<compile_context>
chip_gen: v7x
topology: tpu7x:2x2x1
jax: 0.10.0
libtpu: 0.0.40
codegen_flags: <defaults>
</compile_context>

<pallas_src>
import jax
import jax.numpy as jnp
from jax.experimental import pallas as pl
from jax.experimental.pallas import tpu as pltpu

# ----------------------------- config (small shapes) -----------------------------
B = 2          # batch size
N_CLICK = 8    # clicked news per user
N_CAND = 4     # candidate news per user
T = 16         # words per title
E = 32         # word embedding dim
D = 32         # news vector dim (num_filters)
H = 4          # attention heads
DH = D // H    # per-head dim
DA = 32        # additive-attention query dim (== D so biases can be packed together)
VOCAB = 100

assert D == DA
BM = 8                                   # news items per grid step (sublane-aligned)
M_TOTAL = B * (N_CLICK + N_CAND)         # 24 flattened news items
assert M_TOTAL % BM == 0


def _full_spec(shape):
    """BlockSpec covering the whole array at every (1-D) grid step (shared parameters)."""
    n = len(shape)
    return pl.BlockSpec(shape, lambda i, n=n: (0,) * n)


# ----------------------------- news encoder kernel -----------------------------
def news_encoder_kernel(x_ref, wqkv_ref, wt_ref, nb_ref, out_ref):
    # x_ref block: (BM, T, E) bf16 -> BM news titles at once
    bm = x_ref.shape[0]
    x2 = x_ref[...].reshape(bm * T, E)                                           # (BM*T, E) bf16
    # single fused Q/K/V projection on the MXU
    qkv = jnp.dot(x2, wqkv_ref[...], preferred_element_type=jnp.float32)         # (BM*T, 3D) f32
    qkv = qkv.reshape(bm, T, 3 * D)
    q = qkv[..., 0 * D:1 * D]
    k = qkv[..., 1 * D:2 * D]
    v = qkv[..., 2 * D:3 * D]

    scale = 1.0 / (DH ** 0.5)
    heads = []
    for h in range(H):                                                           # static unroll
        qh = q[..., h * DH:(h + 1) * DH].astype(jnp.bfloat16)
        kh = k[..., h * DH:(h + 1) * DH].astype(jnp.bfloat16)
        vh = v[..., h * DH:(h + 1) * DH].astype(jnp.bfloat16)
        logits = jnp.einsum("btd,bsd->bts", qh, kh,
                            preferred_element_type=jnp.float32) * scale          # (BM, T, T) f32
        attn = jax.nn.softmax(logits, axis=-1)                                   # f32 softmax
        heads.append(jnp.einsum("bts,bsd->btd", attn.astype(jnp.bfloat16), vh,
                                preferred_element_type=jnp.float32))             # (BM, T, DH)
    ctx = jnp.concatenate(heads, axis=-1)                                        # (BM, T, D) f32

    # additive attention pooling over words (bias pack: row 0 = bt, row 1 = vt)
    bt = nb_ref[0:1, :]                                                          # (1, DA) f32
    vt = nb_ref[1:2, :]                                                          # (1, DA) f32
    e = jnp.tanh(jnp.einsum("btd,da->bta", ctx.astype(jnp.bfloat16), wt_ref[...],
                            preferred_element_type=jnp.float32) + bt)            # (BM, T, DA)
    s = jnp.sum(e * vt, axis=-1)                                                 # (BM, T)
    alpha = jax.nn.softmax(s, axis=-1)                                           # over words
    out_ref[...] = jnp.sum(alpha[..., None] * ctx, axis=1)                       # (BM, D) f32


def encode_news(x_emb_bf16, p):
    """x_emb_bf16: (M, T, E) bf16 word embeddings of M flattened news items -> (M, D) f32."""
    M = x_emb_bf16.shape[0]
    return pl.pallas_call(
        news_encoder_kernel,
        out_shape=jax.ShapeDtypeStruct((M, D), jnp.float32),
        grid=(M // BM,),
        in_specs=[
            pl.BlockSpec((BM, T, E), lambda i: (i, 0, 0)),
            _full_spec((E, 3 * D)),
            _full_spec((D, DA)),
            _full_spec((2, DA)),
        ],
        out_specs=pl.BlockSpec((BM, D), lambda i: (i, 0)),
        compiler_params=pltpu.CompilerParams(dimension_semantics=("parallel",)),
    )(x_emb_bf16, p["Wqkv"], p["Wt"], p["news_bias"])


# ----------------------------- user encoder kernel -----------------------------
def user_encoder_kernel(cl_ref, cd_ref, uqk_ref, uv_ref, wc_ref, wr_ref, wa_ref,
                        ub_ref, out_ref):
    Bb, N, Dd = cl_ref.shape                                                     # (B, N, D)
    C = cd_ref.shape[1]
    BB = Bb * C

    cl = cl_ref[...]                                                             # (B, N, D) f32
    cd = cd_ref[...]                                                             # (B, C, D) f32

    # ---- candidate-independent work, hoisted out of the per-candidate path ----
    v = jnp.einsum("bnd,de->bne", cl.astype(jnp.bfloat16), uv_ref[...],
                   preferred_element_type=jnp.float32)                           # (B, N, D)
    zeros = jnp.zeros((Bb, 1, Dd), cl.dtype)
    cl_prev = jnp.concatenate([zeros, cl[:, :-1, :]], axis=1)
    cl_next = jnp.concatenate([cl[:, 1:, :], zeros], axis=1)
    cl_win = jnp.concatenate([cl_prev, cl, cl_next], axis=-1)                    # (B, N, 3D)

    def rep_cands(a):  # (B, N, F) -> (B*C, N, F), replicated over candidates
        return jnp.broadcast_to(a[:, None], (Bb, C, a.shape[1], a.shape[2])
                                ).reshape(BB, a.shape[1], a.shape[2])

    cl_bc = rep_cands(cl)                                                        # (BB, N, D)
    v_bc = rep_cands(v)                                                          # (BB, N, D)
    win_bc = rep_cands(cl_win)                                                   # (BB, N, 3D)
    cd_rep = jnp.broadcast_to(cd[:, :, None, :], (Bb, C, N, Dd)).reshape(BB, N, Dd)

    # ---- candidate-aware multi-head self-attention (all candidates at once) ----
    x2 = jnp.concatenate([cl_bc, cd_rep], axis=-1).astype(jnp.bfloat16)          # (BB, N, 2D)
    qk = jnp.einsum("bnf,fd->bnd", x2, uqk_ref[...],
                    preferred_element_type=jnp.float32)                          # (BB, N, 2D)
    q = qk[..., :Dd]
    k = qk[..., Dd:]
    scale = 1.0 / (DH ** 0.5)
    heads = []
    for h in range(H):                                                           # static unroll
        qh = q[..., h * DH:(h + 1) * DH].astype(jnp.bfloat16)
        kh = k[..., h * DH:(h + 1) * DH].astype(jnp.bfloat16)
        vh = v_bc[..., h * DH:(h + 1) * DH].astype(jnp.bfloat16)
        logits = jnp.einsum("bnd,bmd->bnm", qh, kh,
                            preferred_element_type=jnp.float32) * scale          # (BB, N, N)
        attn = jax.nn.softmax(logits, axis=-1)
        heads.append(jnp.einsum("bnm,bmd->bnd", attn.astype(jnp.bfloat16), vh,
                                preferred_element_type=jnp.float32))
    l = jnp.concatenate(heads, axis=-1)                                          # (BB, N, D) f32

    # bias pack rows: 0=bc, 1=br, 2=ba, 3=va
    bc_b = ub_ref[0:1, :]
    br_b = ub_ref[1:2, :]
    ba_b = ub_ref[2:3, :]
    va_b = ub_ref[3:4, :]

    # ---- candidate-aware CNN (width-3 window over clicked history + candidate) ----
    m_in = jnp.concatenate([win_bc, cd_rep], axis=-1).astype(jnp.bfloat16)       # (BB, N, 4D)
    m = jnp.tanh(jnp.einsum("bnf,fd->bnd", m_in, wc_ref[...],
                            preferred_element_type=jnp.float32) + bc_b)          # (BB, N, D)

    # ---- fuse the two candidate-aware views ----
    r = jnp.einsum("bnf,fd->bnd",
                   jnp.concatenate([m, l], axis=-1).astype(jnp.bfloat16),
                   wr_ref[...], preferred_element_type=jnp.float32) + br_b       # (BB, N, D)

    # ---- candidate-aware attention pooling ----
    att_in = jnp.concatenate([r, cd_rep], axis=-1).astype(jnp.bfloat16)          # (BB, N, 2D)
    eh = jnp.tanh(jnp.einsum("bnf,fa->bna", att_in, wa_ref[...],
                             preferred_element_type=jnp.float32) + ba_b)         # (BB, N, DA)
    escore = jnp.sum(eh * va_b, axis=-1)                                         # (BB, N)
    alpha = jax.nn.softmax(escore, axis=-1)
    u = jnp.sum(alpha[..., None] * r, axis=1)                                    # (BB, D)

    # dot-product click score for every (batch, candidate) -- single lane-dense store
    out_ref[...] = jnp.sum(u.reshape(Bb, C, Dd) * cd, axis=-1)                   # (B, C)


def user_scores(clicked_vec, cand_vec, p):
    """clicked_vec: (B, N_CLICK, D), cand_vec: (B, N_CAND, D) -> scores (B, N_CAND)."""
    return pl.pallas_call(
        user_encoder_kernel,
        out_shape=jax.ShapeDtypeStruct((B, N_CAND), jnp.float32),
        grid=(1,),
        in_specs=[
            _full_spec((B, N_CLICK, D)),
            _full_spec((B, N_CAND, D)),
            _full_spec((2 * D, 2 * D)),
            _full_spec((D, D)),
            _full_spec((4 * D, D)),
            _full_spec((2 * D, D)),
            _full_spec((2 * D, DA)),
            _full_spec((4, D)),
        ],
        out_specs=pl.BlockSpec((B, N_CAND), lambda i: (0, 0)),
        compiler_params=pltpu.CompilerParams(dimension_semantics=("arbitrary",)),
    )(clicked_vec, cand_vec,
      p["Uqk"], p["Uv"], p["Wc"], p["Wr"], p["Wa"], p["user_bias"])


# ----------------------------- full CAUM forward -----------------------------
def caum_forward(params, candidate_ids, clicked_ids):
    """candidate_ids: (B, N_CAND, T) int32, clicked_ids: (B, N_CLICK, T) int32 -> (B, N_CAND)."""
    emb = params["emb"]
    # embedding lookup (glue, plain JAX); clicked + candidate titles encoded by ONE kernel call
    all_ids = jnp.concatenate([clicked_ids.reshape(-1, T),
                               candidate_ids.reshape(-1, T)], axis=0)            # (M, T)
    all_emb = jnp.take(emb, all_ids, axis=0).astype(jnp.bfloat16)                # (M, T, E) bf16
    news_vec = encode_news(all_emb, params)                                      # (M, D) f32
    n_click = B * N_CLICK
    clicked_vec = news_vec[:n_click].reshape(B, N_CLICK, D)
    cand_vec = news_vec[n_click:].reshape(B, N_CAND, D)
    # candidate-aware user encoder + dot-product score (single fused kernel)
    return user_scores(clicked_vec, cand_vec, params)


# ----------------------------- deterministic parameters -----------------------------
def init_params(key):
    ks = jax.random.split(key, 10)
    g = lambda k, shape, s=0.1: jax.random.normal(k, shape, jnp.float32) * s
    bt = jnp.zeros((DA,), jnp.float32)
    vt = g(ks[3], (DA,))
    bc = jnp.zeros((D,), jnp.float32)
    br = jnp.zeros((D,), jnp.float32)
    ba = jnp.zeros((DA,), jnp.float32)
    va = g(ks[8], (DA,))
    return dict(
        emb=g(ks[0], (VOCAB, E), 0.3),
        # news encoder (MXU weights stored in bf16)
        Wqkv=g(ks[1], (E, 3 * D)).astype(jnp.bfloat16),
        Wt=g(ks[2], (D, DA)).astype(jnp.bfloat16),
        news_bias=jnp.stack([bt, vt], axis=0),                 # (2, DA) f32: [bt, vt]
        # user encoder
        Uqk=g(ks[4], (2 * D, 2 * D)).astype(jnp.bfloat16),
        Uv=g(ks[5], (D, D)).astype(jnp.bfloat16),
        Wc=g(ks[6], (4 * D, D)).astype(jnp.bfloat16),
        Wr=g(ks[7], (2 * D, D)).astype(jnp.bfloat16),
        Wa=g(ks[9], (2 * D, DA)).astype(jnp.bfloat16),
        user_bias=jnp.stack([bc, br, ba, va], axis=0),         # (4, D) f32: [bc, br, ba, va]
    )


if __name__ == "__main__":
    key = jax.random.PRNGKey(0)
    k_cand, k_click, k_param = jax.random.split(key, 3)
    candidate_ids = jax.random.randint(k_cand, (B, N_CAND, T), 0, VOCAB, dtype=jnp.int32)
    clicked_ids = jax.random.randint(k_click, (B, N_CLICK, T), 0, VOCAB, dtype=jnp.int32)
    params = init_params(k_param)

    scores = jax.jit(caum_forward)(params, candidate_ids, clicked_ids)
    scores = jax.block_until_ready(scores)
    assert scores.shape == (B, N_CAND), scores.shape
    assert bool(jnp.all(jnp.isfinite(scores)))
    print("KERNEL_OK")
</pallas_src>

<mosaic_0001>
module attributes {stable_mosaic.version = 11 : i64} {
  func.func @news_encoder_kernel(%arg0: i32, %arg1: memref<8x16x32xbf16, #tpu.memory_space<vmem>>, %arg2: memref<32x96xbf16, #tpu.memory_space<vmem>>, %arg3: memref<32x32xbf16, #tpu.memory_space<vmem>>, %arg4: memref<2x32xf32, #tpu.memory_space<vmem>>, %arg5: memref<8x32xf32, #tpu.memory_space<vmem>>) attributes {dimension_semantics = [#tpu.dimension_semantics<parallel>], iteration_bounds = array<i64: 3>, scalar_prefetch = 0 : i64, scratch_operands = 0 : i64, tpu.core_type = #tpu.core_type<tc>, window_params = [{transform_indices = @transform_0, window_bounds = array<i64: 8, 16, 32>}, {pipeline_mode = #tpu.pipeline_mode<synchronous>, transform_indices = @transform_1, window_bounds = array<i64: 32, 96>}, {pipeline_mode = #tpu.pipeline_mode<synchronous>, transform_indices = @transform_2, window_bounds = array<i64: 32, 32>}, {pipeline_mode = #tpu.pipeline_mode<synchronous>, transform_indices = @transform_3, window_bounds = array<i64: 2, 32>}, {transform_indices = @transform_4, window_bounds = array<i64: 8, 32>}]} {
    %c0 = arith.constant 0 : index
    %c0_0 = arith.constant 0 : index
    %c0_1 = arith.constant 0 : index
    %0 = vector.load %arg1[%c0, %c0_0, %c0_1] : memref<8x16x32xbf16, #tpu.memory_space<vmem>>, vector<8x16x32xbf16>
    %1 = vector.shape_cast %0 : vector<8x16x32xbf16> to vector<128x32xbf16>
    %c0_2 = arith.constant 0 : index
    %c0_3 = arith.constant 0 : index
    %2 = vector.load %arg2[%c0_2, %c0_3] : memref<32x96xbf16, #tpu.memory_space<vmem>>, vector<32x96xbf16>
    %cst = arith.constant dense<0.000000e+00> : vector<128x96xf32>
    %3 = tpu.matmul %1, %2, %cst {dimension_numbers = #tpu.dot_dimension_numbers<[1], [0], [0], [1], [0, 0, 1, 1], [], []>} : vector<128x32xbf16>, vector<32x96xbf16>, vector<128x96xf32> -> vector<128x96xf32>
    %4 = vector.shape_cast %3 : vector<128x96xf32> to vector<8x16x96xf32>
    %5 = vector.extract_strided_slice %4 {offsets = [0, 0, 0], sizes = [8, 16, 32], strides = [1, 1, 1]} : vector<8x16x96xf32> to vector<8x16x32xf32>
    %6 = vector.extract_strided_slice %4 {offsets = [0, 0, 32], sizes = [8, 16, 32], strides = [1, 1, 1]} : vector<8x16x96xf32> to vector<8x16x32xf32>
    %7 = vector.extract_strided_slice %4 {offsets = [0, 0, 64], sizes = [8, 16, 32], strides = [1, 1, 1]} : vector<8x16x96xf32> to vector<8x16x32xf32>
    %8 = vector.extract_strided_slice %5 {offsets = [0, 0, 0], sizes = [8, 16, 8], strides = [1, 1, 1]} : vector<8x16x32xf32> to vector<8x16x8xf32>
    %9 = arith.truncf %8 : vector<8x16x8xf32> to vector<8x16x8xbf16>
    %10 = vector.extract_strided_slice %6 {offsets = [0, 0, 0], sizes = [8, 16, 8], strides = [1, 1, 1]} : vector<8x16x32xf32> to vector<8x16x8xf32>
    %11 = arith.truncf %10 : vector<8x16x8xf32> to vector<8x16x8xbf16>
    %12 = vector.extract_strided_slice %7 {offsets = [0, 0, 0], sizes = [8, 16, 8], strides = [1, 1, 1]} : vector<8x16x32xf32> to vector<8x16x8xf32>
    %13 = arith.truncf %12 : vector<8x16x8xf32> to vector<8x16x8xbf16>
    "tpu.trace_start"() <{level = 10 : i32, message = "btd,bsd->bts"}> : () -> ()
    %cst_4 = arith.constant dense<0.000000e+00> : vector<8x16x16xf32>
    %14 = tpu.matmul %9, %11, %cst_4 {dimension_numbers = #tpu.dot_dimension_numbers<[2], [2], [1], [1], [0, 0, 0, 1, 1, 1], [0], [0]>} : vector<8x16x8xbf16>, vector<8x16x8xbf16>, vector<8x16x16xf32> -> vector<8x16x16xf32>
    "tpu.trace_stop"() : () -> ()
    %cst_5 = arith.constant 0.353553385 : f32
    %15 = vector.broadcast %cst_5 : f32 to vector<8x16x16xf32>
    %16 = arith.mulf %14, %15 : vector<8x16x16xf32>
    %cst_6 = arith.constant dense<0xFF800000> : vector<8x16xf32>
    %17 = vector.multi_reduction <maximumf>, %16, %cst_6 [2] : vector<8x16x16xf32> to vector<8x16xf32>
    %cst_7 = arith.constant 0xFF800000 : f32
    %18 = vector.broadcast %cst_7 : f32 to vector<8x16xf32>
    %19 = arith.maximumf %18, %17 : vector<8x16xf32>
    %20 = vector.shape_cast %19 : vector<8x16xf32> to vector<8x16x1xf32>
    %21 = vector.broadcast %20 : vector<8x16x1xf32> to vector<8x16x16xf32>
    %22 = arith.subf %16, %21 : vector<8x16x16xf32>
    %23 = math.exp %22 : vector<8x16x16xf32>
    %cst_8 = arith.constant dense<0.000000e+00> : vector<8x16xf32>
    %24 = vector.multi_reduction <add>, %23, %cst_8 [2] : vector<8x16x16xf32> to vector<8x16xf32>
    %25 = vector.shape_cast %24 : vector<8x16xf32> to vector<8x16x1xf32>
    %26 = vector.broadcast %25 : vector<8x16x1xf32> to vector<8x16x16xf32>
    %27 = arith.divf %23, %26 : vector<8x16x16xf32>
    %28 = arith.truncf %27 : vector<8x16x16xf32> to vector<8x16x16xbf16>
    "tpu.trace_start"() <{level = 10 : i32, message = "bts,bsd->btd"}> : () -> ()
    %cst_9 = arith.constant dense<0.000000e+00> : vector<8x16x8xf32>
    %29 = tpu.matmul %28, %13, %cst_9 {dimension_numbers = #tpu.dot_dimension_numbers<[2], [1], [1], [2], [0, 0, 0, 1, 1, 2], [0], [0]>} : vector<8x16x16xbf16>, vector<8x16x8xbf16>, vector<8x16x8xf32> -> vector<8x16x8xf32>
    "tpu.trace_stop"() : () -> ()
    %30 = vector.extract_strided_slice %5 {offsets = [0, 0, 8], sizes = [8, 16, 8], strides = [1, 1, 1]} : vector<8x16x32xf32> to vector<8x16x8xf32>
    %31 = arith.truncf %30 : vector<8x16x8xf32> to vector<8x16x8xbf16>
    %32 = vector.extract_strided_slice %6 {offsets = [0, 0, 8], sizes = [8, 16, 8], strides = [1, 1, 1]} : vector<8x16x32xf32> to vector<8x16x8xf32>
    %33 = arith.truncf %32 : vector<8x16x8xf32> to vector<8x16x8xbf16>
    %34 = vector.extract_strided_slice %7 {offsets = [0, 0, 8], sizes = [8, 16, 8], strides = [1, 1, 1]} : vector<8x16x32xf32> to vector<8x16x8xf32>
    %35 = arith.truncf %34 : vector<8x16x8xf32> to vector<8x16x8xbf16>
    "tpu.trace_start"() <{level = 10 : i32, message = "btd,bsd->bts"}> : () -> ()
    %cst_10 = arith.constant dense<0.000000e+00> : vector<8x16x16xf32>
    %36 = tpu.matmul %31, %33, %cst_10 {dimension_numbers = #tpu.dot_dimension_numbers<[2], [2], [1], [1], [0, 0, 0, 1, 1, 1], [0], [0]>} : vector<8x16x8xbf16>, vector<8x16x8xbf16>, vector<8x16x16xf32> -> vector<8x16x16xf32>
    "tpu.trace_stop"() : () -> ()
    %cst_11 = arith.constant 0.353553385 : f32
    %37 = vector.broadcast %cst_11 : f32 to vector<8x16x16xf32>
    %38 = arith.mulf %36, %37 : vector<8x16x16xf32>
    %cst_12 = arith.constant dense<0xFF800000> : vector<8x16xf32>
    %39 = vector.multi_reduction <maximumf>, %38, %cst_12 [2] : vector<8x16x16xf32> to vector<8x16xf32>
    %cst_13 = arith.constant 0xFF800000 : f32
    %40 = vector.broadcast %cst_13 : f32 to vector<8x16xf32>
    %41 = arith.maximumf %40, %39 : vector<8x16xf32>
    %42 = vector.shape_cast %41 : vector<8x16xf32> to vector<8x16x1xf32>
    %43 = vector.broadcast %42 : vector<8x16x1xf32> to vector<8x16x16xf32>
    %44 = arith.subf %38, %43 : vector<8x16x16xf32>
    %45 = math.exp %44 : vector<8x16x16xf32>
    %cst_14 = arith.constant dense<0.000000e+00> : vector<8x16xf32>
    %46 = vector.multi_reduction <add>, %45, %cst_14 [2] : vector<8x16x16xf32> to vector<8x16xf32>
    %47 = vector.shape_cast %46 : vector<8x16xf32> to vector<8x16x1xf32>
    %48 = vector.broadcast %47 : vector<8x16x1xf32> to vector<8x16x16xf32>
    %49 = arith.divf %45, %48 : vector<8x16x16xf32>
    %50 = arith.truncf %49 : vector<8x16x16xf32> to vector<8x16x16xbf16>
    "tpu.trace_start"() <{level = 10 : i32, message = "bts,bsd->btd"}> : () -> ()
    %cst_15 = arith.constant dense<0.000000e+00> : vector<8x16x8xf32>
    %51 = tpu.matmul %50, %35, %cst_15 {dimension_numbers = #tpu.dot_dimension_numbers<[2], [1], [1], [2], [0, 0, 0, 1, 1, 2], [0], [0]>} : vector<8x16x16xbf16>, vector<8x16x8xbf16>, vector<8x16x8xf32> -> vector<8x16x8xf32>
    "tpu.trace_stop"() : () -> ()
    %52 = vector.extract_strided_slice %5 {offsets = [0, 0, 16], sizes = [8, 16, 8], strides = [1, 1, 1]} : vector<8x16x32xf32> to vector<8x16x8xf32>
    %53 = arith.truncf %52 : vector<8x16x8xf32> to vector<8x16x8xbf16>
    %54 = vector.extract_strided_slice %6 {offsets = [0, 0, 16], sizes = [8, 16, 8], strides = [1, 1, 1]} : vector<8x16x32xf32> to vector<8x16x8xf32>
    %55 = arith.truncf %54 : vector<8x16x8xf32> to vector<8x16x8xbf16>
    %56 = vector.extract_strided_slice %7 {offsets = [0, 0, 16], sizes = [8, 16, 8], strides = [1, 1, 1]} : vector<8x16x32xf32> to vector<8x16x8xf32>
    %57 = arith.truncf %56 : vector<8x16x8xf32> to vector<8x16x8xbf16>
    "tpu.trace_start"() <{level = 10 : i32, message = "btd,bsd->bts"}> : () -> ()
    %cst_16 = arith.constant dense<0.000000e+00> : vector<8x16x16xf32>
    %58 = tpu.matmul %53, %55, %cst_16 {dimension_numbers = #tpu.dot_dimension_numbers<[2], [2], [1], [1], [0, 0, 0, 1, 1, 1], [0], [0]>} : vector<8x16x8xbf16>, vector<8x16x8xbf16>, vector<8x16x16xf32> -> vector<8x16x16xf32>
    "tpu.trace_stop"() : () -> ()
    %cst_17 = arith.constant 0.353553385 : f32
    %59 = vector.broadcast %cst_17 : f32 to vector<8x16x16xf32>
    %60 = arith.mulf %58, %59 : vector<8x16x16xf32>
    %cst_18 = arith.constant dense<0xFF800000> : vector<8x16xf32>
    %61 = vector.multi_reduction <maximumf>, %60, %cst_18 [2] : vector<8x16x16xf32> to vector<8x16xf32>
    %cst_19 = arith.constant 0xFF800000 : f32
    %62 = vector.broadcast %cst_19 : f32 to vector<8x16xf32>
    %63 = arith.maximumf %62, %61 : vector<8x16xf32>
    %64 = vector.shape_cast %63 : vector<8x16xf32> to vector<8x16x1xf32>
    %65 = vector.broadcast %64 : vector<8x16x1xf32> to vector<8x16x16xf32>
    %66 = arith.subf %60, %65 : vector<8x16x16xf32>
    %67 = math.exp %66 : vector<8x16x16xf32>
    %cst_20 = arith.constant dense<0.000000e+00> : vector<8x16xf32>
    %68 = vector.multi_reduction <add>, %67, %cst_20 [2] : vector<8x16x16xf32> to vector<8x16xf32>
    %69 = vector.shape_cast %68 : vector<8x16xf32> to vector<8x16x1xf32>
    %70 = vector.broadcast %69 : vector<8x16x1xf32> to vector<8x16x16xf32>
    %71 = arith.divf %67, %70 : vector<8x16x16xf32>
    %72 = arith.truncf %71 : vector<8x16x16xf32> to vector<8x16x16xbf16>
    "tpu.trace_start"() <{level = 10 : i32, message = "bts,bsd->btd"}> : () -> ()
    %cst_21 = arith.constant dense<0.000000e+00> : vector<8x16x8xf32>
    %73 = tpu.matmul %72, %57, %cst_21 {dimension_numbers = #tpu.dot_dimension_numbers<[2], [1], [1], [2], [0, 0, 0, 1, 1, 2], [0], [0]>} : vector<8x16x16xbf16>, vector<8x16x8xbf16>, vector<8x16x8xf32> -> vector<8x16x8xf32>
    "tpu.trace_stop"() : () -> ()
    %74 = vector.extract_strided_slice %5 {offsets = [0, 0, 24], sizes = [8, 16, 8], strides = [1, 1, 1]} : vector<8x16x32xf32> to vector<8x16x8xf32>
    %75 = arith.truncf %74 : vector<8x16x8xf32> to vector<8x16x8xbf16>
    %76 = vector.extract_strided_slice %6 {offsets = [0, 0, 24], sizes = [8, 16, 8], strides = [1, 1, 1]} : vector<8x16x32xf32> to vector<8x16x8xf32>
    %77 = arith.truncf %76 : vector<8x16x8xf32> to vector<8x16x8xbf16>
    %78 = vector.extract_strided_slice %7 {offsets = [0, 0, 24], sizes = [8, 16, 8], strides = [1, 1, 1]} : vector<8x16x32xf32> to vector<8x16x8xf32>
    %79 = arith.truncf %78 : vector<8x16x8xf32> to vector<8x16x8xbf16>
    "tpu.trace_start"() <{level = 10 : i32, message = "btd,bsd->bts"}> : () -> ()
    %cst_22 = arith.constant dense<0.000000e+00> : vector<8x16x16xf32>
    %80 = tpu.matmul %75, %77, %cst_22 {dimension_numbers = #tpu.dot_dimension_numbers<[2], [2], [1], [1], [0, 0, 0, 1, 1, 1], [0], [0]>} : vector<8x16x8xbf16>, vector<8x16x8xbf16>, vector<8x16x16xf32> -> vector<8x16x16xf32>
    "tpu.trace_stop"() : () -> ()
    %cst_23 = arith.constant 0.353553385 : f32
    %81 = vector.broadcast %cst_23 : f32 to vector<8x16x16xf32>
    %82 = arith.mulf %80, %81 : vector<8x16x16xf32>
    %cst_24 = arith.constant dense<0xFF800000> : vector<8x16xf32>
    %83 = vector.multi_reduction <maximumf>, %82, %cst_24 [2] : vector<8x16x16xf32> to vector<8x16xf32>
    %cst_25 = arith.constant 0xFF800000 : f32
    %84 = vector.broadcast %cst_25 : f32 to vector<8x16xf32>
    %85 = arith.maximumf %84, %83 : vector<8x16xf32>
    %86 = vector.shape_cast %85 : vector<8x16xf32> to vector<8x16x1xf32>
    %87 = vector.broadcast %86 : vector<8x16x1xf32> to vector<8x16x16xf32>
    %88 = arith.subf %82, %87 : vector<8x16x16xf32>
    %89 = math.exp %88 : vector<8x16x16xf32>
    %cst_26 = arith.constant dense<0.000000e+00> : vector<8x16xf32>
    %90 = vector.multi_reduction <add>, %89, %cst_26 [2] : vector<8x16x16xf32> to vector<8x16xf32>
    %91 = vector.shape_cast %90 : vector<8x16xf32> to vector<8x16x1xf32>
    %92 = vector.broadcast %91 : vector<8x16x1xf32> to vector<8x16x16xf32>
    %93 = arith.divf %89, %92 : vector<8x16x16xf32>
    %94 = arith.truncf %93 : vector<8x16x16xf32> to vector<8x16x16xbf16>
    "tpu.trace_start"() <{level = 10 : i32, message = "bts,bsd->btd"}> : () -> ()
    %cst_27 = arith.constant dense<0.000000e+00> : vector<8x16x8xf32>
    %95 = tpu.matmul %94, %79, %cst_27 {dimension_numbers = #tpu.dot_dimension_numbers<[2], [1], [1], [2], [0, 0, 0, 1, 1, 2], [0], [0]>} : vector<8x16x16xbf16>, vector<8x16x8xbf16>, vector<8x16x8xf32> -> vector<8x16x8xf32>
    "tpu.trace_stop"() : () -> ()
    %96 = tpu.concatenate %29, %51, %73, %95 in 2 : vector<8x16x8xf32>, vector<8x16x8xf32>, vector<8x16x8xf32>, vector<8x16x8xf32> -> vector<8x16x32xf32>
    %c0_28 = arith.constant 0 : index
    %c0_29 = arith.constant 0 : index
    %97 = vector.load %arg4[%c0_28, %c0_29] : memref<2x32xf32, #tpu.memory_space<vmem>>, vector<1x32xf32>
    %c1 = arith.constant 1 : index
    %c0_30 = arith.constant 0 : index
    %98 = vector.load %arg4[%c1, %c0_30] : memref<2x32xf32, #tpu.memory_space<vmem>>, vector<1x32xf32>
    %99 = arith.truncf %96 : vector<8x16x32xf32> to vector<8x16x32xbf16>
    %c0_31 = arith.constant 0 : index
    %c0_32 = arith.constant 0 : index
    %100 = vector.load %arg3[%c0_31, %c0_32] : memref<32x32xbf16, #tpu.memory_space<vmem>>, vector<32x32xbf16>
    "tpu.trace_start"() <{level = 10 : i32, message = "btd,da->bta"}> : () -> ()
    %cst_33 = arith.constant dense<0.000000e+00> : vector<8x16x32xf32>
    %101 = tpu.matmul %99, %100, %cst_33 {dimension_numbers = #tpu.dot_dimension_numbers<[2], [0], [0, 1], [1], [0, 0, 0, 1, 1, 1], [], []>} : vector<8x16x32xbf16>, vector<32x32xbf16>, vector<8x16x32xf32> -> vector<8x16x32xf32>
    "tpu.trace_stop"() : () -> ()
    %102 = vector.shape_cast %97 : vector<1x32xf32> to vector<1x1x32xf32>
    %103 = vector.broadcast %102 : vector<1x1x32xf32> to vector<8x16x32xf32>
    %104 = arith.addf %101, %103 : vector<8x16x32xf32>
    %105 = math.tanh %104 : vector<8x16x32xf32>
    %106 = vector.shape_cast %98 : vector<1x32xf32> to vector<1x1x32xf32>
    %107 = vector.broadcast %106 : vector<1x1x32xf32> to vector<8x16x32xf32>
    %108 = arith.mulf %105, %107 : vector<8x16x32xf32>
    %cst_34 = arith.constant dense<0.000000e+00> : vector<8x16xf32>
    %109 = vector.multi_reduction <add>, %108, %cst_34 [2] : vector<8x16x32xf32> to vector<8x16xf32>
    %cst_35 = arith.constant dense<0xFF800000> : vector<8xf32>
    %110 = vector.multi_reduction <maximumf>, %109, %cst_35 [1] : vector<8x16xf32> to vector<8xf32>
    %cst_36 = arith.constant 0xFF800000 : f32
    %111 = vector.broadcast %cst_36 : f32 to vector<8xf32>
    %112 = arith.maximumf %111, %110 : vector<8xf32>
    %113 = vector.shape_cast %112 : vector<8xf32> to vector<8x1xf32>
    %114 = vector.broadcast %113 : vector<8x1xf32> to vector<8x16xf32>
    %115 = arith.subf %109, %114 : vector<8x16xf32>
    %116 = math.exp %115 : vector<8x16xf32>
    %cst_37 = arith.constant dense<0.000000e+00> : vector<8xf32>
    %117 = vector.multi_reduction <add>, %116, %cst_37 [1] : vector<8x16xf32> to vector<8xf32>
    %118 = vector.shape_cast %117 : vector<8xf32> to vector<8x1xf32>
    %119 = vector.broadcast %118 : vector<8x1xf32> to vector<8x16xf32>
    %120 = arith.divf %116, %119 : vector<8x16xf32>
    %121 = vector.shape_cast %120 : vector<8x16xf32> to vector<8x16x1xf32>
    %122 = vector.broadcast %121 : vector<8x16x1xf32> to vector<8x16x32xf32>
    %123 = arith.mulf %122, %96 : vector<8x16x32xf32>
    %cst_38 = arith.constant dense<0.000000e+00> : vector<8x32xf32>
    %124 = vector.multi_reduction <add>, %123, %cst_38 [1] : vector<8x16x32xf32> to vector<8x32xf32>
    %c0_39 = arith.constant 0 : index
    %c0_40 = arith.constant 0 : index
    %125 = vector.load %arg5[%c0_39, %c0_40] : memref<8x32xf32, #tpu.memory_space<vmem>>, vector<8x32xf32>
    tpu.vector_store %arg5[%c0_39, %c0_40], %124 {strides = array<i32>} : memref<8x32xf32, #tpu.memory_space<vmem>>, vector<8x32xf32>,
    return
  }
  func.func @transform_0(%arg0: i32) -> (i32, i32, i32) {
    %c0_i32 = arith.constant 0 : i32
    %c0_i32_0 = arith.constant 0 : i32
    %c0_i32_1 = arith.constant 0 : i32
    return %arg0, %c0_i32, %c0_i32_0 : i32, i32, i32
  }
  func.func @transform_1(%arg0: i32) -> (i32, i32) {
    %c0_i32 = arith.constant 0 : i32
    %c0_i32_0 = arith.constant 0 : i32
    %c0_i32_1 = arith.constant 0 : i32
    return %c0_i32, %c0_i32_0 : i32, i32
  }
  func.func @transform_2(%arg0: i32) -> (i32, i32) {
    %c0_i32 = arith.constant 0 : i32
    %c0_i32_0 = arith.constant 0 : i32
    %c0_i32_1 = arith.constant 0 : i32
    return %c0_i32, %c0_i32_0 : i32, i32
  }
  func.func @transform_3(%arg0: i32) -> (i32, i32) {
    %c0_i32 = arith.constant 0 : i32
    %c0_i32_0 = arith.constant 0 : i32
    %c0_i32_1 = arith.constant 0 : i32
    return %c0_i32, %c0_i32_0 : i32, i32
  }
  func.func @transform_4(%arg0: i32) -> (i32, i32) {
    %c0_i32 = arith.constant 0 : i32
    %c0_i32_0 = arith.constant 0 : i32
    return %arg0, %c0_i32 : i32, i32
  }
}

module attributes {stable_mosaic.version = 11 : i64} {
  func.func @user_encoder_kernel(%arg0: i32, %arg1: memref<2x8x32xf32, #tpu.memory_space<vmem>>, %arg2: memref<2x4x32xf32, #tpu.memory_space<vmem>>, %arg3: memref<64x64xbf16, #tpu.memory_space<vmem>>, %arg4: memref<32x32xbf16, #tpu.memory_space<vmem>>, %arg5: memref<128x32xbf16, #tpu.memory_space<vmem>>, %arg6: memref<64x32xbf16, #tpu.memory_space<vmem>>, %arg7: memref<64x32xbf16, #tpu.memory_space<vmem>>, %arg8: memref<4x32xf32, #tpu.memory_space<vmem>>, %arg9: memref<2x4xf32, #tpu.memory_space<vmem>>) attributes {dimension_semantics = [#tpu.dimension_semantics<arbitrary>], iteration_bounds = array<i64: 1>, scalar_prefetch = 0 : i64, scratch_operands = 0 : i64, tpu.core_type = #tpu.core_type<tc>, window_params = [{pipeline_mode = #tpu.pipeline_mode<synchronous>, transform_indices = @transform_0, window_bounds = array<i64: 2, 8, 32>}, {pipeline_mode = #tpu.pipeline_mode<synchronous>, transform_indices = @transform_1, window_bounds = array<i64: 2, 4, 32>}, {pipeline_mode = #tpu.pipeline_mode<synchronous>, transform_indices = @transform_2, window_bounds = array<i64: 64, 64>}, {pipeline_mode = #tpu.pipeline_mode<synchronous>, transform_indices = @transform_3, window_bounds = array<i64: 32, 32>}, {pipeline_mode = #tpu.pipeline_mode<synchronous>, transform_indices = @transform_4, window_bounds = array<i64: 128, 32>}, {pipeline_mode = #tpu.pipeline_mode<synchronous>, transform_indices = @transform_5, window_bounds = array<i64: 64, 32>}, {pipeline_mode = #tpu.pipeline_mode<synchronous>, transform_indices = @transform_6, window_bounds = array<i64: 64, 32>}, {pipeline_mode = #tpu.pipeline_mode<synchronous>, transform_indices = @transform_7, window_bounds = array<i64: 4, 32>}, {pipeline_mode = #tpu.pipeline_mode<synchronous>, transform_indices = @transform_8, window_bounds = array<i64: 2, 4>}]} {
    %c0 = arith.constant 0 : index
    %c0_0 = arith.constant 0 : index
    %c0_1 = arith.constant 0 : index
    %0 = vector.load %arg1[%c0, %c0_0, %c0_1] : memref<2x8x32xf32, #tpu.memory_space<vmem>>, vector<2x8x32xf32>
    %c0_2 = arith.constant 0 : index
    %c0_3 = arith.constant 0 : index
    %c0_4 = arith.constant 0 : index
    %1 = vector.load %arg2[%c0_2, %c0_3, %c0_4] : memref<2x4x32xf32, #tpu.memory_space<vmem>>, vector<2x4x32xf32>
    %2 = arith.truncf %0 : vector<2x8x32xf32> to vector<2x8x32xbf16>
    %c0_5 = arith.constant 0 : index
    %c0_6 = arith.constant 0 : index
    %3 = vector.load %arg4[%c0_5, %c0_6] : memref<32x32xbf16, #tpu.memory_space<vmem>>, vector<32x32xbf16>
    "tpu.trace_start"() <{level = 10 : i32, message = "bnd,de->bne"}> : () -> ()
    %cst = arith.constant dense<0.000000e+00> : vector<2x8x32xf32>
    %4 = tpu.matmul %2, %3, %cst {dimension_numbers = #tpu.dot_dimension_numbers<[2], [0], [0, 1], [1], [0, 0, 0, 1, 1, 1], [], []>} : vector<2x8x32xbf16>, vector<32x32xbf16>, vector<2x8x32xf32> -> vector<2x8x32xf32>
    %cst_7 = arith.constant 0.000000e+00 : f32
    "tpu.trace_stop"() : () -> ()
    %5 = vector.broadcast %cst_7 : f32 to vector<2x1x32xf32>
    %6 = vector.extract_strided_slice %0 {offsets = [0, 0, 0], sizes = [2, 7, 32], strides = [1, 1, 1]} : vector<2x8x32xf32> to vector<2x7x32xf32>
    %7 = tpu.concatenate %5, %6 in 1 : vector<2x1x32xf32>, vector<2x7x32xf32> -> vector<2x8x32xf32>
    %8 = vector.extract_strided_slice %0 {offsets = [0, 1, 0], sizes = [2, 7, 32], strides = [1, 1, 1]} : vector<2x8x32xf32> to vector<2x7x32xf32>
    %9 = tpu.concatenate %8, %5 in 1 : vector<2x7x32xf32>, vector<2x1x32xf32> -> vector<2x8x32xf32>
    %10 = tpu.concatenate %7, %0, %9 in 2 : vector<2x8x32xf32>, vector<2x8x32xf32>, vector<2x8x32xf32> -> vector<2x8x96xf32>
    %11 = vector.shape_cast %0 : vector<2x8x32xf32> to vector<2x1x8x32xf32>
    %12 = vector.shape_cast %11 : vector<2x1x8x32xf32> to vector<2x1x8x32xf32>
    %13 = vector.broadcast %12 : vector<2x1x8x32xf32> to vector<2x4x8x32xf32>
    %14 = vector.shape_cast %13 : vector<2x4x8x32xf32> to vector<8x8x32xf32>
    %15 = vector.shape_cast %4 : vector<2x8x32xf32> to vector<2x1x8x32xf32>
    %16 = vector.shape_cast %15 : vector<2x1x8x32xf32> to vector<2x1x8x32xf32>
    %17 = vector.broadcast %16 : vector<2x1x8x32xf32> to vector<2x4x8x32xf32>
    %18 = vector.shape_cast %17 : vector<2x4x8x32xf32> to vector<8x8x32xf32>
    %19 = vector.shape_cast %10 : vector<2x8x96xf32> to vector<2x1x8x96xf32>
    %20 = vector.shape_cast %19 : vector<2x1x8x96xf32> to vector<2x1x8x96xf32>
    %21 = vector.broadcast %20 : vector<2x1x8x96xf32> to vector<2x4x8x96xf32>
    %22 = vector.shape_cast %21 : vector<2x4x8x96xf32> to vector<8x8x96xf32>
    %23 = vector.shape_cast %1 : vector<2x4x32xf32> to vector<2x4x1x32xf32>
    %24 = vector.shape_cast %23 : vector<2x4x1x32xf32> to vector<2x4x1x32xf32>
    %25 = vector.broadcast %24 : vector<2x4x1x32xf32> to vector<2x4x8x32xf32>
    %26 = vector.shape_cast %25 : vector<2x4x8x32xf32> to vector<8x8x32xf32>
    %27 = tpu.concatenate %14, %26 in 2 : vector<8x8x32xf32>, vector<8x8x32xf32> -> vector<8x8x64xf32>
    %28 = arith.truncf %27 : vector<8x8x64xf32> to vector<8x8x64xbf16>
    %c0_8 = arith.constant 0 : index
    %c0_9 = arith.constant 0 : index
    %29 = vector.load %arg3[%c0_8, %c0_9] : memref<64x64xbf16, #tpu.memory_space<vmem>>, vector<64x64xbf16>
    "tpu.trace_start"() <{level = 10 : i32, message = "bnf,fd->bnd"}> : () -> ()
    %cst_10 = arith.constant dense<0.000000e+00> : vector<8x8x64xf32>
    %30 = tpu.matmul %28, %29, %cst_10 {dimension_numbers = #tpu.dot_dimension_numbers<[2], [0], [0, 1], [1], [0, 0, 0, 1, 1, 1], [], []>} : vector<8x8x64xbf16>, vector<64x64xbf16>, vector<8x8x64xf32> -> vector<8x8x64xf32>
    "tpu.trace_stop"() : () -> ()
    %31 = vector.extract_strided_slice %30 {offsets = [0, 0, 0], sizes = [8, 8, 32], strides = [1, 1, 1]} : vector<8x8x64xf32> to vector<8x8x32xf32>
    %32 = vector.extract_strided_slice %30 {offsets = [0, 0, 32], sizes = [8, 8, 32], strides = [1, 1, 1]} : vector<8x8x64xf32> to vector<8x8x32xf32>
    %33 = vector.extract_strided_slice %31 {offsets = [0, 0, 0], sizes = [8, 8, 8], strides = [1, 1, 1]} : vector<8x8x32xf32> to vector<8x8x8xf32>
    %34 = arith.truncf %33 : vector<8x8x8xf32> to vector<8x8x8xbf16>
    %35 = vector.extract_strided_slice %32 {offsets = [0, 0, 0], sizes = [8, 8, 8], strides = [1, 1, 1]} : vector<8x8x32xf32> to vector<8x8x8xf32>
    %36 = arith.truncf %35 : vector<8x8x8xf32> to vector<8x8x8xbf16>
    %37 = vector.extract_strided_slice %18 {offsets = [0, 0, 0], sizes = [8, 8, 8], strides = [1, 1, 1]} : vector<8x8x32xf32> to vector<8x8x8xf32>
    %38 = arith.truncf %37 : vector<8x8x8xf32> to vector<8x8x8xbf16>
    "tpu.trace_start"() <{level = 10 : i32, message = "bnd,bmd->bnm"}> : () -> ()
    %cst_11 = arith.constant dense<0.000000e+00> : vector<8x8x8xf32>
    %39 = tpu.matmul %34, %36, %cst_11 {dimension_numbers = #tpu.dot_dimension_numbers<[2], [2], [1], [1], [0, 0, 0, 1, 1, 1], [0], [0]>} : vector<8x8x8xbf16>, vector<8x8x8xbf16>, vector<8x8x8xf32> -> vector<8x8x8xf32>
    "tpu.trace_stop"() : () -> ()
    %cst_12 = arith.constant 0.353553385 : f32
    %40 = vector.broadcast %cst_12 : f32 to vector<8x8x8xf32>
    %41 = arith.mulf %39, %40 : vector<8x8x8xf32>
    %cst_13 = arith.constant dense<0xFF800000> : vector<8x8xf32>
    %42 = vector.multi_reduction <maximumf>, %41, %cst_13 [2] : vector<8x8x8xf32> to vector<8x8xf32>
    %cst_14 = arith.constant 0xFF800000 : f32
    %43 = vector.broadcast %cst_14 : f32 to vector<8x8xf32>
    %44 = arith.maximumf %43, %42 : vector<8x8xf32>
    %45 = vector.shape_cast %44 : vector<8x8xf32> to vector<8x8x1xf32>
    %46 = vector.broadcast %45 : vector<8x8x1xf32> to vector<8x8x8xf32>
    %47 = arith.subf %41, %46 : vector<8x8x8xf32>
    %48 = math.exp %47 : vector<8x8x8xf32>
    %cst_15 = arith.constant dense<0.000000e+00> : vector<8x8xf32>
    %49 = vector.multi_reduction <add>, %48, %cst_15 [2] : vector<8x8x8xf32> to vector<8x8xf32>
    %50 = vector.shape_cast %49 : vector<8x8xf32> to vector<8x8x1xf32>
    %51 = vector.broadcast %50 : vector<8x8x1xf32> to vector<8x8x8xf32>
    %52 = arith.divf %48, %51 : vector<8x8x8xf32>
    %53 = arith.truncf %52 : vector<8x8x8xf32> to vector<8x8x8xbf16>
    "tpu.trace_start"() <{level = 10 : i32, message = "bnm,bmd->bnd"}> : () -> ()
    %cst_16 = arith.constant dense<0.000000e+00> : vector<8x8x8xf32>
    %54 = tpu.matmul %53, %38, %cst_16 {dimension_numbers = #tpu.dot_dimension_numbers<[2], [1], [1], [2], [0, 0, 0, 1, 1, 2], [0], [0]>} : vector<8x8x8xbf16>, vector<8x8x8xbf16>, vector<8x8x8xf32> -> vector<8x8x8xf32>
    "tpu.trace_stop"() : () -> ()
    %55 = vector.extract_strided_slice %31 {offsets = [0, 0, 8], sizes = [8, 8, 8], strides = [1, 1, 1]} : vector<8x8x32xf32> to vector<8x8x8xf32>
    %56 = arith.truncf %55 : vector<8x8x8xf32> to vector<8x8x8xbf16>
    %57 = vector.extract_strided_slice %32 {offsets = [0, 0, 8], sizes = [8, 8, 8], strides = [1, 1, 1]} : vector<8x8x32xf32> to vector<8x8x8xf32>
    %58 = arith.truncf %57 : vector<8x8x8xf32> to vector<8x8x8xbf16>
    %59 = vector.extract_strided_slice %18 {offsets = [0, 0, 8], sizes = [8, 8, 8], strides = [1, 1, 1]} : vector<8x8x32xf32> to vector<8x8x8xf32>
    %60 = arith.truncf %59 : vector<8x8x8xf32> to vector<8x8x8xbf16>
    "tpu.trace_start"() <{level = 10 : i32, message = "bnd,bmd->bnm"}> : () -> ()
    %cst_17 = arith.constant dense<0.000000e+00> : vector<8x8x8xf32>
    %61 = tpu.matmul %56, %58, %cst_17 {dimension_numbers = #tpu.dot_dimension_numbers<[2], [2], [1], [1], [0, 0, 0, 1, 1, 1], [0], [0]>} : vector<8x8x8xbf16>, vector<8x8x8xbf16>, vector<8x8x8xf32> -> vector<8x8x8xf32>
    "tpu.trace_stop"() : () -> ()
    %cst_18 = arith.constant 0.353553385 : f32
    %62 = vector.broadcast %cst_18 : f32 to vector<8x8x8xf32>
    %63 = arith.mulf %61, %62 : vector<8x8x8xf32>
    %cst_19 = arith.constant dense<0xFF800000> : vector<8x8xf32>
    %64 = vector.multi_reduction <maximumf>, %63, %cst_19 [2] : vector<8x8x8xf32> to vector<8x8xf32>
    %cst_20 = arith.constant 0xFF800000 : f32
    %65 = vector.broadcast %cst_20 : f32 to vector<8x8xf32>
    %66 = arith.maximumf %65, %64 : vector<8x8xf32>
    %67 = vector.shape_cast %66 : vector<8x8xf32> to vector<8x8x1xf32>
    %68 = vector.broadcast %67 : vector<8x8x1xf32> to vector<8x8x8xf32>
    %69 = arith.subf %63, %68 : vector<8x8x8xf32>
    %70 = math.exp %69 : vector<8x8x8xf32>
    %cst_21 = arith.constant dense<0.000000e+00> : vector<8x8xf32>
    %71 = vector.multi_reduction <add>, %70, %cst_21 [2] : vector<8x8x8xf32> to vector<8x8xf32>
    %72 = vector.shape_cast %71 : vector<8x8xf32> to vector<8x8x1xf32>
    %73 = vector.broadcast %72 : vector<8x8x1xf32> to vector<8x8x8xf32>
    %74 = arith.divf %70, %73 : vector<8x8x8xf32>
    %75 = arith.truncf %74 : vector<8x8x8xf32> to vector<8x8x8xbf16>
    "tpu.trace_start"() <{level = 10 : i32, message = "bnm,bmd->bnd"}> : () -> ()
    %cst_22 = arith.constant dense<0.000000e+00> : vector<8x8x8xf32>
    %76 = tpu.matmul %75, %60, %cst_22 {dimension_numbers = #tpu.dot_dimension_numbers<[2], [1], [1], [2], [0, 0, 0, 1, 1, 2], [0], [0]>} : vector<8x8x8xbf16>, vector<8x8x8xbf16>, vector<8x8x8xf32> -> vector<8x8x8xf32>
    "tpu.trace_stop"() : () -> ()
    %77 = vector.extract_strided_slice %31 {offsets = [0, 0, 16], sizes = [8, 8, 8], strides = [1, 1, 1]} : vector<8x8x32xf32> to vector<8x8x8xf32>
    %78 = arith.truncf %77 : vector<8x8x8xf32> to vector<8x8x8xbf16>
    %79 = vector.extract_strided_slice %32 {offsets = [0, 0, 16], sizes = [8, 8, 8], strides = [1, 1, 1]} : vector<8x8x32xf32> to vector<8x8x8xf32>
    %80 = arith.truncf %79 : vector<8x8x8xf32> to vector<8x8x8xbf16>
    %81 = vector.extract_strided_slice %18 {offsets = [0, 0, 16], sizes = [8, 8, 8], strides = [1, 1, 1]} : vector<8x8x32xf32> to vector<8x8x8xf32>
    %82 = arith.truncf %81 : vector<8x8x8xf32> to vector<8x8x8xbf16>
    "tpu.trace_start"() <{level = 10 : i32, message = "bnd,bmd->bnm"}> : () -> ()
    %cst_23 = arith.constant dense<0.000000e+00> : vector<8x8x8xf32>
    %83 = tpu.matmul %78, %80, %cst_23 {dimension_numbers = #tpu.dot_dimension_numbers<[2], [2], [1], [1], [0, 0, 0, 1, 1, 1], [0], [0]>} : vector<8x8x8xbf16>, vector<8x8x8xbf16>, vector<8x8x8xf32> -> vector<8x8x8xf32>
    "tpu.trace_stop"() : () -> ()
    %cst_24 = arith.constant 0.353553385 : f32
    %84 = vector.broadcast %cst_24 : f32 to vector<8x8x8xf32>
    %85 = arith.mulf %83, %84 : vector<8x8x8xf32>
    %cst_25 = arith.constant dense<0xFF800000> : vector<8x8xf32>
    %86 = vector.multi_reduction <maximumf>, %85, %cst_25 [2] : vector<8x8x8xf32> to vector<8x8xf32>
    %cst_26 = arith.constant 0xFF800000 : f32
    %87 = vector.broadcast %cst_26 : f32 to vector<8x8xf32>
    %88 = arith.maximumf %87, %86 : vector<8x8xf32>
    %89 = vector.shape_cast %88 : vector<8x8xf32> to vector<8x8x1xf32>
    %90 = vector.broadcast %89 : vector<8x8x1xf32> to vector<8x8x8xf32>
    %91 = arith.subf %85, %90 : vector<8x8x8xf32>
    %92 = math.exp %91 : vector<8x8x8xf32>
    %cst_27 = arith.constant dense<0.000000e+00> : vector<8x8xf32>
    %93 = vector.multi_reduction <add>, %92, %cst_27 [2] : vector<8x8x8xf32> to vector<8x8xf32>
    %94 = vector.shape_cast %93 : vector<8x8xf32> to vector<8x8x1xf32>
    %95 = vector.broadcast %94 : vector<8x8x1xf32> to vector<8x8x8xf32>
    %96 = arith.divf %92, %95 : vector<8x8x8xf32>
    %97 = arith.truncf %96 : vector<8x8x8xf32> to vector<8x8x8xbf16>
    "tpu.trace_start"() <{level = 10 : i32, message = "bnm,bmd->bnd"}> : () -> ()
    %cst_28 = arith.constant dense<0.000000e+00> : vector<8x8x8xf32>
    %98 = tpu.matmul %97, %82, %cst_28 {dimension_numbers = #tpu.dot_dimension_numbers<[2], [1], [1], [2], [0, 0, 0, 1, 1, 2], [0], [0]>} : vector<8x8x8xbf16>, vector<8x8x8xbf16>, vector<8x8x8xf32> -> vector<8x8x8xf32>
    "tpu.trace_stop"() : () -> ()
    %99 = vector.extract_strided_slice %31 {offsets = [0, 0, 24], sizes = [8, 8, 8], strides = [1, 1, 1]} : vector<8x8x32xf32> to vector<8x8x8xf32>
    %100 = arith.truncf %99 : vector<8x8x8xf32> to vector<8x8x8xbf16>
    %101 = vector.extract_strided_slice %32 {offsets = [0, 0, 24], sizes = [8, 8, 8], strides = [1, 1, 1]} : vector<8x8x32xf32> to vector<8x8x8xf32>
    %102 = arith.truncf %101 : vector<8x8x8xf32> to vector<8x8x8xbf16>
    %103 = vector.extract_strided_slice %18 {offsets = [0, 0, 24], sizes = [8, 8, 8], strides = [1, 1, 1]} : vector<8x8x32xf32> to vector<8x8x8xf32>
    %104 = arith.truncf %103 : vector<8x8x8xf32> to vector<8x8x8xbf16>
    "tpu.trace_start"() <{level = 10 : i32, message = "bnd,bmd->bnm"}> : () -> ()
    %cst_29 = arith.constant dense<0.000000e+00> : vector<8x8x8xf32>
    %105 = tpu.matmul %100, %102, %cst_29 {dimension_numbers = #tpu.dot_dimension_numbers<[2], [2], [1], [1], [0, 0, 0, 1, 1, 1], [0], [0]>} : vector<8x8x8xbf16>, vector<8x8x8xbf16>, vector<8x8x8xf32> -> vector<8x8x8xf32>
    "tpu.trace_stop"() : () -> ()
    %cst_30 = arith.constant 0.353553385 : f32
    %106 = vector.broadcast %cst_30 : f32 to vector<8x8x8xf32>
    %107 = arith.mulf %105, %106 : vector<8x8x8xf32>
    %cst_31 = arith.constant dense<0xFF800000> : vector<8x8xf32>
    %108 = vector.multi_reduction <maximumf>, %107, %cst_31 [2] : vector<8x8x8xf32> to vector<8x8xf32>
    %cst_32 = arith.constant 0xFF800000 : f32
    %109 = vector.broadcast %cst_32 : f32 to vector<8x8xf32>
    %110 = arith.maximumf %109, %108 : vector<8x8xf32>
    %111 = vector.shape_cast %110 : vector<8x8xf32> to vector<8x8x1xf32>
    %112 = vector.broadcast %111 : vector<8x8x1xf32> to vector<8x8x8xf32>
    %113 = arith.subf %107, %112 : vector<8x8x8xf32>
    %114 = math.exp %113 : vector<8x8x8xf32>
    %cst_33 = arith.constant dense<0.000000e+00> : vector<8x8xf32>
    %115 = vector.multi_reduction <add>, %114, %cst_33 [2] : vector<8x8x8xf32> to vector<8x8xf32>
    %116 = vector.shape_cast %115 : vector<8x8xf32> to vector<8x8x1xf32>
    %117 = vector.broadcast %116 : vector<8x8x1xf32> to vector<8x8x8xf32>
    %118 = arith.divf %114, %117 : vector<8x8x8xf32>
    %119 = arith.truncf %118 : vector<8x8x8xf32> to vector<8x8x8xbf16>
    "tpu.trace_start"() <{level = 10 : i32, message = "bnm,bmd->bnd"}> : () -> ()
    %cst_34 = arith.constant dense<0.000000e+00> : vector<8x8x8xf32>
    %120 = tpu.matmul %119, %104, %cst_34 {dimension_numbers = #tpu.dot_dimension_numbers<[2], [1], [1], [2], [0, 0, 0, 1, 1, 2], [0], [0]>} : vector<8x8x8xbf16>, vector<8x8x8xbf16>, vector<8x8x8xf32> -> vector<8x8x8xf32>
    "tpu.trace_stop"() : () -> ()
    %121 = tpu.concatenate %54, %76, %98, %120 in 2 : vector<8x8x8xf32>, vector<8x8x8xf32>, vector<8x8x8xf32>, vector<8x8x8xf32> -> vector<8x8x32xf32>
    %c0_35 = arith.constant 0 : index
    %c0_36 = arith.constant 0 : index
    %122 = vector.load %arg8[%c0_35, %c0_36] : memref<4x32xf32, #tpu.memory_space<vmem>>, vector<1x32xf32>
    %c1 = arith.constant 1 : index
    %c0_37 = arith.constant 0 : index
    %123 = vector.load %arg8[%c1, %c0_37] : memref<4x32xf32, #tpu.memory_space<vmem>>, vector<1x32xf32>
    %c2 = arith.constant 2 : index
    %c0_38 = arith.constant 0 : index
    %124 = vector.load %arg8[%c2, %c0_38] : memref<4x32xf32, #tpu.memory_space<vmem>>, vector<1x32xf32>
    %c3 = arith.constant 3 : index
    %c0_39 = arith.constant 0 : index
    %125 = vector.load %arg8[%c3, %c0_39] : memref<4x32xf32, #tpu.memory_space<vmem>>, vector<1x32xf32>
    %126 = tpu.concatenate %22, %26 in 2 : vector<8x8x96xf32>, vector<8x8x32xf32> -> vector<8x8x128xf32>
    %127 = arith.truncf %126 : vector<8x8x128xf32> to vector<8x8x128xbf16>
    %c0_40 = arith.constant 0 : index
    %c0_41 = arith.constant 0 : index
    %128 = vector.load %arg5[%c0_40, %c0_41] : memref<128x32xbf16, #tpu.memory_space<vmem>>, vector<128x32xbf16>
    "tpu.trace_start"() <{level = 10 : i32, message = "bnf,fd->bnd"}> : () -> ()
    %cst_42 = arith.constant dense<0.000000e+00> : vector<8x8x32xf32>
    %129 = tpu.matmul %127, %128, %cst_42 {dimension_numbers = #tpu.dot_dimension_numbers<[2], [0], [0, 1], [1], [0, 0, 0, 1, 1, 1], [], []>} : vector<8x8x128xbf16>, vector<128x32xbf16>, vector<8x8x32xf32> -> vector<8x8x32xf32>
    "tpu.trace_stop"() : () -> ()
    %130 = vector.shape_cast %122 : vector<1x32xf32> to vector<1x1x32xf32>
    %131 = vector.broadcast %130 : vector<1x1x32xf32> to vector<8x8x32xf32>
    %132 = arith.addf %129, %131 : vector<8x8x32xf32>
    %133 = math.tanh %132 : vector<8x8x32xf32>
    %134 = tpu.concatenate %133, %121 in 2 : vector<8x8x32xf32>, vector<8x8x32xf32> -> vector<8x8x64xf32>
    %135 = arith.truncf %134 : vector<8x8x64xf32> to vector<8x8x64xbf16>
    %c0_43 = arith.constant 0 : index
    %c0_44 = arith.constant 0 : index
    %136 = vector.load %arg6[%c0_43, %c0_44] : memref<64x32xbf16, #tpu.memory_space<vmem>>, vector<64x32xbf16>
    "tpu.trace_start"() <{level = 10 : i32, message = "bnf,fd->bnd"}> : () -> ()
    %cst_45 = arith.constant dense<0.000000e+00> : vector<8x8x32xf32>
    %137 = tpu.matmul %135, %136, %cst_45 {dimension_numbers = #tpu.dot_dimension_numbers<[2], [0], [0, 1], [1], [0, 0, 0, 1, 1, 1], [], []>} : vector<8x8x64xbf16>, vector<64x32xbf16>, vector<8x8x32xf32> -> vector<8x8x32xf32>
    "tpu.trace_stop"() : () -> ()
    %138 = vector.shape_cast %123 : vector<1x32xf32> to vector<1x1x32xf32>
    %139 = vector.broadcast %138 : vector<1x1x32xf32> to vector<8x8x32xf32>
    %140 = arith.addf %137, %139 : vector<8x8x32xf32>
    %141 = tpu.concatenate %140, %26 in 2 : vector<8x8x32xf32>, vector<8x8x32xf32> -> vector<8x8x64xf32>
    %142 = arith.truncf %141 : vector<8x8x64xf32> to vector<8x8x64xbf16>
    %c0_46 = arith.constant 0 : index
    %c0_47 = arith.constant 0 : index
    %143 = vector.load %arg7[%c0_46, %c0_47] : memref<64x32xbf16, #tpu.memory_space<vmem>>, vector<64x32xbf16>
    "tpu.trace_start"() <{level = 10 : i32, message = "bnf,fa->bna"}> : () -> ()
    %cst_48 = arith.constant dense<0.000000e+00> : vector<8x8x32xf32>
    %144 = tpu.matmul %142, %143, %cst_48 {dimension_numbers = #tpu.dot_dimension_numbers<[2], [0], [0, 1], [1], [0, 0, 0, 1, 1, 1], [], []>} : vector<8x8x64xbf16>, vector<64x32xbf16>, vector<8x8x32xf32> -> vector<8x8x32xf32>
    "tpu.trace_stop"() : () -> ()
    %145 = vector.shape_cast %124 : vector<1x32xf32> to vector<1x1x32xf32>
    %146 = vector.broadcast %145 : vector<1x1x32xf32> to vector<8x8x32xf32>
    %147 = arith.addf %144, %146 : vector<8x8x32xf32>
    %148 = math.tanh %147 : vector<8x8x32xf32>
    %149 = vector.shape_cast %125 : vector<1x32xf32> to vector<1x1x32xf32>
    %150 = vector.broadcast %149 : vector<1x1x32xf32> to vector<8x8x32xf32>
    %151 = arith.mulf %148, %150 : vector<8x8x32xf32>
    %cst_49 = arith.constant dense<0.000000e+00> : vector<8x8xf32>
    %152 = vector.multi_reduction <add>, %151, %cst_49 [2] : vector<8x8x32xf32> to vector<8x8xf32>
    %cst_50 = arith.constant dense<0xFF800000> : vector<8xf32>
    %153 = vector.multi_reduction <maximumf>, %152, %cst_50 [1] : vector<8x8xf32> to vector<8xf32>
    %cst_51 = arith.constant 0xFF800000 : f32
    %154 = vector.broadcast %cst_51 : f32 to vector<8xf32>
    %155 = arith.maximumf %154, %153 : vector<8xf32>
    %156 = vector.shape_cast %155 : vector<8xf32> to vector<8x1xf32>
    %157 = vector.broadcast %156 : vector<8x1xf32> to vector<8x8xf32>
    %158 = arith.subf %152, %157 : vector<8x8xf32>
    %159 = math.exp %158 : vector<8x8xf32>
    %cst_52 = arith.constant dense<0.000000e+00> : vector<8xf32>
    %160 = vector.multi_reduction <add>, %159, %cst_52 [1] : vector<8x8xf32> to vector<8xf32>
    %161 = vector.shape_cast %160 : vector<8xf32> to vector<8x1xf32>
    %162 = vector.broadcast %161 : vector<8x1xf32> to vector<8x8xf32>
    %163 = arith.divf %159, %162 : vector<8x8xf32>
    %164 = vector.shape_cast %163 : vector<8x8xf32> to vector<8x8x1xf32>
    %165 = vector.broadcast %164 : vector<8x8x1xf32> to vector<8x8x32xf32>
    %166 = arith.mulf %165, %140 : vector<8x8x32xf32>
    %cst_53 = arith.constant dense<0.000000e+00> : vector<8x32xf32>
    %167 = vector.multi_reduction <add>, %166, %cst_53 [1] : vector<8x8x32xf32> to vector<8x32xf32>
    %168 = vector.shape_cast %167 : vector<8x32xf32> to vector<2x4x32xf32>
    %169 = arith.mulf %168, %1 : vector<2x4x32xf32>
    %cst_54 = arith.constant dense<0.000000e+00> : vector<2x4xf32>
    %170 = vector.multi_reduction <add>, %169, %cst_54 [2] : vector<2x4x32xf32> to vector<2x4xf32>
    %c0_55 = arith.constant 0 : index
    %c0_56 = arith.constant 0 : index
    %171 = vector.load %arg9[%c0_55, %c0_56] : memref<2x4xf32, #tpu.memory_space<vmem>>, vector<2x4xf32>
    tpu.vector_store %arg9[%c0_55, %c0_56], %170 {strides = array<i32>} : memref<2x4xf32, #tpu.memory_space<vmem>>, vector<2x4xf32>,
    return
  }
  func.func @transform_0(%arg0: i32) -> (i32, i32, i32) {
    %c0_i32 = arith.constant 0 : i32
    %c0_i32_0 = arith.constant 0 : i32
    %c0_i32_1 = arith.constant 0 : i32
    %c0_i32_2 = arith.constant 0 : i32
    return %c0_i32, %c0_i32_0, %c0_i32_1 : i32, i32, i32
  }
  func.func @transform_1(%arg0: i32) -> (i32, i32, i32) {
    %c0_i32 = arith.constant 0 : i32
    %c0_i32_0 = arith.constant 0 : i32
    %c0_i32_1 = arith.constant 0 : i32
    %c0_i32_2 = arith.constant 0 : i32
    return %c0_i32, %c0_i32_0, %c0_i32_1 : i32, i32, i32
  }
  func.func @transform_2(%arg0: i32) -> (i32, i32) {
    %c0_i32 = arith.constant 0 : i32
    %c0_i32_0 = arith.constant 0 : i32
    %c0_i32_1 = arith.constant 0 : i32
    return %c0_i32, %c0_i32_0 : i32, i32
  }
  func.func @transform_3(%arg0: i32) -> (i32, i32) {
    %c0_i32 = arith.constant 0 : i32
    %c0_i32_0 = arith.constant 0 : i32
    %c0_i32_1 = arith.constant 0 : i32
    return %c0_i32, %c0_i32_0 : i32, i32
  }
  func.func @transform_4(%arg0: i32) -> (i32, i32) {
    %c0_i32 = arith.constant 0 : i32
    %c0_i32_0 = arith.constant 0 : i32
    %c0_i32_1 = arith.constant 0 : i32
    return %c0_i32, %c0_i32_0 : i32, i32
  }
  func.func @transform_5(%arg0: i32) -> (i32, i32) {
    %c0_i32 = arith.constant 0 : i32
    %c0_i32_0 = arith.constant 0 : i32
    %c0_i32_1 = arith.constant 0 : i32
    return %c0_i32, %c0_i32_0 : i32, i32
  }
  func.func @transform_6(%arg0: i32) -> (i32, i32) {
    %c0_i32 = arith.constant 0 : i32
    %c0_i32_0 = arith.constant 0 : i32
    %c0_i32_1 = arith.constant 0 : i32
    return %c0_i32, %c0_i32_0 : i32, i32
  }
  func.func @transform_7(%arg0: i32) -> (i32, i32) {
    %c0_i32 = arith.constant 0 : i32
    %c0_i32_0 = arith.constant 0 : i32
    %c0_i32_1 = arith.constant 0 : i32
    return %c0_i32, %c0_i32_0 : i32, i32
  }
  func.func @transform_8(%arg0: i32) -> (i32, i32) {
    %c0_i32 = arith.constant 0 : i32
    %c0_i32_0 = arith.constant 0 : i32
    %c0_i32_1 = arith.constant 0 : i32
    return %c0_i32, %c0_i32_0 : i32, i32
  }
}

</mosaic_0001>

<llo_original>
// kernel: caum_forward.3
$region0: #{caum_forward.3}
  #allocation0 [shape = 'u32[]', space=smem, size = 0x4, offset = 0x4, fixed_abs, tag = 'smem constant byte address 0x4 - core index']
  #allocation1 [shape = 'u32[144,128]{1,0:T(1,128)}', space=vmem, size = 0x12000, scoped, tag = 'internal scratch']
  %s0 = inlined_call_operand.vmem [shape: f32[2,8,32], index: 0, kind: input, shape index: {}]
  %s1 = inlined_call_operand.vmem [shape: f32[2,4,32], index: 1, kind: input, shape index: {}]
  %s2 = inlined_call_operand.vmem [shape: bf16[64,64], index: 2, kind: input, shape index: {}]
  %s3 = inlined_call_operand.vmem [shape: bf16[32,32], index: 3, kind: input, shape index: {}]
  %s4 = inlined_call_operand.vmem [shape: bf16[128,32], index: 4, kind: input, shape index: {}]
  %s5 = inlined_call_operand.vmem [shape: bf16[64,32], index: 5, kind: input, shape index: {}]
  %s6 = inlined_call_operand.vmem [shape: bf16[64,32], index: 6, kind: input, shape index: {}]
  %s7 = inlined_call_operand.vmem [shape: f32[4,32], index: 7, kind: input, shape index: {}]
  %s8 = inlined_call_operand.hbm [shape: f32[2,4], index: 8, kind: output, shape index: {}]
  %s9 = sld [smem:[#allocation0]]
  $region42: #{caum_forward.3} parent=0
    _
  %s11 = ssub.s32 1, %s9
  %s12 = scalar_select 0, %s11, %s9
  $region1: #{caum_forward.3} parent=0
    #allocation2 [shape = 'u8[1024]{0}', space=vmem, size = 0x400, scoped, tag = 'output window, operand 0, single buffered']
    #allocation3 [shape = 's32[1]{0}', space=sflag, size = 0x4, scoped, tag = 'scoped memory for caum_forward.3']
    %13 = vsyncpa [#allocation3], 0
    // Predicated region
    $region2: #{caum_forward.3} parent=1 // pred_check
      _
    $region3: #{caum_forward.3} parent=1 // pred_check_branch
      %15 = sbr.rel (0) target = $region5
    $region4: #{caum_forward.3} parent=1 // pred_region
      _
    $region5: #{caum_forward.3} parent=1 // pred_fallthru
      _
    // Predicated region
    $region6: #{caum_forward.3} parent=1 // pred_check
      _
    $region7: #{caum_forward.3} parent=1 // pred_check_branch
      %17 = sbr.rel (0) target = $region9
    $region8: #{caum_forward.3} parent=1 // pred_region
      _
    $region9: #{caum_forward.3} parent=1 // pred_fallthru
      _
    // Predicated region
    $region10: #{caum_forward.3} parent=1 // pred_check
      _
    $region11: #{caum_forward.3} parent=1 // pred_check_branch
      %19 = sbr.rel (0) target = $region13
    $region12: #{caum_forward.3} parent=1 // pred_region
      _
    $region13: #{caum_forward.3} parent=1 // pred_fallthru
      _
    // Predicated region
    $region14: #{caum_forward.3} parent=1 // pred_check
      _
    $region15: #{caum_forward.3} parent=1 // pred_check_branch
      %21 = sbr.rel (0) target = $region17
    $region16: #{caum_forward.3} parent=1 // pred_region
      _
    $region17: #{caum_forward.3} parent=1 // pred_fallthru
      _
    // Predicated region
    $region18: #{caum_forward.3} parent=1 // pred_check
      _
    $region19: #{caum_forward.3} parent=1 // pred_check_branch
      %23 = sbr.rel (0) target = $region21
    $region20: #{caum_forward.3} parent=1 // pred_region
      _
    $region21: #{caum_forward.3} parent=1 // pred_fallthru
      _
    // Predicated region
    $region22: #{caum_forward.3} parent=1 // pred_check
      _
    $region23: #{caum_forward.3} parent=1 // pred_check_branch
      %25 = sbr.rel (0) target = $region25
    $region24: #{caum_forward.3} parent=1 // pred_region
      _
    $region25: #{caum_forward.3} parent=1 // pred_fallthru
      _
    // Predicated region
    $region26: #{caum_forward.3} parent=1 // pred_check
      _
    $region27: #{caum_forward.3} parent=1 // pred_check_branch
      %27 = sbr.rel (0) target = $region29
    $region28: #{caum_forward.3} parent=1 // pred_region
      _
    $region29: #{caum_forward.3} parent=1 // pred_fallthru
      _
    // Predicated region
    $region30: #{caum_forward.3} parent=1 // pred_check
      _
    $region31: #{caum_forward.3} parent=1 // pred_check_branch
      %29 = sbr.rel (0) target = $region33
    $region32: #{caum_forward.3} parent=1 // pred_region
      _
    $region33: #{caum_forward.3} parent=1 // pred_fallthru
      _
    %v31 = vld [vmem:[%s0] sm:$0xff]
    %v32 = vld [vmem:[%s0 + $0x8] sm:$0xff]
    %v33 = vld [vmem:[%s1] sm:$0xf]
    %v34 = vld [vmem:[%s1 + $0x4] sm:$0xf]
    %v35 = vpack.c.bf16 %v31, %v31
    %v36 = vpack.c.bf16 %v32, %v32
    %v37 = vld [vmem:[%s3] sm:$0xf]
    %v38 = vld [vmem:[%s3 + $0x4] sm:$0xf]
    %v39 = vld [vmem:[%s3 + $0x8] sm:$0xf]
    %v40 = vld [vmem:[%s3 + $0xc] sm:$0xf]
    %v43 = vunpack.c.l.b16 %v35
    %v44 = vunpack.c.l.b16 %v36
    %v45 = vpack.c.b16 %v44, %v43
    %v50 = vunpack.c.l.b16 %v37
    %v51 = vunpack.c.l.b16 %v38
    %v52 = vunpack.c.l.b16 %v39
    %v53 = vunpack.c.l.b16 %v40
    %v54 = vpack.c.b16 %v51, %v50
    %v55 = vpack.c.b16 %v53, %v52
    %vm58 = vcmask 261120
    %v60 = vsel %vm58, %v45, 0
    %62 = vmatprep.subr.bf16.mxu0 0
    %63 = vmatpush1.bf16.msra.mxu0 %v54
    %64 = vmatprep.subr.bf16.mxu0 0
    %65 = vmatpush1.bf16.msra.mxu0 %v55
    %66 = vmatprep.subr.bf16.mxu0 0
    %67 = vmatpush1.bf16.msra.mxu0 0
    %68 = vmatprep.subr.bf16.mxu0 0
    %69 = vmatpush1.bf16.msra.mxu0 0
    %70 = vmatprep.subr.bf16.mxu0 0
    %71 = vmatpush1.bf16.msra.mxu0 0
    %72 = vmatprep.subr.bf16.mxu0 0
    %73 = vmatpush1.bf16.msra.mxu0 0
    %74 = vmatprep.subr.bf16.mxu0 0
    %75 = vmatpush1.bf16.msra.mxu0 0
    %76 = vmatprep.subr.bf16.mxu0 0
    %77 = vmatpush1.bf16.msra.mxu0 0
    %78 = vmatprep.subr.bf16.mxu0 0
    %79 = vmatpush1.bf16.msra.mxu0 0
    %80 = vmatprep.subr.bf16.mxu0 0
    %81 = vmatpush1.bf16.msra.mxu0 0
    %82 = vmatprep.subr.bf16.mxu0 0
    %83 = vmatpush1.bf16.msra.mxu0 0
    %84 = vmatprep.subr.bf16.mxu0 0
    %85 = vmatpush1.bf16.msra.mxu0 0
    %86 = vmatprep.subr.bf16.mxu0 0
    %87 = vmatpush1.bf16.msra.mxu0 0
    %88 = vmatprep.subr.bf16.mxu0 0
    %89 = vmatpush1.bf16.msra.mxu0 0
    %90 = vmatprep.subr.bf16.mxu0 0
    %91 = vmatpush1.bf16.msra.mxu0 0
    %92 = vmatprep.subr.bf16.mxu0 0
    %93 = vmatpush1.bf16.msra.mxu0 0
    %94 = vmatprep.mubr.bf16.mxu0 0
    %95 = vmatmul.mubr.bf16.gmra.mrb[0].mxu0 %v60
    %v96 = vpop.f32.mrb[0].mxu0
    %v97 = vadd.f32 0.0, %v96
    %v98 = vpop.f32.mrb[0].mxu0
    %v99 = vpop.f32.mrb[0].mxu0
    %v100 = vadd.f32 0.0, %v99
    %v101 = vpop.f32.mrb[0].mxu0
    %102 = vdwg.mxu0
    %v105 = vrot.slane %v31, 7
    %v106 = vrot.slane %v32, 7
    %vm109 = vcmask 1040384
    %v110 = vsel %vm109, 0.0, %v105
    %v111 = vsel %vm109, 0.0, %v106
    %v112 = vrot.slane %v31, 1
    %v113 = vrot.slane %v32, 1
    %vm116 = vcmask 1046528
    %v117 = vsel %vm116, %v112, 0.0
    %v118 = vsel %vm116, %v113, 0.0
    %119 = vrot.lane.b32.xlu0 %v31, 32
    %v120 = vpop.permute.xlu0 %119
    %121 = vrot.lane.b32.xlu0 %v32, 32
    %v122 = vpop.permute.xlu0 %121
    %127 = vrot.lane.b32.xlu0 %v117, 64
    %v128 = vpop.permute.xlu0 %127
    %129 = vrot.lane.b32.xlu0 %v118, 64
    %v130 = vpop.permute.xlu0 %129
    %v133 = vsel %vm58, %v110, %v120
    %v134 = vsel %vm58, %v111, %v122
    %vm135 = vcmask 523264
    %v136 = vsel %vm135, %v133, %v128
    %v137 = vsel %vm135, %v134, %v130
    %v141 = vunpack.c.l.s4 1966171168
    %v142 = vunpack.c.0.s8 %v141
    %v143 = vlaneseq
    %v144 = vshrl.u32 %v143, 7
    %v145 = vsub.s32 %v142, %v144
    %v146 = vrot.slane %v33, %v145
    %v147 = vcombine.high %v146, %v146
    %v149 = vunpack.c.l.s4 1966171168
    %v150 = vunpack.c.0.s8 %v149
    %v151 = vlaneseq
    %v152 = vshrl.u32 %v151, 7
    %v153 = vsub.s32 %v150, %v152
    %v154 = vrot.slane %v146, %v153
    %v156 = vunpack.c.l.s4 1966171168
    %v157 = vunpack.c.0.s8 %v156
    %v158 = vlaneseq
    %v159 = vshrl.u32 %v158, 7
    %v160 = vsub.s32 %v157, %v159
    %v161 = vrot.slane %v147, %v160
    %v162 = vcombine.high %v154, %v154
    %v163 = vcombine.high %v161, %v161
    %v165 = vunpack.c.l.s4 1966171168
    %v166 = vunpack.c.0.s8 %v165
    %v167 = vlaneseq
    %v168 = vshrl.u32 %v167, 7
    %v169 = vsub.s32 %v166, %v168
    %v170 = vrot.slane %v34, %v169
    %v171 = vcombine.high %v170, %v170
    %v173 = vunpack.c.l.s4 1966171168
    %v174 = vunpack.c.0.s8 %v173
    %v175 = vlaneseq
    %v176 = vshrl.u32 %v175, 7
    %v177 = vsub.s32 %v174, %v176
    %v178 = vrot.slane %v170, %v177
    %v180 = vunpack.c.l.s4 1966171168
    %v181 = vunpack.c.0.s8 %v180
    %v182 = vlaneseq
    %v183 = vshrl.u32 %v182, 7
    %v184 = vsub.s32 %v181, %v183
    %v185 = vrot.slane %v171, %v184
    %v186 = vcombine.high %v178, %v178
    %v187 = vcombine.high %v185, %v185
    %v188 = vlaneseq
    %v189 = vshrl.u32 %v188, 7
    %v190 = vsub.s32 0, %v189
    %v191 = vrot.slane %v154, %v190
    %v192 = vlaneseq
    %v193 = vshrl.u32 %v192, 7
    %v194 = vsub.s32 0, %v193
    %v195 = vrot.slane %v161, %v194
    %v196 = vlaneseq
    %v197 = vshrl.u32 %v196, 7
    %v198 = vsub.s32 0, %v197
    %v199 = vrot.slane %v162, %v198
    %v200 = vlaneseq
    %v201 = vshrl.u32 %v200, 7
    %v202 = vsub.s32 0, %v201
    %v203 = vrot.slane %v163, %v202
    %v204 = vlaneseq
    %v205 = vshrl.u32 %v204, 7
    %v206 = vsub.s32 0, %v205
    %v207 = vrot.slane %v178, %v206
    %v208 = vlaneseq
    %v209 = vshrl.u32 %v208, 7
    %v210 = vsub.s32 0, %v209
    %v211 = vrot.slane %v185, %v210
    %v212 = vlaneseq
    %v213 = vshrl.u32 %v212, 7
    %v214 = vsub.s32 0, %v213
    %v215 = vrot.slane %v186, %v214
    %v216 = vlaneseq
    %v217 = vshrl.u32 %v216, 7
    %v218 = vsub.s32 0, %v217
    %v219 = vrot.slane %v187, %v218
    %220 = vrot.lane.b32.xlu0 %v191, 32
    %v221 = vpop.permute.xlu0 %220
    %222 = vrot.lane.b32.xlu0 %v195, 32
    %v223 = vpop.permute.xlu0 %222
    %224 = vrot.lane.b32.xlu0 %v199, 32
    %v225 = vpop.permute.xlu0 %224
    %226 = vrot.lane.b32.xlu0 %v203, 32
    %v227 = vpop.permute.xlu0 %226
    %228 = vrot.lane.b32.xlu0 %v207, 32
    %v229 = vpop.permute.xlu0 %228
    %230 = vrot.lane.b32.xlu0 %v211, 32
    %v231 = vpop.permute.xlu0 %230
    %232 = vrot.lane.b32.xlu0 %v215, 32
    %v233 = vpop.permute.xlu0 %232
    %234 = vrot.lane.b32.xlu0 %v219, 32
    %v235 = vpop.permute.xlu0 %234
    %v244 = vsel %vm58, %v31, %v221
    %v245 = vsel %vm58, %v31, %v223
    %v246 = vsel %vm58, %v31, %v225
    %v247 = vsel %vm58, %v31, %v227
    %v248 = vsel %vm58, %v32, %v229
    %v249 = vsel %vm58, %v32, %v231
    %v250 = vsel %vm58, %v32, %v233
    %v251 = vsel %vm58, %v32, %v235
    %v252 = vpack.c.bf16 %v244, %v244
    %v253 = vpack.c.bf16 %v245, %v245
    %v254 = vpack.c.bf16 %v246, %v246
    %v255 = vpack.c.bf16 %v247, %v247
    %v256 = vpack.c.bf16 %v248, %v248
    %v257 = vpack.c.bf16 %v249, %v249
    %v258 = vpack.c.bf16 %v250, %v250
    %v259 = vpack.c.bf16 %v251, %v251
    %v260 = vld [vmem:[%s2] sm:$0xf]
    %v261 = vld [vmem:[%s2 + $0x4] sm:$0xf]
    %v262 = vld [vmem:[%s2 + $0x8] sm:$0xf]
    %v263 = vld [vmem:[%s2 + $0xc] sm:$0xf]
    %v264 = vld [vmem:[%s2 + $0x10] sm:$0xf]
    %v265 = vld [vmem:[%s2 + $0x14] sm:$0xf]
    %v266 = vld [vmem:[%s2 + $0x18] sm:$0xf]
    %v267 = vld [vmem:[%s2 + $0x1c] sm:$0xf]
    %v276 = vunpack.c.l.b16 %v252
    %v277 = vunpack.c.l.b16 %v253
    %v278 = vunpack.c.l.b16 %v254
    %v279 = vunpack.c.l.b16 %v255
    %v280 = vunpack.c.l.b16 %v256
    %v281 = vunpack.c.l.b16 %v257
    %v282 = vunpack.c.l.b16 %v258
    %v283 = vunpack.c.l.b16 %v259
    %v284 = vpack.c.b16 %v277, %v276
    %v285 = vpack.c.b16 %v279, %v278
    %v286 = vpack.c.b16 %v281, %v280
    %v287 = vpack.c.b16 %v283, %v282
    %v296 = vunpack.c.l.b16 %v260
    %v297 = vunpack.c.l.b16 %v261
    %v298 = vunpack.c.l.b16 %v262
    %v299 = vunpack.c.l.b16 %v263
    %v300 = vunpack.c.l.b16 %v264
    %v301 = vunpack.c.l.b16 %v265
    %v302 = vunpack.c.l.b16 %v266
    %v303 = vunpack.c.l.b16 %v267
    %v304 = vpack.c.b16 %v297, %v296
    %v305 = vpack.c.b16 %v299, %v298
    %v306 = vpack.c.b16 %v301, %v300
    %v307 = vpack.c.b16 %v303, %v302
    %v313 = vsel %vm135, %v284, 0
    %v316 = vsel %vm135, %v285, 0
    %v319 = vsel %vm135, %v286, 0
    %v322 = vsel %vm135, %v287, 0
    %324 = vmatprep.subr.bf16.mxu0 0
    %325 = vmatpush1.bf16.msra.mxu0 %v304
    %326 = vmatprep.subr.bf16.mxu0 0
    %327 = vmatpush1.bf16.msra.mxu0 %v305
    %328 = vmatprep.subr.bf16.mxu0 0
    %329 = vmatpush1.bf16.msra.mxu0 %v306
    %330 = vmatprep.subr.bf16.mxu0 0
    %331 = vmatpush1.bf16.msra.mxu0 %v307
    %332 = vmatprep.subr.bf16.mxu0 0
    %333 = vmatpush1.bf16.msra.mxu0 0
    %334 = vmatprep.subr.bf16.mxu0 0
    %335 = vmatpush1.bf16.msra.mxu0 0
    %336 = vmatprep.subr.bf16.mxu0 0
    %337 = vmatpush1.bf16.msra.mxu0 0
    %338 = vmatprep.subr.bf16.mxu0 0
    %339 = vmatpush1.bf16.msra.mxu0 0
    %340 = vmatprep.subr.bf16.mxu0 0
    %341 = vmatpush1.bf16.msra.mxu0 0
    %342 = vmatprep.subr.bf16.mxu0 0
    %343 = vmatpush1.bf16.msra.mxu0 0
    %344 = vmatprep.subr.bf16.mxu0 0
    %345 = vmatpush1.bf16.msra.mxu0 0
    %346 = vmatprep.subr.bf16.mxu0 0
    %347 = vmatpush1.bf16.msra.mxu0 0
    %348 = vmatprep.subr.bf16.mxu0 0
    %349 = vmatpush1.bf16.msra.mxu0 0
    %350 = vmatprep.subr.bf16.mxu0 0
    %351 = vmatpush1.bf16.msra.mxu0 0
    %352 = vmatprep.subr.bf16.mxu0 0
    %353 = vmatpush1.bf16.msra.mxu0 0
    %354 = vmatprep.subr.bf16.mxu0 0
    %355 = vmatpush1.bf16.msra.mxu0 0
    %356 = vmatprep.mubr.bf16.mxu0 0
    %357 = vmatmul.mubr.bf16.gmra.mrb[0].mxu0 %v313
    %v358 = vpop.f32.mrb[0].mxu0
    %v359 = vadd.f32 0.0, %v358
    %v360 = vpop.f32.mrb[0].mxu0
    %v361 = vpop.f32.mrb[0].mxu0
    %v362 = vadd.f32 0.0, %v361
    %v363 = vpop.f32.mrb[0].mxu0
    %364 = vmatprep.mubr.bf16.mxu0 0
    %365 = vmatmul.mubr.bf16.gmra.mrb[0].mxu0 %v316
    %v366 = vpop.f32.mrb[0].mxu0
    %v367 = vadd.f32 0.0, %v366
    %v368 = vpop.f32.mrb[0].mxu0
    %v369 = vpop.f32.mrb[0].mxu0
    %v370 = vadd.f32 0.0, %v369
    %v371 = vpop.f32.mrb[0].mxu0
    %372 = vmatprep.mubr.bf16.mxu0 0
    %373 = vmatmul.mubr.bf16.gmra.mrb[0].mxu0 %v319
    %v374 = vpop.f32.mrb[0].mxu0
    %v375 = vadd.f32 0.0, %v374
    %v376 = vpop.f32.mrb[0].mxu0
    %v377 = vpop.f32.mrb[0].mxu0
    %v378 = vadd.f32 0.0, %v377
    %v379 = vpop.f32.mrb[0].mxu0
    %380 = vmatprep.mubr.bf16.mxu0 0
    %381 = vmatmul.mubr.bf16.gmra.mrb[0].mxu0 %v322
    %v382 = vpop.f32.mrb[0].mxu0
    %v383 = vadd.f32 0.0, %v382
    %v384 = vpop.f32.mrb[0].mxu0
    %v385 = vpop.f32.mrb[0].mxu0
    %v386 = vadd.f32 0.0, %v385
    %v387 = vpop.f32.mrb[0].mxu0
    %388 = vdwg.mxu0
    %v389 = vpack.c.bf16 %v359, %v359
    %v390 = vpack.c.bf16 %v362, %v362
    %v391 = vpack.c.bf16 %v367, %v367
    %v392 = vpack.c.bf16 %v370, %v370
    %v393 = vpack.c.bf16 %v375, %v375
    %v394 = vpack.c.bf16 %v378, %v378
    %v395 = vpack.c.bf16 %v383, %v383
    %v396 = vpack.c.bf16 %v386, %v386
    %v397 = vpack.c.bf16 %v97, %v97
    %v398 = vpack.c.bf16 %v100, %v100
    %400 = vrot.lane.b32.xlu0 %v389, 96
    %v401 = vpop.permute.xlu0 %400
    %vm402 = vcmask 64512
    %v404 = vsel %vm402, %v389, 0
    %v407 = vsel %vm402, %v401, 0
    %409 = vmatprep.subr.bf16.mxu0 0
    %410 = vmatpush1.bf16.xpose.msra.mxu0 %v407
    %411 = vmatprep.subr.bf16.mxu0 0
    %412 = vmatpush1.bf16.xpose.msra.mxu0 0
    %413 = vmatprep.subr.bf16.mxu0 0
    %414 = vmatpush1.bf16.xpose.msra.mxu0 0
    %415 = vmatprep.subr.bf16.mxu0 0
    %416 = vmatpush1.bf16.xpose.msra.mxu0 0
    %417 = vmatprep.subr.bf16.mxu0 0
    %418 = vmatpush1.bf16.xpose.msra.mxu0 0
    %419 = vmatprep.subr.bf16.mxu0 0
    %420 = vmatpush1.bf16.xpose.msra.mxu0 0
    %421 = vmatprep.subr.bf16.mxu0 0
    %422 = vmatpush1.bf16.xpose.msra.mxu0 0
    %423 = vmatprep.subr.bf16.mxu0 0
    %424 = vmatpush1.bf16.xpose.msra.mxu0 0
    %425 = vmatprep.subr.bf16.mxu0 0
    %426 = vmatpush1.bf16.xpose.msra.mxu0 0
    %427 = vmatprep.subr.bf16.mxu0 0
    %428 = vmatpush1.bf16.xpose.msra.mxu0 0
    %429 = vmatprep.subr.bf16.mxu0 0
    %430 = vmatpush1.bf16.xpose.msra.mxu0 0
    %431 = vmatprep.subr.bf16.mxu0 0
    %432 = vmatpush1.bf16.xpose.msra.mxu0 0
    %433 = vmatprep.subr.bf16.mxu0 0
    %434 = vmatpush1.bf16.xpose.msra.mxu0 0
    %435 = vmatprep.subr.bf16.mxu0 0
    %436 = vmatpush1.bf16.xpose.msra.mxu0 0
    %437 = vmatprep.subr.bf16.mxu0 0
    %438 = vmatpush1.bf16.xpose.msra.mxu0 0
    %439 = vmatprep.subr.bf16.mxu0 0
    %440 = vmatpush1.bf16.xpose.msra.mxu0 0
    %441 = vmatprep.mubr.bf16.mxu0 0
    %442 = vmatmul.mubr.bf16.gmra.mrb[0].mxu0 %v404
    %v443 = vpop.f32.mrb[0].mxu0
    %v444 = vadd.f32 0.0, %v443
    %v445 = vpop.f32.mrb[0].mxu0
    %v446 = vpop.f32.mrb[0].mxu0
    %v447 = vpop.f32.mrb[0].mxu0
    %448 = vdwg.mxu0
    %450 = vrot.lane.b32.xlu0 %v390, 96
    %v451 = vpop.permute.xlu0 %450
    %v453 = vsel %vm402, %v390, 0
    %v456 = vsel %vm402, %v451, 0
    %458 = vmatprep.subr.bf16.mxu0 0
    %459 = vmatpush1.bf16.xpose.msra.mxu0 %v456
    %460 = vmatprep.subr.bf16.mxu0 0
    %461 = vmatpush1.bf16.xpose.msra.mxu0 0
    %462 = vmatprep.subr.bf16.mxu0 0
    %463 = vmatpush1.bf16.xpose.msra.mxu0 0
    %464 = vmatprep.subr.bf16.mxu0 0
    %465 = vmatpush1.bf16.xpose.msra.mxu0 0
    %466 = vmatprep.subr.bf16.mxu0 0
    %467 = vmatpush1.bf16.xpose.msra.mxu0 0
    %468 = vmatprep.subr.bf16.mxu0 0
    %469 = vmatpush1.bf16.xpose.msra.mxu0 0
    %470 = vmatprep.subr.bf16.mxu0 0
    %471 = vmatpush1.bf16.xpose.msra.mxu0 0
    %472 = vmatprep.subr.bf16.mxu0 0
    %473 = vmatpush1.bf16.xpose.msra.mxu0 0
    %474 = vmatprep.subr.bf16.mxu0 0
    %475 = vmatpush1.bf16.xpose.msra.mxu0 0
    %476 = vmatprep.subr.bf16.mxu0 0
    %477 = vmatpush1.bf16.xpose.msra.mxu0 0
    %478 = vmatprep.subr.bf16.mxu0 0
    %479 = vmatpush1.bf16.xpose.msra.mxu0 0
    %480 = vmatprep.subr.bf16.mxu0 0
    %481 = vmatpush1.bf16.xpose.msra.mxu0 0
    %482 = vmatprep.subr.bf16.mxu0 0
    %483 = vmatpush1.bf16.xpose.msra.mxu0 0
    %484 = vmatprep.subr.bf16.mxu0 0
    %485 = vmatpush1.bf16.xpose.msra.mxu0 0
    %486 = vmatprep.subr.bf16.mxu0 0
    %487 = vmatpush1.bf16.xpose.msra.mxu0 0
    %488 = vmatprep.subr.bf16.mxu0 0
    %489 = vmatpush1.bf16.xpose.msra.mxu0 0
    %490 = vmatprep.mubr.bf16.mxu0 0
    %491 = vmatmul.mubr.bf16.gmra.mrb[0].mxu0 %v453
    %v492 = vpop.f32.mrb[0].mxu0
    %v493 = vadd.f32 0.0, %v492
    %v494 = vpop.f32.mrb[0].mxu0
    %v495 = vpop.f32.mrb[0].mxu0
    %v496 = vpop.f32.mrb[0].mxu0
    %497 = vdwg.mxu0
    %499 = vrot.lane.b32.xlu0 %v391, 96
    %v500 = vpop.permute.xlu0 %499
    %v502 = vsel %vm402, %v391, 0
    %v505 = vsel %vm402, %v500, 0
    %507 = vmatprep.subr.bf16.mxu0 0
    %508 = vmatpush1.bf16.xpose.msra.mxu0 %v505
    %509 = vmatprep.subr.bf16.mxu0 0
    %510 = vmatpush1.bf16.xpose.msra.mxu0 0
    %511 = vmatprep.subr.bf16.mxu0 0
    %512 = vmatpush1.bf16.xpose.msra.mxu0 0
    %513 = vmatprep.subr.bf16.mxu0 0
    %514 = vmatpush1.bf16.xpose.msra.mxu0 0
    %515 = vmatprep.subr.bf16.mxu0 0
    %516 = vmatpush1.bf16.xpose.msra.mxu0 0
    %517 = vmatprep.subr.bf16.mxu0 0
    %518 = vmatpush1.bf16.xpose.msra.mxu0 0
    %519 = vmatprep.subr.bf16.mxu0 0
    %520 = vmatpush1.bf16.xpose.msra.mxu0 0
    %521 = vmatprep.subr.bf16.mxu0 0
    %522 = vmatpush1.bf16.xpose.msra.mxu0 0
    %523 = vmatprep.subr.bf16.mxu0 0
    %524 = vmatpush1.bf16.xpose.msra.mxu0 0
    %525 = vmatprep.subr.bf16.mxu0 0
    %526 = vmatpush1.bf16.xpose.msra.mxu0 0
    %527 = vmatprep.subr.bf16.mxu0 0
    %528 = vmatpush1.bf16.xpose.msra.mxu0 0
    %529 = vmatprep.subr.bf16.mxu0 0
    %530 = vmatpush1.bf16.xpose.msra.mxu0 0
    %531 = vmatprep.subr.bf16.mxu0 0
    %532 = vmatpush1.bf16.xpose.msra.mxu0 0
    %533 = vmatprep.subr.bf16.mxu0 0
    %534 = vmatpush1.bf16.xpose.msra.mxu0 0
    %535 = vmatprep.subr.bf16.mxu0 0
    %536 = vmatpush1.bf16.xpose.msra.mxu0 0
    %537 = vmatprep.subr.bf16.mxu0 0
    %538 = vmatpush1.bf16.xpose.msra.mxu0 0
    %539 = vmatprep.mubr.bf16.mxu0 0
    %540 = vmatmul.mubr.bf16.gmra.mrb[0].mxu0 %v502
    %v541 = vpop.f32.mrb[0].mxu0
    %v542 = vadd.f32 0.0, %v541
    %v543 = vpop.f32.mrb[0].mxu0
    %v544 = vpop.f32.mrb[0].mxu0
    %v545 = vpop.f32.mrb[0].mxu0
    %546 = vdwg.mxu0
    %548 = vrot.lane.b32.xlu0 %v392, 96
    %v549 = vpop.permute.xlu0 %548
    %v551 = vsel %vm402, %v392, 0
    %v554 = vsel %vm402, %v549, 0
    %556 = vmatprep.subr.bf16.mxu0 0
    %557 = vmatpush1.bf16.xpose.msra.mxu0 %v554
    %558 = vmatprep.subr.bf16.mxu0 0
    %559 = vmatpush1.bf16.xpose.msra.mxu0 0
    %560 = vmatprep.subr.bf16.mxu0 0
    %561 = vmatpush1.bf16.xpose.msra.mxu0 0
    %562 = vmatprep.subr.bf16.mxu0 0
    %563 = vmatpush1.bf16.xpose.msra.mxu0 0
    %564 = vmatprep.subr.bf16.mxu0 0
    %565 = vmatpush1.bf16.xpose.msra.mxu0 0
    %566 = vmatprep.subr.bf16.mxu0 0
    %567 = vmatpush1.bf16.xpose.msra.mxu0 0
    %568 = vmatprep.subr.bf16.mxu0 0
    %569 = vmatpush1.bf16.xpose.msra.mxu0 0
    %570 = vmatprep.subr.bf16.mxu0 0
    %571 = vmatpush1.bf16.xpose.msra.mxu0 0
    %572 = vmatprep.subr.bf16.mxu0 0
    %573 = vmatpush1.bf16.xpose.msra.mxu0 0
    %574 = vmatprep.subr.bf16.mxu0 0
    %575 = vmatpush1.bf16.xpose.msra.mxu0 0
    %576 = vmatprep.subr.bf16.mxu0 0
    %577 = vmatpush1.bf16.xpose.msra.mxu0 0
    %578 = vmatprep.subr.bf16.mxu0 0
    %579 = vmatpush1.bf16.xpose.msra.mxu0 0
    %580 = vmatprep.subr.bf16.mxu0 0
    %581 = vmatpush1.bf16.xpose.msra.mxu0 0
    %582 = vmatprep.subr.bf16.mxu0 0
    %583 = vmatpush1.bf16.xpose.msra.mxu0 0
    %584 = vmatprep.subr.bf16.mxu0 0
    %585 = vmatpush1.bf16.xpose.msra.mxu0 0
    %586 = vmatprep.subr.bf16.mxu0 0
    %587 = vmatpush1.bf16.xpose.msra.mxu0 0
    %588 = vmatprep.mubr.bf16.mxu0 0
    %589 = vmatmul.mubr.bf16.gmra.mrb[0].mxu0 %v551
    %v590 = vpop.f32.mrb[0].mxu0
    %v591 = vadd.f32 0.0, %v590
    %v592 = vpop.f32.mrb[0].mxu0
    %v593 = vpop.f32.mrb[0].mxu0
    %v594 = vpop.f32.mrb[0].mxu0
    %595 = vdwg.mxu0
    %597 = vrot.lane.b32.xlu0 %v393, 96
    %v598 = vpop.permute.xlu0 %597
    %v600 = vsel %vm402, %v393, 0
    %v603 = vsel %vm402, %v598, 0
    %605 = vmatprep.subr.bf16.mxu0 0
    %606 = vmatpush1.bf16.xpose.msra.mxu0 %v603
    %607 = vmatprep.subr.bf16.mxu0 0
    %608 = vmatpush1.bf16.xpose.msra.mxu0 0
    %609 = vmatprep.subr.bf16.mxu0 0
    %610 = vmatpush1.bf16.xpose.msra.mxu0 0
    %611 = vmatprep.subr.bf16.mxu0 0
    %612 = vmatpush1.bf16.xpose.msra.mxu0 0
    %613 = vmatprep.subr.bf16.mxu0 0
    %614 = vmatpush1.bf16.xpose.msra.mxu0 0
    %615 = vmatprep.subr.bf16.mxu0 0
    %616 = vmatpush1.bf16.xpose.msra.mxu0 0
    %617 = vmatprep.subr.bf16.mxu0 0
    %618 = vmatpush1.bf16.xpose.msra.mxu0 0
    %619 = vmatprep.subr.bf16.mxu0 0
    %620 = vmatpush1.bf16.xpose.msra.mxu0 0
    %621 = vmatprep.subr.bf16.mxu0 0
    %622 = vmatpush1.bf16.xpose.msra.mxu0 0
    %623 = vmatprep.subr.bf16.mxu0 0
    %624 = vmatpush1.bf16.xpose.msra.mxu0 0
    %625 = vmatprep.subr.bf16.mxu0 0
    %626 = vmatpush1.bf16.xpose.msra.mxu0 0
    %627 = vmatprep.subr.bf16.mxu0 0
    %628 = vmatpush1.bf16.xpose.msra.mxu0 0
    %629 = vmatprep.subr.bf16.mxu0 0
    %630 = vmatpush1.bf16.xpose.msra.mxu0 0
    %631 = vmatprep.subr.bf16.mxu0 0
    %632 = vmatpush1.bf16.xpose.msra.mxu0 0
    %633 = vmatprep.subr.bf16.mxu0 0
    %634 = vmatpush1.bf16.xpose.msra.mxu0 0
    %635 = vmatprep.subr.bf16.mxu0 0
    %636 = vmatpush1.bf16.xpose.msra.mxu0 0
    %637 = vmatprep.mubr.bf16.mxu0 0
    %638 = vmatmul.mubr.bf16.gmra.mrb[0].mxu0 %v600
    %v639 = vpop.f32.mrb[0].mxu0
    %v640 = vadd.f32 0.0, %v639
    %v641 = vpop.f32.mrb[0].mxu0
    %v642 = vpop.f32.mrb[0].mxu0
    %v643 = vpop.f32.mrb[0].mxu0
    %644 = vdwg.mxu0
    %646 = vrot.lane.b32.xlu0 %v394, 96
    %v647 = vpop.permute.xlu0 %646
    %v649 = vsel %vm402, %v394, 0
    %v652 = vsel %vm402, %v647, 0
    %654 = vmatprep.subr.bf16.mxu0 0
    %655 = vmatpush1.bf16.xpose.msra.mxu0 %v652
    %656 = vmatprep.subr.bf16.mxu0 0
    %657 = vmatpush1.bf16.xpose.msra.mxu0 0
    %658 = vmatprep.subr.bf16.mxu0 0
    %659 = vmatpush1.bf16.xpose.msra.mxu0 0
    %660 = vmatprep.subr.bf16.mxu0 0
    %661 = vmatpush1.bf16.xpose.msra.mxu0 0
    %662 = vmatprep.subr.bf16.mxu0 0
    %663 = vmatpush1.bf16.xpose.msra.mxu0 0
    %664 = vmatprep.subr.bf16.mxu0 0
    %665 = vmatpush1.bf16.xpose.msra.mxu0 0
    %666 = vmatprep.subr.bf16.mxu0 0
    %667 = vmatpush1.bf16.xpose.msra.mxu0 0
    %668 = vmatprep.subr.bf16.mxu0 0
    %669 = vmatpush1.bf16.xpose.msra.mxu0 0
    %670 = vmatprep.subr.bf16.mxu0 0
    %671 = vmatpush1.bf16.xpose.msra.mxu0 0
    %672 = vmatprep.subr.bf16.mxu0 0
    %673 = vmatpush1.bf16.xpose.msra.mxu0 0
    %674 = vmatprep.subr.bf16.mxu0 0
    %675 = vmatpush1.bf16.xpose.msra.mxu0 0
    %676 = vmatprep.subr.bf16.mxu0 0
    %677 = vmatpush1.bf16.xpose.msra.mxu0 0
    %678 = vmatprep.subr.bf16.mxu0 0
    %679 = vmatpush1.bf16.xpose.msra.mxu0 0
    %680 = vmatprep.subr.bf16.mxu0 0
    %681 = vmatpush1.bf16.xpose.msra.mxu0 0
    %682 = vmatprep.subr.bf16.mxu0 0
    %683 = vmatpush1.bf16.xpose.msra.mxu0 0
    %684 = vmatprep.subr.bf16.mxu0 0
    %685 = vmatpush1.bf16.xpose.msra.mxu0 0
    %686 = vmatprep.mubr.bf16.mxu0 0
    %687 = vmatmul.mubr.bf16.gmra.mrb[0].mxu0 %v649
    %v688 = vpop.f32.mrb[0].mxu0
    %v689 = vadd.f32 0.0, %v688
    %v690 = vpop.f32.mrb[0].mxu0
    %v691 = vpop.f32.mrb[0].mxu0
    %v692 = vpop.f32.mrb[0].mxu0
    %693 = vdwg.mxu0
    %695 = vrot.lane.b32.xlu0 %v395, 96
    %v696 = vpop.permute.xlu0 %695
    %v698 = vsel %vm402, %v395, 0
    %v701 = vsel %vm402, %v696, 0
    %703 = vmatprep.subr.bf16.mxu0 0
    %704 = vmatpush1.bf16.xpose.msra.mxu0 %v701
    %705 = vmatprep.subr.bf16.mxu0 0
    %706 = vmatpush1.bf16.xpose.msra.mxu0 0
    %707 = vmatprep.subr.bf16.mxu0 0
    %708 = vmatpush1.bf16.xpose.msra.mxu0 0
    %709 = vmatprep.subr.bf16.mxu0 0
    %710 = vmatpush1.bf16.xpose.msra.mxu0 0
    %711 = vmatprep.subr.bf16.mxu0 0
    %712 = vmatpush1.bf16.xpose.msra.mxu0 0
    %713 = vmatprep.subr.bf16.mxu0 0
    %714 = vmatpush1.bf16.xpose.msra.mxu0 0
    %715 = vmatprep.subr.bf16.mxu0 0
    %716 = vmatpush1.bf16.xpose.msra.mxu0 0
    %717 = vmatprep.subr.bf16.mxu0 0
    %718 = vmatpush1.bf16.xpose.msra.mxu0 0
    %719 = vmatprep.subr.bf16.mxu0 0
    %720 = vmatpush1.bf16.xpose.msra.mxu0 0
    %721 = vmatprep.subr.bf16.mxu0 0
    %722 = vmatpush1.bf16.xpose.msra.mxu0 0
    %723 = vmatprep.subr.bf16.mxu0 0
    %724 = vmatpush1.bf16.xpose.msra.mxu0 0
    %725 = vmatprep.subr.bf16.mxu0 0
    %726 = vmatpush1.bf16.xpose.msra.mxu0 0
    %727 = vmatprep.subr.bf16.mxu0 0
    %728 = vmatpush1.bf16.xpose.msra.mxu0 0
    %729 = vmatprep.subr.bf16.mxu0 0
    %730 = vmatpush1.bf16.xpose.msra.mxu0 0
    %731 = vmatprep.subr.bf16.mxu0 0
    %732 = vmatpush1.bf16.xpose.msra.mxu0 0
    %733 = vmatprep.subr.bf16.mxu0 0
    %734 = vmatpush1.bf16.xpose.msra.mxu0 0
    %735 = vmatprep.mubr.bf16.mxu0 0
    %736 = vmatmul.mubr.bf16.gmra.mrb[0].mxu0 %v698
    %v737 = vpop.f32.mrb[0].mxu0
    %v738 = vadd.f32 0.0, %v737
    %v739 = vpop.f32.mrb[0].mxu0
    %v740 = vpop.f32.mrb[0].mxu0
    %v741 = vpop.f32.mrb[0].mxu0
    %742 = vdwg.mxu0
    %744 = vrot.lane.b32.xlu0 %v396, 96
    %v745 = vpop.permute.xlu0 %744
    %v747 = vsel %vm402, %v396, 0
    %v750 = vsel %vm402, %v745, 0
    %752 = vmatprep.subr.bf16.mxu0 0
    %753 = vmatpush1.bf16.xpose.msra.mxu0 %v750
    %754 = vmatprep.subr.bf16.mxu0 0
    %755 = vmatpush1.bf16.xpose.msra.mxu0 0
    %756 = vmatprep.subr.bf16.mxu0 0
    %757 = vmatpush1.bf16.xpose.msra.mxu0 0
    %758 = vmatprep.subr.bf16.mxu0 0
    %759 = vmatpush1.bf16.xpose.msra.mxu0 0
    %760 = vmatprep.subr.bf16.mxu0 0
    %761 = vmatpush1.bf16.xpose.msra.mxu0 0
    %762 = vmatprep.subr.bf16.mxu0 0
    %763 = vmatpush1.bf16.xpose.msra.mxu0 0
    %764 = vmatprep.subr.bf16.mxu0 0
    %765 = vmatpush1.bf16.xpose.msra.mxu0 0
    %766 = vmatprep.subr.bf16.mxu0 0
    %767 = vmatpush1.bf16.xpose.msra.mxu0 0
    %768 = vmatprep.subr.bf16.mxu0 0
    %769 = vmatpush1.bf16.xpose.msra.mxu0 0
    %770 = vmatprep.subr.bf16.mxu0 0
    %771 = vmatpush1.bf16.xpose.msra.mxu0 0
    %772 = vmatprep.subr.bf16.mxu0 0
    %773 = vmatpush1.bf16.xpose.msra.mxu0 0
    %774 = vmatprep.subr.bf16.mxu0 0
    %775 = vmatpush1.bf16.xpose.msra.mxu0 0
    %776 = vmatprep.subr.bf16.mxu0 0
    %777 = vmatpush1.bf16.xpose.msra.mxu0 0
    %778 = vmatprep.subr.bf16.mxu0 0
    %779 = vmatpush1.bf16.xpose.msra.mxu0 0
    %780 = vmatprep.subr.bf16.mxu0 0
    %781 = vmatpush1.bf16.xpose.msra.mxu0 0
    %782 = vmatprep.subr.bf16.mxu0 0
    %783 = vmatpush1.bf16.xpose.msra.mxu0 0
    %784 = vmatprep.mubr.bf16.mxu0 0
    %785 = vmatmul.mubr.bf16.gmra.mrb[0].mxu0 %v747
    %v786 = vpop.f32.mrb[0].mxu0
    %v787 = vadd.f32 0.0, %v786
    %v788 = vpop.f32.mrb[0].mxu0
    %v789 = vpop.f32.mrb[0].mxu0
    %v790 = vpop.f32.mrb[0].mxu0
    %791 = vdwg.mxu0
    %v792 = vmul.f32 %v444, 0.35355338
    %v793 = vmul.f32 %v493, 0.35355338
    %v794 = vmul.f32 %v542, 0.35355338
    %v795 = vmul.f32 %v591, 0.35355338
    %v796 = vmul.f32 %v640, 0.35355338
    %v797 = vmul.f32 %v689, 0.35355338
    %v798 = vmul.f32 %v738, 0.35355338
    %v799 = vmul.f32 %v787, 0.35355338
    %v800 = vsel %vm402, %v792, -inf
    %801 = vmax.xlane.f32.xlu0 %v800
    %v802 = vpop.xlane.xlu0 %801
    %v803 = vsel %vm402, %v793, -inf
    %804 = vmax.xlane.f32.xlu0 %v803
    %v805 = vpop.xlane.xlu0 %804
    %v806 = vsel %vm402, %v794, -inf
    %807 = vmax.xlane.f32.xlu0 %v806
    %v808 = vpop.xlane.xlu0 %807
    %v809 = vsel %vm402, %v795, -inf
    %810 = vmax.xlane.f32.xlu0 %v809
    %v811 = vpop.xlane.xlu0 %810
    %v812 = vsel %vm402, %v796, -inf
    %813 = vmax.xlane.f32.xlu0 %v812
    %v814 = vpop.xlane.xlu0 %813
    %v815 = vsel %vm402, %v797, -inf
    %816 = vmax.xlane.f32.xlu0 %v815
    %v817 = vpop.xlane.xlu0 %816
    %v818 = vsel %vm402, %v798, -inf
    %819 = vmax.xlane.f32.xlu0 %v818
    %v820 = vpop.xlane.xlu0 %819
    %v821 = vsel %vm402, %v799, -inf
    %822 = vmax.xlane.f32.xlu0 %v821
    %v823 = vpop.xlane.xlu0 %822
    %v824 = vsub.f32 %v792, %v802
    %v825 = vsub.f32 %v793, %v805
    %v826 = vsub.f32 %v794, %v808
    %v827 = vsub.f32 %v795, %v811
    %v828 = vsub.f32 %v796, %v814
    %v829 = vsub.f32 %v797, %v817
    %v830 = vsub.f32 %v798, %v820
    %v831 = vsub.f32 %v799, %v823
    %v832 = vmul.f32 %v824, 1.442695
    %v833 = vpow.pop %v832
    %v834 = vmul.f32 %v825, 1.442695
    %v835 = vpow.pop %v834
    %v836 = vmul.f32 %v826, 1.442695
    %v837 = vpow.pop %v836
    %v838 = vmul.f32 %v827, 1.442695
    %v839 = vpow.pop %v838
    %v840 = vmul.f32 %v828, 1.442695
    %v841 = vpow.pop %v840
    %v842 = vmul.f32 %v829, 1.442695
    %v843 = vpow.pop %v842
    %v844 = vmul.f32 %v830, 1.442695
    %v845 = vpow.pop %v844
    %v846 = vmul.f32 %v831, 1.442695
    %v847 = vpow.pop %v846
    %v848 = vsel %vm402, %v833, 0.0
    %849 = vadd.xlane.f32.xlu0 %v848
    %v850 = vpop.xlane.xlu0 %849
    %v851 = vsel %vm402, %v835, 0.0
    %852 = vadd.xlane.f32.xlu0 %v851
    %v853 = vpop.xlane.xlu0 %852
    %v854 = vsel %vm402, %v837, 0.0
    %855 = vadd.xlane.f32.xlu0 %v854
    %v856 = vpop.xlane.xlu0 %855
    %v857 = vsel %vm402, %v839, 0.0
    %858 = vadd.xlane.f32.xlu0 %v857
    %v859 = vpop.xlane.xlu0 %858
    %v860 = vsel %vm402, %v841, 0.0
    %861 = vadd.xlane.f32.xlu0 %v860
    %v862 = vpop.xlane.xlu0 %861
    %v863 = vsel %vm402, %v843, 0.0
    %864 = vadd.xlane.f32.xlu0 %v863
    %v865 = vpop.xlane.xlu0 %864
    %v866 = vsel %vm402, %v845, 0.0
    %867 = vadd.xlane.f32.xlu0 %v866
    %v868 = vpop.xlane.xlu0 %867
    %v869 = vsel %vm402, %v847, 0.0
    %870 = vadd.xlane.f32.xlu0 %v869
    %v871 = vpop.xlane.xlu0 %870
    %v872 = vrcp.pop %v850
    %v873 = vmul.f32 %v833, %v872
    %v874 = vrcp.pop %v853
    %v875 = vmul.f32 %v835, %v874
    %v876 = vrcp.pop %v856
    %v877 = vmul.f32 %v837, %v876
    %v878 = vrcp.pop %v859
    %v879 = vmul.f32 %v839, %v878
    %v880 = vrcp.pop %v862
    %v881 = vmul.f32 %v841, %v880
    %v882 = vrcp.pop %v865
    %v883 = vmul.f32 %v843, %v882
    %v884 = vrcp.pop %v868
    %v885 = vmul.f32 %v845, %v884
    %v886 = vrcp.pop %v871
    %v887 = vmul.f32 %v847, %v886
    %v888 = vpack.c.bf16 %v873, %v873
    %v889 = vpack.c.bf16 %v875, %v875
    %v890 = vpack.c.bf16 %v877, %v877
    %v891 = vpack.c.bf16 %v879, %v879
    %v892 = vpack.c.bf16 %v881, %v881
    %v893 = vpack.c.bf16 %v883, %v883
    %v894 = vpack.c.bf16 %v885, %v885
    %v895 = vpack.c.bf16 %v887, %v887
    %v897 = vsel %vm402, %v888, 0
    %vm899 = vcmask 1043456
    %v901 = vsel %vm899, %v397, 0
    %903 = vmatprep.subr.bf16.mxu0 0
    %904 = vmatpush1.bf16.msra.mxu0 %v901
    %905 = vmatprep.subr.bf16.mxu0 0
    %906 = vmatpush1.bf16.msra.mxu0 0
    %907 = vmatprep.subr.bf16.mxu0 0
    %908 = vmatpush1.bf16.msra.mxu0 0
    %909 = vmatprep.subr.bf16.mxu0 0
    %910 = vmatpush1.bf16.msra.mxu0 0
    %911 = vmatprep.subr.bf16.mxu0 0
    %912 = vmatpush1.bf16.msra.mxu0 0
    %913 = vmatprep.subr.bf16.mxu0 0
    %914 = vmatpush1.bf16.msra.mxu0 0
    %915 = vmatprep.subr.bf16.mxu0 0
    %916 = vmatpush1.bf16.msra.mxu0 0
    %917 = vmatprep.subr.bf16.mxu0 0
    %918 = vmatpush1.bf16.msra.mxu0 0
    %919 = vmatprep.subr.bf16.mxu0 0
    %920 = vmatpush1.bf16.msra.mxu0 0
    %921 = vmatprep.subr.bf16.mxu0 0
    %922 = vmatpush1.bf16.msra.mxu0 0
    %923 = vmatprep.subr.bf16.mxu0 0
    %924 = vmatpush1.bf16.msra.mxu0 0
    %925 = vmatprep.subr.bf16.mxu0 0
    %926 = vmatpush1.bf16.msra.mxu0 0
    %927 = vmatprep.subr.bf16.mxu0 0
    %928 = vmatpush1.bf16.msra.mxu0 0
    %929 = vmatprep.subr.bf16.mxu0 0
    %930 = vmatpush1.bf16.msra.mxu0 0
    %931 = vmatprep.subr.bf16.mxu0 0
    %932 = vmatpush1.bf16.msra.mxu0 0
    %933 = vmatprep.subr.bf16.mxu0 0
    %934 = vmatpush1.bf16.msra.mxu0 0
    %935 = vmatprep.mubr.bf16.mxu0 0
    %936 = vmatmul.mubr.bf16.gmra.mrb[0].mxu0 %v897
    %v937 = vpop.f32.mrb[0].mxu0
    %v938 = vadd.f32 0.0, %v937
    %v939 = vpop.f32.mrb[0].mxu0
    %v940 = vpop.f32.mrb[0].mxu0
    %v941 = vpop.f32.mrb[0].mxu0
    %942 = vdwg.mxu0
    %v944 = vsel %vm402, %v889, 0
    %946 = vmatprep.subr.bf16.mxu0 0
    %947 = vmatpush1.bf16.msra.mxu0 %v901
    %948 = vmatprep.subr.bf16.mxu0 0
    %949 = vmatpush1.bf16.msra.mxu0 0
    %950 = vmatprep.subr.bf16.mxu0 0
    %951 = vmatpush1.bf16.msra.mxu0 0
    %952 = vmatprep.subr.bf16.mxu0 0
    %953 = vmatpush1.bf16.msra.mxu0 0
    %954 = vmatprep.subr.bf16.mxu0 0
    %955 = vmatpush1.bf16.msra.mxu0 0
    %956 = vmatprep.subr.bf16.mxu0 0
    %957 = vmatpush1.bf16.msra.mxu0 0
    %958 = vmatprep.subr.bf16.mxu0 0
    %959 = vmatpush1.bf16.msra.mxu0 0
    %960 = vmatprep.subr.bf16.mxu0 0
    %961 = vmatpush1.bf16.msra.mxu0 0
    %962 = vmatprep.subr.bf16.mxu0 0
    %963 = vmatpush1.bf16.msra.mxu0 0
    %964 = vmatprep.subr.bf16.mxu0 0
    %965 = vmatpush1.bf16.msra.mxu0 0
    %966 = vmatprep.subr.bf16.mxu0 0
    %967 = vmatpush1.bf16.msra.mxu0 0
    %968 = vmatprep.subr.bf16.mxu0 0
    %969 = vmatpush1.bf16.msra.mxu0 0
    %970 = vmatprep.subr.bf16.mxu0 0
    %971 = vmatpush1.bf16.msra.mxu0 0
    %972 = vmatprep.subr.bf16.mxu0 0
    %973 = vmatpush1.bf16.msra.mxu0 0
    %974 = vmatprep.subr.bf16.mxu0 0
    %975 = vmatpush1.bf16.msra.mxu0 0
    %976 = vmatprep.subr.bf16.mxu0 0
    %977 = vmatpush1.bf16.msra.mxu0 0
    %978 = vmatprep.mubr.bf16.mxu0 0
    %979 = vmatmul.mubr.bf16.gmra.mrb[0].mxu0 %v944
    %v980 = vpop.f32.mrb[0].mxu0
    %v981 = vadd.f32 0.0, %v980
    %v982 = vpop.f32.mrb[0].mxu0
    %v983 = vpop.f32.mrb[0].mxu0
    %v984 = vpop.f32.mrb[0].mxu0
    %985 = vdwg.mxu0
    %v987 = vsel %vm402, %v890, 0
    %989 = vmatprep.subr.bf16.mxu0 0
    %990 = vmatpush1.bf16.msra.mxu0 %v901
    %991 = vmatprep.subr.bf16.mxu0 0
    %992 = vmatpush1.bf16.msra.mxu0 0
    %993 = vmatprep.subr.bf16.mxu0 0
    %994 = vmatpush1.bf16.msra.mxu0 0
    %995 = vmatprep.subr.bf16.mxu0 0
    %996 = vmatpush1.bf16.msra.mxu0 0
    %997 = vmatprep.subr.bf16.mxu0 0
    %998 = vmatpush1.bf16.msra.mxu0 0
    %999 = vmatprep.subr.bf16.mxu0 0
    %1000 = vmatpush1.bf16.msra.mxu0 0
    %1001 = vmatprep.subr.bf16.mxu0 0
    %1002 = vmatpush1.bf16.msra.mxu0 0
    %1003 = vmatprep.subr.bf16.mxu0 0
    %1004 = vmatpush1.bf16.msra.mxu0 0
    %1005 = vmatprep.subr.bf16.mxu0 0
    %1006 = vmatpush1.bf16.msra.mxu0 0
    %1007 = vmatprep.subr.bf16.mxu0 0
    %1008 = vmatpush1.bf16.msra.mxu0 0
    %1009 = vmatprep.subr.bf16.mxu0 0
    %1010 = vmatpush1.bf16.msra.mxu0 0
    %1011 = vmatprep.subr.bf16.mxu0 0
    %1012 = vmatpush1.bf16.msra.mxu0 0
    %1013 = vmatprep.subr.bf16.mxu0 0
    %1014 = vmatpush1.bf16.msra.mxu0 0
    %1015 = vmatprep.subr.bf16.mxu0 0
    %1016 = vmatpush1.bf16.msra.mxu0 0
    %1017 = vmatprep.subr.bf16.mxu0 0
    %1018 = vmatpush1.bf16.msra.mxu0 0
    %1019 = vmatprep.subr.bf16.mxu0 0
    %1020 = vmatpush1.bf16.msra.mxu0 0
    %1021 = vmatprep.mubr.bf16.mxu0 0
    %1022 = vmatmul.mubr.bf16.gmra.mrb[0].mxu0 %v987
    %v1023 = vpop.f32.mrb[0].mxu0
    %v1024 = vadd.f32 0.0, %v1023
    %v1025 = vpop.f32.mrb[0].mxu0
    %v1026 = vpop.f32.mrb[0].mxu0
    %v1027 = vpop.f32.mrb[0].mxu0
    %1028 = vdwg.mxu0
    %v1030 = vsel %vm402, %v891, 0
    %1032 = vmatprep.subr.bf16.mxu0 0
    %1033 = vmatpush1.bf16.msra.mxu0 %v901
    %1034 = vmatprep.subr.bf16.mxu0 0
    %1035 = vmatpush1.bf16.msra.mxu0 0
    %1036 = vmatprep.subr.bf16.mxu0 0
    %1037 = vmatpush1.bf16.msra.mxu0 0
    %1038 = vmatprep.subr.bf16.mxu0 0
    %1039 = vmatpush1.bf16.msra.mxu0 0
    %1040 = vmatprep.subr.bf16.mxu0 0
    %1041 = vmatpush1.bf16.msra.mxu0 0
    %1042 = vmatprep.subr.bf16.mxu0 0
    %1043 = vmatpush1.bf16.msra.mxu0 0
    %1044 = vmatprep.subr.bf16.mxu0 0
    %1045 = vmatpush1.bf16.msra.mxu0 0
    %1046 = vmatprep.subr.bf16.mxu0 0
    %1047 = vmatpush1.bf16.msra.mxu0 0
    %1048 = vmatprep.subr.bf16.mxu0 0
    %1049 = vmatpush1.bf16.msra.mxu0 0
    %1050 = vmatprep.subr.bf16.mxu0 0
    %1051 = vmatpush1.bf16.msra.mxu0 0
    %1052 = vmatprep.subr.bf16.mxu0 0
    %1053 = vmatpush1.bf16.msra.mxu0 0
    %1054 = vmatprep.subr.bf16.mxu0 0
    %1055 = vmatpush1.bf16.msra.mxu0 0
    %1056 = vmatprep.subr.bf16.mxu0 0
    %1057 = vmatpush1.bf16.msra.mxu0 0
    %1058 = vmatprep.subr.bf16.mxu0 0
    %1059 = vmatpush1.bf16.msra.mxu0 0
    %1060 = vmatprep.subr.bf16.mxu0 0
    %1061 = vmatpush1.bf16.msra.mxu0 0
    %1062 = vmatprep.subr.bf16.mxu0 0
    %1063 = vmatpush1.bf16.msra.mxu0 0
    %1064 = vmatprep.mubr.bf16.mxu0 0
    %1065 = vmatmul.mubr.bf16.gmra.mrb[0].mxu0 %v1030
    %v1066 = vpop.f32.mrb[0].mxu0
    %v1067 = vadd.f32 0.0, %v1066
    %v1068 = vpop.f32.mrb[0].mxu0
    %v1069 = vpop.f32.mrb[0].mxu0
    %v1070 = vpop.f32.mrb[0].mxu0
    %1071 = vdwg.mxu0
    %v1073 = vsel %vm402, %v892, 0
    %v1076 = vsel %vm899, %v398, 0
    %1078 = vmatprep.subr.bf16.mxu0 0
    %1079 = vmatpush1.bf16.msra.mxu0 %v1076
    %1080 = vmatprep.subr.bf16.mxu0 0
    %1081 = vmatpush1.bf16.msra.mxu0 0
    %1082 = vmatprep.subr.bf16.mxu0 0
    %1083 = vmatpush1.bf16.msra.mxu0 0
    %1084 = vmatprep.subr.bf16.mxu0 0
    %1085 = vmatpush1.bf16.msra.mxu0 0
    %1086 = vmatprep.subr.bf16.mxu0 0
    %1087 = vmatpush1.bf16.msra.mxu0 0
    %1088 = vmatprep.subr.bf16.mxu0 0
    %1089 = vmatpush1.bf16.msra.mxu0 0
    %1090 = vmatprep.subr.bf16.mxu0 0
    %1091 = vmatpush1.bf16.msra.mxu0 0
    %1092 = vmatprep.subr.bf16.mxu0 0
    %1093 = vmatpush1.bf16.msra.mxu0 0
    %1094 = vmatprep.subr.bf16.mxu0 0
    %1095 = vmatpush1.bf16.msra.mxu0 0
    %1096 = vmatprep.subr.bf16.mxu0 0
    %1097 = vmatpush1.bf16.msra.mxu0 0
    %1098 = vmatprep.subr.bf16.mxu0 0
    %1099 = vmatpush1.bf16.msra.mxu0 0
    %1100 = vmatprep.subr.bf16.mxu0 0
    %1101 = vmatpush1.bf16.msra.mxu0 0
    %1102 = vmatprep.subr.bf16.mxu0 0
    %1103 = vmatpush1.bf16.msra.mxu0 0
    %1104 = vmatprep.subr.bf16.mxu0 0
    %1105 = vmatpush1.bf16.msra.mxu0 0
    %1106 = vmatprep.subr.bf16.mxu0 0
    %1107 = vmatpush1.bf16.msra.mxu0 0
    %1108 = vmatprep.subr.bf16.mxu0 0
    %1109 = vmatpush1.bf16.msra.mxu0 0
    %1110 = vmatprep.mubr.bf16.mxu0 0
    %1111 = vmatmul.mubr.bf16.gmra.mrb[0].mxu0 %v1073
    %v1112 = vpop.f32.mrb[0].mxu0
    %v1113 = vadd.f32 0.0, %v1112
    %v1114 = vpop.f32.mrb[0].mxu0
    %v1115 = vpop.f32.mrb[0].mxu0
    %v1116 = vpop.f32.mrb[0].mxu0
    %1117 = vdwg.mxu0
    %v1119 = vsel %vm402, %v893, 0
    %1121 = vmatprep.subr.bf16.mxu0 0
    %1122 = vmatpush1.bf16.msra.mxu0 %v1076
    %1123 = vmatprep.subr.bf16.mxu0 0
    %1124 = vmatpush1.bf16.msra.mxu0 0
    %1125 = vmatprep.subr.bf16.mxu0 0
    %1126 = vmatpush1.bf16.msra.mxu0 0
    %1127 = vmatprep.subr.bf16.mxu0 0
    %1128 = vmatpush1.bf16.msra.mxu0 0
    %1129 = vmatprep.subr.bf16.mxu0 0
    %1130 = vmatpush1.bf16.msra.mxu0 0
    %1131 = vmatprep.subr.bf16.mxu0 0
    %1132 = vmatpush1.bf16.msra.mxu0 0
    %1133 = vmatprep.subr.bf16.mxu0 0
    %1134 = vmatpush1.bf16.msra.mxu0 0
    %1135 = vmatprep.subr.bf16.mxu0 0
    %1136 = vmatpush1.bf16.msra.mxu0 0
    %1137 = vmatprep.subr.bf16.mxu0 0
    %1138 = vmatpush1.bf16.msra.mxu0 0
    %1139 = vmatprep.subr.bf16.mxu0 0
    %1140 = vmatpush1.bf16.msra.mxu0 0
    %1141 = vmatprep.subr.bf16.mxu0 0
    %1142 = vmatpush1.bf16.msra.mxu0 0
    %1143 = vmatprep.subr.bf16.mxu0 0
    %1144 = vmatpush1.bf16.msra.mxu0 0
    %1145 = vmatprep.subr.bf16.mxu0 0
    %1146 = vmatpush1.bf16.msra.mxu0 0
    %1147 = vmatprep.subr.bf16.mxu0 0
    %1148 = vmatpush1.bf16.msra.mxu0 0
    %1149 = vmatprep.subr.bf16.mxu0 0
    %1150 = vmatpush1.bf16.msra.mxu0 0
    %1151 = vmatprep.subr.bf16.mxu0 0
    %1152 = vmatpush1.bf16.msra.mxu0 0
    %1153 = vmatprep.mubr.bf16.mxu0 0
    %1154 = vmatmul.mubr.bf16.gmra.mrb[0].mxu0 %v1119
    %v1155 = vpop.f32.mrb[0].mxu0
    %v1156 = vadd.f32 0.0, %v1155
    %v1157 = vpop.f32.mrb[0].mxu0
    %v1158 = vpop.f32.mrb[0].mxu0
    %v1159 = vpop.f32.mrb[0].mxu0
    %1160 = vdwg.mxu0
    %v1162 = vsel %vm402, %v894, 0
    %1164 = vmatprep.subr.bf16.mxu0 0
    %1165 = vmatpush1.bf16.msra.mxu0 %v1076
    %1166 = vmatprep.subr.bf16.mxu0 0
    %1167 = vmatpush1.bf16.msra.mxu0 0
    %1168 = vmatprep.subr.bf16.mxu0 0
    %1169 = vmatpush1.bf16.msra.mxu0 0
    %1170 = vmatprep.subr.bf16.mxu0 0
    %1171 = vmatpush1.bf16.msra.mxu0 0
    %1172 = vmatprep.subr.bf16.mxu0 0
    %1173 = vmatpush1.bf16.msra.mxu0 0
    %1174 = vmatprep.subr.bf16.mxu0 0
    %1175 = vmatpush1.bf16.msra.mxu0 0
    %1176 = vmatprep.subr.bf16.mxu0 0
    %1177 = vmatpush1.bf16.msra.mxu0 0
    %1178 = vmatprep.subr.bf16.mxu0 0
    %1179 = vmatpush1.bf16.msra.mxu0 0
    %1180 = vmatprep.subr.bf16.mxu0 0
    %1181 = vmatpush1.bf16.msra.mxu0 0
    %1182 = vmatprep.subr.bf16.mxu0 0
    %1183 = vmatpush1.bf16.msra.mxu0 0
    %1184 = vmatprep.subr.bf16.mxu0 0
    %1185 = vmatpush1.bf16.msra.mxu0 0
    %1186 = vmatprep.subr.bf16.mxu0 0
    %1187 = vmatpush1.bf16.msra.mxu0 0
    %1188 = vmatprep.subr.bf16.mxu0 0
    %1189 = vmatpush1.bf16.msra.mxu0 0
    %1190 = vmatprep.subr.bf16.mxu0 0
    %1191 = vmatpush1.bf16.msra.mxu0 0
    %1192 = vmatprep.subr.bf16.mxu0 0
    %1193 = vmatpush1.bf16.msra.mxu0 0
    %1194 = vmatprep.subr.bf16.mxu0 0
    %1195 = vmatpush1.bf16.msra.mxu0 0
    %1196 = vmatprep.mubr.bf16.mxu0 0
    %1197 = vmatmul.mubr.bf16.gmra.mrb[0].mxu0 %v1162
    %v1198 = vpop.f32.mrb[0].mxu0
    %v1199 = vadd.f32 0.0, %v1198
    %v1200 = vpop.f32.mrb[0].mxu0
    %v1201 = vpop.f32.mrb[0].mxu0
    %v1202 = vpop.f32.mrb[0].mxu0
    %1203 = vdwg.mxu0
    %v1205 = vsel %vm402, %v895, 0
    %1207 = vmatprep.subr.bf16.mxu0 0
    %1208 = vmatpush1.bf16.msra.mxu0 %v1076
    %1209 = vmatprep.subr.bf16.mxu0 0
    %1210 = vmatpush1.bf16.msra.mxu0 0
    %1211 = vmatprep.subr.bf16.mxu0 0
    %1212 = vmatpush1.bf16.msra.mxu0 0
    %1213 = vmatprep.subr.bf16.mxu0 0
    %1214 = vmatpush1.bf16.msra.mxu0 0
    %1215 = vmatprep.subr.bf16.mxu0 0
    %1216 = vmatpush1.bf16.msra.mxu0 0
    %1217 = vmatprep.subr.bf16.mxu0 0
    %1218 = vmatpush1.bf16.msra.mxu0 0
    %1219 = vmatprep.subr.bf16.mxu0 0
    %1220 = vmatpush1.bf16.msra.mxu0 0
    %1221 = vmatprep.subr.bf16.mxu0 0
    %1222 = vmatpush1.bf16.msra.mxu0 0
    %1223 = vmatprep.subr.bf16.mxu0 0
    %1224 = vmatpush1.bf16.msra.mxu0 0
    %1225 = vmatprep.subr.bf16.mxu0 0
    %1226 = vmatpush1.bf16.msra.mxu0 0
    %1227 = vmatprep.subr.bf16.mxu0 0
    %1228 = vmatpush1.bf16.msra.mxu0 0
    %1229 = vmatprep.subr.bf16.mxu0 0
    %1230 = vmatpush1.bf16.msra.mxu0 0
    %1231 = vmatprep.subr.bf16.mxu0 0
    %1232 = vmatpush1.bf16.msra.mxu0 0
    %1233 = vmatprep.subr.bf16.mxu0 0
    %1234 = vmatpush1.bf16.msra.mxu0 0
    %1235 = vmatprep.subr.bf16.mxu0 0
    %1236 = vmatpush1.bf16.msra.mxu0 0
    %1237 = vmatprep.subr.bf16.mxu0 0
    %1238 = vmatpush1.bf16.msra.mxu0 0
    %1239 = vmatprep.mubr.bf16.mxu0 0
    %1240 = vmatmul.mubr.bf16.gmra.mrb[0].mxu0 %v1205
    %v1241 = vpop.f32.mrb[0].mxu0
    %v1242 = vadd.f32 0.0, %v1241
    %v1243 = vpop.f32.mrb[0].mxu0
    %v1244 = vpop.f32.mrb[0].mxu0
    %v1245 = vpop.f32.mrb[0].mxu0
    %1246 = vdwg.mxu0
    %1247 = vrot.lane.b32.xlu0 %v389, 120
    %v1248 = vpop.permute.xlu0 %1247
    %1249 = vrot.lane.b32.xlu0 %v389, 88
    %v1250 = vpop.permute.xlu0 %1249
    %v1252 = vsel %vm402, %v1248, 0
    %v1255 = vsel %vm402, %v1250, 0
    %1257 = vmatprep.subr.bf16.mxu0 0
    %1258 = vmatpush1.bf16.xpose.msra.mxu0 %v1255
    %1259 = vmatprep.subr.bf16.mxu0 0
    %1260 = vmatpush1.bf16.xpose.msra.mxu0 0
    %1261 = vmatprep.subr.bf16.mxu0 0
    %1262 = vmatpush1.bf16.xpose.msra.mxu0 0
    %1263 = vmatprep.subr.bf16.mxu0 0
    %1264 = vmatpush1.bf16.xpose.msra.mxu0 0
    %1265 = vmatprep.subr.bf16.mxu0 0
    %1266 = vmatpush1.bf16.xpose.msra.mxu0 0
    %1267 = vmatprep.subr.bf16.mxu0 0
    %1268 = vmatpush1.bf16.xpose.msra.mxu0 0
    %1269 = vmatprep.subr.bf16.mxu0 0
    %1270 = vmatpush1.bf16.xpose.msra.mxu0 0
    %1271 = vmatprep.subr.bf16.mxu0 0
    %1272 = vmatpush1.bf16.xpose.msra.mxu0 0
    %1273 = vmatprep.subr.bf16.mxu0 0
    %1274 = vmatpush1.bf16.xpose.msra.mxu0 0
    %1275 = vmatprep.subr.bf16.mxu0 0
    %1276 = vmatpush1.bf16.xpose.msra.mxu0 0
    %1277 = vmatprep.subr.bf16.mxu0 0
    %1278 = vmatpush1.bf16.xpose.msra.mxu0 0
    %1279 = vmatprep.subr.bf16.mxu0 0
    %1280 = vmatpush1.bf16.xpose.msra.mxu0 0
    %1281 = vmatprep.subr.bf16.mxu0 0
    %1282 = vmatpush1.bf16.xpose.msra.mxu0 0
    %1283 = vmatprep.subr.bf16.mxu0 0
    %1284 = vmatpush1.bf16.xpose.msra.mxu0 0
    %1285 = vmatprep.subr.bf16.mxu0 0
    %1286 = vmatpush1.bf16.xpose.msra.mxu0 0
    %1287 = vmatprep.subr.bf16.mxu0 0
    %1288 = vmatpush1.bf16.xpose.msra.mxu0 0
    %1289 = vmatprep.mubr.bf16.mxu0 0
    %1290 = vmatmul.mubr.bf16.gmra.mrb[0].mxu0 %v1252
    %v1291 = vpop.f32.mrb[0].mxu0
    %v1292 = vadd.f32 0.0, %v1291
    %v1293 = vpop.f32.mrb[0].mxu0
    %v1294 = vpop.f32.mrb[0].mxu0
    %v1295 = vpop.f32.mrb[0].mxu0
    %1296 = vdwg.mxu0
    %1297 = vrot.lane.b32.xlu0 %v390, 120
    %v1298 = vpop.permute.xlu0 %1297
    %1299 = vrot.lane.b32.xlu0 %v390, 88
    %v1300 = vpop.permute.xlu0 %1299
    %v1302 = vsel %vm402, %v1298, 0
    %v1305 = vsel %vm402, %v1300, 0
    %1307 = vmatprep.subr.bf16.mxu0 0
    %1308 = vmatpush1.bf16.xpose.msra.mxu0 %v1305
    %1309 = vmatprep.subr.bf16.mxu0 0
    %1310 = vmatpush1.bf16.xpose.msra.mxu0 0
    %1311 = vmatprep.subr.bf16.mxu0 0
    %1312 = vmatpush1.bf16.xpose.msra.mxu0 0
    %1313 = vmatprep.subr.bf16.mxu0 0
    %1314 = vmatpush1.bf16.xpose.msra.mxu0 0
    %1315 = vmatprep.subr.bf16.mxu0 0
    %1316 = vmatpush1.bf16.xpose.msra.mxu0 0
    %1317 = vmatprep.subr.bf16.mxu0 0
    %1318 = vmatpush1.bf16.xpose.msra.mxu0 0
    %1319 = vmatprep.subr.bf16.mxu0 0
    %1320 = vmatpush1.bf16.xpose.msra.mxu0 0
    %1321 = vmatprep.subr.bf16.mxu0 0
    %1322 = vmatpush1.bf16.xpose.msra.mxu0 0
    %1323 = vmatprep.subr.bf16.mxu0 0
    %1324 = vmatpush1.bf16.xpose.msra.mxu0 0
    %1325 = vmatprep.subr.bf16.mxu0 0
    %1326 = vmatpush1.bf16.xpose.msra.mxu0 0
    %1327 = vmatprep.subr.bf16.mxu0 0
    %1328 = vmatpush1.bf16.xpose.msra.mxu0 0
    %1329 = vmatprep.subr.bf16.mxu0 0
    %1330 = vmatpush1.bf16.xpose.msra.mxu0 0
    %1331 = vmatprep.subr.bf16.mxu0 0
    %1332 = vmatpush1.bf16.xpose.msra.mxu0 0
    %1333 = vmatprep.subr.bf16.mxu0 0
    %1334 = vmatpush1.bf16.xpose.msra.mxu0 0
    %1335 = vmatprep.subr.bf16.mxu0 0
    %1336 = vmatpush1.bf16.xpose.msra.mxu0 0
    %1337 = vmatprep.subr.bf16.mxu0 0
    %1338 = vmatpush1.bf16.xpose.msra.mxu0 0
    %1339 = vmatprep.mubr.bf16.mxu0 0
    %1340 = vmatmul.mubr.bf16.gmra.mrb[0].mxu0 %v1302
    %v1341 = vpop.f32.mrb[0].mxu0
    %v1342 = vadd.f32 0.0, %v1341
    %v1343 = vpop.f32.mrb[0].mxu0
    %v1344 = vpop.f32.mrb[0].mxu0
    %v1345 = vpop.f32.mrb[0].mxu0
    %1346 = vdwg.mxu0
    %1347 = vrot.lane.b32.xlu0 %v391, 120
    %v1348 = vpop.permute.xlu0 %1347
    %1349 = vrot.lane.b32.xlu0 %v391, 88
    %v1350 = vpop.permute.xlu0 %1349
    %v1352 = vsel %vm402, %v1348, 0
    %v1355 = vsel %vm402, %v1350, 0
    %1357 = vmatprep.subr.bf16.mxu0 0
    %1358 = vmatpush1.bf16.xpose.msra.mxu0 %v1355
    %1359 = vmatprep.subr.bf16.mxu0 0
    %1360 = vmatpush1.bf16.xpose.msra.mxu0 0
    %1361 = vmatprep.subr.bf16.mxu0 0
    %1362 = vmatpush1.bf16.xpose.msra.mxu0 0
    %1363 = vmatprep.subr.bf16.mxu0 0
    %1364 = vmatpush1.bf16.xpose.msra.mxu0 0
    %1365 = vmatprep.subr.bf16.mxu0 0
    %1366 = vmatpush1.bf16.xpose.msra.mxu0 0
    %1367 = vmatprep.subr.bf16.mxu0 0
    %1368 = vmatpush1.bf16.xpose.msra.mxu0 0
    %1369 = vmatprep.subr.bf16.mxu0 0
    %1370 = vmatpush1.bf16.xpose.msra.mxu0 0
    %1371 = vmatprep.subr.bf16.mxu0 0
    %1372 = vmatpush1.bf16.xpose.msra.mxu0 0
    %1373 = vmatprep.subr.bf16.mxu0 0
    %1374 = vmatpush1.bf16.xpose.msra.mxu0 0
    %1375 = vmatprep.subr.bf16.mxu0 0
    %1376 = vmatpush1.bf16.xpose.msra.mxu0 0
    %1377 = vmatprep.subr.bf16.mxu0 0
    %1378 = vmatpush1.bf16.xpose.msra.mxu0 0
    %1379 = vmatprep.subr.bf16.mxu0 0
    %1380 = vmatpush1.bf16.xpose.msra.mxu0 0
    %1381 = vmatprep.subr.bf16.mxu0 0
    %1382 = vmatpush1.bf16.xpose.msra.mxu0 0
    %1383 = vmatprep.subr.bf16.mxu0 0
    %1384 = vmatpush1.bf16.xpose.msra.mxu0 0
    %1385 = vmatprep.subr.bf16.mxu0 0
    %1386 = vmatpush1.bf16.xpose.msra.mxu0 0
    %1387 = vmatprep.subr.bf16.mxu0 0
    %1388 = vmatpush1.bf16.xpose.msra.mxu0 0
    %1389 = vmatprep.mubr.bf16.mxu0 0
    %1390 = vmatmul.mubr.bf16.gmra.mrb[0].mxu0 %v1352
    %v1391 = vpop.f32.mrb[0].mxu0
    %v1392 = vadd.f32 0.0, %v1391
    %v1393 = vpop.f32.mrb[0].mxu0
    %v1394 = vpop.f32.mrb[0].mxu0
    %v1395 = vpop.f32.mrb[0].mxu0
    %1396 = vdwg.mxu0
    %1397 = vrot.lane.b32.xlu0 %v392, 120
    %v1398 = vpop.permute.xlu0 %1397
    %1399 = vrot.lane.b32.xlu0 %v392, 88
    %v1400 = vpop.permute.xlu0 %1399
    %v1402 = vsel %vm402, %v1398, 0
    %v1405 = vsel %vm402, %v1400, 0
    %1407 = vmatprep.subr.bf16.mxu0 0
    %1408 = vmatpush1.bf16.xpose.msra.mxu0 %v1405
    %1409 = vmatprep.subr.bf16.mxu0 0
    %1410 = vmatpush1.bf16.xpose.msra.mxu0 0
    %1411 = vmatprep.subr.bf16.mxu0 0
    %1412 = vmatpush1.bf16.xpose.msra.mxu0 0
    %1413 = vmatprep.subr.bf16.mxu0 0
    %1414 = vmatpush1.bf16.xpose.msra.mxu0 0
    %1415 = vmatprep.subr.bf16.mxu0 0
    %1416 = vmatpush1.bf16.xpose.msra.mxu0 0
    %1417 = vmatprep.subr.bf16.mxu0 0
    %1418 = vmatpush1.bf16.xpose.msra.mxu0 0
    %1419 = vmatprep.subr.bf16.mxu0 0
    %1420 = vmatpush1.bf16.xpose.msra.mxu0 0
    %1421 = vmatprep.subr.bf16.mxu0 0
    %1422 = vmatpush1.bf16.xpose.msra.mxu0 0
    %1423 = vmatprep.subr.bf16.mxu0 0
    %1424 = vmatpush1.bf16.xpose.msra.mxu0 0
    %1425 = vmatprep.subr.bf16.mxu0 0
    %1426 = vmatpush1.bf16.xpose.msra.mxu0 0
    %1427 = vmatprep.subr.bf16.mxu0 0
    %1428 = vmatpush1.bf16.xpose.msra.mxu0 0
    %1429 = vmatprep.subr.bf16.mxu0 0
    %1430 = vmatpush1.bf16.xpose.msra.mxu0 0
    %1431 = vmatprep.subr.bf16.mxu0 0
    %1432 = vmatpush1.bf16.xpose.msra.mxu0 0
    %1433 = vmatprep.subr.bf16.mxu0 0
    %1434 = vmatpush1.bf16.xpose.msra.mxu0 0
    %1435 = vmatprep.subr.bf16.mxu0 0
    %1436 = vmatpush1.bf16.xpose.msra.mxu0 0
    %1437 = vmatprep.subr.bf16.mxu0 0
    %1438 = vmatpush1.bf16.xpose.msra.mxu0 0
    %1439 = vmatprep.mubr.bf16.mxu0 0
    %1440 = vmatmul.mubr.bf16.gmra.mrb[0].mxu0 %v1402
    %v1441 = vpop.f32.mrb[0].mxu0
    %v1442 = vadd.f32 0.0, %v1441
    %v1443 = vpop.f32.mrb[0].mxu0
    %v1444 = vpop.f32.mrb[0].mxu0
    %v1445 = vpop.f32.mrb[0].mxu0
    %1446 = vdwg.mxu0
    %1447 = vrot.lane.b32.xlu0 %v393, 120
    %v1448 = vpop.permute.xlu0 %1447
    %1449 = vrot.lane.b32.xlu0 %v393, 88
    %v1450 = vpop.permute.xlu0 %1449
    %v1452 = vsel %vm402, %v1448, 0
    %v1455 = vsel %vm402, %v1450, 0
    %1457 = vmatprep.subr.bf16.mxu0 0
    %1458 = vmatpush1.bf16.xpose.msra.mxu0 %v1455
    %1459 = vmatprep.subr.bf16.mxu0 0
    %1460 = vmatpush1.bf16.xpose.msra.mxu0 0
    %1461 = vmatprep.subr.bf16.mxu0 0
    %1462 = vmatpush1.bf16.xpose.msra.mxu0 0
    %1463 = vmatprep.subr.bf16.mxu0 0
    %1464 = vmatpush1.bf16.xpose.msra.mxu0 0
    %1465 = vmatprep.subr.bf16.mxu0 0
    %1466 = vmatpush1.bf16.xpose.msra.mxu0 0
    %1467 = vmatprep.subr.bf16.mxu0 0
    %1468 = vmatpush1.bf16.xpose.msra.mxu0 0
    %1469 = vmatprep.subr.bf16.mxu0 0
    %1470 = vmatpush1.bf16.xpose.msra.mxu0 0
    %1471 = vmatprep.subr.bf16.mxu0 0
    %1472 = vmatpush1.bf16.xpose.msra.mxu0 0
    %1473 = vmatprep.subr.bf16.mxu0 0
    %1474 = vmatpush1.bf16.xpose.msra.mxu0 0
    %1475 = vmatprep.subr.bf16.mxu0 0
    %1476 = vmatpush1.bf16.xpose.msra.mxu0 0
    %1477 = vmatprep.subr.bf16.mxu0 0
    %1478 = vmatpush1.bf16.xpose.msra.mxu0 0
    %1479 = vmatprep.subr.bf16.mxu0 0
    %1480 = vmatpush1.bf16.xpose.msra.mxu0 0
    %1481 = vmatprep.subr.bf16.mxu0 0
    %1482 = vmatpush1.bf16.xpose.msra.mxu0 0
    %1483 = vmatprep.subr.bf16.mxu0 0
    %1484 = vmatpush1.bf16.xpose.msra.mxu0 0
    %1485 = vmatprep.subr.bf16.mxu0 0
    %1486 = vmatpush1.bf16.xpose.msra.mxu0 0
    %1487 = vmatprep.subr.bf16.mxu0 0
    %1488 = vmatpush1.bf16.xpose.msra.mxu0 0
    %1489 = vmatprep.mubr.bf16.mxu0 0
    %1490 = vmatmul.mubr.bf16.gmra.mrb[0].mxu0 %v1452
    %v1491 = vpop.f32.mrb[0].mxu0
    %v1492 = vadd.f32 0.0, %v1491
    %v1493 = vpop.f32.mrb[0].mxu0
    %v1494 = vpop.f32.mrb[0].mxu0
    %v1495 = vpop.f32.mrb[0].mxu0
    %1496 = vdwg.mxu0
    %1497 = vrot.lane.b32.xlu0 %v394, 120
    %v1498 = vpop.permute.xlu0 %1497
    %1499 = vrot.lane.b32.xlu0 %v394, 88
    %v1500 = vpop.permute.xlu0 %1499
    %v1502 = vsel %vm402, %v1498, 0
    %v1505 = vsel %vm402, %v1500, 0
    %1507 = vmatprep.subr.bf16.mxu0 0
    %1508 = vmatpush1.bf16.xpose.msra.mxu0 %v1505
    %1509 = vmatprep.subr.bf16.mxu0 0
    %1510 = vmatpush1.bf16.xpose.msra.mxu0 0
    %1511 = vmatprep.subr.bf16.mxu0 0
    %1512 = vmatpush1.bf16.xpose.msra.mxu0 0
    %1513 = vmatprep.subr.bf16.mxu0 0
    %1514 = vmatpush1.bf16.xpose.msra.mxu0 0
    %1515 = vmatprep.subr.bf16.mxu0 0
    %1516 = vmatpush1.bf16.xpose.msra.mxu0 0
    %1517 = vmatprep.subr.bf16.mxu0 0
    %1518 = vmatpush1.bf16.xpose.msra.mxu0 0
    %1519 = vmatprep.subr.bf16.mxu0 0
    %1520 = vmatpush1.bf16.xpose.msra.mxu0 0
    %1521 = vmatprep.subr.bf16.mxu0 0
    %1522 = vmatpush1.bf16.xpose.msra.mxu0 0
    %1523 = vmatprep.subr.bf16.mxu0 0
    %1524 = vmatpush1.bf16.xpose.msra.mxu0 0
    %1525 = vmatprep.subr.bf16.mxu0 0
    %1526 = vmatpush1.bf16.xpose.msra.mxu0 0
    %1527 = vmatprep.subr.bf16.mxu0 0
    %1528 = vmatpush1.bf16.xpose.msra.mxu0 0
    %1529 = vmatprep.subr.bf16.mxu0 0
    %1530 = vmatpush1.bf16.xpose.msra.mxu0 0
    %1531 = vmatprep.subr.bf16.mxu0 0
    %1532 = vmatpush1.bf16.xpose.msra.mxu0 0
    %1533 = vmatprep.subr.bf16.mxu0 0
    %1534 = vmatpush1.bf16.xpose.msra.mxu0 0
    %1535 = vmatprep.subr.bf16.mxu0 0
    %1536 = vmatpush1.bf16.xpose.msra.mxu0 0
    %1537 = vmatprep.subr.bf16.mxu0 0
    %1538 = vmatpush1.bf16.xpose.msra.mxu0 0
    %1539 = vmatprep.mubr.bf16.mxu0 0
    %1540 = vmatmul.mubr.bf16.gmra.mrb[0].mxu0 %v1502
    %v1541 = vpop.f32.mrb[0].mxu0
    %v1542 = vadd.f32 0.0, %v1541
    %v1543 = vpop.f32.mrb[0].mxu0
    %v1544 = vpop.f32.mrb[0].mxu0
    %v1545 = vpop.f32.mrb[0].mxu0
    %1546 = vdwg.mxu0
    %1547 = vrot.lane.b32.xlu0 %v395, 120
    %v1548 = vpop.permute.xlu0 %1547
    %1549 = vrot.lane.b32.xlu0 %v395, 88
    %v1550 = vpop.permute.xlu0 %1549
    %v1552 = vsel %vm402, %v1548, 0
    %v1555 = vsel %vm402, %v1550, 0
    %1557 = vmatprep.subr.bf16.mxu0 0
    %1558 = vmatpush1.bf16.xpose.msra.mxu0 %v1555
    %1559 = vmatprep.subr.bf16.mxu0 0
    %1560 = vmatpush1.bf16.xpose.msra.mxu0 0
    %1561 = vmatprep.subr.bf16.mxu0 0
    %1562 = vmatpush1.bf16.xpose.msra.mxu0 0
    %1563 = vmatprep.subr.bf16.mxu0 0
    %1564 = vmatpush1.bf16.xpose.msra.mxu0 0
    %1565 = vmatprep.subr.bf16.mxu0 0
    %1566 = vmatpush1.bf16.xpose.msra.mxu0 0
    %1567 = vmatprep.subr.bf16.mxu0 0
    %1568 = vmatpush1.bf16.xpose.msra.mxu0 0
    %1569 = vmatprep.subr.bf16.mxu0 0
    %1570 = vmatpush1.bf16.xpose.msra.mxu0 0
    %1571 = vmatprep.subr.bf16.mxu0 0
    %1572 = vmatpush1.bf16.xpose.msra.mxu0 0
    %1573 = vmatprep.subr.bf16.mxu0 0
    %1574 = vmatpush1.bf16.xpose.msra.mxu0 0
    %1575 = vmatprep.subr.bf16.mxu0 0
    %1576 = vmatpush1.bf16.xpose.msra.mxu0 0
    %1577 = vmatprep.subr.bf16.mxu0 0
    %1578 = vmatpush1.bf16.xpose.msra.mxu0 0
    %1579 = vmatprep.subr.bf16.mxu0 0
    %1580 = vmatpush1.bf16.xpose.msra.mxu0 0
    %1581 = vmatprep.subr.bf16.mxu0 0
    %1582 = vmatpush1.bf16.xpose.msra.mxu0 0
    %1583 = vmatprep.subr.bf16.mxu0 0
    %1584 = vmatpush1.bf16.xpose.msra.mxu0 0
    %1585 = vmatprep.subr.bf16.mxu0 0
    %1586 = vmatpush1.bf16.xpose.msra.mxu0 0
    %1587 = vmatprep.subr.bf16.mxu0 0
    %1588 = vmatpush1.bf16.xpose.msra.mxu0 0
    %1589 = vmatprep.mubr.bf16.mxu0 0
    %1590 = vmatmul.mubr.bf16.gmra.mrb[0].mxu0 %v1552
    %v1591 = vpop.f32.mrb[0].mxu0
    %v1592 = vadd.f32 0.0, %v1591
    %v1593 = vpop.f32.mrb[0].mxu0
    %v1594 = vpop.f32.mrb[0].mxu0
    %v1595 = vpop.f32.mrb[0].mxu0
    %1596 = vdwg.mxu0
    %1597 = vrot.lane.b32.xlu0 %v396, 120
    %v1598 = vpop.permute.xlu0 %1597
    %1599 = vrot.lane.b32.xlu0 %v396, 88
    %v1600 = vpop.permute.xlu0 %1599
    %v1602 = vsel %vm402, %v1598, 0
    %v1605 = vsel %vm402, %v1600, 0
    %1607 = vmatprep.subr.bf16.mxu0 0
    %1608 = vmatpush1.bf16.xpose.msra.mxu0 %v1605
    %1609 = vmatprep.subr.bf16.mxu0 0
    %1610 = vmatpush1.bf16.xpose.msra.mxu0 0
    %1611 = vmatprep.subr.bf16.mxu0 0
    %1612 = vmatpush1.bf16.xpose.msra.mxu0 0
    %1613 = vmatprep.subr.bf16.mxu0 0
    %1614 = vmatpush1.bf16.xpose.msra.mxu0 0
    %1615 = vmatprep.subr.bf16.mxu0 0
    %1616 = vmatpush1.bf16.xpose.msra.mxu0 0
    %1617 = vmatprep.subr.bf16.mxu0 0
    %1618 = vmatpush1.bf16.xpose.msra.mxu0 0
    %1619 = vmatprep.subr.bf16.mxu0 0
    %1620 = vmatpush1.bf16.xpose.msra.mxu0 0
    %1621 = vmatprep.subr.bf16.mxu0 0
    %1622 = vmatpush1.bf16.xpose.msra.mxu0 0
    %1623 = vmatprep.subr.bf16.mxu0 0
    %1624 = vmatpush1.bf16.xpose.msra.mxu0 0
    %1625 = vmatprep.subr.bf16.mxu0 0
    %1626 = vmatpush1.bf16.xpose.msra.mxu0 0
    %1627 = vmatprep.subr.bf16.mxu0 0
    %1628 = vmatpush1.bf16.xpose.msra.mxu0 0
    %1629 = vmatprep.subr.bf16.mxu0 0
    %1630 = vmatpush1.bf16.xpose.msra.mxu0 0
    %1631 = vmatprep.subr.bf16.mxu0 0
    %1632 = vmatpush1.bf16.xpose.msra.mxu0 0
    %1633 = vmatprep.subr.bf16.mxu0 0
    %1634 = vmatpush1.bf16.xpose.msra.mxu0 0
    %1635 = vmatprep.subr.bf16.mxu0 0
    %1636 = vmatpush1.bf16.xpose.msra.mxu0 0
    %1637 = vmatprep.subr.bf16.mxu0 0
    %1638 = vmatpush1.bf16.xpose.msra.mxu0 0
    %1639 = vmatprep.mubr.bf16.mxu0 0
    %1640 = vmatmul.mubr.bf16.gmra.mrb[0].mxu0 %v1602
    %v1641 = vpop.f32.mrb[0].mxu0
    %v1642 = vadd.f32 0.0, %v1641
    %v1643 = vpop.f32.mrb[0].mxu0
    %v1644 = vpop.f32.mrb[0].mxu0
    %v1645 = vpop.f32.mrb[0].mxu0
    %1646 = vdwg.mxu0
    %v1647 = vmul.f32 %v1292, 0.35355338
    %v1648 = vmul.f32 %v1342, 0.35355338
    %v1649 = vmul.f32 %v1392, 0.35355338
    %v1650 = vmul.f32 %v1442, 0.35355338
    %v1651 = vmul.f32 %v1492, 0.35355338
    %v1652 = vmul.f32 %v1542, 0.35355338
    %v1653 = vmul.f32 %v1592, 0.35355338
    %v1654 = vmul.f32 %v1642, 0.35355338
    %v1655 = vsel %vm402, %v1647, -inf
    %1656 = vmax.xlane.f32.xlu0 %v1655
    %v1657 = vpop.xlane.xlu0 %1656
    %v1658 = vsel %vm402, %v1648, -inf
    %1659 = vmax.xlane.f32.xlu0 %v1658
    %v1660 = vpop.xlane.xlu0 %1659
    %v1661 = vsel %vm402, %v1649, -inf
    %1662 = vmax.xlane.f32.xlu0 %v1661
    %v1663 = vpop.xlane.xlu0 %1662
    %v1664 = vsel %vm402, %v1650, -inf
    %1665 = vmax.xlane.f32.xlu0 %v1664
    %v1666 = vpop.xlane.xlu0 %1665
    %v1667 = vsel %vm402, %v1651, -inf
    %1668 = vmax.xlane.f32.xlu0 %v1667
    %v1669 = vpop.xlane.xlu0 %1668
    %v1670 = vsel %vm402, %v1652, -inf
    %1671 = vmax.xlane.f32.xlu0 %v1670
    %v1672 = vpop.xlane.xlu0 %1671
    %v1673 = vsel %vm402, %v1653, -inf
    %1674 = vmax.xlane.f32.xlu0 %v1673
    %v1675 = vpop.xlane.xlu0 %1674
    %v1676 = vsel %vm402, %v1654, -inf
    %1677 = vmax.xlane.f32.xlu0 %v1676
    %v1678 = vpop.xlane.xlu0 %1677
    %v1679 = vsub.f32 %v1647, %v1657
    %v1680 = vsub.f32 %v1648, %v1660
    %v1681 = vsub.f32 %v1649, %v1663
    %v1682 = vsub.f32 %v1650, %v1666
    %v1683 = vsub.f32 %v1651, %v1669
    %v1684 = vsub.f32 %v1652, %v1672
    %v1685 = vsub.f32 %v1653, %v1675
    %v1686 = vsub.f32 %v1654, %v1678
    %v1687 = vmul.f32 %v1679, 1.442695
    %v1688 = vpow.pop %v1687
    %v1689 = vmul.f32 %v1680, 1.442695
    %v1690 = vpow.pop %v1689
    %v1691 = vmul.f32 %v1681, 1.442695
    %v1692 = vpow.pop %v1691
    %v1693 = vmul.f32 %v1682, 1.442695
    %v1694 = vpow.pop %v1693
    %v1695 = vmul.f32 %v1683, 1.442695
    %v1696 = vpow.pop %v1695
    %v1697 = vmul.f32 %v1684, 1.442695
    %v1698 = vpow.pop %v1697
    %v1699 = vmul.f32 %v1685, 1.442695
    %v1700 = vpow.pop %v1699
    %v1701 = vmul.f32 %v1686, 1.442695
    %v1702 = vpow.pop %v1701
    %v1703 = vsel %vm402, %v1688, 0.0
    %1704 = vadd.xlane.f32.xlu0 %v1703
    %v1705 = vpop.xlane.xlu0 %1704
    %v1706 = vsel %vm402, %v1690, 0.0
    %1707 = vadd.xlane.f32.xlu0 %v1706
    %v1708 = vpop.xlane.xlu0 %1707
    %v1709 = vsel %vm402, %v1692, 0.0
    %1710 = vadd.xlane.f32.xlu0 %v1709
    %v1711 = vpop.xlane.xlu0 %1710
    %v1712 = vsel %vm402, %v1694, 0.0
    %1713 = vadd.xlane.f32.xlu0 %v1712
    %v1714 = vpop.xlane.xlu0 %1713
    %v1715 = vsel %vm402, %v1696, 0.0
    %1716 = vadd.xlane.f32.xlu0 %v1715
    %v1717 = vpop.xlane.xlu0 %1716
    %v1718 = vsel %vm402, %v1698, 0.0
    %1719 = vadd.xlane.f32.xlu0 %v1718
    %v1720 = vpop.xlane.xlu0 %1719
    %v1721 = vsel %vm402, %v1700, 0.0
    %1722 = vadd.xlane.f32.xlu0 %v1721
    %v1723 = vpop.xlane.xlu0 %1722
    %v1724 = vsel %vm402, %v1702, 0.0
    %1725 = vadd.xlane.f32.xlu0 %v1724
    %v1726 = vpop.xlane.xlu0 %1725
    %v1727 = vrcp.pop %v1705
    %v1728 = vmul.f32 %v1688, %v1727
    %v1729 = vrcp.pop %v1708
    %v1730 = vmul.f32 %v1690, %v1729
    %v1731 = vrcp.pop %v1711
    %v1732 = vmul.f32 %v1692, %v1731
    %v1733 = vrcp.pop %v1714
    %v1734 = vmul.f32 %v1694, %v1733
    %v1735 = vrcp.pop %v1717
    %v1736 = vmul.f32 %v1696, %v1735
    %v1737 = vrcp.pop %v1720
    %v1738 = vmul.f32 %v1698, %v1737
    %v1739 = vrcp.pop %v1723
    %v1740 = vmul.f32 %v1700, %v1739
    %v1741 = vrcp.pop %v1726
    %v1742 = vmul.f32 %v1702, %v1741
    %v1743 = vpack.c.bf16 %v1728, %v1728
    %v1744 = vpack.c.bf16 %v1730, %v1730
    %v1745 = vpack.c.bf16 %v1732, %v1732
    %v1746 = vpack.c.bf16 %v1734, %v1734
    %v1747 = vpack.c.bf16 %v1736, %v1736
    %v1748 = vpack.c.bf16 %v1738, %v1738
    %v1749 = vpack.c.bf16 %v1740, %v1740
    %v1750 = vpack.c.bf16 %v1742, %v1742
    %1752 = vrot.lane.b32.xlu0 %v397, 120
    %v1753 = vpop.permute.xlu0 %1752
    %v1755 = vsel %vm402, %v1743, 0
    %v1758 = vsel %vm899, %v1753, 0
    %1760 = vmatprep.subr.bf16.mxu0 0
    %1761 = vmatpush1.bf16.msra.mxu0 %v1758
    %1762 = vmatprep.subr.bf16.mxu0 0
    %1763 = vmatpush1.bf16.msra.mxu0 0
    %1764 = vmatprep.subr.bf16.mxu0 0
    %1765 = vmatpush1.bf16.msra.mxu0 0
    %1766 = vmatprep.subr.bf16.mxu0 0
    %1767 = vmatpush1.bf16.msra.mxu0 0
    %1768 = vmatprep.subr.bf16.mxu0 0
    %1769 = vmatpush1.bf16.msra.mxu0 0
    %1770 = vmatprep.subr.bf16.mxu0 0
    %1771 = vmatpush1.bf16.msra.mxu0 0
    %1772 = vmatprep.subr.bf16.mxu0 0
    %1773 = vmatpush1.bf16.msra.mxu0 0
    %1774 = vmatprep.subr.bf16.mxu0 0
    %1775 = vmatpush1.bf16.msra.mxu0 0
    %1776 = vmatprep.subr.bf16.mxu0 0
    %1777 = vmatpush1.bf16.msra.mxu0 0
    %1778 = vmatprep.subr.bf16.mxu0 0
    %1779 = vmatpush1.bf16.msra.mxu0 0
    %1780 = vmatprep.subr.bf16.mxu0 0
    %1781 = vmatpush1.bf16.msra.mxu0 0
    %1782 = vmatprep.subr.bf16.mxu0 0
    %1783 = vmatpush1.bf16.msra.mxu0 0
    %1784 = vmatprep.subr.bf16.mxu0 0
    %1785 = vmatpush1.bf16.msra.mxu0 0
    %1786 = vmatprep.subr.bf16.mxu0 0
    %1787 = vmatpush1.bf16.msra.mxu0 0
    %1788 = vmatprep.subr.bf16.mxu0 0
    %1789 = vmatpush1.bf16.msra.mxu0 0
    %1790 = vmatprep.subr.bf16.mxu0 0
    %1791 = vmatpush1.bf16.msra.mxu0 0
    %1792 = vmatprep.mubr.bf16.mxu0 0
    %1793 = vmatmul.mubr.bf16.gmra.mrb[0].mxu0 %v1755
    %v1794 = vpop.f32.mrb[0].mxu0
    %v1795 = vadd.f32 0.0, %v1794
    %v1796 = vpop.f32.mrb[0].mxu0
    %v1797 = vpop.f32.mrb[0].mxu0
    %v1798 = vpop.f32.mrb[0].mxu0
    %1799 = vdwg.mxu0
    %v1801 = vsel %vm402, %v1744, 0
    %1803 = vmatprep.subr.bf16.mxu0 0
    %1804 = vmatpush1.bf16.msra.mxu0 %v1758
    %1805 = vmatprep.subr.bf16.mxu0 0
    %1806 = vmatpush1.bf16.msra.mxu0 0
    %1807 = vmatprep.subr.bf16.mxu0 0
    %1808 = vmatpush1.bf16.msra.mxu0 0
    %1809 = vmatprep.subr.bf16.mxu0 0
    %1810 = vmatpush1.bf16.msra.mxu0 0
    %1811 = vmatprep.subr.bf16.mxu0 0
    %1812 = vmatpush1.bf16.msra.mxu0 0
    %1813 = vmatprep.subr.bf16.mxu0 0
    %1814 = vmatpush1.bf16.msra.mxu0 0
    %1815 = vmatprep.subr.bf16.mxu0 0
    %1816 = vmatpush1.bf16.msra.mxu0 0
    %1817 = vmatprep.subr.bf16.mxu0 0
    %1818 = vmatpush1.bf16.msra.mxu0 0
    %1819 = vmatprep.subr.bf16.mxu0 0
    %1820 = vmatpush1.bf16.msra.mxu0 0
    %1821 = vmatprep.subr.bf16.mxu0 0
    %1822 = vmatpush1.bf16.msra.mxu0 0
    %1823 = vmatprep.subr.bf16.mxu0 0
    %1824 = vmatpush1.bf16.msra.mxu0 0
    %1825 = vmatprep.subr.bf16.mxu0 0
    %1826 = vmatpush1.bf16.msra.mxu0 0
    %1827 = vmatprep.subr.bf16.mxu0 0
    %1828 = vmatpush1.bf16.msra.mxu0 0
    %1829 = vmatprep.subr.bf16.mxu0 0
    %1830 = vmatpush1.bf16.msra.mxu0 0
    %1831 = vmatprep.subr.bf16.mxu0 0
    %1832 = vmatpush1.bf16.msra.mxu0 0
    %1833 = vmatprep.subr.bf16.mxu0 0
    %1834 = vmatpush1.bf16.msra.mxu0 0
    %1835 = vmatprep.mubr.bf16.mxu0 0
    %1836 = vmatmul.mubr.bf16.gmra.mrb[0].mxu0 %v1801
    %v1837 = vpop.f32.mrb[0].mxu0
    %v1838 = vadd.f32 0.0, %v1837
    %v1839 = vpop.f32.mrb[0].mxu0
    %v1840 = vpop.f32.mrb[0].mxu0
    %v1841 = vpop.f32.mrb[0].mxu0
    %1842 = vdwg.mxu0
    %v1844 = vsel %vm402, %v1745, 0
    %1846 = vmatprep.subr.bf16.mxu0 0
    %1847 = vmatpush1.bf16.msra.mxu0 %v1758
    %1848 = vmatprep.subr.bf16.mxu0 0
    %1849 = vmatpush1.bf16.msra.mxu0 0
    %1850 = vmatprep.subr.bf16.mxu0 0
    %1851 = vmatpush1.bf16.msra.mxu0 0
    %1852 = vmatprep.subr.bf16.mxu0 0
    %1853 = vmatpush1.bf16.msra.mxu0 0
    %1854 = vmatprep.subr.bf16.mxu0 0
    %1855 = vmatpush1.bf16.msra.mxu0 0
    %1856 = vmatprep.subr.bf16.mxu0 0
    %1857 = vmatpush1.bf16.msra.mxu0 0
    %1858 = vmatprep.subr.bf16.mxu0 0
    %1859 = vmatpush1.bf16.msra.mxu0 0
    %1860 = vmatprep.subr.bf16.mxu0 0
    %1861 = vmatpush1.bf16.msra.mxu0 0
    %1862 = vmatprep.subr.bf16.mxu0 0
    %1863 = vmatpush1.bf16.msra.mxu0 0
    %1864 = vmatprep.subr.bf16.mxu0 0
    %1865 = vmatpush1.bf16.msra.mxu0 0
    %1866 = vmatprep.subr.bf16.mxu0 0
    %1867 = vmatpush1.bf16.msra.mxu0 0
    %1868 = vmatprep.subr.bf16.mxu0 0
    %1869 = vmatpush1.bf16.msra.mxu0 0
    %1870 = vmatprep.subr.bf16.mxu0 0
    %1871 = vmatpush1.bf16.msra.mxu0 0
    %1872 = vmatprep.subr.bf16.mxu0 0
    %1873 = vmatpush1.bf16.msra.mxu0 0
    %1874 = vmatprep.subr.bf16.mxu0 0
    %1875 = vmatpush1.bf16.msra.mxu0 0
    %1876 = vmatprep.subr.bf16.mxu0 0
    %1877 = vmatpush1.bf16.msra.mxu0 0
    %1878 = vmatprep.mubr.bf16.mxu0 0
    %1879 = vmatmul.mubr.bf16.gmra.mrb[0].mxu0 %v1844
    %v1880 = vpop.f32.mrb[0].mxu0
    %v1881 = vadd.f32 0.0, %v1880
    %v1882 = vpop.f32.mrb[0].mxu0
    %v1883 = vpop.f32.mrb[0].mxu0
    %v1884 = vpop.f32.mrb[0].mxu0
    %1885 = vdwg.mxu0
    %v1887 = vsel %vm402, %v1746, 0
    %1889 = vmatprep.subr.bf16.mxu0 0
    %1890 = vmatpush1.bf16.msra.mxu0 %v1758
    %1891 = vmatprep.subr.bf16.mxu0 0
    %1892 = vmatpush1.bf16.msra.mxu0 0
    %1893 = vmatprep.subr.bf16.mxu0 0
    %1894 = vmatpush1.bf16.msra.mxu0 0
    %1895 = vmatprep.subr.bf16.mxu0 0
    %1896 = vmatpush1.bf16.msra.mxu0 0
    %1897 = vmatprep.subr.bf16.mxu0 0
    %1898 = vmatpush1.bf16.msra.mxu0 0
    %1899 = vmatprep.subr.bf16.mxu0 0
    %1900 = vmatpush1.bf16.msra.mxu0 0
    %1901 = vmatprep.subr.bf16.mxu0 0
    %1902 = vmatpush1.bf16.msra.mxu0 0
    %1903 = vmatprep.subr.bf16.mxu0 0
    %1904 = vmatpush1.bf16.msra.mxu0 0
    %1905 = vmatprep.subr.bf16.mxu0 0
    %1906 = vmatpush1.bf16.msra.mxu0 0
    %1907 = vmatprep.subr.bf16.mxu0 0
    %1908 = vmatpush1.bf16.msra.mxu0 0
    %1909 = vmatprep.subr.bf16.mxu0 0
    %1910 = vmatpush1.bf16.msra.mxu0 0
    %1911 = vmatprep.subr.bf16.mxu0 0
    %1912 = vmatpush1.bf16.msra.mxu0 0
    %1913 = vmatprep.subr.bf16.mxu0 0
    %1914 = vmatpush1.bf16.msra.mxu0 0
    %1915 = vmatprep.subr.bf16.mxu0 0
    %1916 = vmatpush1.bf16.msra.mxu0 0
    %1917 = vmatprep.subr.bf16.mxu0 0
    %1918 = vmatpush1.bf16.msra.mxu0 0
    %1919 = vmatprep.subr.bf16.mxu0 0
    %1920 = vmatpush1.bf16.msra.mxu0 0
    %1921 = vmatprep.mubr.bf16.mxu0 0
    %1922 = vmatmul.mubr.bf16.gmra.mrb[0].mxu0 %v1887
    %v1923 = vpop.f32.mrb[0].mxu0
    %v1924 = vadd.f32 0.0, %v1923
    %v1925 = vpop.f32.mrb[0].mxu0
    %v1926 = vpop.f32.mrb[0].mxu0
    %v1927 = vpop.f32.mrb[0].mxu0
    %1928 = vdwg.mxu0
    %1930 = vrot.lane.b32.xlu0 %v398, 120
    %v1931 = vpop.permute.xlu0 %1930
    %v1933 = vsel %vm402, %v1747, 0
    %v1936 = vsel %vm899, %v1931, 0
    %1938 = vmatprep.subr.bf16.mxu0 0
    %1939 = vmatpush1.bf16.msra.mxu0 %v1936
    %1940 = vmatprep.subr.bf16.mxu0 0
    %1941 = vmatpush1.bf16.msra.mxu0 0
    %1942 = vmatprep.subr.bf16.mxu0 0
    %1943 = vmatpush1.bf16.msra.mxu0 0
    %1944 = vmatprep.subr.bf16.mxu0 0
    %1945 = vmatpush1.bf16.msra.mxu0 0
    %1946 = vmatprep.subr.bf16.mxu0 0
    %1947 = vmatpush1.bf16.msra.mxu0 0
    %1948 = vmatprep.subr.bf16.mxu0 0
    %1949 = vmatpush1.bf16.msra.mxu0 0
    %1950 = vmatprep.subr.bf16.mxu0 0
    %1951 = vmatpush1.bf16.msra.mxu0 0
    %1952 = vmatprep.subr.bf16.mxu0 0
    %1953 = vmatpush1.bf16.msra.mxu0 0
    %1954 = vmatprep.subr.bf16.mxu0 0
    %1955 = vmatpush1.bf16.msra.mxu0 0
    %1956 = vmatprep.subr.bf16.mxu0 0
    %1957 = vmatpush1.bf16.msra.mxu0 0
    %1958 = vmatprep.subr.bf16.mxu0 0
    %1959 = vmatpush1.bf16.msra.mxu0 0
    %1960 = vmatprep.subr.bf16.mxu0 0
    %1961 = vmatpush1.bf16.msra.mxu0 0
    %1962 = vmatprep.subr.bf16.mxu0 0
    %1963 = vmatpush1.bf16.msra.mxu0 0
    %1964 = vmatprep.subr.bf16.mxu0 0
    %1965 = vmatpush1.bf16.msra.mxu0 0
    %1966 = vmatprep.subr.bf16.mxu0 0
    %1967 = vmatpush1.bf16.msra.mxu0 0
    %1968 = vmatprep.subr.bf16.mxu0 0
    %1969 = vmatpush1.bf16.msra.mxu0 0
    %1970 = vmatprep.mubr.bf16.mxu0 0
    %1971 = vmatmul.mubr.bf16.gmra.mrb[0].mxu0 %v1933
    %v1972 = vpop.f32.mrb[0].mxu0
    %v1973 = vadd.f32 0.0, %v1972
    %v1974 = vpop.f32.mrb[0].mxu0
    %v1975 = vpop.f32.mrb[0].mxu0
    %v1976 = vpop.f32.mrb[0].mxu0
    %1977 = vdwg.mxu0
    %v1979 = vsel %vm402, %v1748, 0
    %1981 = vmatprep.subr.bf16.mxu0 0
    %1982 = vmatpush1.bf16.msra.mxu0 %v1936
    %1983 = vmatprep.subr.bf16.mxu0 0
    %1984 = vmatpush1.bf16.msra.mxu0 0
    %1985 = vmatprep.subr.bf16.mxu0 0
    %1986 = vmatpush1.bf16.msra.mxu0 0
    %1987 = vmatprep.subr.bf16.mxu0 0
    %1988 = vmatpush1.bf16.msra.mxu0 0
    %1989 = vmatprep.subr.bf16.mxu0 0
    %1990 = vmatpush1.bf16.msra.mxu0 0
    %1991 = vmatprep.subr.bf16.mxu0 0
    %1992 = vmatpush1.bf16.msra.mxu0 0
    %1993 = vmatprep.subr.bf16.mxu0 0
    %1994 = vmatpush1.bf16.msra.mxu0 0
    %1995 = vmatprep.subr.bf16.mxu0 0
    %1996 = vmatpush1.bf16.msra.mxu0 0
    %1997 = vmatprep.subr.bf16.mxu0 0
    %1998 = vmatpush1.bf16.msra.mxu0 0
    %1999 = vmatprep.subr.bf16.mxu0 0
    %2000 = vmatpush1.bf16.msra.mxu0 0
    %2001 = vmatprep.subr.bf16.mxu0 0
    %2002 = vmatpush1.bf16.msra.mxu0 0
    %2003 = vmatprep.subr.bf16.mxu0 0
    %2004 = vmatpush1.bf16.msra.mxu0 0
    %2005 = vmatprep.subr.bf16.mxu0 0
    %2006 = vmatpush1.bf16.msra.mxu0 0
    %2007 = vmatprep.subr.bf16.mxu0 0
    %2008 = vmatpush1.bf16.msra.mxu0 0
    %2009 = vmatprep.subr.bf16.mxu0 0
    %2010 = vmatpush1.bf16.msra.mxu0 0
    %2011 = vmatprep.subr.bf16.mxu0 0
    %2012 = vmatpush1.bf16.msra.mxu0 0
    %2013 = vmatprep.mubr.bf16.mxu0 0
    %2014 = vmatmul.mubr.bf16.gmra.mrb[0].mxu0 %v1979
    %v2015 = vpop.f32.mrb[0].mxu0
    %v2016 = vadd.f32 0.0, %v2015
    %v2017 = vpop.f32.mrb[0].mxu0
    %v2018 = vpop.f32.mrb[0].mxu0
    %v2019 = vpop.f32.mrb[0].mxu0
    %2020 = vdwg.mxu0
    %v2022 = vsel %vm402, %v1749, 0
    %2024 = vmatprep.subr.bf16.mxu0 0
    %2025 = vmatpush1.bf16.msra.mxu0 %v1936
    %2026 = vmatprep.subr.bf16.mxu0 0
    %2027 = vmatpush1.bf16.msra.mxu0 0
    %2028 = vmatprep.subr.bf16.mxu0 0
    %2029 = vmatpush1.bf16.msra.mxu0 0
    %2030 = vmatprep.subr.bf16.mxu0 0
    %2031 = vmatpush1.bf16.msra.mxu0 0
    %2032 = vmatprep.subr.bf16.mxu0 0
    %2033 = vmatpush1.bf16.msra.mxu0 0
    %2034 = vmatprep.subr.bf16.mxu0 0
    %2035 = vmatpush1.bf16.msra.mxu0 0
    %2036 = vmatprep.subr.bf16.mxu0 0
    %2037 = vmatpush1.bf16.msra.mxu0 0
    %2038 = vmatprep.subr.bf16.mxu0 0
    %2039 = vmatpush1.bf16.msra.mxu0 0
    %2040 = vmatprep.subr.bf16.mxu0 0
    %2041 = vmatpush1.bf16.msra.mxu0 0
    %2042 = vmatprep.subr.bf16.mxu0 0
    %2043 = vmatpush1.bf16.msra.mxu0 0
    %2044 = vmatprep.subr.bf16.mxu0 0
    %2045 = vmatpush1.bf16.msra.mxu0 0
    %2046 = vmatprep.subr.bf16.mxu0 0
    %2047 = vmatpush1.bf16.msra.mxu0 0
    %2048 = vmatprep.subr.bf16.mxu0 0
    %2049 = vmatpush1.bf16.msra.mxu0 0
    %2050 = vmatprep.subr.bf16.mxu0 0
    %2051 = vmatpush1.bf16.msra.mxu0 0
    %2052 = vmatprep.subr.bf16.mxu0 0
    %2053 = vmatpush1.bf16.msra.mxu0 0
    %2054 = vmatprep.subr.bf16.mxu0 0
    %2055 = vmatpush1.bf16.msra.mxu0 0
    %2056 = vmatprep.mubr.bf16.mxu0 0
    %2057 = vmatmul.mubr.bf16.gmra.mrb[0].mxu0 %v2022
    %v2058 = vpop.f32.mrb[0].mxu0
    %v2059 = vadd.f32 0.0, %v2058
    %v2060 = vpop.f32.mrb[0].mxu0
    %v2061 = vpop.f32.mrb[0].mxu0
    %v2062 = vpop.f32.mrb[0].mxu0
    %2063 = vdwg.mxu0
    %v2065 = vsel %vm402, %v1750, 0
    %2067 = vmatprep.subr.bf16.mxu0 0
    %2068 = vmatpush1.bf16.msra.mxu0 %v1936
    %2069 = vmatprep.subr.bf16.mxu0 0
    %2070 = vmatpush1.bf16.msra.mxu0 0
    %2071 = vmatprep.subr.bf16.mxu0 0
    %2072 = vmatpush1.bf16.msra.mxu0 0
    %2073 = vmatprep.subr.bf16.mxu0 0
    %2074 = vmatpush1.bf16.msra.mxu0 0
    %2075 = vmatprep.subr.bf16.mxu0 0
    %2076 = vmatpush1.bf16.msra.mxu0 0
    %2077 = vmatprep.subr.bf16.mxu0 0
    %2078 = vmatpush1.bf16.msra.mxu0 0
    %2079 = vmatprep.subr.bf16.mxu0 0
    %2080 = vmatpush1.bf16.msra.mxu0 0
    %2081 = vmatprep.subr.bf16.mxu0 0
    %2082 = vmatpush1.bf16.msra.mxu0 0
    %2083 = vmatprep.subr.bf16.mxu0 0
    %2084 = vmatpush1.bf16.msra.mxu0 0
    %2085 = vmatprep.subr.bf16.mxu0 0
    %2086 = vmatpush1.bf16.msra.mxu0 0
    %2087 = vmatprep.subr.bf16.mxu0 0
    %2088 = vmatpush1.bf16.msra.mxu0 0
    %2089 = vmatprep.subr.bf16.mxu0 0
    %2090 = vmatpush1.bf16.msra.mxu0 0
    %2091 = vmatprep.subr.bf16.mxu0 0
    %2092 = vmatpush1.bf16.msra.mxu0 0
    %2093 = vmatprep.subr.bf16.mxu0 0
    %2094 = vmatpush1.bf16.msra.mxu0 0
    %2095 = vmatprep.subr.bf16.mxu0 0
    %2096 = vmatpush1.bf16.msra.mxu0 0
    %2097 = vmatprep.subr.bf16.mxu0 0
    %2098 = vmatpush1.bf16.msra.mxu0 0
    %2099 = vmatprep.mubr.bf16.mxu0 0
    %2100 = vmatmul.mubr.bf16.gmra.mrb[0].mxu0 %v2065
    %v2101 = vpop.f32.mrb[0].mxu0
    %v2102 = vadd.f32 0.0, %v2101
    %v2103 = vpop.f32.mrb[0].mxu0
    %v2104 = vpop.f32.mrb[0].mxu0
    %v2105 = vpop.f32.mrb[0].mxu0
    %2106 = vdwg.mxu0
    %2107 = vrot.lane.b32.xlu0 %v389, 112
    %v2108 = vpop.permute.xlu0 %2107
    %2109 = vrot.lane.b32.xlu0 %v389, 80
    %v2110 = vpop.permute.xlu0 %2109
    %v2112 = vsel %vm402, %v2108, 0
    %v2115 = vsel %vm402, %v2110, 0
    %2117 = vmatprep.subr.bf16.mxu0 0
    %2118 = vmatpush1.bf16.xpose.msra.mxu0 %v2115
    %2119 = vmatprep.subr.bf16.mxu0 0
    %2120 = vmatpush1.bf16.xpose.msra.mxu0 0
    %2121 = vmatprep.subr.bf16.mxu0 0
    %2122 = vmatpush1.bf16.xpose.msra.mxu0 0
    %2123 = vmatprep.subr.bf16.mxu0 0
    %2124 = vmatpush1.bf16.xpose.msra.mxu0 0
    %2125 = vmatprep.subr.bf16.mxu0 0
    %2126 = vmatpush1.bf16.xpose.msra.mxu0 0
    %2127 = vmatprep.subr.bf16.mxu0 0
    %2128 = vmatpush1.bf16.xpose.msra.mxu0 0
    %2129 = vmatprep.subr.bf16.mxu0 0
    %2130 = vmatpush1.bf16.xpose.msra.mxu0 0
    %2131 = vmatprep.subr.bf16.mxu0 0
    %2132 = vmatpush1.bf16.xpose.msra.mxu0 0
    %2133 = vmatprep.subr.bf16.mxu0 0
    %2134 = vmatpush1.bf16.xpose.msra.mxu0 0
    %2135 = vmatprep.subr.bf16.mxu0 0
    %2136 = vmatpush1.bf16.xpose.msra.mxu0 0
    %2137 = vmatprep.subr.bf16.mxu0 0
    %2138 = vmatpush1.bf16.xpose.msra.mxu0 0
    %2139 = vmatprep.subr.bf16.mxu0 0
    %2140 = vmatpush1.bf16.xpose.msra.mxu0 0
    %2141 = vmatprep.subr.bf16.mxu0 0
    %2142 = vmatpush1.bf16.xpose.msra.mxu0 0
    %2143 = vmatprep.subr.bf16.mxu0 0
    %2144 = vmatpush1.bf16.xpose.msra.mxu0 0
    %2145 = vmatprep.subr.bf16.mxu0 0
    %2146 = vmatpush1.bf16.xpose.msra.mxu0 0
    %2147 = vmatprep.subr.bf16.mxu0 0
    %2148 = vmatpush1.bf16.xpose.msra.mxu0 0
    %2149 = vmatprep.mubr.bf16.mxu0 0
    %2150 = vmatmul.mubr.bf16.gmra.mrb[0].mxu0 %v2112
    %v2151 = vpop.f32.mrb[0].mxu0
    %v2152 = vadd.f32 0.0, %v2151
    %v2153 = vpop.f32.mrb[0].mxu0
    %v2154 = vpop.f32.mrb[0].mxu0
    %v2155 = vpop.f32.mrb[0].mxu0
    %2156 = vdwg.mxu0
    %2157 = vrot.lane.b32.xlu0 %v390, 112
    %v2158 = vpop.permute.xlu0 %2157
    %2159 = vrot.lane.b32.xlu0 %v390, 80
    %v2160 = vpop.permute.xlu0 %2159
    %v2162 = vsel %vm402, %v2158, 0
    %v2165 = vsel %vm402, %v2160, 0
    %2167 = vmatprep.subr.bf16.mxu0 0
    %2168 = vmatpush1.bf16.xpose.msra.mxu0 %v2165
    %2169 = vmatprep.subr.bf16.mxu0 0
    %2170 = vmatpush1.bf16.xpose.msra.mxu0 0
    %2171 = vmatprep.subr.bf16.mxu0 0
    %2172 = vmatpush1.bf16.xpose.msra.mxu0 0
    %2173 = vmatprep.subr.bf16.mxu0 0
    %2174 = vmatpush1.bf16.xpose.msra.mxu0 0
    %2175 = vmatprep.subr.bf16.mxu0 0
    %2176 = vmatpush1.bf16.xpose.msra.mxu0 0
    %2177 = vmatprep.subr.bf16.mxu0 0
    %2178 = vmatpush1.bf16.xpose.msra.mxu0 0
    %2179 = vmatprep.subr.bf16.mxu0 0
    %2180 = vmatpush1.bf16.xpose.msra.mxu0 0
    %2181 = vmatprep.subr.bf16.mxu0 0
    %2182 = vmatpush1.bf16.xpose.msra.mxu0 0
    %2183 = vmatprep.subr.bf16.mxu0 0
    %2184 = vmatpush1.bf16.xpose.msra.mxu0 0
    %2185 = vmatprep.subr.bf16.mxu0 0
    %2186 = vmatpush1.bf16.xpose.msra.mxu0 0
    %2187 = vmatprep.subr.bf16.mxu0 0
    %2188 = vmatpush1.bf16.xpose.msra.mxu0 0
    %2189 = vmatprep.subr.bf16.mxu0 0
    %2190 = vmatpush1.bf16.xpose.msra.mxu0 0
    %2191 = vmatprep.subr.bf16.mxu0 0
    %2192 = vmatpush1.bf16.xpose.msra.mxu0 0
    %2193 = vmatprep.subr.bf16.mxu0 0
    %2194 = vmatpush1.bf16.xpose.msra.mxu0 0
    %2195 = vmatprep.subr.bf16.mxu0 0
    %2196 = vmatpush1.bf16.xpose.msra.mxu0 0
    %2197 = vmatprep.subr.bf16.mxu0 0
    %2198 = vmatpush1.bf16.xpose.msra.mxu0 0
    %2199 = vmatprep.mubr.bf16.mxu0 0
    %2200 = vmatmul.mubr.bf16.gmra.mrb[0].mxu0 %v2162
    %v2201 = vpop.f32.mrb[0].mxu0
    %v2202 = vadd.f32 0.0, %v2201
    %v2203 = vpop.f32.mrb[0].mxu0
    %v2204 = vpop.f32.mrb[0].mxu0
    %v2205 = vpop.f32.mrb[0].mxu0
    %2206 = vdwg.mxu0
    %2207 = vrot.lane.b32.xlu0 %v391, 112
    %v2208 = vpop.permute.xlu0 %2207
    %2209 = vrot.lane.b32.xlu0 %v391, 80
    %v2210 = vpop.permute.xlu0 %2209
    %v2212 = vsel %vm402, %v2208, 0
    %v2215 = vsel %vm402, %v2210, 0
    %2217 = vmatprep.subr.bf16.mxu0 0
    %2218 = vmatpush1.bf16.xpose.msra.mxu0 %v2215
    %2219 = vmatprep.subr.bf16.mxu0 0
    %2220 = vmatpush1.bf16.xpose.msra.mxu0 0
    %2221 = vmatprep.subr.bf16.mxu0 0
    %2222 = vmatpush1.bf16.xpose.msra.mxu0 0
    %2223 = vmatprep.subr.bf16.mxu0 0
    %2224 = vmatpush1.bf16.xpose.msra.mxu0 0
    %2225 = vmatprep.subr.bf16.mxu0 0
    %2226 = vmatpush1.bf16.xpose.msra.mxu0 0
    %2227 = vmatprep.subr.bf16.mxu0 0
    %2228 = vmatpush1.bf16.xpose.msra.mxu0 0
    %2229 = vmatprep.subr.bf16.mxu0 0
    %2230 = vmatpush1.bf16.xpose.msra.mxu0 0
    %2231 = vmatprep.subr.bf16.mxu0 0
    %2232 = vmatpush1.bf16.xpose.msra.mxu0 0
    %2233 = vmatprep.subr.bf16.mxu0 0
    %2234 = vmatpush1.bf16.xpose.msra.mxu0 0
    %2235 = vmatprep.subr.bf16.mxu0 0
    %2236 = vmatpush1.bf16.xpose.msra.mxu0 0
    %2237 = vmatprep.subr.bf16.mxu0 0
    %2238 = vmatpush1.bf16.xpose.msra.mxu0 0
    %2239 = vmatprep.subr.bf16.mxu0 0
    %2240 = vmatpush1.bf16.xpose.msra.mxu0 0
    %2241 = vmatprep.subr.bf16.mxu0 0
    %2242 = vmatpush1.bf16.xpose.msra.mxu0 0
    %2243 = vmatprep.subr.bf16.mxu0 0
    %2244 = vmatpush1.bf16.xpose.msra.mxu0 0
    %2245 = vmatprep.subr.bf16.mxu0 0
    %2246 = vmatpush1.bf16.xpose.msra.mxu0 0
    %2247 = vmatprep.subr.bf16.mxu0 0
    %2248 = vmatpush1.bf16.xpose.msra.mxu0 0
    %2249 = vmatprep.mubr.bf16.mxu0 0
    %2250 = vmatmul.mubr.bf16.gmra.mrb[0].mxu0 %v2212
    %v2251 = vpop.f32.mrb[0].mxu0
    %v2252 = vadd.f32 0.0, %v2251
    %v2253 = vpop.f32.mrb[0].mxu0
    %v2254 = vpop.f32.mrb[0].mxu0
    %v2255 = vpop.f32.mrb[0].mxu0
    %2256 = vdwg.mxu0
    %2257 = vrot.lane.b32.xlu0 %v392, 112
    %v2258 = vpop.permute.xlu0 %2257
    %2259 = vrot.lane.b32.xlu0 %v392, 80
    %v2260 = vpop.permute.xlu0 %2259
    %v2262 = vsel %vm402, %v2258, 0
    %v2265 = vsel %vm402, %v2260, 0
    %2267 = vmatprep.subr.bf16.mxu0 0
    %2268 = vmatpush1.bf16.xpose.msra.mxu0 %v2265
    %2269 = vmatprep.subr.bf16.mxu0 0
    %2270 = vmatpush1.bf16.xpose.msra.mxu0 0
    %2271 = vmatprep.subr.bf16.mxu0 0
    %2272 = vmatpush1.bf16.xpose.msra.mxu0 0
    %2273 = vmatprep.subr.bf16.mxu0 0
    %2274 = vmatpush1.bf16.xpose.msra.mxu0 0
    %2275 = vmatprep.subr.bf16.mxu0 0
    %2276 = vmatpush1.bf16.xpose.msra.mxu0 0
    %2277 = vmatprep.subr.bf16.mxu0 0
    %2278 = vmatpush1.bf16.xpose.msra.mxu0 0
    %2279 = vmatprep.subr.bf16.mxu0 0
    %2280 = vmatpush1.bf16.xpose.msra.mxu0 0
    %2281 = vmatprep.subr.bf16.mxu0 0
    %2282 = vmatpush1.bf16.xpose.msra.mxu0 0
    %2283 = vmatprep.subr.bf16.mxu0 0
    %2284 = vmatpush1.bf16.xpose.msra.mxu0 0
    %2285 = vmatprep.subr.bf16.mxu0 0
    %2286 = vmatpush1.bf16.xpose.msra.mxu0 0
    %2287 = vmatprep.subr.bf16.mxu0 0
    %2288 = vmatpush1.bf16.xpose.msra.mxu0 0
    %2289 = vmatprep.subr.bf16.mxu0 0
    %2290 = vmatpush1.bf16.xpose.msra.mxu0 0
    %2291 = vmatprep.subr.bf16.mxu0 0
    %2292 = vmatpush1.bf16.xpose.msra.mxu0 0
    %2293 = vmatprep.subr.bf16.mxu0 0
    %2294 = vmatpush1.bf16.xpose.msra.mxu0 0
    %2295 = vmatprep.subr.bf16.mxu0 0
    %2296 = vmatpush1.bf16.xpose.msra.mxu0 0
    %2297 = vmatprep.subr.bf16.mxu0 0
    %2298 = vmatpush1.bf16.xpose.msra.mxu0 0
    %2299 = vmatprep.mubr.bf16.mxu0 0
    %2300 = vmatmul.mubr.bf16.gmra.mrb[0].mxu0 %v2262
    %v2301 = vpop.f32.mrb[0].mxu0
    %v2302 = vadd.f32 0.0, %v2301
    %v2303 = vpop.f32.mrb[0].mxu0
    %v2304 = vpop.f32.mrb[0].mxu0
    %v2305 = vpop.f32.mrb[0].mxu0
    %2306 = vdwg.mxu0
    %2307 = vrot.lane.b32.xlu0 %v393, 112
    %v2308 = vpop.permute.xlu0 %2307
    %2309 = vrot.lane.b32.xlu0 %v393, 80
    %v2310 = vpop.permute.xlu0 %2309
    %v2312 = vsel %vm402, %v2308, 0
    %v2315 = vsel %vm402, %v2310, 0
    %2317 = vmatprep.subr.bf16.mxu0 0
    %2318 = vmatpush1.bf16.xpose.msra.mxu0 %v2315
    %2319 = vmatprep.subr.bf16.mxu0 0
    %2320 = vmatpush1.bf16.xpose.msra.mxu0 0
    %2321 = vmatprep.subr.bf16.mxu0 0
    %2322 = vmatpush1.bf16.xpose.msra.mxu0 0
    %2323 = vmatprep.subr.bf16.mxu0 0
    %2324 = vmatpush1.bf16.xpose.msra.mxu0 0
    %2325 = vmatprep.subr.bf16.mxu0 0
    %2326 = vmatpush1.bf16.xpose.msra.mxu0 0
    %2327 = vmatprep.subr.bf16.mxu0 0
    %2328 = vmatpush1.bf16.xpose.msra.mxu0 0
    %2329 = vmatprep.subr.bf16.mxu0 0
    %2330 = vmatpush1.bf16.xpose.msra.mxu0 0
    %2331 = vmatprep.subr.bf16.mxu0 0
    %2332 = vmatpush1.bf16.xpose.msra.mxu0 0
    %2333 = vmatprep.subr.bf16.mxu0 0
    %2334 = vmatpush1.bf16.xpose.msra.mxu0 0
    %2335 = vmatprep.subr.bf16.mxu0 0
    %2336 = vmatpush1.bf16.xpose.msra.mxu0 0
    %2337 = vmatprep.subr.bf16.mxu0 0
    %2338 = vmatpush1.bf16.xpose.msra.mxu0 0
    %2339 = vmatprep.subr.bf16.mxu0 0
    %2340 = vmatpush1.bf16.xpose.msra.mxu0 0
    %2341 = vmatprep.subr.bf16.mxu0 0
    %2342 = vmatpush1.bf16.xpose.msra.mxu0 0
    %2343 = vmatprep.subr.bf16.mxu0 0
    %2344 = vmatpush1.bf16.xpose.msra.mxu0 0
    %2345 = vmatprep.subr.bf16.mxu0 0
    %2346 = vmatpush1.bf16.xpose.msra.mxu0 0
    %2347 = vmatprep.subr.bf16.mxu0 0
    %2348 = vmatpush1.bf16.xpose.msra.mxu0 0
    %2349 = vmatprep.mubr.bf16.mxu0 0
    %2350 = vmatmul.mubr.bf16.gmra.mrb[0].mxu0 %v2312
    %v2351 = vpop.f32.mrb[0].mxu0
    %v2352 = vadd.f32 0.0, %v2351
    %v2353 = vpop.f32.mrb[0].mxu0
    %v2354 = vpop.f32.mrb[0].mxu0
    %v2355 = vpop.f32.mrb[0].mxu0
    %2356 = vdwg.mxu0
    %2357 = vrot.lane.b32.xlu0 %v394, 112
    %v2358 = vpop.permute.xlu0 %2357
    %2359 = vrot.lane.b32.xlu0 %v394, 80
    %v2360 = vpop.permute.xlu0 %2359
    %v2362 = vsel %vm402, %v2358, 0
    %v2365 = vsel %vm402, %v2360, 0
    %2367 = vmatprep.subr.bf16.mxu0 0
    %2368 = vmatpush1.bf16.xpose.msra.mxu0 %v2365
    %2369 = vmatprep.subr.bf16.mxu0 0
    %2370 = vmatpush1.bf16.xpose.msra.mxu0 0
    %2371 = vmatprep.subr.bf16.mxu0 0
    %2372 = vmatpush1.bf16.xpose.msra.mxu0 0
    %2373 = vmatprep.subr.bf16.mxu0 0
    %2374 = vmatpush1.bf16.xpose.msra.mxu0 0
    %2375 = vmatprep.subr.bf16.mxu0 0
    %2376 = vmatpush1.bf16.xpose.msra.mxu0 0
    %2377 = vmatprep.subr.bf16.mxu0 0
    %2378 = vmatpush1.bf16.xpose.msra.mxu0 0
    %2379 = vmatprep.subr.bf16.mxu0 0
    %2380 = vmatpush1.bf16.xpose.msra.mxu0 0
    %2381 = vmatprep.subr.bf16.mxu0 0
    %2382 = vmatpush1.bf16.xpose.msra.mxu0 0
    %2383 = vmatprep.subr.bf16.mxu0 0
    %2384 = vmatpush1.bf16.xpose.msra.mxu0 0
    %2385 = vmatprep.subr.bf16.mxu0 0
    %2386 = vmatpush1.bf16.xpose.msra.mxu0 0
    %2387 = vmatprep.subr.bf16.mxu0 0
    %2388 = vmatpush1.bf16.xpose.msra.mxu0 0
    %2389 = vmatprep.subr.bf16.mxu0 0
    %2390 = vmatpush1.bf16.xpose.msra.mxu0 0
    %2391 = vmatprep.subr.bf16.mxu0 0
    %2392 = vmatpush1.bf16.xpose.msra.mxu0 0
    %2393 = vmatprep.subr.bf16.mxu0 0
    %2394 = vmatpush1.bf16.xpose.msra.mxu0 0
    %2395 = vmatprep.subr.bf16.mxu0 0
    %2396 = vmatpush1.bf16.xpose.msra.mxu0 0
    %2397 = vmatprep.subr.bf16.mxu0 0
    %2398 = vmatpush1.bf16.xpose.msra.mxu0 0
    %2399 = vmatprep.mubr.bf16.mxu0 0
    %2400 = vmatmul.mubr.bf16.gmra.mrb[0].mxu0 %v2362
    %v2401 = vpop.f32.mrb[0].mxu0
    %v2402 = vadd.f32 0.0, %v2401
    %v2403 = vpop.f32.mrb[0].mxu0
    %v2404 = vpop.f32.mrb[0].mxu0
    %v2405 = vpop.f32.mrb[0].mxu0
    %2406 = vdwg.mxu0
    %2407 = vrot.lane.b32.xlu0 %v395, 112
    %v2408 = vpop.permute.xlu0 %2407
    %2409 = vrot.lane.b32.xlu0 %v395, 80
    %v2410 = vpop.permute.xlu0 %2409
    %v2412 = vsel %vm402, %v2408, 0
    %v2415 = vsel %vm402, %v2410, 0
    %2417 = vmatprep.subr.bf16.mxu0 0
    %2418 = vmatpush1.bf16.xpose.msra.mxu0 %v2415
    %2419 = vmatprep.subr.bf16.mxu0 0
    %2420 = vmatpush1.bf16.xpose.msra.mxu0 0
    %2421 = vmatprep.subr.bf16.mxu0 0
    %2422 = vmatpush1.bf16.xpose.msra.mxu0 0
    %2423 = vmatprep.subr.bf16.mxu0 0
    %2424 = vmatpush1.bf16.xpose.msra.mxu0 0
    %2425 = vmatprep.subr.bf16.mxu0 0
    %2426 = vmatpush1.bf16.xpose.msra.mxu0 0
    %2427 = vmatprep.subr.bf16.mxu0 0
    %2428 = vmatpush1.bf16.xpose.msra.mxu0 0
    %2429 = vmatprep.subr.bf16.mxu0 0
    %2430 = vmatpush1.bf16.xpose.msra.mxu0 0
    %2431 = vmatprep.subr.bf16.mxu0 0
    %2432 = vmatpush1.bf16.xpose.msra.mxu0 0
    %2433 = vmatprep.subr.bf16.mxu0 0
    %2434 = vmatpush1.bf16.xpose.msra.mxu0 0
    %2435 = vmatprep.subr.bf16.mxu0 0
    %2436 = vmatpush1.bf16.xpose.msra.mxu0 0
    %2437 = vmatprep.subr.bf16.mxu0 0
    %2438 = vmatpush1.bf16.xpose.msra.mxu0 0
    %2439 = vmatprep.subr.bf16.mxu0 0
    %2440 = vmatpush1.bf16.xpose.msra.mxu0 0
    %2441 = vmatprep.subr.bf16.mxu0 0
    %2442 = vmatpush1.bf16.xpose.msra.mxu0 0
    %2443 = vmatprep.subr.bf16.mxu0 0
    %2444 = vmatpush1.bf16.xpose.msra.mxu0 0
    %2445 = vmatprep.subr.bf16.mxu0 0
    %2446 = vmatpush1.bf16.xpose.msra.mxu0 0
    %2447 = vmatprep.subr.bf16.mxu0 0
    %2448 = vmatpush1.bf16.xpose.msra.mxu0 0
    %2449 = vmatprep.mubr.bf16.mxu0 0
    %2450 = vmatmul.mubr.bf16.gmra.mrb[0].mxu0 %v2412
    %v2451 = vpop.f32.mrb[0].mxu0
    %v2452 = vadd.f32 0.0, %v2451
    %v2453 = vpop.f32.mrb[0].mxu0
    %v2454 = vpop.f32.mrb[0].mxu0
    %v2455 = vpop.f32.mrb[0].mxu0
    %2456 = vdwg.mxu0
    %2457 = vrot.lane.b32.xlu0 %v396, 112
    %v2458 = vpop.permute.xlu0 %2457
    %2459 = vrot.lane.b32.xlu0 %v396, 80
    %v2460 = vpop.permute.xlu0 %2459
    %v2462 = vsel %vm402, %v2458, 0
    %v2465 = vsel %vm402, %v2460, 0
    %2467 = vmatprep.subr.bf16.mxu0 0
    %2468 = vmatpush1.bf16.xpose.msra.mxu0 %v2465
    %2469 = vmatprep.subr.bf16.mxu0 0
    %2470 = vmatpush1.bf16.xpose.msra.mxu0 0
    %2471 = vmatprep.subr.bf16.mxu0 0
    %2472 = vmatpush1.bf16.xpose.msra.mxu0 0
    %2473 = vmatprep.subr.bf16.mxu0 0
    %2474 = vmatpush1.bf16.xpose.msra.mxu0 0
    %2475 = vmatprep.subr.bf16.mxu0 0
    %2476 = vmatpush1.bf16.xpose.msra.mxu0 0
    %2477 = vmatprep.subr.bf16.mxu0 0
    %2478 = vmatpush1.bf16.xpose.msra.mxu0 0
    %2479 = vmatprep.subr.bf16.mxu0 0
    %2480 = vmatpush1.bf16.xpose.msra.mxu0 0
    %2481 = vmatprep.subr.bf16.mxu0 0
    %2482 = vmatpush1.bf16.xpose.msra.mxu0 0
    %2483 = vmatprep.subr.bf16.mxu0 0
    %2484 = vmatpush1.bf16.xpose.msra.mxu0 0
    %2485 = vmatprep.subr.bf16.mxu0 0
    %2486 = vmatpush1.bf16.xpose.msra.mxu0 0
    %2487 = vmatprep.subr.bf16.mxu0 0
    %2488 = vmatpush1.bf16.xpose.msra.mxu0 0
    %2489 = vmatprep.subr.bf16.mxu0 0
    %2490 = vmatpush1.bf16.xpose.msra.mxu0 0
    %2491 = vmatprep.subr.bf16.mxu0 0
    %2492 = vmatpush1.bf16.xpose.msra.mxu0 0
    %2493 = vmatprep.subr.bf16.mxu0 0
    %2494 = vmatpush1.bf16.xpose.msra.mxu0 0
    %2495 = vmatprep.subr.bf16.mxu0 0
    %2496 = vmatpush1.bf16.xpose.msra.mxu0 0
    %2497 = vmatprep.subr.bf16.mxu0 0
    %2498 = vmatpush1.bf16.xpose.msra.mxu0 0
    %2499 = vmatprep.mubr.bf16.mxu0 0
    %2500 = vmatmul.mubr.bf16.gmra.mrb[0].mxu0 %v2462
    %v2501 = vpop.f32.mrb[0].mxu0
    %v2502 = vadd.f32 0.0, %v2501
    %v2503 = vpop.f32.mrb[0].mxu0
    %v2504 = vpop.f32.mrb[0].mxu0
    %v2505 = vpop.f32.mrb[0].mxu0
    %2506 = vdwg.mxu0
    %v2507 = vmul.f32 %v2152, 0.35355338
    %v2508 = vmul.f32 %v2202, 0.35355338
    %v2509 = vmul.f32 %v2252, 0.35355338
    %v2510 = vmul.f32 %v2302, 0.35355338
    %v2511 = vmul.f32 %v2352, 0.35355338
    %v2512 = vmul.f32 %v2402, 0.35355338
    %v2513 = vmul.f32 %v2452, 0.35355338
    %v2514 = vmul.f32 %v2502, 0.35355338
    %v2515 = vsel %vm402, %v2507, -inf
    %2516 = vmax.xlane.f32.xlu0 %v2515
    %v2517 = vpop.xlane.xlu0 %2516
    %v2518 = vsel %vm402, %v2508, -inf
    %2519 = vmax.xlane.f32.xlu0 %v2518
    %v2520 = vpop.xlane.xlu0 %2519
    %v2521 = vsel %vm402, %v2509, -inf
    %2522 = vmax.xlane.f32.xlu0 %v2521
    %v2523 = vpop.xlane.xlu0 %2522
    %v2524 = vsel %vm402, %v2510, -inf
    %2525 = vmax.xlane.f32.xlu0 %v2524
    %v2526 = vpop.xlane.xlu0 %2525
    %v2527 = vsel %vm402, %v2511, -inf
    %2528 = vmax.xlane.f32.xlu0 %v2527
    %v2529 = vpop.xlane.xlu0 %2528
    %v2530 = vsel %vm402, %v2512, -inf
    %2531 = vmax.xlane.f32.xlu0 %v2530
    %v2532 = vpop.xlane.xlu0 %2531
    %v2533 = vsel %vm402, %v2513, -inf
    %2534 = vmax.xlane.f32.xlu0 %v2533
    %v2535 = vpop.xlane.xlu0 %2534
    %v2536 = vsel %vm402, %v2514, -inf
    %2537 = vmax.xlane.f32.xlu0 %v2536
    %v2538 = vpop.xlane.xlu0 %2537
    %v2539 = vsub.f32 %v2507, %v2517
    %v2540 = vsub.f32 %v2508, %v2520
    %v2541 = vsub.f32 %v2509, %v2523
    %v2542 = vsub.f32 %v2510, %v2526
    %v2543 = vsub.f32 %v2511, %v2529
    %v2544 = vsub.f32 %v2512, %v2532
    %v2545 = vsub.f32 %v2513, %v2535
    %v2546 = vsub.f32 %v2514, %v2538
    %v2547 = vmul.f32 %v2539, 1.442695
    %v2548 = vpow.pop %v2547
    %v2549 = vmul.f32 %v2540, 1.442695
    %v2550 = vpow.pop %v2549
    %v2551 = vmul.f32 %v2541, 1.442695
    %v2552 = vpow.pop %v2551
    %v2553 = vmul.f32 %v2542, 1.442695
    %v2554 = vpow.pop %v2553
    %v2555 = vmul.f32 %v2543, 1.442695
    %v2556 = vpow.pop %v2555
    %v2557 = vmul.f32 %v2544, 1.442695
    %v2558 = vpow.pop %v2557
    %v2559 = vmul.f32 %v2545, 1.442695
    %v2560 = vpow.pop %v2559
    %v2561 = vmul.f32 %v2546, 1.442695
    %v2562 = vpow.pop %v2561
    %v2563 = vsel %vm402, %v2548, 0.0
    %2564 = vadd.xlane.f32.xlu0 %v2563
    %v2565 = vpop.xlane.xlu0 %2564
    %v2566 = vsel %vm402, %v2550, 0.0
    %2567 = vadd.xlane.f32.xlu0 %v2566
    %v2568 = vpop.xlane.xlu0 %2567
    %v2569 = vsel %vm402, %v2552, 0.0
    %2570 = vadd.xlane.f32.xlu0 %v2569
    %v2571 = vpop.xlane.xlu0 %2570
    %v2572 = vsel %vm402, %v2554, 0.0
    %2573 = vadd.xlane.f32.xlu0 %v2572
    %v2574 = vpop.xlane.xlu0 %2573
    %v2575 = vsel %vm402, %v2556, 0.0
    %2576 = vadd.xlane.f32.xlu0 %v2575
    %v2577 = vpop.xlane.xlu0 %2576
    %v2578 = vsel %vm402, %v2558, 0.0
    %2579 = vadd.xlane.f32.xlu0 %v2578
    %v2580 = vpop.xlane.xlu0 %2579
    %v2581 = vsel %vm402, %v2560, 0.0
    %2582 = vadd.xlane.f32.xlu0 %v2581
    %v2583 = vpop.xlane.xlu0 %2582
    %v2584 = vsel %vm402, %v2562, 0.0
    %2585 = vadd.xlane.f32.xlu0 %v2584
    %v2586 = vpop.xlane.xlu0 %2585
    %v2587 = vrcp.pop %v2565
    %v2588 = vmul.f32 %v2548, %v2587
    %v2589 = vrcp.pop %v2568
    %v2590 = vmul.f32 %v2550, %v2589
    %v2591 = vrcp.pop %v2571
    %v2592 = vmul.f32 %v2552, %v2591
    %v2593 = vrcp.pop %v2574
    %v2594 = vmul.f32 %v2554, %v2593
    %v2595 = vrcp.pop %v2577
    %v2596 = vmul.f32 %v2556, %v2595
    %v2597 = vrcp.pop %v2580
    %v2598 = vmul.f32 %v2558, %v2597
    %v2599 = vrcp.pop %v2583
    %v2600 = vmul.f32 %v2560, %v2599
    %v2601 = vrcp.pop %v2586
    %v2602 = vmul.f32 %v2562, %v2601
    %v2603 = vpack.c.bf16 %v2588, %v2588
    %v2604 = vpack.c.bf16 %v2590, %v2590
    %v2605 = vpack.c.bf16 %v2592, %v2592
    %v2606 = vpack.c.bf16 %v2594, %v2594
    %v2607 = vpack.c.bf16 %v2596, %v2596
    %v2608 = vpack.c.bf16 %v2598, %v2598
    %v2609 = vpack.c.bf16 %v2600, %v2600
    %v2610 = vpack.c.bf16 %v2602, %v2602
    %2611 = vrot.lane.b32.xlu0 %v397, 112
    %v2612 = vpop.permute.xlu0 %2611
    %v2614 = vsel %vm402, %v2603, 0
    %v2617 = vsel %vm899, %v2612, 0
    %2619 = vmatprep.subr.bf16.mxu0 0
    %2620 = vmatpush1.bf16.msra.mxu0 %v2617
    %2621 = vmatprep.subr.bf16.mxu0 0
    %2622 = vmatpush1.bf16.msra.mxu0 0
    %2623 = vmatprep.subr.bf16.mxu0 0
    %2624 = vmatpush1.bf16.msra.mxu0 0
    %2625 = vmatprep.subr.bf16.mxu0 0
    %2626 = vmatpush1.bf16.msra.mxu0 0
    %2627 = vmatprep.subr.bf16.mxu0 0
    %2628 = vmatpush1.bf16.msra.mxu0 0
    %2629 = vmatprep.subr.bf16.mxu0 0
    %2630 = vmatpush1.bf16.msra.mxu0 0
    %2631 = vmatprep.subr.bf16.mxu0 0
    %2632 = vmatpush1.bf16.msra.mxu0 0
    %2633 = vmatprep.subr.bf16.mxu0 0
    %2634 = vmatpush1.bf16.msra.mxu0 0
    %2635 = vmatprep.subr.bf16.mxu0 0
    %2636 = vmatpush1.bf16.msra.mxu0 0
    %2637 = vmatprep.subr.bf16.mxu0 0
    %2638 = vmatpush1.bf16.msra.mxu0 0
    %2639 = vmatprep.subr.bf16.mxu0 0
    %2640 = vmatpush1.bf16.msra.mxu0 0
    %2641 = vmatprep.subr.bf16.mxu0 0
    %2642 = vmatpush1.bf16.msra.mxu0 0
    %2643 = vmatprep.subr.bf16.mxu0 0
    %2644 = vmatpush1.bf16.msra.mxu0 0
    %2645 = vmatprep.subr.bf16.mxu0 0
    %2646 = vmatpush1.bf16.msra.mxu0 0
    %2647 = vmatprep.subr.bf16.mxu0 0
    %2648 = vmatpush1.bf16.msra.mxu0 0
    %2649 = vmatprep.subr.bf16.mxu0 0
    %2650 = vmatpush1.bf16.msra.mxu0 0
    %2651 = vmatprep.mubr.bf16.mxu0 0
    %2652 = vmatmul.mubr.bf16.gmra.mrb[0].mxu0 %v2614
    %v2653 = vpop.f32.mrb[0].mxu0
    %v2654 = vadd.f32 0.0, %v2653
    %v2655 = vpop.f32.mrb[0].mxu0
    %v2656 = vpop.f32.mrb[0].mxu0
    %v2657 = vpop.f32.mrb[0].mxu0
    %2658 = vdwg.mxu0
    %v2660 = vsel %vm402, %v2604, 0
    %2662 = vmatprep.subr.bf16.mxu0 0
    %2663 = vmatpush1.bf16.msra.mxu0 %v2617
    %2664 = vmatprep.subr.bf16.mxu0 0
    %2665 = vmatpush1.bf16.msra.mxu0 0
    %2666 = vmatprep.subr.bf16.mxu0 0
    %2667 = vmatpush1.bf16.msra.mxu0 0
    %2668 = vmatprep.subr.bf16.mxu0 0
    %2669 = vmatpush1.bf16.msra.mxu0 0
    %2670 = vmatprep.subr.bf16.mxu0 0
    %2671 = vmatpush1.bf16.msra.mxu0 0
    %2672 = vmatprep.subr.bf16.mxu0 0
    %2673 = vmatpush1.bf16.msra.mxu0 0
    %2674 = vmatprep.subr.bf16.mxu0 0
    %2675 = vmatpush1.bf16.msra.mxu0 0
    %2676 = vmatprep.subr.bf16.mxu0 0
    %2677 = vmatpush1.bf16.msra.mxu0 0
    %2678 = vmatprep.subr.bf16.mxu0 0
    %2679 = vmatpush1.bf16.msra.mxu0 0
    %2680 = vmatprep.subr.bf16.mxu0 0
    %2681 = vmatpush1.bf16.msra.mxu0 0
    %2682 = vmatprep.subr.bf16.mxu0 0
    %2683 = vmatpush1.bf16.msra.mxu0 0
    %2684 = vmatprep.subr.bf16.mxu0 0
    %2685 = vmatpush1.bf16.msra.mxu0 0
    %2686 = vmatprep.subr.bf16.mxu0 0
    %2687 = vmatpush1.bf16.msra.mxu0 0
    %2688 = vmatprep.subr.bf16.mxu0 0
    %2689 = vmatpush1.bf16.msra.mxu0 0
    %2690 = vmatprep.subr.bf16.mxu0 0
    %2691 = vmatpush1.bf16.msra.mxu0 0
    %2692 = vmatprep.subr.bf16.mxu0 0
    %2693 = vmatpush1.bf16.msra.mxu0 0
    %2694 = vmatprep.mubr.bf16.mxu0 0
    %2695 = vmatmul.mubr.bf16.gmra.mrb[0].mxu0 %v2660
    %v2696 = vpop.f32.mrb[0].mxu0
    %v2697 = vadd.f32 0.0, %v2696
    %v2698 = vpop.f32.mrb[0].mxu0
    %v2699 = vpop.f32.mrb[0].mxu0
    %v2700 = vpop.f32.mrb[0].mxu0
    %2701 = vdwg.mxu0
    %v2703 = vsel %vm402, %v2605, 0
    %2705 = vmatprep.subr.bf16.mxu0 0
    %2706 = vmatpush1.bf16.msra.mxu0 %v2617
    %2707 = vmatprep.subr.bf16.mxu0 0
    %2708 = vmatpush1.bf16.msra.mxu0 0
    %2709 = vmatprep.subr.bf16.mxu0 0
    %2710 = vmatpush1.bf16.msra.mxu0 0
    %2711 = vmatprep.subr.bf16.mxu0 0
    %2712 = vmatpush1.bf16.msra.mxu0 0
    %2713 = vmatprep.subr.bf16.mxu0 0
    %2714 = vmatpush1.bf16.msra.mxu0 0
    %2715 = vmatprep.subr.bf16.mxu0 0
    %2716 = vmatpush1.bf16.msra.mxu0 0
    %2717 = vmatprep.subr.bf16.mxu0 0
    %2718 = vmatpush1.bf16.msra.mxu0 0
    %2719 = vmatprep.subr.bf16.mxu0 0
    %2720 = vmatpush1.bf16.msra.mxu0 0
    %2721 = vmatprep.subr.bf16.mxu0 0
    %2722 = vmatpush1.bf16.msra.mxu0 0
    %2723 = vmatprep.subr.bf16.mxu0 0
    %2724 = vmatpush1.bf16.msra.mxu0 0
    %2725 = vmatprep.subr.bf16.mxu0 0
    %2726 = vmatpush1.bf16.msra.mxu0 0
    %2727 = vmatprep.subr.bf16.mxu0 0
    %2728 = vmatpush1.bf16.msra.mxu0 0
    %2729 = vmatprep.subr.bf16.mxu0 0
    %2730 = vmatpush1.bf16.msra.mxu0 0
    %2731 = vmatprep.subr.bf16.mxu0 0
    %2732 = vmatpush1.bf16.msra.mxu0 0
    %2733 = vmatprep.subr.bf16.mxu0 0
    %2734 = vmatpush1.bf16.msra.mxu0 0
    %2735 = vmatprep.subr.bf16.mxu0 0
    %2736 = vmatpush1.bf16.msra.mxu0 0
    %2737 = vmatprep.mubr.bf16.mxu0 0
    %2738 = vmatmul.mubr.bf16.gmra.mrb[0].mxu0 %v2703
    %v2739 = vpop.f32.mrb[0].mxu0
    %v2740 = vadd.f32 0.0, %v2739
    %v2741 = vpop.f32.mrb[0].mxu0
    %v2742 = vpop.f32.mrb[0].mxu0
    %v2743 = vpop.f32.mrb[0].mxu0
    %2744 = vdwg.mxu0
    %v2746 = vsel %vm402, %v2606, 0
    %2748 = vmatprep.subr.bf16.mxu0 0
    %2749 = vmatpush1.bf16.msra.mxu0 %v2617
    %2750 = vmatprep.subr.bf16.mxu0 0
    %2751 = vmatpush1.bf16.msra.mxu0 0
    %2752 = vmatprep.subr.bf16.mxu0 0
    %2753 = vmatpush1.bf16.msra.mxu0 0
    %2754 = vmatprep.subr.bf16.mxu0 0
    %2755 = vmatpush1.bf16.msra.mxu0 0
    %2756 = vmatprep.subr.bf16.mxu0 0
    %2757 = vmatpush1.bf16.msra.mxu0 0
    %2758 = vmatprep.subr.bf16.mxu0 0
    %2759 = vmatpush1.bf16.msra.mxu0 0
    %2760 = vmatprep.subr.bf16.mxu0 0
    %2761 = vmatpush1.bf16.msra.mxu0 0
    %2762 = vmatprep.subr.bf16.mxu0 0
    %2763 = vmatpush1.bf16.msra.mxu0 0
    %2764 = vmatprep.subr.bf16.mxu0 0
    %2765 = vmatpush1.bf16.msra.mxu0 0
    %2766 = vmatprep.subr.bf16.mxu0 0
    %2767 = vmatpush1.bf16.msra.mxu0 0
    %2768 = vmatprep.subr.bf16.mxu0 0
    %2769 = vmatpush1.bf16.msra.mxu0 0
    %2770 = vmatprep.subr.bf16.mxu0 0
    %2771 = vmatpush1.bf16.msra.mxu0 0
    %2772 = vmatprep.subr.bf16.mxu0 0
    %2773 = vmatpush1.bf16.msra.mxu0 0
    %2774 = vmatprep.subr.bf16.mxu0 0
    %2775 = vmatpush1.bf16.msra.mxu0 0
    %2776 = vmatprep.subr.bf16.mxu0 0
    %2777 = vmatpush1.bf16.msra.mxu0 0
    %2778 = vmatprep.subr.bf16.mxu0 0
    %2779 = vmatpush1.bf16.msra.mxu0 0
    %2780 = vmatprep.mubr.bf16.mxu0 0
    %2781 = vmatmul.mubr.bf16.gmra.mrb[0].mxu0 %v2746
    %v2782 = vpop.f32.mrb[0].mxu0
    %v2783 = vadd.f32 0.0, %v2782
    %v2784 = vpop.f32.mrb[0].mxu0
    %v2785 = vpop.f32.mrb[0].mxu0
    %v2786 = vpop.f32.mrb[0].mxu0
    %2787 = vdwg.mxu0
    %2788 = vrot.lane.b32.xlu0 %v398, 112
    %v2789 = vpop.permute.xlu0 %2788
    %v2791 = vsel %vm402, %v2607, 0
    %v2794 = vsel %vm899, %v2789, 0
    %2796 = vmatprep.subr.bf16.mxu0 0
    %2797 = vmatpush1.bf16.msra.mxu0 %v2794
    %2798 = vmatprep.subr.bf16.mxu0 0
    %2799 = vmatpush1.bf16.msra.mxu0 0
    %2800 = vmatprep.subr.bf16.mxu0 0
    %2801 = vmatpush1.bf16.msra.mxu0 0
    %2802 = vmatprep.subr.bf16.mxu0 0
    %2803 = vmatpush1.bf16.msra.mxu0 0
    %2804 = vmatprep.subr.bf16.mxu0 0
    %2805 = vmatpush1.bf16.msra.mxu0 0
    %2806 = vmatprep.subr.bf16.mxu0 0
    %2807 = vmatpush1.bf16.msra.mxu0 0
    %2808 = vmatprep.subr.bf16.mxu0 0
    %2809 = vmatpush1.bf16.msra.mxu0 0
    %2810 = vmatprep.subr.bf16.mxu0 0
    %2811 = vmatpush1.bf16.msra.mxu0 0
    %2812 = vmatprep.subr.bf16.mxu0 0
    %2813 = vmatpush1.bf16.msra.mxu0 0
    %2814 = vmatprep.subr.bf16.mxu0 0
    %2815 = vmatpush1.bf16.msra.mxu0 0
    %2816 = vmatprep.subr.bf16.mxu0 0
    %2817 = vmatpush1.bf16.msra.mxu0 0
    %2818 = vmatprep.subr.bf16.mxu0 0
    %2819 = vmatpush1.bf16.msra.mxu0 0
    %2820 = vmatprep.subr.bf16.mxu0 0
    %2821 = vmatpush1.bf16.msra.mxu0 0
    %2822 = vmatprep.subr.bf16.mxu0 0
    %2823 = vmatpush1.bf16.msra.mxu0 0
    %2824 = vmatprep.subr.bf16.mxu0 0
    %2825 = vmatpush1.bf16.msra.mxu0 0
    %2826 = vmatprep.subr.bf16.mxu0 0
    %2827 = vmatpush1.bf16.msra.mxu0 0
    %2828 = vmatprep.mubr.bf16.mxu0 0
    %2829 = vmatmul.mubr.bf16.gmra.mrb[0].mxu0 %v2791
    %v2830 = vpop.f32.mrb[0].mxu0
    %v2831 = vadd.f32 0.0, %v2830
    %v2832 = vpop.f32.mrb[0].mxu0
    %v2833 = vpop.f32.mrb[0].mxu0
    %v2834 = vpop.f32.mrb[0].mxu0
    %2835 = vdwg.mxu0
    %v2837 = vsel %vm402, %v2608, 0
    %2839 = vmatprep.subr.bf16.mxu0 0
    %2840 = vmatpush1.bf16.msra.mxu0 %v2794
    %2841 = vmatprep.subr.bf16.mxu0 0
    %2842 = vmatpush1.bf16.msra.mxu0 0
    %2843 = vmatprep.subr.bf16.mxu0 0
    %2844 = vmatpush1.bf16.msra.mxu0 0
    %2845 = vmatprep.subr.bf16.mxu0 0
    %2846 = vmatpush1.bf16.msra.mxu0 0
    %2847 = vmatprep.subr.bf16.mxu0 0
    %2848 = vmatpush1.bf16.msra.mxu0 0
    %2849 = vmatprep.subr.bf16.mxu0 0
    %2850 = vmatpush1.bf16.msra.mxu0 0
    %2851 = vmatprep.subr.bf16.mxu0 0
    %2852 = vmatpush1.bf16.msra.mxu0 0
    %2853 = vmatprep.subr.bf16.mxu0 0
    %2854 = vmatpush1.bf16.msra.mxu0 0
    %2855 = vmatprep.subr.bf16.mxu0 0
    %2856 = vmatpush1.bf16.msra.mxu0 0
    %2857 = vmatprep.subr.bf16.mxu0 0
    %2858 = vmatpush1.bf16.msra.mxu0 0
    %2859 = vmatprep.subr.bf16.mxu0 0
    %2860 = vmatpush1.bf16.msra.mxu0 0
    %2861 = vmatprep.subr.bf16.mxu0 0
    %2862 = vmatpush1.bf16.msra.mxu0 0
    %2863 = vmatprep.subr.bf16.mxu0 0
    %2864 = vmatpush1.bf16.msra.mxu0 0
    %2865 = vmatprep.subr.bf16.mxu0 0
    %2866 = vmatpush1.bf16.msra.mxu0 0
    %2867 = vmatprep.subr.bf16.mxu0 0
    %2868 = vmatpush1.bf16.msra.mxu0 0
    %2869 = vmatprep.subr.bf16.mxu0 0
    %2870 = vmatpush1.bf16.msra.mxu0 0
    %2871 = vmatprep.mubr.bf16.mxu0 0
    %2872 = vmatmul.mubr.bf16.gmra.mrb[0].mxu0 %v2837
    %v2873 = vpop.f32.mrb[0].mxu0
    %v2874 = vadd.f32 0.0, %v2873
    %v2875 = vpop.f32.mrb[0].mxu0
    %v2876 = vpop.f32.mrb[0].mxu0
    %v2877 = vpop.f32.mrb[0].mxu0
    %2878 = vdwg.mxu0
    %v2880 = vsel %vm402, %v2609, 0
    %2882 = vmatprep.subr.bf16.mxu0 0
    %2883 = vmatpush1.bf16.msra.mxu0 %v2794
    %2884 = vmatprep.subr.bf16.mxu0 0
    %2885 = vmatpush1.bf16.msra.mxu0 0
    %2886 = vmatprep.subr.bf16.mxu0 0
    %2887 = vmatpush1.bf16.msra.mxu0 0
    %2888 = vmatprep.subr.bf16.mxu0 0
    %2889 = vmatpush1.bf16.msra.mxu0 0
    %2890 = vmatprep.subr.bf16.mxu0 0
    %2891 = vmatpush1.bf16.msra.mxu0 0
    %2892 = vmatprep.subr.bf16.mxu0 0
    %2893 = vmatpush1.bf16.msra.mxu0 0
    %2894 = vmatprep.subr.bf16.mxu0 0
    %2895 = vmatpush1.bf16.msra.mxu0 0
    %2896 = vmatprep.subr.bf16.mxu0 0
    %2897 = vmatpush1.bf16.msra.mxu0 0
    %2898 = vmatprep.subr.bf16.mxu0 0
    %2899 = vmatpush1.bf16.msra.mxu0 0
    %2900 = vmatprep.subr.bf16.mxu0 0
    %2901 = vmatpush1.bf16.msra.mxu0 0
    %2902 = vmatprep.subr.bf16.mxu0 0
    %2903 = vmatpush1.bf16.msra.mxu0 0
    %2904 = vmatprep.subr.bf16.mxu0 0
    %2905 = vmatpush1.bf16.msra.mxu0 0
    %2906 = vmatprep.subr.bf16.mxu0 0
    %2907 = vmatpush1.bf16.msra.mxu0 0
    %2908 = vmatprep.subr.bf16.mxu0 0
    %2909 = vmatpush1.bf16.msra.mxu0 0
    %2910 = vmatprep.subr.bf16.mxu0 0
    %2911 = vmatpush1.bf16.msra.mxu0 0
    %2912 = vmatprep.subr.bf16.mxu0 0
    %2913 = vmatpush1.bf16.msra.mxu0 0
    %2914 = vmatprep.mubr.bf16.mxu0 0
    %2915 = vmatmul.mubr.bf16.gmra.mrb[0].mxu0 %v2880
    %v2916 = vpop.f32.mrb[0].mxu0
    %v2917 = vadd.f32 0.0, %v2916
    %v2918 = vpop.f32.mrb[0].mxu0
    %v2919 = vpop.f32.mrb[0].mxu0
    %v2920 = vpop.f32.mrb[0].mxu0
    %2921 = vdwg.mxu0
    %v2923 = vsel %vm402, %v2610, 0
    %2925 = vmatprep.subr.bf16.mxu0 0
    %2926 = vmatpush1.bf16.msra.mxu0 %v2794
    %2927 = vmatprep.subr.bf16.mxu0 0
    %2928 = vmatpush1.bf16.msra.mxu0 0
    %2929 = vmatprep.subr.bf16.mxu0 0
    %2930 = vmatpush1.bf16.msra.mxu0 0
    %2931 = vmatprep.subr.bf16.mxu0 0
    %2932 = vmatpush1.bf16.msra.mxu0 0
    %2933 = vmatprep.subr.bf16.mxu0 0
    %2934 = vmatpush1.bf16.msra.mxu0 0
    %2935 = vmatprep.subr.bf16.mxu0 0
    %2936 = vmatpush1.bf16.msra.mxu0 0
    %2937 = vmatprep.subr.bf16.mxu0 0
    %2938 = vmatpush1.bf16.msra.mxu0 0
    %2939 = vmatprep.subr.bf16.mxu0 0
    %2940 = vmatpush1.bf16.msra.mxu0 0
    %2941 = vmatprep.subr.bf16.mxu0 0
    %2942 = vmatpush1.bf16.msra.mxu0 0
    %2943 = vmatprep.subr.bf16.mxu0 0
    %2944 = vmatpush1.bf16.msra.mxu0 0
    %2945 = vmatprep.subr.bf16.mxu0 0
    %2946 = vmatpush1.bf16.msra.mxu0 0
    %2947 = vmatprep.subr.bf16.mxu0 0
    %2948 = vmatpush1.bf16.msra.mxu0 0
    %2949 = vmatprep.subr.bf16.mxu0 0
    %2950 = vmatpush1.bf16.msra.mxu0 0
    %2951 = vmatprep.subr.bf16.mxu0 0
    %2952 = vmatpush1.bf16.msra.mxu0 0
    %2953 = vmatprep.subr.bf16.mxu0 0
    %2954 = vmatpush1.bf16.msra.mxu0 0
    %2955 = vmatprep.subr.bf16.mxu0 0
    %2956 = vmatpush1.bf16.msra.mxu0 0
    %2957 = vmatprep.mubr.bf16.mxu0 0
    %2958 = vmatmul.mubr.bf16.gmra.mrb[0].mxu0 %v2923
    %v2959 = vpop.f32.mrb[0].mxu0
    %v2960 = vadd.f32 0.0, %v2959
    %v2961 = vpop.f32.mrb[0].mxu0
    %v2962 = vpop.f32.mrb[0].mxu0
    %v2963 = vpop.f32.mrb[0].mxu0
    %2964 = vdwg.mxu0
    %2965 = vrot.lane.b32.xlu0 %v389, 104
    %v2966 = vpop.permute.xlu0 %2965
    %2967 = vrot.lane.b32.xlu0 %v389, 72
    %v2968 = vpop.permute.xlu0 %2967
    %v2970 = vsel %vm402, %v2966, 0
    %v2973 = vsel %vm402, %v2968, 0
    %2975 = vmatprep.subr.bf16.mxu0 0
    %2976 = vmatpush1.bf16.xpose.msra.mxu0 %v2973
    %2977 = vmatprep.subr.bf16.mxu0 0
    %2978 = vmatpush1.bf16.xpose.msra.mxu0 0
    %2979 = vmatprep.subr.bf16.mxu0 0
    %2980 = vmatpush1.bf16.xpose.msra.mxu0 0
    %2981 = vmatprep.subr.bf16.mxu0 0
    %2982 = vmatpush1.bf16.xpose.msra.mxu0 0
    %2983 = vmatprep.subr.bf16.mxu0 0
    %2984 = vmatpush1.bf16.xpose.msra.mxu0 0
    %2985 = vmatprep.subr.bf16.mxu0 0
    %2986 = vmatpush1.bf16.xpose.msra.mxu0 0
    %2987 = vmatprep.subr.bf16.mxu0 0
    %2988 = vmatpush1.bf16.xpose.msra.mxu0 0
    %2989 = vmatprep.subr.bf16.mxu0 0
    %2990 = vmatpush1.bf16.xpose.msra.mxu0 0
    %2991 = vmatprep.subr.bf16.mxu0 0
    %2992 = vmatpush1.bf16.xpose.msra.mxu0 0
    %2993 = vmatprep.subr.bf16.mxu0 0
    %2994 = vmatpush1.bf16.xpose.msra.mxu0 0
    %2995 = vmatprep.subr.bf16.mxu0 0
    %2996 = vmatpush1.bf16.xpose.msra.mxu0 0
    %2997 = vmatprep.subr.bf16.mxu0 0
    %2998 = vmatpush1.bf16.xpose.msra.mxu0 0
    %2999 = vmatprep.subr.bf16.mxu0 0
    %3000 = vmatpush1.bf16.xpose.msra.mxu0 0
    %3001 = vmatprep.subr.bf16.mxu0 0
    %3002 = vmatpush1.bf16.xpose.msra.mxu0 0
    %3003 = vmatprep.subr.bf16.mxu0 0
    %3004 = vmatpush1.bf16.xpose.msra.mxu0 0
    %3005 = vmatprep.subr.bf16.mxu0 0
    %3006 = vmatpush1.bf16.xpose.msra.mxu0 0
    %3007 = vmatprep.mubr.bf16.mxu0 0
    %3008 = vmatmul.mubr.bf16.gmra.mrb[0].mxu0 %v2970
    %v3009 = vpop.f32.mrb[0].mxu0
    %v3010 = vadd.f32 0.0, %v3009
    %v3011 = vpop.f32.mrb[0].mxu0
    %v3012 = vpop.f32.mrb[0].mxu0
    %v3013 = vpop.f32.mrb[0].mxu0
    %3014 = vdwg.mxu0
    %3015 = vrot.lane.b32.xlu0 %v390, 104
    %v3016 = vpop.permute.xlu0 %3015
    %3017 = vrot.lane.b32.xlu0 %v390, 72
    %v3018 = vpop.permute.xlu0 %3017
    %v3020 = vsel %vm402, %v3016, 0
    %v3023 = vsel %vm402, %v3018, 0
    %3025 = vmatprep.subr.bf16.mxu0 0
    %3026 = vmatpush1.bf16.xpose.msra.mxu0 %v3023
    %3027 = vmatprep.subr.bf16.mxu0 0
    %3028 = vmatpush1.bf16.xpose.msra.mxu0 0
    %3029 = vmatprep.subr.bf16.mxu0 0
    %3030 = vmatpush1.bf16.xpose.msra.mxu0 0
    %3031 = vmatprep.subr.bf16.mxu0 0
    %3032 = vmatpush1.bf16.xpose.msra.mxu0 0
    %3033 = vmatprep.subr.bf16.mxu0 0
    %3034 = vmatpush1.bf16.xpose.msra.mxu0 0
    %3035 = vmatprep.subr.bf16.mxu0 0
    %3036 = vmatpush1.bf16.xpose.msra.mxu0 0
    %3037 = vmatprep.subr.bf16.mxu0 0
    %3038 = vmatpush1.bf16.xpose.msra.mxu0 0
    %3039 = vmatprep.subr.bf16.mxu0 0
    %3040 = vmatpush1.bf16.xpose.msra.mxu0 0
    %3041 = vmatprep.subr.bf16.mxu0 0
    %3042 = vmatpush1.bf16.xpose.msra.mxu0 0
    %3043 = vmatprep.subr.bf16.mxu0 0
    %3044 = vmatpush1.bf16.xpose.msra.mxu0 0
    %3045 = vmatprep.subr.bf16.mxu0 0
    %3046 = vmatpush1.bf16.xpose.msra.mxu0 0
    %3047 = vmatprep.subr.bf16.mxu0 0
    %3048 = vmatpush1.bf16.xpose.msra.mxu0 0
    %3049 = vmatprep.subr.bf16.mxu0 0
    %3050 = vmatpush1.bf16.xpose.msra.mxu0 0
    %3051 = vmatprep.subr.bf16.mxu0 0
    %3052 = vmatpush1.bf16.xpose.msra.mxu0 0
    %3053 = vmatprep.subr.bf16.mxu0 0
    %3054 = vmatpush1.bf16.xpose.msra.mxu0 0
    %3055 = vmatprep.subr.bf16.mxu0 0
    %3056 = vmatpush1.bf16.xpose.msra.mxu0 0
    %3057 = vmatprep.mubr.bf16.mxu0 0
    %3058 = vmatmul.mubr.bf16.gmra.mrb[0].mxu0 %v3020
    %v3059 = vpop.f32.mrb[0].mxu0
    %v3060 = vadd.f32 0.0, %v3059
    %v3061 = vpop.f32.mrb[0].mxu0
    %v3062 = vpop.f32.mrb[0].mxu0
    %v3063 = vpop.f32.mrb[0].mxu0
    %3064 = vdwg.mxu0
    %3065 = vrot.lane.b32.xlu0 %v391, 104
    %v3066 = vpop.permute.xlu0 %3065
    %3067 = vrot.lane.b32.xlu0 %v391, 72
    %v3068 = vpop.permute.xlu0 %3067
    %v3070 = vsel %vm402, %v3066, 0
    %v3073 = vsel %vm402, %v3068, 0
    %3075 = vmatprep.subr.bf16.mxu0 0
    %3076 = vmatpush1.bf16.xpose.msra.mxu0 %v3073
    %3077 = vmatprep.subr.bf16.mxu0 0
    %3078 = vmatpush1.bf16.xpose.msra.mxu0 0
    %3079 = vmatprep.subr.bf16.mxu0 0
    %3080 = vmatpush1.bf16.xpose.msra.mxu0 0
    %3081 = vmatprep.subr.bf16.mxu0 0
    %3082 = vmatpush1.bf16.xpose.msra.mxu0 0
    %3083 = vmatprep.subr.bf16.mxu0 0
    %3084 = vmatpush1.bf16.xpose.msra.mxu0 0
    %3085 = vmatprep.subr.bf16.mxu0 0
    %3086 = vmatpush1.bf16.xpose.msra.mxu0 0
    %3087 = vmatprep.subr.bf16.mxu0 0
    %3088 = vmatpush1.bf16.xpose.msra.mxu0 0
    %3089 = vmatprep.subr.bf16.mxu0 0
    %3090 = vmatpush1.bf16.xpose.msra.mxu0 0
    %3091 = vmatprep.subr.bf16.mxu0 0
    %3092 = vmatpush1.bf16.xpose.msra.mxu0 0
    %3093 = vmatprep.subr.bf16.mxu0 0
    %3094 = vmatpush1.bf16.xpose.msra.mxu0 0
    %3095 = vmatprep.subr.bf16.mxu0 0
    %3096 = vmatpush1.bf16.xpose.msra.mxu0 0
    %3097 = vmatprep.subr.bf16.mxu0 0
    %3098 = vmatpush1.bf16.xpose.msra.mxu0 0
    %3099 = vmatprep.subr.bf16.mxu0 0
    %3100 = vmatpush1.bf16.xpose.msra.mxu0 0
    %3101 = vmatprep.subr.bf16.mxu0 0
    %3102 = vmatpush1.bf16.xpose.msra.mxu0 0
    %3103 = vmatprep.subr.bf16.mxu0 0
    %3104 = vmatpush1.bf16.xpose.msra.mxu0 0
    %3105 = vmatprep.subr.bf16.mxu0 0
    %3106 = vmatpush1.bf16.xpose.msra.mxu0 0
    %3107 = vmatprep.mubr.bf16.mxu0 0
    %3108 = vmatmul.mubr.bf16.gmra.mrb[0].mxu0 %v3070
    %v3109 = vpop.f32.mrb[0].mxu0
    %v3110 = vadd.f32 0.0, %v3109
    %v3111 = vpop.f32.mrb[0].mxu0
    %v3112 = vpop.f32.mrb[0].mxu0
    %v3113 = vpop.f32.mrb[0].mxu0
    %3114 = vdwg.mxu0
    %3115 = vrot.lane.b32.xlu0 %v392, 104
    %v3116 = vpop.permute.xlu0 %3115
    %3117 = vrot.lane.b32.xlu0 %v392, 72
    %v3118 = vpop.permute.xlu0 %3117
    %v3120 = vsel %vm402, %v3116, 0
    %v3123 = vsel %vm402, %v3118, 0
    %3125 = vmatprep.subr.bf16.mxu0 0
    %3126 = vmatpush1.bf16.xpose.msra.mxu0 %v3123
    %3127 = vmatprep.subr.bf16.mxu0 0
    %3128 = vmatpush1.bf16.xpose.msra.mxu0 0
    %3129 = vmatprep.subr.bf16.mxu0 0
    %3130 = vmatpush1.bf16.xpose.msra.mxu0 0
    %3131 = vmatprep.subr.bf16.mxu0 0
    %3132 = vmatpush1.bf16.xpose.msra.mxu0 0
    %3133 = vmatprep.subr.bf16.mxu0 0
    %3134 = vmatpush1.bf16.xpose.msra.mxu0 0
    %3135 = vmatprep.subr.bf16.mxu0 0
    %3136 = vmatpush1.bf16.xpose.msra.mxu0 0
    %3137 = vmatprep.subr.bf16.mxu0 0
    %3138 = vmatpush1.bf16.xpose.msra.mxu0 0
    %3139 = vmatprep.subr.bf16.mxu0 0
    %3140 = vmatpush1.bf16.xpose.msra.mxu0 0
    %3141 = vmatprep.subr.bf16.mxu0 0
    %3142 = vmatpush1.bf16.xpose.msra.mxu0 0
    %3143 = vmatprep.subr.bf16.mxu0 0
    %3144 = vmatpush1.bf16.xpose.msra.mxu0 0
    %3145 = vmatprep.subr.bf16.mxu0 0
    %3146 = vmatpush1.bf16.xpose.msra.mxu0 0
    %3147 = vmatprep.subr.bf16.mxu0 0
    %3148 = vmatpush1.bf16.xpose.msra.mxu0 0
    %3149 = vmatprep.subr.bf16.mxu0 0
    %3150 = vmatpush1.bf16.xpose.msra.mxu0 0
    %3151 = vmatprep.subr.bf16.mxu0 0
    %3152 = vmatpush1.bf16.xpose.msra.mxu0 0
    %3153 = vmatprep.subr.bf16.mxu0 0
    %3154 = vmatpush1.bf16.xpose.msra.mxu0 0
    %3155 = vmatprep.subr.bf16.mxu0 0
    %3156 = vmatpush1.bf16.xpose.msra.mxu0 0
    %3157 = vmatprep.mubr.bf16.mxu0 0
    %3158 = vmatmul.mubr.bf16.gmra.mrb[0].mxu0 %v3120
    %v3159 = vpop.f32.mrb[0].mxu0
    %v3160 = vadd.f32 0.0, %v3159
    %v3161 = vpop.f32.mrb[0].mxu0
    %v3162 = vpop.f32.mrb[0].mxu0
    %v3163 = vpop.f32.mrb[0].mxu0
    %3164 = vdwg.mxu0
    %3165 = vrot.lane.b32.xlu0 %v393, 104
    %v3166 = vpop.permute.xlu0 %3165
    %3167 = vrot.lane.b32.xlu0 %v393, 72
    %v3168 = vpop.permute.xlu0 %3167
    %v3170 = vsel %vm402, %v3166, 0
    %v3173 = vsel %vm402, %v3168, 0
    %3175 = vmatprep.subr.bf16.mxu0 0
    %3176 = vmatpush1.bf16.xpose.msra.mxu0 %v3173
    %3177 = vmatprep.subr.bf16.mxu0 0
    %3178 = vmatpush1.bf16.xpose.msra.mxu0 0
    %3179 = vmatprep.subr.bf16.mxu0 0
    %3180 = vmatpush1.bf16.xpose.msra.mxu0 0
    %3181 = vmatprep.subr.bf16.mxu0 0
    %3182 = vmatpush1.bf16.xpose.msra.mxu0 0
    %3183 = vmatprep.subr.bf16.mxu0 0
    %3184 = vmatpush1.bf16.xpose.msra.mxu0 0
    %3185 = vmatprep.subr.bf16.mxu0 0
    %3186 = vmatpush1.bf16.xpose.msra.mxu0 0
    %3187 = vmatprep.subr.bf16.mxu0 0
    %3188 = vmatpush1.bf16.xpose.msra.mxu0 0
    %3189 = vmatprep.subr.bf16.mxu0 0
    %3190 = vmatpush1.bf16.xpose.msra.mxu0 0
    %3191 = vmatprep.subr.bf16.mxu0 0
    %3192 = vmatpush1.bf16.xpose.msra.mxu0 0
    %3193 = vmatprep.subr.bf16.mxu0 0
    %3194 = vmatpush1.bf16.xpose.msra.mxu0 0
    %3195 = vmatprep.subr.bf16.mxu0 0
    %3196 = vmatpush1.bf16.xpose.msra.mxu0 0
    %3197 = vmatprep.subr.bf16.mxu0 0
    %3198 = vmatpush1.bf16.xpose.msra.mxu0 0
    %3199 = vmatprep.subr.bf16.mxu0 0
    %3200 = vmatpush1.bf16.xpose.msra.mxu0 0
    %3201 = vmatprep.subr.bf16.mxu0 0
    %3202 = vmatpush1.bf16.xpose.msra.mxu0 0
    %3203 = vmatprep.subr.bf16.mxu0 0
    %3204 = vmatpush1.bf16.xpose.msra.mxu0 0
    %3205 = vmatprep.subr.bf16.mxu0 0
    %3206 = vmatpush1.bf16.xpose.msra.mxu0 0
    %3207 = vmatprep.mubr.bf16.mxu0 0
    %3208 = vmatmul.mubr.bf16.gmra.mrb[0].mxu0 %v3170
    %v3209 = vpop.f32.mrb[0].mxu0
    %v3210 = vadd.f32 0.0, %v3209
    %v3211 = vpop.f32.mrb[0].mxu0
    %v3212 = vpop.f32.mrb[0].mxu0
    %v3213 = vpop.f32.mrb[0].mxu0
    %3214 = vdwg.mxu0
    %3215 = vrot.lane.b32.xlu0 %v394, 104
    %v3216 = vpop.permute.xlu0 %3215
    %3217 = vrot.lane.b32.xlu0 %v394, 72
    %v3218 = vpop.permute.xlu0 %3217
    %v3220 = vsel %vm402, %v3216, 0
    %v3223 = vsel %vm402, %v3218, 0
    %3225 = vmatprep.subr.bf16.mxu0 0
    %3226 = vmatpush1.bf16.xpose.msra.mxu0 %v3223
    %3227 = vmatprep.subr.bf16.mxu0 0
    %3228 = vmatpush1.bf16.xpose.msra.mxu0 0
    %3229 = vmatprep.subr.bf16.mxu0 0
    %3230 = vmatpush1.bf16.xpose.msra.mxu0 0
    %3231 = vmatprep.subr.bf16.mxu0 0
    %3232 = vmatpush1.bf16.xpose.msra.mxu0 0
    %3233 = vmatprep.subr.bf16.mxu0 0
    %3234 = vmatpush1.bf16.xpose.msra.mxu0 0
    %3235 = vmatprep.subr.bf16.mxu0 0
    %3236 = vmatpush1.bf16.xpose.msra.mxu0 0
    %3237 = vmatprep.subr.bf16.mxu0 0
    %3238 = vmatpush1.bf16.xpose.msra.mxu0 0
    %3239 = vmatprep.subr.bf16.mxu0 0
    %3240 = vmatpush1.bf16.xpose.msra.mxu0 0
    %3241 = vmatprep.subr.bf16.mxu0 0
    %3242 = vmatpush1.bf16.xpose.msra.mxu0 0
    %3243 = vmatprep.subr.bf16.mxu0 0
    %3244 = vmatpush1.bf16.xpose.msra.mxu0 0
    %3245 = vmatprep.subr.bf16.mxu0 0
    %3246 = vmatpush1.bf16.xpose.msra.mxu0 0
    %3247 = vmatprep.subr.bf16.mxu0 0
    %3248 = vmatpush1.bf16.xpose.msra.mxu0 0
    %3249 = vmatprep.subr.bf16.mxu0 0
    %3250 = vmatpush1.bf16.xpose.msra.mxu0 0
    %3251 = vmatprep.subr.bf16.mxu0 0
    %3252 = vmatpush1.bf16.xpose.msra.mxu0 0
    %3253 = vmatprep.subr.bf16.mxu0 0
    %3254 = vmatpush1.bf16.xpose.msra.mxu0 0
    %3255 = vmatprep.subr.bf16.mxu0 0
    %3256 = vmatpush1.bf16.xpose.msra.mxu0 0
    %3257 = vmatprep.mubr.bf16.mxu0 0
    %3258 = vmatmul.mubr.bf16.gmra.mrb[0].mxu0 %v3220
    %v3259 = vpop.f32.mrb[0].mxu0
    %v3260 = vadd.f32 0.0, %v3259
    %v3261 = vpop.f32.mrb[0].mxu0
    %v3262 = vpop.f32.mrb[0].mxu0
    %v3263 = vpop.f32.mrb[0].mxu0
    %3264 = vdwg.mxu0
    %3265 = vrot.lane.b32.xlu0 %v395, 104
    %v3266 = vpop.permute.xlu0 %3265
    %3267 = vrot.lane.b32.xlu0 %v395, 72
    %v3268 = vpop.permute.xlu0 %3267
    %v3270 = vsel %vm402, %v3266, 0
    %v3273 = vsel %vm402, %v3268, 0
    %3275 = vmatprep.subr.bf16.mxu0 0
    %3276 = vmatpush1.bf16.xpose.msra.mxu0 %v3273
    %3277 = vmatprep.subr.bf16.mxu0 0
    %3278 = vmatpush1.bf16.xpose.msra.mxu0 0
    %3279 = vmatprep.subr.bf16.mxu0 0
    %3280 = vmatpush1.bf16.xpose.msra.mxu0 0
    %3281 = vmatprep.subr.bf16.mxu0 0
    %3282 = vmatpush1.bf16.xpose.msra.mxu0 0
    %3283 = vmatprep.subr.bf16.mxu0 0
    %3284 = vmatpush1.bf16.xpose.msra.mxu0 0
    %3285 = vmatprep.subr.bf16.mxu0 0
    %3286 = vmatpush1.bf16.xpose.msra.mxu0 0
    %3287 = vmatprep.subr.bf16.mxu0 0
    %3288 = vmatpush1.bf16.xpose.msra.mxu0 0
    %3289 = vmatprep.subr.bf16.mxu0 0
    %3290 = vmatpush1.bf16.xpose.msra.mxu0 0
    %3291 = vmatprep.subr.bf16.mxu0 0
    %3292 = vmatpush1.bf16.xpose.msra.mxu0 0
    %3293 = vmatprep.subr.bf16.mxu0 0
    %3294 = vmatpush1.bf16.xpose.msra.mxu0 0
    %3295 = vmatprep.subr.bf16.mxu0 0
    %3296 = vmatpush1.bf16.xpose.msra.mxu0 0
    %3297 = vmatprep.subr.bf16.mxu0 0
    %3298 = vmatpush1.bf16.xpose.msra.mxu0 0
    %3299 = vmatprep.subr.bf16.mxu0 0
    %3300 = vmatpush1.bf16.xpose.msra.mxu0 0
    %3301 = vmatprep.subr.bf16.mxu0 0
    %3302 = vmatpush1.bf16.xpose.msra.mxu0 0
    %3303 = vmatprep.subr.bf16.mxu0 0
    %3304 = vmatpush1.bf16.xpose.msra.mxu0 0
    %3305 = vmatprep.subr.bf16.mxu0 0
    %3306 = vmatpush1.bf16.xpose.msra.mxu0 0
    %3307 = vmatprep.mubr.bf16.mxu0 0
    %3308 = vmatmul.mubr.bf16.gmra.mrb[0].mxu0 %v3270
    %v3309 = vpop.f32.mrb[0].mxu0
    %v3310 = vadd.f32 0.0, %v3309
    %v3311 = vpop.f32.mrb[0].mxu0
    %v3312 = vpop.f32.mrb[0].mxu0
    %v3313 = vpop.f32.mrb[0].mxu0
    %3314 = vdwg.mxu0
    %3315 = vrot.lane.b32.xlu0 %v396, 104
    %v3316 = vpop.permute.xlu0 %3315
    %3317 = vrot.lane.b32.xlu0 %v396, 72
    %v3318 = vpop.permute.xlu0 %3317
    %v3320 = vsel %vm402, %v3316, 0
    %v3323 = vsel %vm402, %v3318, 0
    %3325 = vmatprep.subr.bf16.mxu0 0
    %3326 = vmatpush1.bf16.xpose.msra.mxu0 %v3323
    %3327 = vmatprep.subr.bf16.mxu0 0
    %3328 = vmatpush1.bf16.xpose.msra.mxu0 0
    %3329 = vmatprep.subr.bf16.mxu0 0
    %3330 = vmatpush1.bf16.xpose.msra.mxu0 0
    %3331 = vmatprep.subr.bf16.mxu0 0
    %3332 = vmatpush1.bf16.xpose.msra.mxu0 0
    %3333 = vmatprep.subr.bf16.mxu0 0
    %3334 = vmatpush1.bf16.xpose.msra.mxu0 0
    %3335 = vmatprep.subr.bf16.mxu0 0
    %3336 = vmatpush1.bf16.xpose.msra.mxu0 0
    %3337 = vmatprep.subr.bf16.mxu0 0
    %3338 = vmatpush1.bf16.xpose.msra.mxu0 0
    %3339 = vmatprep.subr.bf16.mxu0 0
    %3340 = vmatpush1.bf16.xpose.msra.mxu0 0
    %3341 = vmatprep.subr.bf16.mxu0 0
    %3342 = vmatpush1.bf16.xpose.msra.mxu0 0
    %3343 = vmatprep.subr.bf16.mxu0 0
    %3344 = vmatpush1.bf16.xpose.msra.mxu0 0
    %3345 = vmatprep.subr.bf16.mxu0 0
    %3346 = vmatpush1.bf16.xpose.msra.mxu0 0
    %3347 = vmatprep.subr.bf16.mxu0 0
    %3348 = vmatpush1.bf16.xpose.msra.mxu0 0
    %3349 = vmatprep.subr.bf16.mxu0 0
    %3350 = vmatpush1.bf16.xpose.msra.mxu0 0
    %3351 = vmatprep.subr.bf16.mxu0 0
    %3352 = vmatpush1.bf16.xpose.msra.mxu0 0
    %3353 = vmatprep.subr.bf16.mxu0 0
    %3354 = vmatpush1.bf16.xpose.msra.mxu0 0
    %3355 = vmatprep.subr.bf16.mxu0 0
    %3356 = vmatpush1.bf16.xpose.msra.mxu0 0
    %3357 = vmatprep.mubr.bf16.mxu0 0
    %3358 = vmatmul.mubr.bf16.gmra.mrb[0].mxu0 %v3320
    %v3359 = vpop.f32.mrb[0].mxu0
    %v3360 = vadd.f32 0.0, %v3359
    %v3361 = vpop.f32.mrb[0].mxu0
    %v3362 = vpop.f32.mrb[0].mxu0
    %v3363 = vpop.f32.mrb[0].mxu0
    %3364 = vdwg.mxu0
    %v3365 = vmul.f32 %v3010, 0.35355338
    %v3366 = vmul.f32 %v3060, 0.35355338
    %v3367 = vmul.f32 %v3110, 0.35355338
    %v3368 = vmul.f32 %v3160, 0.35355338
    %v3369 = vmul.f32 %v3210, 0.35355338
    %v3370 = vmul.f32 %v3260, 0.35355338
    %v3371 = vmul.f32 %v3310, 0.35355338
    %v3372 = vmul.f32 %v3360, 0.35355338
    %v3373 = vsel %vm402, %v3365, -inf
    %3374 = vmax.xlane.f32.xlu0 %v3373
    %v3375 = vpop.xlane.xlu0 %3374
    %v3376 = vsel %vm402, %v3366, -inf
    %3377 = vmax.xlane.f32.xlu0 %v3376
    %v3378 = vpop.xlane.xlu0 %3377
    %v3379 = vsel %vm402, %v3367, -inf
    %3380 = vmax.xlane.f32.xlu0 %v3379
    %v3381 = vpop.xlane.xlu0 %3380
    %v3382 = vsel %vm402, %v3368, -inf
    %3383 = vmax.xlane.f32.xlu0 %v3382
    %v3384 = vpop.xlane.xlu0 %3383
    %v3385 = vsel %vm402, %v3369, -inf
    %3386 = vmax.xlane.f32.xlu0 %v3385
    %v3387 = vpop.xlane.xlu0 %3386
    %v3388 = vsel %vm402, %v3370, -inf
    %3389 = vmax.xlane.f32.xlu0 %v3388
    %v3390 = vpop.xlane.xlu0 %3389
    %v3391 = vsel %vm402, %v3371, -inf
    %3392 = vmax.xlane.f32.xlu0 %v3391
    %v3393 = vpop.xlane.xlu0 %3392
    %v3394 = vsel %vm402, %v3372, -inf
    %3395 = vmax.xlane.f32.xlu0 %v3394
    %v3396 = vpop.xlane.xlu0 %3395
    %v3397 = vsub.f32 %v3365, %v3375
    %v3398 = vsub.f32 %v3366, %v3378
    %v3399 = vsub.f32 %v3367, %v3381
    %v3400 = vsub.f32 %v3368, %v3384
    %v3401 = vsub.f32 %v3369, %v3387
    %v3402 = vsub.f32 %v3370, %v3390
    %v3403 = vsub.f32 %v3371, %v3393
    %v3404 = vsub.f32 %v3372, %v3396
    %v3405 = vmul.f32 %v3397, 1.442695
    %v3406 = vpow.pop %v3405
    %v3407 = vmul.f32 %v3398, 1.442695
    %v3408 = vpow.pop %v3407
    %v3409 = vmul.f32 %v3399, 1.442695
    %v3410 = vpow.pop %v3409
    %v3411 = vmul.f32 %v3400, 1.442695
    %v3412 = vpow.pop %v3411
    %v3413 = vmul.f32 %v3401, 1.442695
    %v3414 = vpow.pop %v3413
    %v3415 = vmul.f32 %v3402, 1.442695
    %v3416 = vpow.pop %v3415
    %v3417 = vmul.f32 %v3403, 1.442695
    %v3418 = vpow.pop %v3417
    %v3419 = vmul.f32 %v3404, 1.442695
    %v3420 = vpow.pop %v3419
    %v3421 = vsel %vm402, %v3406, 0.0
    %3422 = vadd.xlane.f32.xlu0 %v3421
    %v3423 = vpop.xlane.xlu0 %3422
    %v3424 = vsel %vm402, %v3408, 0.0
    %3425 = vadd.xlane.f32.xlu0 %v3424
    %v3426 = vpop.xlane.xlu0 %3425
    %v3427 = vsel %vm402, %v3410, 0.0
    %3428 = vadd.xlane.f32.xlu0 %v3427
    %v3429 = vpop.xlane.xlu0 %3428
    %v3430 = vsel %vm402, %v3412, 0.0
    %3431 = vadd.xlane.f32.xlu0 %v3430
    %v3432 = vpop.xlane.xlu0 %3431
    %v3433 = vsel %vm402, %v3414, 0.0
    %3434 = vadd.xlane.f32.xlu0 %v3433
    %v3435 = vpop.xlane.xlu0 %3434
    %v3436 = vsel %vm402, %v3416, 0.0
    %3437 = vadd.xlane.f32.xlu0 %v3436
    %v3438 = vpop.xlane.xlu0 %3437
    %v3439 = vsel %vm402, %v3418, 0.0
    %3440 = vadd.xlane.f32.xlu0 %v3439
    %v3441 = vpop.xlane.xlu0 %3440
    %v3442 = vsel %vm402, %v3420, 0.0
    %3443 = vadd.xlane.f32.xlu0 %v3442
    %v3444 = vpop.xlane.xlu0 %3443
    %v3445 = vrcp.pop %v3423
    %v3446 = vmul.f32 %v3406, %v3445
    %v3447 = vrcp.pop %v3426
    %v3448 = vmul.f32 %v3408, %v3447
    %v3449 = vrcp.pop %v3429
    %v3450 = vmul.f32 %v3410, %v3449
    %v3451 = vrcp.pop %v3432
    %v3452 = vmul.f32 %v3412, %v3451
    %v3453 = vrcp.pop %v3435
    %v3454 = vmul.f32 %v3414, %v3453
    %v3455 = vrcp.pop %v3438
    %v3456 = vmul.f32 %v3416, %v3455
    %v3457 = vrcp.pop %v3441
    %v3458 = vmul.f32 %v3418, %v3457
    %v3459 = vrcp.pop %v3444
    %v3460 = vmul.f32 %v3420, %v3459
    %v3461 = vpack.c.bf16 %v3446, %v3446
    %v3462 = vpack.c.bf16 %v3448, %v3448
    %v3463 = vpack.c.bf16 %v3450, %v3450
    %v3464 = vpack.c.bf16 %v3452, %v3452
    %v3465 = vpack.c.bf16 %v3454, %v3454
    %v3466 = vpack.c.bf16 %v3456, %v3456
    %v3467 = vpack.c.bf16 %v3458, %v3458
    %v3468 = vpack.c.bf16 %v3460, %v3460
    %3469 = vrot.lane.b32.xlu0 %v397, 104
    %v3470 = vpop.permute.xlu0 %3469
    %v3472 = vsel %vm402, %v3461, 0
    %v3475 = vsel %vm899, %v3470, 0
    %3477 = vmatprep.subr.bf16.mxu0 0
    %3478 = vmatpush1.bf16.msra.mxu0 %v3475
    %3479 = vmatprep.subr.bf16.mxu0 0
    %3480 = vmatpush1.bf16.msra.mxu0 0
    %3481 = vmatprep.subr.bf16.mxu0 0
    %3482 = vmatpush1.bf16.msra.mxu0 0
    %3483 = vmatprep.subr.bf16.mxu0 0
    %3484 = vmatpush1.bf16.msra.mxu0 0
    %3485 = vmatprep.subr.bf16.mxu0 0
    %3486 = vmatpush1.bf16.msra.mxu0 0
    %3487 = vmatprep.subr.bf16.mxu0 0
    %3488 = vmatpush1.bf16.msra.mxu0 0
    %3489 = vmatprep.subr.bf16.mxu0 0
    %3490 = vmatpush1.bf16.msra.mxu0 0
    %3491 = vmatprep.subr.bf16.mxu0 0
    %3492 = vmatpush1.bf16.msra.mxu0 0
    %3493 = vmatprep.subr.bf16.mxu0 0
    %3494 = vmatpush1.bf16.msra.mxu0 0
    %3495 = vmatprep.subr.bf16.mxu0 0
    %3496 = vmatpush1.bf16.msra.mxu0 0
    %3497 = vmatprep.subr.bf16.mxu0 0
    %3498 = vmatpush1.bf16.msra.mxu0 0
    %3499 = vmatprep.subr.bf16.mxu0 0
    %3500 = vmatpush1.bf16.msra.mxu0 0
    %3501 = vmatprep.subr.bf16.mxu0 0
    %3502 = vmatpush1.bf16.msra.mxu0 0
    %3503 = vmatprep.subr.bf16.mxu0 0
    %3504 = vmatpush1.bf16.msra.mxu0 0
    %3505 = vmatprep.subr.bf16.mxu0 0
    %3506 = vmatpush1.bf16.msra.mxu0 0
    %3507 = vmatprep.subr.bf16.mxu0 0
    %3508 = vmatpush1.bf16.msra.mxu0 0
    %3509 = vmatprep.mubr.bf16.mxu0 0
    %3510 = vmatmul.mubr.bf16.gmra.mrb[0].mxu0 %v3472
    %v3511 = vpop.f32.mrb[0].mxu0
    %v3512 = vadd.f32 0.0, %v3511
    %v3513 = vpop.f32.mrb[0].mxu0
    %v3514 = vpop.f32.mrb[0].mxu0
    %v3515 = vpop.f32.mrb[0].mxu0
    %3516 = vdwg.mxu0
    %v3518 = vsel %vm402, %v3462, 0
    %3520 = vmatprep.subr.bf16.mxu0 0
    %3521 = vmatpush1.bf16.msra.mxu0 %v3475
    %3522 = vmatprep.subr.bf16.mxu0 0
    %3523 = vmatpush1.bf16.msra.mxu0 0
    %3524 = vmatprep.subr.bf16.mxu0 0
    %3525 = vmatpush1.bf16.msra.mxu0 0
    %3526 = vmatprep.subr.bf16.mxu0 0
    %3527 = vmatpush1.bf16.msra.mxu0 0
    %3528 = vmatprep.subr.bf16.mxu0 0
    %3529 = vmatpush1.bf16.msra.mxu0 0
    %3530 = vmatprep.subr.bf16.mxu0 0
    %3531 = vmatpush1.bf16.msra.mxu0 0
    %3532 = vmatprep.subr.bf16.mxu0 0
    %3533 = vmatpush1.bf16.msra.mxu0 0
    %3534 = vmatprep.subr.bf16.mxu0 0
    %3535 = vmatpush1.bf16.msra.mxu0 0
    %3536 = vmatprep.subr.bf16.mxu0 0
    %3537 = vmatpush1.bf16.msra.mxu0 0
    %3538 = vmatprep.subr.bf16.mxu0 0
    %3539 = vmatpush1.bf16.msra.mxu0 0
    %3540 = vmatprep.subr.bf16.mxu0 0
    %3541 = vmatpush1.bf16.msra.mxu0 0
    %3542 = vmatprep.subr.bf16.mxu0 0
    %3543 = vmatpush1.bf16.msra.mxu0 0
    %3544 = vmatprep.subr.bf16.mxu0 0
    %3545 = vmatpush1.bf16.msra.mxu0 0
    %3546 = vmatprep.subr.bf16.mxu0 0
    %3547 = vmatpush1.bf16.msra.mxu0 0
    %3548 = vmatprep.subr.bf16.mxu0 0
    %3549 = vmatpush1.bf16.msra.mxu0 0
    %3550 = vmatprep.subr.bf16.mxu0 0
    %3551 = vmatpush1.bf16.msra.mxu0 0
    %3552 = vmatprep.mubr.bf16.mxu0 0
    %3553 = vmatmul.mubr.bf16.gmra.mrb[0].mxu0 %v3518
    %v3554 = vpop.f32.mrb[0].mxu0
    %v3555 = vadd.f32 0.0, %v3554
    %v3556 = vpop.f32.mrb[0].mxu0
    %v3557 = vpop.f32.mrb[0].mxu0
    %v3558 = vpop.f32.mrb[0].mxu0
    %3559 = vdwg.mxu0
    %v3561 = vsel %vm402, %v3463, 0
    %3563 = vmatprep.subr.bf16.mxu0 0
    %3564 = vmatpush1.bf16.msra.mxu0 %v3475
    %3565 = vmatprep.subr.bf16.mxu0 0
    %3566 = vmatpush1.bf16.msra.mxu0 0
    %3567 = vmatprep.subr.bf16.mxu0 0
    %3568 = vmatpush1.bf16.msra.mxu0 0
    %3569 = vmatprep.subr.bf16.mxu0 0
    %3570 = vmatpush1.bf16.msra.mxu0 0
    %3571 = vmatprep.subr.bf16.mxu0 0
    %3572 = vmatpush1.bf16.msra.mxu0 0
    %3573 = vmatprep.subr.bf16.mxu0 0
    %3574 = vmatpush1.bf16.msra.mxu0 0
    %3575 = vmatprep.subr.bf16.mxu0 0
    %3576 = vmatpush1.bf16.msra.mxu0 0
    %3577 = vmatprep.subr.bf16.mxu0 0
    %3578 = vmatpush1.bf16.msra.mxu0 0
    %3579 = vmatprep.subr.bf16.mxu0 0
    %3580 = vmatpush1.bf16.msra.mxu0 0
    %3581 = vmatprep.subr.bf16.mxu0 0
    %3582 = vmatpush1.bf16.msra.mxu0 0
    %3583 = vmatprep.subr.bf16.mxu0 0
    %3584 = vmatpush1.bf16.msra.mxu0 0
    %3585 = vmatprep.subr.bf16.mxu0 0
    %3586 = vmatpush1.bf16.msra.mxu0 0
    %3587 = vmatprep.subr.bf16.mxu0 0
    %3588 = vmatpush1.bf16.msra.mxu0 0
    %3589 = vmatprep.subr.bf16.mxu0 0
    %3590 = vmatpush1.bf16.msra.mxu0 0
    %3591 = vmatprep.subr.bf16.mxu0 0
    %3592 = vmatpush1.bf16.msra.mxu0 0
    %3593 = vmatprep.subr.bf16.mxu0 0
    %3594 = vmatpush1.bf16.msra.mxu0 0
    %3595 = vmatprep.mubr.bf16.mxu0 0
    %3596 = vmatmul.mubr.bf16.gmra.mrb[0].mxu0 %v3561
    %v3597 = vpop.f32.mrb[0].mxu0
    %v3598 = vadd.f32 0.0, %v3597
    %v3599 = vpop.f32.mrb[0].mxu0
    %v3600 = vpop.f32.mrb[0].mxu0
    %v3601 = vpop.f32.mrb[0].mxu0
    %3602 = vdwg.mxu0
    %v3604 = vsel %vm402, %v3464, 0
    %3606 = vmatprep.subr.bf16.mxu0 0
    %3607 = vmatpush1.bf16.msra.mxu0 %v3475
    %3608 = vmatprep.subr.bf16.mxu0 0
    %3609 = vmatpush1.bf16.msra.mxu0 0
    %3610 = vmatprep.subr.bf16.mxu0 0
    %3611 = vmatpush1.bf16.msra.mxu0 0
    %3612 = vmatprep.subr.bf16.mxu0 0
    %3613 = vmatpush1.bf16.msra.mxu0 0
    %3614 = vmatprep.subr.bf16.mxu0 0
    %3615 = vmatpush1.bf16.msra.mxu0 0
    %3616 = vmatprep.subr.bf16.mxu0 0
    %3617 = vmatpush1.bf16.msra.mxu0 0
    %3618 = vmatprep.subr.bf16.mxu0 0
    %3619 = vmatpush1.bf16.msra.mxu0 0
    %3620 = vmatprep.subr.bf16.mxu0 0
    %3621 = vmatpush1.bf16.msra.mxu0 0
    %3622 = vmatprep.subr.bf16.mxu0 0
    %3623 = vmatpush1.bf16.msra.mxu0 0
    %3624 = vmatprep.subr.bf16.mxu0 0
    %3625 = vmatpush1.bf16.msra.mxu0 0
    %3626 = vmatprep.subr.bf16.mxu0 0
    %3627 = vmatpush1.bf16.msra.mxu0 0
    %3628 = vmatprep.subr.bf16.mxu0 0
    %3629 = vmatpush1.bf16.msra.mxu0 0
    %3630 = vmatprep.subr.bf16.mxu0 0
    %3631 = vmatpush1.bf16.msra.mxu0 0
    %3632 = vmatprep.subr.bf16.mxu0 0
    %3633 = vmatpush1.bf16.msra.mxu0 0
    %3634 = vmatprep.subr.bf16.mxu0 0
    %3635 = vmatpush1.bf16.msra.mxu0 0
    %3636 = vmatprep.subr.bf16.mxu0 0
    %3637 = vmatpush1.bf16.msra.mxu0 0
    %3638 = vmatprep.mubr.bf16.mxu0 0
    %3639 = vmatmul.mubr.bf16.gmra.mrb[0].mxu0 %v3604
    %v3640 = vpop.f32.mrb[0].mxu0
    %v3641 = vadd.f32 0.0, %v3640
    %v3642 = vpop.f32.mrb[0].mxu0
    %v3643 = vpop.f32.mrb[0].mxu0
    %v3644 = vpop.f32.mrb[0].mxu0
    %3645 = vdwg.mxu0
    %3646 = vrot.lane.b32.xlu0 %v398, 104
    %v3647 = vpop.permute.xlu0 %3646
    %v3649 = vsel %vm402, %v3465, 0
    %v3652 = vsel %vm899, %v3647, 0
    %3654 = vmatprep.subr.bf16.mxu0 0
    %3655 = vmatpush1.bf16.msra.mxu0 %v3652
    %3656 = vmatprep.subr.bf16.mxu0 0
    %3657 = vmatpush1.bf16.msra.mxu0 0
    %3658 = vmatprep.subr.bf16.mxu0 0
    %3659 = vmatpush1.bf16.msra.mxu0 0
    %3660 = vmatprep.subr.bf16.mxu0 0
    %3661 = vmatpush1.bf16.msra.mxu0 0
    %3662 = vmatprep.subr.bf16.mxu0 0
    %3663 = vmatpush1.bf16.msra.mxu0 0
    %3664 = vmatprep.subr.bf16.mxu0 0
    %3665 = vmatpush1.bf16.msra.mxu0 0
    %3666 = vmatprep.subr.bf16.mxu0 0
    %3667 = vmatpush1.bf16.msra.mxu0 0
    %3668 = vmatprep.subr.bf16.mxu0 0
    %3669 = vmatpush1.bf16.msra.mxu0 0
    %3670 = vmatprep.subr.bf16.mxu0 0
    %3671 = vmatpush1.bf16.msra.mxu0 0
    %3672 = vmatprep.subr.bf16.mxu0 0
    %3673 = vmatpush1.bf16.msra.mxu0 0
    %3674 = vmatprep.subr.bf16.mxu0 0
    %3675 = vmatpush1.bf16.msra.mxu0 0
    %3676 = vmatprep.subr.bf16.mxu0 0
    %3677 = vmatpush1.bf16.msra.mxu0 0
    %3678 = vmatprep.subr.bf16.mxu0 0
    %3679 = vmatpush1.bf16.msra.mxu0 0
    %3680 = vmatprep.subr.bf16.mxu0 0
    %3681 = vmatpush1.bf16.msra.mxu0 0
    %3682 = vmatprep.subr.bf16.mxu0 0
    %3683 = vmatpush1.bf16.msra.mxu0 0
    %3684 = vmatprep.subr.bf16.mxu0 0
    %3685 = vmatpush1.bf16.msra.mxu0 0
    %3686 = vmatprep.mubr.bf16.mxu0 0
    %3687 = vmatmul.mubr.bf16.gmra.mrb[0].mxu0 %v3649
    %v3688 = vpop.f32.mrb[0].mxu0
    %v3689 = vadd.f32 0.0, %v3688
    %v3690 = vpop.f32.mrb[0].mxu0
    %v3691 = vpop.f32.mrb[0].mxu0
    %v3692 = vpop.f32.mrb[0].mxu0
    %3693 = vdwg.mxu0
    %v3695 = vsel %vm402, %v3466, 0
    %3697 = vmatprep.subr.bf16.mxu0 0
    %3698 = vmatpush1.bf16.msra.mxu0 %v3652
    %3699 = vmatprep.subr.bf16.mxu0 0
    %3700 = vmatpush1.bf16.msra.mxu0 0
    %3701 = vmatprep.subr.bf16.mxu0 0
    %3702 = vmatpush1.bf16.msra.mxu0 0
    %3703 = vmatprep.subr.bf16.mxu0 0
    %3704 = vmatpush1.bf16.msra.mxu0 0
    %3705 = vmatprep.subr.bf16.mxu0 0
    %3706 = vmatpush1.bf16.msra.mxu0 0
    %3707 = vmatprep.subr.bf16.mxu0 0
    %3708 = vmatpush1.bf16.msra.mxu0 0
    %3709 = vmatprep.subr.bf16.mxu0 0
    %3710 = vmatpush1.bf16.msra.mxu0 0
    %3711 = vmatprep.subr.bf16.mxu0 0
    %3712 = vmatpush1.bf16.msra.mxu0 0
    %3713 = vmatprep.subr.bf16.mxu0 0
    %3714 = vmatpush1.bf16.msra.mxu0 0
    %3715 = vmatprep.subr.bf16.mxu0 0
    %3716 = vmatpush1.bf16.msra.mxu0 0
    %3717 = vmatprep.subr.bf16.mxu0 0
    %3718 = vmatpush1.bf16.msra.mxu0 0
    %3719 = vmatprep.subr.bf16.mxu0 0
    %3720 = vmatpush1.bf16.msra.mxu0 0
    %3721 = vmatprep.subr.bf16.mxu0 0
    %3722 = vmatpush1.bf16.msra.mxu0 0
    %3723 = vmatprep.subr.bf16.mxu0 0
    %3724 = vmatpush1.bf16.msra.mxu0 0
    %3725 = vmatprep.subr.bf16.mxu0 0
    %3726 = vmatpush1.bf16.msra.mxu0 0
    %3727 = vmatprep.subr.bf16.mxu0 0
    %3728 = vmatpush1.bf16.msra.mxu0 0
    %3729 = vmatprep.mubr.bf16.mxu0 0
    %3730 = vmatmul.mubr.bf16.gmra.mrb[0].mxu0 %v3695
    %v3731 = vpop.f32.mrb[0].mxu0
    %v3732 = vadd.f32 0.0, %v3731
    %v3733 = vpop.f32.mrb[0].mxu0
    %v3734 = vpop.f32.mrb[0].mxu0
    %v3735 = vpop.f32.mrb[0].mxu0
    %3736 = vdwg.mxu0
    %v3738 = vsel %vm402, %v3467, 0
    %3740 = vmatprep.subr.bf16.mxu0 0
    %3741 = vmatpush1.bf16.msra.mxu0 %v3652
    %3742 = vmatprep.subr.bf16.mxu0 0
    %3743 = vmatpush1.bf16.msra.mxu0 0
    %3744 = vmatprep.subr.bf16.mxu0 0
    %3745 = vmatpush1.bf16.msra.mxu0 0
    %3746 = vmatprep.subr.bf16.mxu0 0
    %3747 = vmatpush1.bf16.msra.mxu0 0
    %3748 = vmatprep.subr.bf16.mxu0 0
    %3749 = vmatpush1.bf16.msra.mxu0 0
    %3750 = vmatprep.subr.bf16.mxu0 0
    %3751 = vmatpush1.bf16.msra.mxu0 0
    %3752 = vmatprep.subr.bf16.mxu0 0
    %3753 = vmatpush1.bf16.msra.mxu0 0
    %3754 = vmatprep.subr.bf16.mxu0 0
    %3755 = vmatpush1.bf16.msra.mxu0 0
    %3756 = vmatprep.subr.bf16.mxu0 0
    %3757 = vmatpush1.bf16.msra.mxu0 0
    %3758 = vmatprep.subr.bf16.mxu0 0
    %3759 = vmatpush1.bf16.msra.mxu0 0
    %3760 = vmatprep.subr.bf16.mxu0 0
    %3761 = vmatpush1.bf16.msra.mxu0 0
    %3762 = vmatprep.subr.bf16.mxu0 0
    %3763 = vmatpush1.bf16.msra.mxu0 0
    %3764 = vmatprep.subr.bf16.mxu0 0
    %3765 = vmatpush1.bf16.msra.mxu0 0
    %3766 = vmatprep.subr.bf16.mxu0 0
    %3767 = vmatpush1.bf16.msra.mxu0 0
    %3768 = vmatprep.subr.bf16.mxu0 0
    %3769 = vmatpush1.bf16.msra.mxu0 0
    %3770 = vmatprep.subr.bf16.mxu0 0
    %3771 = vmatpush1.bf16.msra.mxu0 0
    %3772 = vmatprep.mubr.bf16.mxu0 0
    %3773 = vmatmul.mubr.bf16.gmra.mrb[0].mxu0 %v3738
    %v3774 = vpop.f32.mrb[0].mxu0
    %v3775 = vadd.f32 0.0, %v3774
    %v3776 = vpop.f32.mrb[0].mxu0
    %v3777 = vpop.f32.mrb[0].mxu0
    %v3778 = vpop.f32.mrb[0].mxu0
    %3779 = vdwg.mxu0
    %v3781 = vsel %vm402, %v3468, 0
    %3783 = vmatprep.subr.bf16.mxu0 0
    %3784 = vmatpush1.bf16.msra.mxu0 %v3652
    %3785 = vmatprep.subr.bf16.mxu0 0
    %3786 = vmatpush1.bf16.msra.mxu0 0
    %3787 = vmatprep.subr.bf16.mxu0 0
    %3788 = vmatpush1.bf16.msra.mxu0 0
    %3789 = vmatprep.subr.bf16.mxu0 0
    %3790 = vmatpush1.bf16.msra.mxu0 0
    %3791 = vmatprep.subr.bf16.mxu0 0
    %3792 = vmatpush1.bf16.msra.mxu0 0
    %3793 = vmatprep.subr.bf16.mxu0 0
    %3794 = vmatpush1.bf16.msra.mxu0 0
    %3795 = vmatprep.subr.bf16.mxu0 0
    %3796 = vmatpush1.bf16.msra.mxu0 0
    %3797 = vmatprep.subr.bf16.mxu0 0
    %3798 = vmatpush1.bf16.msra.mxu0 0
    %3799 = vmatprep.subr.bf16.mxu0 0
    %3800 = vmatpush1.bf16.msra.mxu0 0
    %3801 = vmatprep.subr.bf16.mxu0 0
    %3802 = vmatpush1.bf16.msra.mxu0 0
    %3803 = vmatprep.subr.bf16.mxu0 0
    %3804 = vmatpush1.bf16.msra.mxu0 0
    %3805 = vmatprep.subr.bf16.mxu0 0
    %3806 = vmatpush1.bf16.msra.mxu0 0
    %3807 = vmatprep.subr.bf16.mxu0 0
    %3808 = vmatpush1.bf16.msra.mxu0 0
    %3809 = vmatprep.subr.bf16.mxu0 0
    %3810 = vmatpush1.bf16.msra.mxu0 0
    %3811 = vmatprep.subr.bf16.mxu0 0
    %3812 = vmatpush1.bf16.msra.mxu0 0
    %3813 = vmatprep.subr.bf16.mxu0 0
    %3814 = vmatpush1.bf16.msra.mxu0 0
    %3815 = vmatprep.mubr.bf16.mxu0 0
    %3816 = vmatmul.mubr.bf16.gmra.mrb[0].mxu0 %v3781
    %v3817 = vpop.f32.mrb[0].mxu0
    %v3818 = vadd.f32 0.0, %v3817
    %v3819 = vpop.f32.mrb[0].mxu0
    %v3820 = vpop.f32.mrb[0].mxu0
    %v3821 = vpop.f32.mrb[0].mxu0
    %3822 = vdwg.mxu0
    %3831 = vrot.lane.b32.xlu0 %v1795, 8
    %v3832 = vpop.permute.xlu0 %3831
    %3833 = vrot.lane.b32.xlu0 %v1838, 8
    %v3834 = vpop.permute.xlu0 %3833
    %3835 = vrot.lane.b32.xlu0 %v1881, 8
    %v3836 = vpop.permute.xlu0 %3835
    %3837 = vrot.lane.b32.xlu0 %v1924, 8
    %v3838 = vpop.permute.xlu0 %3837
    %3839 = vrot.lane.b32.xlu0 %v1973, 8
    %v3840 = vpop.permute.xlu0 %3839
    %3841 = vrot.lane.b32.xlu0 %v2016, 8
    %v3842 = vpop.permute.xlu0 %3841
    %3843 = vrot.lane.b32.xlu0 %v2059, 8
    %v3844 = vpop.permute.xlu0 %3843
    %3845 = vrot.lane.b32.xlu0 %v2102, 8
    %v3846 = vpop.permute.xlu0 %3845
    %3863 = vrot.lane.b32.xlu0 %v2654, 16
    %v3864 = vpop.permute.xlu0 %3863
    %3865 = vrot.lane.b32.xlu0 %v2697, 16
    %v3866 = vpop.permute.xlu0 %3865
    %3867 = vrot.lane.b32.xlu0 %v2740, 16
    %v3868 = vpop.permute.xlu0 %3867
    %3869 = vrot.lane.b32.xlu0 %v2783, 16
    %v3870 = vpop.permute.xlu0 %3869
    %3871 = vrot.lane.b32.xlu0 %v2831, 16
    %v3872 = vpop.permute.xlu0 %3871
    %3873 = vrot.lane.b32.xlu0 %v2874, 16
    %v3874 = vpop.permute.xlu0 %3873
    %3875 = vrot.lane.b32.xlu0 %v2917, 16
    %v3876 = vpop.permute.xlu0 %3875
    %3877 = vrot.lane.b32.xlu0 %v2960, 16
    %v3878 = vpop.permute.xlu0 %3877
    %3895 = vrot.lane.b32.xlu0 %v3512, 24
    %v3896 = vpop.permute.xlu0 %3895
    %3897 = vrot.lane.b32.xlu0 %v3555, 24
    %v3898 = vpop.permute.xlu0 %3897
    %3899 = vrot.lane.b32.xlu0 %v3598, 24
    %v3900 = vpop.permute.xlu0 %3899
    %3901 = vrot.lane.b32.xlu0 %v3641, 24
    %v3902 = vpop.permute.xlu0 %3901
    %3903 = vrot.lane.b32.xlu0 %v3689, 24
    %v3904 = vpop.permute.xlu0 %3903
    %3905 = vrot.lane.b32.xlu0 %v3732, 24
    %v3906 = vpop.permute.xlu0 %3905
    %3907 = vrot.lane.b32.xlu0 %v3775, 24
    %v3908 = vpop.permute.xlu0 %3907
    %3909 = vrot.lane.b32.xlu0 %v3818, 24
    %v3910 = vpop.permute.xlu0 %3909
    %v3919 = vsel %vm402, %v938, %v3832
    %v3920 = vsel %vm402, %v981, %v3834
    %v3921 = vsel %vm402, %v1024, %v3836
    %v3922 = vsel %vm402, %v1067, %v3838
    %v3923 = vsel %vm402, %v1113, %v3840
    %v3924 = vsel %vm402, %v1156, %v3842
    %v3925 = vsel %vm402, %v1199, %v3844
    %v3926 = vsel %vm402, %v1242, %v3846
    %vm3927 = vcmask 130048
    %v3928 = vsel %vm3927, %v3919, %v3864
    %v3929 = vsel %vm3927, %v3920, %v3866
    %v3930 = vsel %vm3927, %v3921, %v3868
    %v3931 = vsel %vm3927, %v3922, %v3870
    %v3932 = vsel %vm3927, %v3923, %v3872
    %v3933 = vsel %vm3927, %v3924, %v3874
    %v3934 = vsel %vm3927, %v3925, %v3876
    %v3935 = vsel %vm3927, %v3926, %v3878
    %vm3936 = vcmask 195584
    %v3937 = vsel %vm3936, %v3928, %v3896
    %v3938 = vsel %vm3936, %v3929, %v3898
    %v3939 = vsel %vm3936, %v3930, %v3900
    %v3940 = vsel %vm3936, %v3931, %v3902
    %v3941 = vsel %vm3936, %v3932, %v3904
    %v3942 = vsel %vm3936, %v3933, %v3906
    %v3943 = vsel %vm3936, %v3934, %v3908
    %v3944 = vsel %vm3936, %v3935, %v3910
    %v3945 = vld [vmem:[%s7] sm:$0x1]
    %v3946 = vld [vmem:[%s7 + $0x1] sm:$0x1]
    %v3947 = vld [vmem:[%s7 + $0x2] sm:$0x1]
    %v3948 = vld [vmem:[%s7 + $0x3] sm:$0x1]
    %3949 = vrot.lane.b32.xlu0 %v191, 96
    %v3950 = vpop.permute.xlu0 %3949
    %3951 = vrot.lane.b32.xlu0 %v195, 96
    %v3952 = vpop.permute.xlu0 %3951
    %3953 = vrot.lane.b32.xlu0 %v199, 96
    %v3954 = vpop.permute.xlu0 %3953
    %3955 = vrot.lane.b32.xlu0 %v203, 96
    %v3956 = vpop.permute.xlu0 %3955
    %3957 = vrot.lane.b32.xlu0 %v207, 96
    %v3958 = vpop.permute.xlu0 %3957
    %3959 = vrot.lane.b32.xlu0 %v211, 96
    %v3960 = vpop.permute.xlu0 %3959
    %3961 = vrot.lane.b32.xlu0 %v215, 96
    %v3962 = vpop.permute.xlu0 %3961
    %3963 = vrot.lane.b32.xlu0 %v219, 96
    %v3964 = vpop.permute.xlu0 %3963
    %vm3973 = vcmask 785408
    %v3974 = vsel %vm3973, %v136, %v3950
    %v3975 = vsel %vm3973, %v136, %v3952
    %v3976 = vsel %vm3973, %v136, %v3954
    %v3977 = vsel %vm3973, %v136, %v3956
    %v3978 = vsel %vm3973, %v137, %v3958
    %v3979 = vsel %vm3973, %v137, %v3960
    %v3980 = vsel %vm3973, %v137, %v3962
    %v3981 = vsel %vm3973, %v137, %v3964
    %v3982 = vpack.c.bf16 %v3974, %v3974
    %v3983 = vpack.c.bf16 %v3975, %v3975
    %v3984 = vpack.c.bf16 %v3976, %v3976
    %v3985 = vpack.c.bf16 %v3977, %v3977
    %v3986 = vpack.c.bf16 %v3978, %v3978
    %v3987 = vpack.c.bf16 %v3979, %v3979
    %v3988 = vpack.c.bf16 %v3980, %v3980
    %v3989 = vpack.c.bf16 %v3981, %v3981
    %v3990 = vld [vmem:[%s4] sm:$0xf]
    %v3991 = vld [vmem:[%s4 + $0x4] sm:$0xf]
    %v3992 = vld [vmem:[%s4 + $0x8] sm:$0xf]
    %v3993 = vld [vmem:[%s4 + $0xc] sm:$0xf]
    %v3994 = vld [vmem:[%s4 + $0x10] sm:$0xf]
    %v3995 = vld [vmem:[%s4 + $0x14] sm:$0xf]
    %v3996 = vld [vmem:[%s4 + $0x18] sm:$0xf]
    %v3997 = vld [vmem:[%s4 + $0x1c] sm:$0xf]
    %v3998 = vld [vmem:[%s4 + $0x20] sm:$0xf]
    %v3999 = vld [vmem:[%s4 + $0x24] sm:$0xf]
    %v4000 = vld [vmem:[%s4 + $0x28] sm:$0xf]
    %v4001 = vld [vmem:[%s4 + $0x2c] sm:$0xf]
    %v4002 = vld [vmem:[%s4 + $0x30] sm:$0xf]
    %v4003 = vld [vmem:[%s4 + $0x34] sm:$0xf]
    %v4004 = vld [vmem:[%s4 + $0x38] sm:$0xf]
    %v4005 = vld [vmem:[%s4 + $0x3c] sm:$0xf]
    %v4006 = vlaneseq
    %v4007 = vshrl.u32 %v4006, 7
    %v4008 = vsub.s32 0, %v4007
    %v4009 = vrot.slane %v3945, %v4008
    %v4018 = vunpack.c.l.b16 %v3982
    %v4019 = vunpack.c.l.b16 %v3983
    %v4020 = vunpack.c.l.b16 %v3984
    %v4021 = vunpack.c.l.b16 %v3985
    %v4022 = vunpack.c.l.b16 %v3986
    %v4023 = vunpack.c.l.b16 %v3987
    %v4024 = vunpack.c.l.b16 %v3988
    %v4025 = vunpack.c.l.b16 %v3989
    %v4026 = vpack.c.b16 %v4019, %v4018
    %v4027 = vpack.c.b16 %v4021, %v4020
    %v4028 = vpack.c.b16 %v4023, %v4022
    %v4029 = vpack.c.b16 %v4025, %v4024
    %v4050 = vunpack.c.l.b16 %v3990
    %v4051 = vunpack.c.l.b16 %v3991
    %v4052 = vunpack.c.l.b16 %v3992
    %v4053 = vunpack.c.l.b16 %v3993
    %v4054 = vunpack.c.l.b16 %v3994
    %v4055 = vunpack.c.l.b16 %v3995
    %v4056 = vunpack.c.l.b16 %v3996
    %v4057 = vunpack.c.l.b16 %v3997
    %v4058 = vunpack.c.l.b16 %v3998
    %v4059 = vunpack.c.l.b16 %v3999
    %v4060 = vunpack.c.l.b16 %v4000
    %v4061 = vunpack.c.l.b16 %v4001
    %v4062 = vunpack.c.l.b16 %v4002
    %v4063 = vunpack.c.l.b16 %v4003
    %v4064 = vunpack.c.l.b16 %v4004
    %v4065 = vunpack.c.l.b16 %v4005
    %v4066 = vpack.c.b16 %v4051, %v4050
    %v4067 = vpack.c.b16 %v4053, %v4052
    %v4068 = vpack.c.b16 %v4055, %v4054
    %v4069 = vpack.c.b16 %v4057, %v4056
    %v4070 = vpack.c.b16 %v4059, %v4058
    %v4071 = vpack.c.b16 %v4061, %v4060
    %v4072 = vpack.c.b16 %v4063, %v4062
    %v4073 = vpack.c.b16 %v4065, %v4064
    %4082 = vmatprep.subr.bf16.mxu0 0
    %4083 = vmatpush1.bf16.msra.mxu0 %v4066
    %4084 = vmatprep.subr.bf16.mxu0 0
    %4085 = vmatpush1.bf16.msra.mxu0 %v4067
    %4086 = vmatprep.subr.bf16.mxu0 0
    %4087 = vmatpush1.bf16.msra.mxu0 %v4068
    %4088 = vmatprep.subr.bf16.mxu0 0
    %4089 = vmatpush1.bf16.msra.mxu0 %v4069
    %4090 = vmatprep.subr.bf16.mxu0 0
    %4091 = vmatpush1.bf16.msra.mxu0 %v4070
    %4092 = vmatprep.subr.bf16.mxu0 0
    %4093 = vmatpush1.bf16.msra.mxu0 %v4071
    %4094 = vmatprep.subr.bf16.mxu0 0
    %4095 = vmatpush1.bf16.msra.mxu0 %v4072
    %4096 = vmatprep.subr.bf16.mxu0 0
    %4097 = vmatpush1.bf16.msra.mxu0 %v4073
    %4098 = vmatprep.subr.bf16.mxu0 0
    %4099 = vmatpush1.bf16.msra.mxu0 0
    %4100 = vmatprep.subr.bf16.mxu0 0
    %4101 = vmatpush1.bf16.msra.mxu0 0
    %4102 = vmatprep.subr.bf16.mxu0 0
    %4103 = vmatpush1.bf16.msra.mxu0 0
    %4104 = vmatprep.subr.bf16.mxu0 0
    %4105 = vmatpush1.bf16.msra.mxu0 0
    %4106 = vmatprep.subr.bf16.mxu0 0
    %4107 = vmatpush1.bf16.msra.mxu0 0
    %4108 = vmatprep.subr.bf16.mxu0 0
    %4109 = vmatpush1.bf16.msra.mxu0 0
    %4110 = vmatprep.subr.bf16.mxu0 0
    %4111 = vmatpush1.bf16.msra.mxu0 0
    %4112 = vmatprep.subr.bf16.mxu0 0
    %4113 = vmatpush1.bf16.msra.mxu0 0
    %4114 = vmatprep.mubr.bf16.mxu0 0
    %4115 = vmatmul.mubr.bf16.gmra.mrb[0].mxu0 %v4026
    %v4116 = vpop.f32.mrb[0].mxu0
    %v4117 = vadd.f32 %v4009, %v4116
    %v4118 = vpop.f32.mrb[0].mxu0
    %v4119 = vpop.f32.mrb[0].mxu0
    %v4120 = vadd.f32 %v4009, %v4119
    %v4121 = vpop.f32.mrb[0].mxu0
    %4122 = vmatprep.mubr.bf16.mxu0 0
    %4123 = vmatmul.mubr.bf16.gmra.mrb[0].mxu0 %v4027
    %v4124 = vpop.f32.mrb[0].mxu0
    %v4125 = vadd.f32 %v4009, %v4124
    %v4126 = vpop.f32.mrb[0].mxu0
    %v4127 = vpop.f32.mrb[0].mxu0
    %v4128 = vadd.f32 %v4009, %v4127
    %v4129 = vpop.f32.mrb[0].mxu0
    %4130 = vmatprep.mubr.bf16.mxu0 0
    %4131 = vmatmul.mubr.bf16.gmra.mrb[0].mxu0 %v4028
    %v4132 = vpop.f32.mrb[0].mxu0
    %v4133 = vadd.f32 %v4009, %v4132
    %v4134 = vpop.f32.mrb[0].mxu0
    %v4135 = vpop.f32.mrb[0].mxu0
    %v4136 = vadd.f32 %v4009, %v4135
    %v4137 = vpop.f32.mrb[0].mxu0
    %4138 = vmatprep.mubr.bf16.mxu0 0
    %4139 = vmatmul.mubr.bf16.gmra.mrb[0].mxu0 %v4029
    %v4140 = vpop.f32.mrb[0].mxu0
    %v4141 = vadd.f32 %v4009, %v4140
    %v4142 = vpop.f32.mrb[0].mxu0
    %v4143 = vpop.f32.mrb[0].mxu0
    %v4144 = vadd.f32 %v4009, %v4143
    %v4145 = vpop.f32.mrb[0].mxu0
    %4146 = vdwg.mxu0
    %v4147 = vtanh.pop %v4117
    %v4148 = vtanh.pop %v4120
    %v4149 = vtanh.pop %v4125
    %v4150 = vtanh.pop %v4128
    %v4151 = vtanh.pop %v4133
    %v4152 = vtanh.pop %v4136
    %v4153 = vtanh.pop %v4141
    %v4154 = vtanh.pop %v4144
    %4163 = vrot.lane.b32.xlu0 %v3937, 32
    %v4164 = vpop.permute.xlu0 %4163
    %4165 = vrot.lane.b32.xlu0 %v3938, 32
    %v4166 = vpop.permute.xlu0 %4165
    %4167 = vrot.lane.b32.xlu0 %v3939, 32
    %v4168 = vpop.permute.xlu0 %4167
    %4169 = vrot.lane.b32.xlu0 %v3940, 32
    %v4170 = vpop.permute.xlu0 %4169
    %4171 = vrot.lane.b32.xlu0 %v3941, 32
    %v4172 = vpop.permute.xlu0 %4171
    %4173 = vrot.lane.b32.xlu0 %v3942, 32
    %v4174 = vpop.permute.xlu0 %4173
    %4175 = vrot.lane.b32.xlu0 %v3943, 32
    %v4176 = vpop.permute.xlu0 %4175
    %4177 = vrot.lane.b32.xlu0 %v3944, 32
    %v4178 = vpop.permute.xlu0 %4177
    %v4187 = vsel %vm58, %v4147, %v4164
    %v4188 = vsel %vm58, %v4148, %v4166
    %v4189 = vsel %vm58, %v4149, %v4168
    %v4190 = vsel %vm58, %v4150, %v4170
    %v4191 = vsel %vm58, %v4151, %v4172
    %v4192 = vsel %vm58, %v4152, %v4174
    %v4193 = vsel %vm58, %v4153, %v4176
    %v4194 = vsel %vm58, %v4154, %v4178
    %v4195 = vpack.c.bf16 %v4187, %v4187
    %v4196 = vpack.c.bf16 %v4188, %v4188
    %v4197 = vpack.c.bf16 %v4189, %v4189
    %v4198 = vpack.c.bf16 %v4190, %v4190
    %v4199 = vpack.c.bf16 %v4191, %v4191
    %v4200 = vpack.c.bf16 %v4192, %v4192
    %v4201 = vpack.c.bf16 %v4193, %v4193
    %v4202 = vpack.c.bf16 %v4194, %v4194
    %v4203 = vld [vmem:[%s5] sm:$0xf]
    %v4204 = vld [vmem:[%s5 + $0x4] sm:$0xf]
    %v4205 = vld [vmem:[%s5 + $0x8] sm:$0xf]
    %v4206 = vld [vmem:[%s5 + $0xc] sm:$0xf]
    %v4207 = vld [vmem:[%s5 + $0x10] sm:$0xf]
    %v4208 = vld [vmem:[%s5 + $0x14] sm:$0xf]
    %v4209 = vld [vmem:[%s5 + $0x18] sm:$0xf]
    %v4210 = vld [vmem:[%s5 + $0x1c] sm:$0xf]
    %v4211 = vlaneseq
    %v4212 = vshrl.u32 %v4211, 7
    %v4213 = vsub.s32 0, %v4212
    %v4214 = vrot.slane %v3946, %v4213
    %v4223 = vunpack.c.l.b16 %v4195
    %v4224 = vunpack.c.l.b16 %v4196
    %v4225 = vunpack.c.l.b16 %v4197
    %v4226 = vunpack.c.l.b16 %v4198
    %v4227 = vunpack.c.l.b16 %v4199
    %v4228 = vunpack.c.l.b16 %v4200
    %v4229 = vunpack.c.l.b16 %v4201
    %v4230 = vunpack.c.l.b16 %v4202
    %v4231 = vpack.c.b16 %v4224, %v4223
    %v4232 = vpack.c.b16 %v4226, %v4225
    %v4233 = vpack.c.b16 %v4228, %v4227
    %v4234 = vpack.c.b16 %v4230, %v4229
    %v4243 = vunpack.c.l.b16 %v4203
    %v4244 = vunpack.c.l.b16 %v4204
    %v4245 = vunpack.c.l.b16 %v4205
    %v4246 = vunpack.c.l.b16 %v4206
    %v4247 = vunpack.c.l.b16 %v4207
    %v4248 = vunpack.c.l.b16 %v4208
    %v4249 = vunpack.c.l.b16 %v4209
    %v4250 = vunpack.c.l.b16 %v4210
    %v4251 = vpack.c.b16 %v4244, %v4243
    %v4252 = vpack.c.b16 %v4246, %v4245
    %v4253 = vpack.c.b16 %v4248, %v4247
    %v4254 = vpack.c.b16 %v4250, %v4249
    %v4260 = vsel %vm135, %v4231, 0
    %v4263 = vsel %vm135, %v4232, 0
    %v4266 = vsel %vm135, %v4233, 0
    %v4269 = vsel %vm135, %v4234, 0
    %4271 = vmatprep.subr.bf16.mxu0 0
    %4272 = vmatpush1.bf16.msra.mxu0 %v4251
    %4273 = vmatprep.subr.bf16.mxu0 0
    %4274 = vmatpush1.bf16.msra.mxu0 %v4252
    %4275 = vmatprep.subr.bf16.mxu0 0
    %4276 = vmatpush1.bf16.msra.mxu0 %v4253
    %4277 = vmatprep.subr.bf16.mxu0 0
    %4278 = vmatpush1.bf16.msra.mxu0 %v4254
    %4279 = vmatprep.subr.bf16.mxu0 0
    %4280 = vmatpush1.bf16.msra.mxu0 0
    %4281 = vmatprep.subr.bf16.mxu0 0
    %4282 = vmatpush1.bf16.msra.mxu0 0
    %4283 = vmatprep.subr.bf16.mxu0 0
    %4284 = vmatpush1.bf16.msra.mxu0 0
    %4285 = vmatprep.subr.bf16.mxu0 0
    %4286 = vmatpush1.bf16.msra.mxu0 0
    %4287 = vmatprep.subr.bf16.mxu0 0
    %4288 = vmatpush1.bf16.msra.mxu0 0
    %4289 = vmatprep.subr.bf16.mxu0 0
    %4290 = vmatpush1.bf16.msra.mxu0 0
    %4291 = vmatprep.subr.bf16.mxu0 0
    %4292 = vmatpush1.bf16.msra.mxu0 0
    %4293 = vmatprep.subr.bf16.mxu0 0
    %4294 = vmatpush1.bf16.msra.mxu0 0
    %4295 = vmatprep.subr.bf16.mxu0 0
    %4296 = vmatpush1.bf16.msra.mxu0 0
    %4297 = vmatprep.subr.bf16.mxu0 0
    %4298 = vmatpush1.bf16.msra.mxu0 0
    %4299 = vmatprep.subr.bf16.mxu0 0
    %4300 = vmatpush1.bf16.msra.mxu0 0
    %4301 = vmatprep.subr.bf16.mxu0 0
    %4302 = vmatpush1.bf16.msra.mxu0 0
    %4303 = vmatprep.mubr.bf16.mxu0 0
    %4304 = vmatmul.mubr.bf16.gmra.mrb[0].mxu0 %v4260
    %v4305 = vpop.f32.mrb[0].mxu0
    %v4306 = vadd.f32 %v4214, %v4305
    %v4307 = vpop.f32.mrb[0].mxu0
    %v4308 = vpop.f32.mrb[0].mxu0
    %v4309 = vadd.f32 %v4214, %v4308
    %v4310 = vpop.f32.mrb[0].mxu0
    %4311 = vmatprep.mubr.bf16.mxu0 0
    %4312 = vmatmul.mubr.bf16.gmra.mrb[0].mxu0 %v4263
    %v4313 = vpop.f32.mrb[0].mxu0
    %v4314 = vadd.f32 %v4214, %v4313
    %v4315 = vpop.f32.mrb[0].mxu0
    %v4316 = vpop.f32.mrb[0].mxu0
    %v4317 = vadd.f32 %v4214, %v4316
    %v4318 = vpop.f32.mrb[0].mxu0
    %4319 = vmatprep.mubr.bf16.mxu0 0
    %4320 = vmatmul.mubr.bf16.gmra.mrb[0].mxu0 %v4266
    %v4321 = vpop.f32.mrb[0].mxu0
    %v4322 = vadd.f32 %v4214, %v4321
    %v4323 = vpop.f32.mrb[0].mxu0
    %v4324 = vpop.f32.mrb[0].mxu0
    %v4325 = vadd.f32 %v4214, %v4324
    %v4326 = vpop.f32.mrb[0].mxu0
    %4327 = vmatprep.mubr.bf16.mxu0 0
    %4328 = vmatmul.mubr.bf16.gmra.mrb[0].mxu0 %v4269
    %v4329 = vpop.f32.mrb[0].mxu0
    %v4330 = vadd.f32 %v4214, %v4329
    %v4331 = vpop.f32.mrb[0].mxu0
    %v4332 = vpop.f32.mrb[0].mxu0
    %v4333 = vadd.f32 %v4214, %v4332
    %v4334 = vpop.f32.mrb[0].mxu0
    %4335 = vdwg.mxu0
    %v4336 = vsel %vm58, %v4306, %v221
    %v4337 = vsel %vm58, %v4309, %v223
    %v4338 = vsel %vm58, %v4314, %v225
    %v4339 = vsel %vm58, %v4317, %v227
    %v4340 = vsel %vm58, %v4322, %v229
    %v4341 = vsel %vm58, %v4325, %v231
    %v4342 = vsel %vm58, %v4330, %v233
    %v4343 = vsel %vm58, %v4333, %v235
    %v4344 = vpack.c.bf16 %v4336, %v4336
    %v4345 = vpack.c.bf16 %v4337, %v4337
    %v4346 = vpack.c.bf16 %v4338, %v4338
    %v4347 = vpack.c.bf16 %v4339, %v4339
    %v4348 = vpack.c.bf16 %v4340, %v4340
    %v4349 = vpack.c.bf16 %v4341, %v4341
    %v4350 = vpack.c.bf16 %v4342, %v4342
    %v4351 = vpack.c.bf16 %v4343, %v4343
    %v4352 = vld [vmem:[%s6] sm:$0xf]
    %v4353 = vld [vmem:[%s6 + $0x4] sm:$0xf]
    %v4354 = vld [vmem:[%s6 + $0x8] sm:$0xf]
    %v4355 = vld [vmem:[%s6 + $0xc] sm:$0xf]
    %v4356 = vld [vmem:[%s6 + $0x10] sm:$0xf]
    %v4357 = vld [vmem:[%s6 + $0x14] sm:$0xf]
    %v4358 = vld [vmem:[%s6 + $0x18] sm:$0xf]
    %v4359 = vld [vmem:[%s6 + $0x1c] sm:$0xf]
    %v4360 = vlaneseq
    %v4361 = vshrl.u32 %v4360, 7
    %v4362 = vsub.s32 0, %v4361
    %v4363 = vrot.slane %v3947, %v4362
    %v4372 = vunpack.c.l.b16 %v4344
    %v4373 = vunpack.c.l.b16 %v4345
    %v4374 = vunpack.c.l.b16 %v4346
    %v4375 = vunpack.c.l.b16 %v4347
    %v4376 = vunpack.c.l.b16 %v4348
    %v4377 = vunpack.c.l.b16 %v4349
    %v4378 = vunpack.c.l.b16 %v4350
    %v4379 = vunpack.c.l.b16 %v4351
    %v4380 = vpack.c.b16 %v4373, %v4372
    %v4381 = vpack.c.b16 %v4375, %v4374
    %v4382 = vpack.c.b16 %v4377, %v4376
    %v4383 = vpack.c.b16 %v4379, %v4378
    %v4392 = vunpack.c.l.b16 %v4352
    %v4393 = vunpack.c.l.b16 %v4353
    %v4394 = vunpack.c.l.b16 %v4354
    %v4395 = vunpack.c.l.b16 %v4355
    %v4396 = vunpack.c.l.b16 %v4356
    %v4397 = vunpack.c.l.b16 %v4357
    %v4398 = vunpack.c.l.b16 %v4358
    %v4399 = vunpack.c.l.b16 %v4359
    %v4400 = vpack.c.b16 %v4393, %v4392
    %v4401 = vpack.c.b16 %v4395, %v4394
    %v4402 = vpack.c.b16 %v4397, %v4396
    %v4403 = vpack.c.b16 %v4399, %v4398
    %v4409 = vsel %vm135, %v4380, 0
    %v4412 = vsel %vm135, %v4381, 0
    %v4415 = vsel %vm135, %v4382, 0
    %v4418 = vsel %vm135, %v4383, 0
    %4420 = vmatprep.subr.bf16.mxu0 0
    %4421 = vmatpush1.bf16.msra.mxu0 %v4400
    %4422 = vmatprep.subr.bf16.mxu0 0
    %4423 = vmatpush1.bf16.msra.mxu0 %v4401
    %4424 = vmatprep.subr.bf16.mxu0 0
    %4425 = vmatpush1.bf16.msra.mxu0 %v4402
    %4426 = vmatprep.subr.bf16.mxu0 0
    %4427 = vmatpush1.bf16.msra.mxu0 %v4403
    %4428 = vmatprep.subr.bf16.mxu0 0
    %4429 = vmatpush1.bf16.msra.mxu0 0
    %4430 = vmatprep.subr.bf16.mxu0 0
    %4431 = vmatpush1.bf16.msra.mxu0 0
    %4432 = vmatprep.subr.bf16.mxu0 0
    %4433 = vmatpush1.bf16.msra.mxu0 0
    %4434 = vmatprep.subr.bf16.mxu0 0
    %4435 = vmatpush1.bf16.msra.mxu0 0
    %4436 = vmatprep.subr.bf16.mxu0 0
    %4437 = vmatpush1.bf16.msra.mxu0 0
    %4438 = vmatprep.subr.bf16.mxu0 0
    %4439 = vmatpush1.bf16.msra.mxu0 0
    %4440 = vmatprep.subr.bf16.mxu0 0
    %4441 = vmatpush1.bf16.msra.mxu0 0
    %4442 = vmatprep.subr.bf16.mxu0 0
    %4443 = vmatpush1.bf16.msra.mxu0 0
    %4444 = vmatprep.subr.bf16.mxu0 0
    %4445 = vmatpush1.bf16.msra.mxu0 0
    %4446 = vmatprep.subr.bf16.mxu0 0
    %4447 = vmatpush1.bf16.msra.mxu0 0
    %4448 = vmatprep.subr.bf16.mxu0 0
    %4449 = vmatpush1.bf16.msra.mxu0 0
    %4450 = vmatprep.subr.bf16.mxu0 0
    %4451 = vmatpush1.bf16.msra.mxu0 0
    %4452 = vmatprep.mubr.bf16.mxu0 0
    %4453 = vmatmul.mubr.bf16.gmra.mrb[0].mxu0 %v4409
    %v4454 = vpop.f32.mrb[0].mxu0
    %v4455 = vadd.f32 %v4363, %v4454
    %v4456 = vpop.f32.mrb[0].mxu0
    %v4457 = vpop.f32.mrb[0].mxu0
    %v4458 = vadd.f32 %v4363, %v4457
    %v4459 = vpop.f32.mrb[0].mxu0
    %4460 = vmatprep.mubr.bf16.mxu0 0
    %4461 = vmatmul.mubr.bf16.gmra.mrb[0].mxu0 %v4412
    %v4462 = vpop.f32.mrb[0].mxu0
    %v4463 = vadd.f32 %v4363, %v4462
    %v4464 = vpop.f32.mrb[0].mxu0
    %v4465 = vpop.f32.mrb[0].mxu0
    %v4466 = vadd.f32 %v4363, %v4465
    %v4467 = vpop.f32.mrb[0].mxu0
    %4468 = vmatprep.mubr.bf16.mxu0 0
    %4469 = vmatmul.mubr.bf16.gmra.mrb[0].mxu0 %v4415
    %v4470 = vpop.f32.mrb[0].mxu0
    %v4471 = vadd.f32 %v4363, %v4470
    %v4472 = vpop.f32.mrb[0].mxu0
    %v4473 = vpop.f32.mrb[0].mxu0
    %v4474 = vadd.f32 %v4363, %v4473
    %v4475 = vpop.f32.mrb[0].mxu0
    %4476 = vmatprep.mubr.bf16.mxu0 0
    %4477 = vmatmul.mubr.bf16.gmra.mrb[0].mxu0 %v4418
    %v4478 = vpop.f32.mrb[0].mxu0
    %v4479 = vadd.f32 %v4363, %v4478
    %v4480 = vpop.f32.mrb[0].mxu0
    %v4481 = vpop.f32.mrb[0].mxu0
    %v4482 = vadd.f32 %v4363, %v4481
    %v4483 = vpop.f32.mrb[0].mxu0
    %4484 = vdwg.mxu0
    %v4485 = vtanh.pop %v4455
    %v4486 = vtanh.pop %v4458
    %v4487 = vtanh.pop %v4463
    %v4488 = vtanh.pop %v4466
    %v4489 = vtanh.pop %v4471
    %v4490 = vtanh.pop %v4474
    %v4491 = vtanh.pop %v4479
    %v4492 = vtanh.pop %v4482
    %v4493 = vlaneseq
    %v4494 = vshrl.u32 %v4493, 7
    %v4495 = vsub.s32 0, %v4494
    %v4496 = vrot.slane %v3948, %v4495
    %v4497 = vmul.f32 %v4485, %v4496
    %v4498 = vmul.f32 %v4486, %v4496
    %v4499 = vmul.f32 %v4487, %v4496
    %v4500 = vmul.f32 %v4488, %v4496
    %v4501 = vmul.f32 %v4489, %v4496
    %v4502 = vmul.f32 %v4490, %v4496
    %v4503 = vmul.f32 %v4491, %v4496
    %v4504 = vmul.f32 %v4492, %v4496
    %v4505 = vsel %vm58, %v4497, 0.0
    %4506 = vadd.xlane.f32.xlu0 %v4505
    %v4507 = vpop.xlane.xlu0 %4506
    %v4508 = vsel %vm58, %v4498, 0.0
    %4509 = vadd.xlane.f32.xlu0 %v4508
    %v4510 = vpop.xlane.xlu0 %4509
    %v4511 = vsel %vm58, %v4499, 0.0
    %4512 = vadd.xlane.f32.xlu0 %v4511
    %v4513 = vpop.xlane.xlu0 %4512
    %v4514 = vsel %vm58, %v4500, 0.0
    %4515 = vadd.xlane.f32.xlu0 %v4514
    %v4516 = vpop.xlane.xlu0 %4515
    %v4517 = vsel %vm58, %v4501, 0.0
    %4518 = vadd.xlane.f32.xlu0 %v4517
    %v4519 = vpop.xlane.xlu0 %4518
    %v4520 = vsel %vm58, %v4502, 0.0
    %4521 = vadd.xlane.f32.xlu0 %v4520
    %v4522 = vpop.xlane.xlu0 %4521
    %v4523 = vsel %vm58, %v4503, 0.0
    %4524 = vadd.xlane.f32.xlu0 %v4523
    %v4525 = vpop.xlane.xlu0 %4524
    %v4526 = vsel %vm58, %v4504, 0.0
    %4527 = vadd.xlane.f32.xlu0 %v4526
    %v4528 = vpop.xlane.xlu0 %4527
    %v4537 = vlaneseq
    %v4538 = vand.u32 %v4537, 127
    %v4539 = vlaneseq
    %v4540 = vshrl.u32 %v4539, 7
    %v4541 = vsub.s32 %v4538, %v4540
    %v4542 = vrot.slane %v4507, %v4541
    %v4543 = vlaneseq
    %v4544 = vshrl.u32 %v4543, 7
    %v4545 = vsub.s32 %v4538, %v4544
    %v4546 = vrot.slane %v4510, %v4545
    %v4547 = vlaneseq
    %v4548 = vshrl.u32 %v4547, 7
    %v4549 = vsub.s32 %v4538, %v4548
    %v4550 = vrot.slane %v4513, %v4549
    %v4551 = vlaneseq
    %v4552 = vshrl.u32 %v4551, 7
    %v4553 = vsub.s32 %v4538, %v4552
    %v4554 = vrot.slane %v4516, %v4553
    %v4555 = vlaneseq
    %v4556 = vshrl.u32 %v4555, 7
    %v4557 = vsub.s32 %v4538, %v4556
    %v4558 = vrot.slane %v4519, %v4557
    %v4559 = vlaneseq
    %v4560 = vshrl.u32 %v4559, 7
    %v4561 = vsub.s32 %v4538, %v4560
    %v4562 = vrot.slane %v4522, %v4561
    %v4563 = vlaneseq
    %v4564 = vshrl.u32 %v4563, 7
    %v4565 = vsub.s32 %v4538, %v4564
    %v4566 = vrot.slane %v4525, %v4565
    %v4567 = vlaneseq
    %v4568 = vshrl.u32 %v4567, 7
    %v4569 = vsub.s32 %v4538, %v4568
    %v4570 = vrot.slane %v4528, %v4569
    %vm4571 = vcmask 1041409
    %v4572 = vsel %vm4571, %v4546, %v4542
    %vm4573 = vcmask 1042434
    %v4574 = vsel %vm4573, %v4550, %v4572
    %vm4575 = vcmask 1043459
    %v4576 = vsel %vm4575, %v4554, %v4574
    %vm4577 = vcmask 1044484
    %v4578 = vsel %vm4577, %v4558, %v4576
    %vm4579 = vcmask 1045509
    %v4580 = vsel %vm4579, %v4562, %v4578
    %vm4581 = vcmask 1046534
    %v4582 = vsel %vm4581, %v4566, %v4580
    %vm4583 = vcmask 1047559
    %v4584 = vsel %vm4583, %v4570, %v4582
    %v4586 = vsel %vm402, %v4584, -inf
    %4587 = vmax.xlane.f32.xlu0 %v4586
    %v4588 = vpop.xlane.xlu0 %4587
    %v4590 = vlaneseq
    %v4591 = vshrl.u32 %v4590, 7
    %v4592 = vsub.s32 0, %v4591
    %v4593 = vrot.slane %v4588, %v4592
    %v4594 = vlaneseq
    %v4595 = vshrl.u32 %v4594, 7
    %v4596 = vsub.s32 1, %v4595
    %v4597 = vrot.slane %v4588, %v4596
    %v4598 = vlaneseq
    %v4599 = vshrl.u32 %v4598, 7
    %v4600 = vsub.s32 2, %v4599
    %v4601 = vrot.slane %v4588, %v4600
    %v4602 = vlaneseq
    %v4603 = vshrl.u32 %v4602, 7
    %v4604 = vsub.s32 3, %v4603
    %v4605 = vrot.slane %v4588, %v4604
    %v4606 = vlaneseq
    %v4607 = vshrl.u32 %v4606, 7
    %v4608 = vsub.s32 4, %v4607
    %v4609 = vrot.slane %v4588, %v4608
    %v4610 = vlaneseq
    %v4611 = vshrl.u32 %v4610, 7
    %v4612 = vsub.s32 5, %v4611
    %v4613 = vrot.slane %v4588, %v4612
    %v4614 = vlaneseq
    %v4615 = vshrl.u32 %v4614, 7
    %v4616 = vsub.s32 6, %v4615
    %v4617 = vrot.slane %v4588, %v4616
    %v4618 = vlaneseq
    %v4619 = vshrl.u32 %v4618, 7
    %v4620 = vsub.s32 7, %v4619
    %v4621 = vrot.slane %v4588, %v4620
    %v4630 = vsub.f32 %v4507, %v4593
    %v4631 = vsub.f32 %v4510, %v4597
    %v4632 = vsub.f32 %v4513, %v4601
    %v4633 = vsub.f32 %v4516, %v4605
    %v4634 = vsub.f32 %v4519, %v4609
    %v4635 = vsub.f32 %v4522, %v4613
    %v4636 = vsub.f32 %v4525, %v4617
    %v4637 = vsub.f32 %v4528, %v4621
    %v4638 = vmul.f32 %v4630, 1.442695
    %v4639 = vpow.pop %v4638
    %v4640 = vmul.f32 %v4631, 1.442695
    %v4641 = vpow.pop %v4640
    %v4642 = vmul.f32 %v4632, 1.442695
    %v4643 = vpow.pop %v4642
    %v4644 = vmul.f32 %v4633, 1.442695
    %v4645 = vpow.pop %v4644
    %v4646 = vmul.f32 %v4634, 1.442695
    %v4647 = vpow.pop %v4646
    %v4648 = vmul.f32 %v4635, 1.442695
    %v4649 = vpow.pop %v4648
    %v4650 = vmul.f32 %v4636, 1.442695
    %v4651 = vpow.pop %v4650
    %v4652 = vmul.f32 %v4637, 1.442695
    %v4653 = vpow.pop %v4652
    %4662 = vset.pattern.permute.xlu0 0
    %4663 = vperm.xlu0 %4662, %v4639
    %v4664 = vpop.permute.xlu0 %4663
    %4665 = vset.pattern.permute.xlu0 0
    %4666 = vperm.xlu0 %4665, %v4641
    %v4667 = vpop.permute.xlu0 %4666
    %4668 = vset.pattern.permute.xlu0 0
    %4669 = vperm.xlu0 %4668, %v4643
    %v4670 = vpop.permute.xlu0 %4669
    %4671 = vset.pattern.permute.xlu0 0
    %4672 = vperm.xlu0 %4671, %v4645
    %v4673 = vpop.permute.xlu0 %4672
    %4674 = vset.pattern.permute.xlu0 0
    %4675 = vperm.xlu0 %4674, %v4647
    %v4676 = vpop.permute.xlu0 %4675
    %4677 = vset.pattern.permute.xlu0 0
    %4678 = vperm.xlu0 %4677, %v4649
    %v4679 = vpop.permute.xlu0 %4678
    %4680 = vset.pattern.permute.xlu0 0
    %4681 = vperm.xlu0 %4680, %v4651
    %v4682 = vpop.permute.xlu0 %4681
    %4683 = vset.pattern.permute.xlu0 0
    %4684 = vperm.xlu0 %4683, %v4653
    %v4685 = vpop.permute.xlu0 %4684
    %v4686 = vlaneseq
    %v4687 = vshrl.u32 %v4686, 7
    %v4688 = vsub.s32 %v4538, %v4687
    %v4689 = vrot.slane %v4664, %v4688
    %v4690 = vlaneseq
    %v4691 = vshrl.u32 %v4690, 7
    %v4692 = vsub.s32 %v4538, %v4691
    %v4693 = vrot.slane %v4667, %v4692
    %v4694 = vlaneseq
    %v4695 = vshrl.u32 %v4694, 7
    %v4696 = vsub.s32 %v4538, %v4695
    %v4697 = vrot.slane %v4670, %v4696
    %v4698 = vlaneseq
    %v4699 = vshrl.u32 %v4698, 7
    %v4700 = vsub.s32 %v4538, %v4699
    %v4701 = vrot.slane %v4673, %v4700
    %v4702 = vlaneseq
    %v4703 = vshrl.u32 %v4702, 7
    %v4704 = vsub.s32 %v4538, %v4703
    %v4705 = vrot.slane %v4676, %v4704
    %v4706 = vlaneseq
    %v4707 = vshrl.u32 %v4706, 7
    %v4708 = vsub.s32 %v4538, %v4707
    %v4709 = vrot.slane %v4679, %v4708
    %v4710 = vlaneseq
    %v4711 = vshrl.u32 %v4710, 7
    %v4712 = vsub.s32 %v4538, %v4711
    %v4713 = vrot.slane %v4682, %v4712
    %v4714 = vlaneseq
    %v4715 = vshrl.u32 %v4714, 7
    %v4716 = vsub.s32 %v4538, %v4715
    %v4717 = vrot.slane %v4685, %v4716
    %v4718 = vsel %vm4571, %v4693, %v4689
    %v4719 = vsel %vm4573, %v4697, %v4718
    %v4720 = vsel %vm4575, %v4701, %v4719
    %v4721 = vsel %vm4577, %v4705, %v4720
    %v4722 = vsel %vm4579, %v4709, %v4721
    %v4723 = vsel %vm4581, %v4713, %v4722
    %v4724 = vsel %vm4583, %v4717, %v4723
    %v4726 = vsel %vm402, %v4724, 0.0
    %4727 = vadd.xlane.f32.xlu0 %v4726
    %v4728 = vpop.xlane.xlu0 %4727
    %v4730 = vlaneseq
    %v4731 = vshrl.u32 %v4730, 7
    %v4732 = vsub.s32 0, %v4731
    %v4733 = vrot.slane %v4728, %v4732
    %v4734 = vlaneseq
    %v4735 = vshrl.u32 %v4734, 7
    %v4736 = vsub.s32 1, %v4735
    %v4737 = vrot.slane %v4728, %v4736
    %v4738 = vlaneseq
    %v4739 = vshrl.u32 %v4738, 7
    %v4740 = vsub.s32 2, %v4739
    %v4741 = vrot.slane %v4728, %v4740
    %v4742 = vlaneseq
    %v4743 = vshrl.u32 %v4742, 7
    %v4744 = vsub.s32 3, %v4743
    %v4745 = vrot.slane %v4728, %v4744
    %v4746 = vlaneseq
    %v4747 = vshrl.u32 %v4746, 7
    %v4748 = vsub.s32 4, %v4747
    %v4749 = vrot.slane %v4728, %v4748
    %v4750 = vlaneseq
    %v4751 = vshrl.u32 %v4750, 7
    %v4752 = vsub.s32 5, %v4751
    %v4753 = vrot.slane %v4728, %v4752
    %v4754 = vlaneseq
    %v4755 = vshrl.u32 %v4754, 7
    %v4756 = vsub.s32 6, %v4755
    %v4757 = vrot.slane %v4728, %v4756
    %v4758 = vlaneseq
    %v4759 = vshrl.u32 %v4758, 7
    %v4760 = vsub.s32 7, %v4759
    %v4761 = vrot.slane %v4728, %v4760
    %v4770 = vrcp.pop %v4733
    %v4771 = vmul.f32 %v4639, %v4770
    %v4772 = vrcp.pop %v4737
    %v4773 = vmul.f32 %v4641, %v4772
    %v4774 = vrcp.pop %v4741
    %v4775 = vmul.f32 %v4643, %v4774
    %v4776 = vrcp.pop %v4745
    %v4777 = vmul.f32 %v4645, %v4776
    %v4778 = vrcp.pop %v4749
    %v4779 = vmul.f32 %v4647, %v4778
    %v4780 = vrcp.pop %v4753
    %v4781 = vmul.f32 %v4649, %v4780
    %v4782 = vrcp.pop %v4757
    %v4783 = vmul.f32 %v4651, %v4782
    %v4784 = vrcp.pop %v4761
    %v4785 = vmul.f32 %v4653, %v4784
    %4787 = vset.pattern.permute.xlu0 0
    %4788 = vperm.xlu0 %4787, %v4771
    %v4789 = vpop.permute.xlu0 %4788
    %4792 = vset.pattern.permute.xlu0 0
    %4793 = vperm.xlu0 %4792, %v4773
    %v4794 = vpop.permute.xlu0 %4793
    %4797 = vset.pattern.permute.xlu0 0
    %4798 = vperm.xlu0 %4797, %v4775
    %v4799 = vpop.permute.xlu0 %4798
    %4802 = vset.pattern.permute.xlu0 0
    %4803 = vperm.xlu0 %4802, %v4777
    %v4804 = vpop.permute.xlu0 %4803
    %4807 = vset.pattern.permute.xlu0 0
    %4808 = vperm.xlu0 %4807, %v4779
    %v4809 = vpop.permute.xlu0 %4808
    %4812 = vset.pattern.permute.xlu0 0
    %4813 = vperm.xlu0 %4812, %v4781
    %v4814 = vpop.permute.xlu0 %4813
    %4817 = vset.pattern.permute.xlu0 0
    %4818 = vperm.xlu0 %4817, %v4783
    %v4819 = vpop.permute.xlu0 %4818
    %4822 = vset.pattern.permute.xlu0 0
    %4823 = vperm.xlu0 %4822, %v4785
    %v4824 = vpop.permute.xlu0 %4823
    %v4826 = vmul.f32 %v4789, %v4306
    %v4827 = vmul.f32 %v4794, %v4309
    %v4828 = vmul.f32 %v4799, %v4314
    %v4829 = vmul.f32 %v4804, %v4317
    %v4830 = vmul.f32 %v4809, %v4322
    %v4831 = vmul.f32 %v4814, %v4325
    %v4832 = vmul.f32 %v4819, %v4330
    %v4833 = vmul.f32 %v4824, %v4333
    %v4834 = vsel %vm58, %v4826, 0.0
    %v4835 = vrot.slane %v4834, 4
    %v4836 = vadd.f32 %v4834, %v4835
    %v4837 = vrot.slane %v4836, 2
    %v4838 = vadd.f32 %v4836, %v4837
    %v4839 = vrot.slane %v4838, 1
    %v4840 = vadd.f32 %v4838, %v4839
    %v4841 = vsel %vm58, %v4827, 0.0
    %v4842 = vrot.slane %v4841, 4
    %v4843 = vadd.f32 %v4841, %v4842
    %v4844 = vrot.slane %v4843, 2
    %v4845 = vadd.f32 %v4843, %v4844
    %v4846 = vrot.slane %v4845, 1
    %v4847 = vadd.f32 %v4845, %v4846
    %v4848 = vsel %vm58, %v4828, 0.0
    %v4849 = vrot.slane %v4848, 4
    %v4850 = vadd.f32 %v4848, %v4849
    %v4851 = vrot.slane %v4850, 2
    %v4852 = vadd.f32 %v4850, %v4851
    %v4853 = vrot.slane %v4852, 1
    %v4854 = vadd.f32 %v4852, %v4853
    %v4855 = vsel %vm58, %v4829, 0.0
    %v4856 = vrot.slane %v4855, 4
    %v4857 = vadd.f32 %v4855, %v4856
    %v4858 = vrot.slane %v4857, 2
    %v4859 = vadd.f32 %v4857, %v4858
    %v4860 = vrot.slane %v4859, 1
    %v4861 = vadd.f32 %v4859, %v4860
    %v4862 = vsel %vm58, %v4830, 0.0
    %v4863 = vrot.slane %v4862, 4
    %v4864 = vadd.f32 %v4862, %v4863
    %v4865 = vrot.slane %v4864, 2
    %v4866 = vadd.f32 %v4864, %v4865
    %v4867 = vrot.slane %v4866, 1
    %v4868 = vadd.f32 %v4866, %v4867
    %v4869 = vsel %vm58, %v4831, 0.0
    %v4870 = vrot.slane %v4869, 4
    %v4871 = vadd.f32 %v4869, %v4870
    %v4872 = vrot.slane %v4871, 2
    %v4873 = vadd.f32 %v4871, %v4872
    %v4874 = vrot.slane %v4873, 1
    %v4875 = vadd.f32 %v4873, %v4874
    %v4876 = vsel %vm58, %v4832, 0.0
    %v4877 = vrot.slane %v4876, 4
    %v4878 = vadd.f32 %v4876, %v4877
    %v4879 = vrot.slane %v4878, 2
    %v4880 = vadd.f32 %v4878, %v4879
    %v4881 = vrot.slane %v4880, 1
    %v4882 = vadd.f32 %v4880, %v4881
    %v4883 = vsel %vm58, %v4833, 0.0
    %v4884 = vrot.slane %v4883, 4
    %v4885 = vadd.f32 %v4883, %v4884
    %v4886 = vrot.slane %v4885, 2
    %v4887 = vadd.f32 %v4885, %v4886
    %v4888 = vrot.slane %v4887, 1
    %v4889 = vadd.f32 %v4887, %v4888
    %v4890 = vrot.slane %v33, 1
    %v4891 = vrot.slane %v33, 2
    %v4892 = vrot.slane %v33, 3
    %v4893 = vrot.slane %v34, 1
    %v4894 = vrot.slane %v34, 2
    %v4895 = vrot.slane %v34, 3
    %v4904 = vmul.f32 %v4840, %v33
    %v4905 = vmul.f32 %v4847, %v4890
    %v4906 = vmul.f32 %v4854, %v4891
    %v4907 = vmul.f32 %v4861, %v4892
    %v4908 = vmul.f32 %v4868, %v34
    %v4909 = vmul.f32 %v4875, %v4893
    %v4910 = vmul.f32 %v4882, %v4894
    %v4911 = vmul.f32 %v4889, %v4895
    %v4920 = vrot.slane %v4905, 7
    %v4921 = vsel %vm4571, %v4920, %v4904
    %v4922 = vrot.slane %v4906, 6
    %v4923 = vsel %vm4573, %v4922, %v4921
    %v4924 = vrot.slane %v4907, 5
    %v4925 = vsel %vm4575, %v4924, %v4923
    %v4926 = vrot.slane %v4909, 7
    %v4927 = vsel %vm4571, %v4926, %v4908
    %v4928 = vrot.slane %v4910, 6
    %v4929 = vsel %vm4573, %v4928, %v4927
    %v4930 = vrot.slane %v4911, 5
    %v4931 = vsel %vm4575, %v4930, %v4929
    %vm4934 = vcmask 257024
    %v4935 = vsel %vm4934, %v4925, 0.0
    %4936 = vadd.xlane.f32.xlu0 %v4935
    %v4937 = vpop.xlane.xlu0 %4936
    %v4938 = vsel %vm4934, %v4931, 0.0
    %4939 = vadd.xlane.f32.xlu0 %v4938
    %v4940 = vpop.xlane.xlu0 %4939
    %v4943 = vlaneseq
    %v4944 = vshrl.u32 %v4943, 7
    %v4945 = vsub.s32 %v4538, %v4944
    %v4946 = vrot.slane %v4937, %v4945
    %v4947 = vlaneseq
    %v4948 = vshrl.u32 %v4947, 7
    %v4949 = vsub.s32 %v4538, %v4948
    %v4950 = vrot.slane %v4940, %v4949
    %v4951 = vsel %vm4571, %v4950, %v4946
    %vm4953 = vcmask 25600
    %4954 = vst.msk [vmem:[#allocation2] sm:$0x3] %vm4953, %v4951
    // Predicated region
    $region34: #{caum_forward.3} parent=1 // pred_check
      _
    $region35: #{caum_forward.3} parent=1 // pred_check_branch
      %4956 = sbr.rel (0) target = $region37
    $region36: #{caum_forward.3} parent=1 // pred_region
      %s4958 = ssub.s32 32, 32
      %4959 = vsyncadd [#allocation3], %s4958
      %s4961 = sshll.u32 [#allocation2], 4
      %s4962 = int_to_ptr.vmem [resolvable:$true] %s4961
      %4964 = dma.vmem_to_hbm [thread:$0]  %s4962, 32, %s8, [#allocation3]
    $region37: #{caum_forward.3} parent=1 // pred_fallthru
      _
    // Predicated region
    $region38: #{caum_forward.3} parent=1 // pred_check
      _
    $region39: #{caum_forward.3} parent=1 // pred_check_branch
      %4966 = sbr.rel (0) target = $region41
    $region40: #{caum_forward.3} parent=1 // pred_region
      %4967 = dma.done [#allocation3], 32
    $region41: #{caum_forward.3} parent=1 // pred_fallthru
      _
    %4968 = vsyncpa [#allocation3], 1

// kernel: caum_forward.2
$region0: #{caum_forward.2}
  #allocation0 [shape = 'u32[]', space=smem, size = 0x4, offset = 0x4, fixed_abs, tag = 'smem constant byte address 0x4 - core index']
  #allocation1 [shape = 'u32[144,128]{1,0:T(1,128)}', space=vmem, size = 0x12000, scoped, tag = 'internal scratch']
  %s0 = inlined_call_operand.vmem [shape: bf16[24,16,32], index: 0, kind: input, shape index: {}]
  %s1 = inlined_call_operand.vmem [shape: bf16[32,96], index: 1, kind: input, shape index: {}]
  %s2 = inlined_call_operand.vmem [shape: bf16[32,32], index: 2, kind: input, shape index: {}]
  %s3 = inlined_call_operand.vmem [shape: f32[2,32], index: 3, kind: input, shape index: {}]
  %s4 = inlined_call_operand.vmem [shape: f32[24,32], index: 4, kind: output, shape index: {}]
  %s5 = sld [smem:[#allocation0]]
  $region49: #{caum_forward.2} parent=0
    _
  %s7 = ssub.s32 1, %s5
  %s8 = scalar_select 0, %s7, %s5
  loop: start=0, step=1, limit=5
  $region2: #{caum_forward.2} parent=0 // loop_pre_header
    _
  $region3: #{caum_forward.2} parent=0 // loop_header
    %s10 = sphi 0, %s14
    %p11 = scmp.ge.s32.totalorder %s10, 5
    %s20 = sphi 0, %s22
    %s23 = sphi 0, %s20
    %s24 = sphi 0, %s23
    %s40 = sphi 0, %s24
    %s44 = sphi 0, %s44
    %s46 = sphi 0, %s44
    %s47 = sphi 0, %s46
    %s61 = sphi 0, %s47
    %s65 = sphi 0, %s65
    %s67 = sphi 0, %s65
    %s68 = sphi 0, %s67
    %s82 = sphi 0, %s68
    %s86 = sphi 0, %s86
    %s88 = sphi 0, %s86
    %s89 = sphi 0, %s88
    %s103 = sphi 0, %s89
    %s109 = sphi 0, %s111
    %s112 = sphi 0, %s109
    %s113 = sphi 0, %s112
    %s129 = sphi 0, %s113
  $region4: #{caum_forward.2} parent=0 // loop_header_branch
    %13 = sbr.rel (%p11) target = $region8
  $region5: #{caum_forward.2} parent=0 // loop_body
    %s15 = ssub.s32 %s10, 1
    %s16 = ssub.s32 %s10, 2
    %s17 = sadd.s32 %s10, 1
    %s18 = ssub.s32 %s10, %s17
    %p19 = scmp.eq.s32.totalorder %s18, 0
    %s21 = sadd.s32 %s20, 1
    %s22 = scalar_select %p19, %s20, %s21
    %p25 = pneg %p19
    %p26 = scmp.eq.s32.totalorder %s10, 2
    %p27 = por %p25, %p26
    %p28 = scmp.ne.s32.totalorder %s20, %s23
    %p29 = scmp.eq.s32.totalorder %s10, 0
    %p30 = por %p28, %p29
    %p31 = scmp.ne.s32.totalorder %s20, %s23
    %p32 = scmp.eq.s32.totalorder %s15, 2
    %p33 = por %p31, %p32
    %p34 = scmp.ne.s32.totalorder %s23, %s24
    %p35 = scmp.eq.s32.totalorder %s15, 0
    %p36 = por %p34, %p35
    %p37 = scmp.ne.s32.totalorder %s23, %s24
    %p38 = scmp.eq.s32.totalorder %s16, 2
    %p39 = por %p37, %p38
    %p41 = scmp.ne.s32.totalorder %s24, %s40
    %p42 = scmp.eq.s32.totalorder %s16, 0
    %p43 = por %p41, %p42
    %s45 = sadd.s32 %s44, 1
    %p48 = scmp.eq.s32.totalorder %s10, 2
    %p49 = scmp.ne.s32.totalorder %s44, %s46
    %p50 = scmp.eq.s32.totalorder %s10, 0
    %p51 = por %p49, %p50
    %p52 = scmp.ne.s32.totalorder %s44, %s46
    %p53 = scmp.eq.s32.totalorder %s15, 2
    %p54 = por %p52, %p53
    %p55 = scmp.ne.s32.totalorder %s46, %s47
    %p56 = scmp.eq.s32.totalorder %s15, 0
    %p57 = por %p55, %p56
    %p58 = scmp.ne.s32.totalorder %s46, %s47
    %p59 = scmp.eq.s32.totalorder %s16, 2
    %p60 = por %p58, %p59
    %p62 = scmp.ne.s32.totalorder %s47, %s61
    %p63 = scmp.eq.s32.totalorder %s16, 0
    %p64 = por %p62, %p63
    %s66 = sadd.s32 %s65, 1
    %p69 = scmp.eq.s32.totalorder %s10, 2
    %p70 = scmp.ne.s32.totalorder %s65, %s67
    %p71 = scmp.eq.s32.totalorder %s10, 0
    %p72 = por %p70, %p71
    %p73 = scmp.ne.s32.totalorder %s65, %s67
    %p74 = scmp.eq.s32.totalorder %s15, 2
    %p75 = por %p73, %p74
    %p76 = scmp.ne.s32.totalorder %s67, %s68
    %p77 = scmp.eq.s32.totalorder %s15, 0
    %p78 = por %p76, %p77
    %p79 = scmp.ne.s32.totalorder %s67, %s68
    %p80 = scmp.eq.s32.totalorder %s16, 2
    %p81 = por %p79, %p80
    %p83 = scmp.ne.s32.totalorder %s68, %s82
    %p84 = scmp.eq.s32.totalorder %s16, 0
    %p85 = por %p83, %p84
    %s87 = sadd.s32 %s86, 1
    %p90 = scmp.eq.s32.totalorder %s10, 2
    %p91 = scmp.ne.s32.totalorder %s86, %s88
    %p92 = scmp.eq.s32.totalorder %s10, 0
    %p93 = por %p91, %p92
    %p94 = scmp.ne.s32.totalorder %s86, %s88
    %p95 = scmp.eq.s32.totalorder %s15, 2
    %p96 = por %p94, %p95
    %p97 = scmp.ne.s32.totalorder %s88, %s89
    %p98 = scmp.eq.s32.totalorder %s15, 0
    %p99 = por %p97, %p98
    %p100 = scmp.ne.s32.totalorder %s88, %s89
    %p101 = scmp.eq.s32.totalorder %s16, 2
    %p102 = por %p100, %p101
    %p104 = scmp.ne.s32.totalorder %s89, %s103
    %p105 = scmp.eq.s32.totalorder %s16, 0
    %p106 = por %p104, %p105
    %s107 = ssub.s32 %s10, %s17
    %p108 = scmp.eq.s32.totalorder %s107, 0
    %s110 = sadd.s32 %s109, 1
    %s111 = scalar_select %p108, %s109, %s110
    %p114 = pneg %p108
    %p115 = scmp.eq.s32.totalorder %s10, 2
    %p116 = por %p114, %p115
    %p117 = scmp.ne.s32.totalorder %s109, %s112
    %p118 = scmp.eq.s32.totalorder %s10, 0
    %p119 = por %p117, %p118
    %p120 = scmp.ne.s32.totalorder %s109, %s112
    %p121 = scmp.eq.s32.totalorder %s15, 2
    %p122 = por %p120, %p121
    %p123 = scmp.ne.s32.totalorder %s112, %s113
    %p124 = scmp.eq.s32.totalorder %s15, 0
    %p125 = por %p123, %p124
    %p126 = scmp.ne.s32.totalorder %s112, %s113
    %p127 = scmp.eq.s32.totalorder %s16, 2
    %p128 = por %p126, %p127
    %p130 = scmp.ne.s32.totalorder %s113, %s129
    %p131 = scmp.eq.s32.totalorder %s16, 0
    %p132 = por %p130, %p131
    %p133 = scmp.le.s32.totalorder 1, %s10
    %p134 = scmp.lt.s32.totalorder %s10, 4
    %p135 = pnand %p133, %p134
    %p136 = pneg %p135
    // Predicated region
    $region9: #{caum_forward.2} parent=5 // pred_check
      _
    $region10: #{caum_forward.2} parent=5 // pred_check_branch
      %138 = sbr.rel (%p135) target = $region12
    $region11: #{caum_forward.2} parent=5 // pred_region
      %s139 = ssub.s32 %s10, 1
      // Predicated region
      $region13: #{caum_forward.2} parent=11 // pred_check
        %p140 = pneg %p57
      $region14: #{caum_forward.2} parent=11 // pred_check_branch
        %142 = sbr.rel (%p140) target = $region16
      $region15: #{caum_forward.2} parent=11 // pred_region
        _
      $region16: #{caum_forward.2} parent=11 // pred_fallthru
        _
      // Predicated region
      $region17: #{caum_forward.2} parent=11 // pred_check
        %p143 = pneg %p78
      $region18: #{caum_forward.2} parent=11 // pred_check_branch
        %145 = sbr.rel (%p143) target = $region20
      $region19: #{caum_forward.2} parent=11 // pred_region
        _
      $region20: #{caum_forward.2} parent=11 // pred_fallthru
        _
      // Predicated region
      $region21: #{caum_forward.2} parent=11 // pred_check
        %p146 = pneg %p99
      $region22: #{caum_forward.2} parent=11 // pred_check_branch
        %148 = sbr.rel (%p146) target = $region24
      $region23: #{caum_forward.2} parent=11 // pred_region
        _
      $region24: #{caum_forward.2} parent=11 // pred_fallthru
        _
    $region12: #{caum_forward.2} parent=5 // pred_fallthru
      _
    %p149 = scmp.lt.s32.totalorder %s10, 3
    // Predicated region
    $region25: #{caum_forward.2} parent=5 // pred_check
      %p150 = pneg %p149
    $region26: #{caum_forward.2} parent=5 // pred_check_branch
      %152 = sbr.rel (%p150) target = $region28
    $region27: #{caum_forward.2} parent=5 // pred_region
      // Predicated region
      $region29: #{caum_forward.2} parent=27 // pred_check
        %p153 = pneg %p30
      $region30: #{caum_forward.2} parent=27 // pred_check_branch
        %155 = sbr.rel (%p153) target = $region32
      $region31: #{caum_forward.2} parent=27 // pred_region
        %s156 = smul.u32 8, %s10
        %p157 = scmp.lt.s32.totalorder %s156, 23
        %s158 = scalar_select %p157, %s156, 23
        %s159 = smul.addr %s158, 2
        %s160 = smul.addr %s159, 4
        %s161 = scalar_lea.vmem %s0, %s160
        %s162 = smul.u32 8, %s10
      $region32: #{caum_forward.2} parent=27 // pred_fallthru
        _
    $region28: #{caum_forward.2} parent=5 // pred_fallthru
      _
    %p163 = scmp.le.s32.totalorder 1, %s10
    %p164 = scmp.lt.s32.totalorder %s10, 4
    %p165 = pnand %p163, %p164
    %p166 = pneg %p165
    // Predicated region
    $region33: #{caum_forward.2} parent=5 // pred_check
      _
    $region34: #{caum_forward.2} parent=5 // pred_check_branch
      %168 = sbr.rel (%p165) target = $region36
    $region35: #{caum_forward.2} parent=5 // pred_region
      %s169 = ssub.s32 %s10, 1
      %s170 = smul.u32 8, %s15
      %p171 = scmp.lt.s32.totalorder %s170, 23
      %s172 = scalar_select %p171, %s170, 23
      %s173 = smul.addr %s172, 2
      %s174 = smul.addr %s173, 4
      %s175 = scalar_lea.vmem %s0, %s174
      %p176 = pneg %p36
      %p177 = pneg %p33
      %p178 = pneg %p57
      %p179 = pneg %p54
      %p180 = pneg %p78
      %p181 = pneg %p75
      %p182 = pneg %p99
      %p183 = pneg %p96
      %p184 = pneg %p125
      %p185 = pneg %p122
      %p186 = scmp.lt.s32.totalorder %s15, 2
      %s187 = scalar_select %p186, %s15, 2
      %s188 = smul.addr %s187, 8
      %s189 = scalar_lea.vmem %s4, %s188
      %s190 = smul.u32 8, %s15
      %p191 = scmp.lt.s32.totalorder %s190, 23
      %s192 = scalar_select %p191, %s190, 23
      %s193 = smul.addr %s192, 2
      %s194 = smul.addr %s193, 4
      %s195 = scalar_lea.vmem %s0, %s194
      %s196 = smul.u32 8, %s15
      %p197 = scmp.lt.s32.totalorder %s15, 2
      %s198 = scalar_select %p197, %s15, 2
      %s199 = smul.addr %s198, 8
      %s200 = scalar_lea.vmem %s4, %s199
      %v202 = vld [vmem:[%s195] sm:$0xf]
      %v203 = vld [vmem:[%s195 + $0x4] sm:$0xf]
      %v204 = vld [vmem:[%s195 + $0x8] sm:$0xf]
      %v205 = vld [vmem:[%s195 + $0xc] sm:$0xf]
      %v206 = vld [vmem:[%s195 + $0x10] sm:$0xf]
      %v207 = vld [vmem:[%s195 + $0x14] sm:$0xf]
      %v208 = vld [vmem:[%s195 + $0x18] sm:$0xf]
      %v209 = vld [vmem:[%s195 + $0x1c] sm:$0xf]
      %v210 = vld [vmem:[%s195 + $0x20] sm:$0xf]
      %v211 = vld [vmem:[%s195 + $0x24] sm:$0xf]
      %v212 = vld [vmem:[%s195 + $0x28] sm:$0xf]
      %v213 = vld [vmem:[%s195 + $0x2c] sm:$0xf]
      %v214 = vld [vmem:[%s195 + $0x30] sm:$0xf]
      %v215 = vld [vmem:[%s195 + $0x34] sm:$0xf]
      %v216 = vld [vmem:[%s195 + $0x38] sm:$0xf]
      %v217 = vld [vmem:[%s195 + $0x3c] sm:$0xf]
      %v218 = vld [vmem:[%s1] sm:$0xf]
      %v219 = vld [vmem:[%s1 + $0x4] sm:$0xf]
      %v220 = vld [vmem:[%s1 + $0x8] sm:$0xf]
      %v221 = vld [vmem:[%s1 + $0xc] sm:$0xf]
      %v238 = vunpack.c.l.b16 %v202
      %v239 = vunpack.c.l.b16 %v203
      %v240 = vunpack.c.l.b16 %v204
      %v241 = vunpack.c.l.b16 %v205
      %v242 = vunpack.c.l.b16 %v206
      %v243 = vunpack.c.l.b16 %v207
      %v244 = vunpack.c.l.b16 %v208
      %v245 = vunpack.c.l.b16 %v209
      %v246 = vunpack.c.l.b16 %v210
      %v247 = vunpack.c.l.b16 %v211
      %v248 = vunpack.c.l.b16 %v212
      %v249 = vunpack.c.l.b16 %v213
      %v250 = vunpack.c.l.b16 %v214
      %v251 = vunpack.c.l.b16 %v215
      %v252 = vunpack.c.l.b16 %v216
      %v253 = vunpack.c.l.b16 %v217
      %v254 = vpack.c.b16 %v239, %v238
      %v255 = vpack.c.b16 %v241, %v240
      %v256 = vpack.c.b16 %v243, %v242
      %v257 = vpack.c.b16 %v245, %v244
      %v258 = vpack.c.b16 %v247, %v246
      %v259 = vpack.c.b16 %v249, %v248
      %v260 = vpack.c.b16 %v251, %v250
      %v261 = vpack.c.b16 %v253, %v252
      %v266 = vunpack.c.l.b16 %v218
      %v267 = vunpack.c.l.b16 %v219
      %v268 = vunpack.c.l.b16 %v220
      %v269 = vunpack.c.l.b16 %v221
      %v270 = vpack.c.b16 %v267, %v266
      %v271 = vpack.c.b16 %v269, %v268
      %vm274 = vcmask 261120
      %v276 = vsel %vm274, %v254, 0
      %v279 = vsel %vm274, %v255, 0
      %v282 = vsel %vm274, %v256, 0
      %v285 = vsel %vm274, %v257, 0
      %v288 = vsel %vm274, %v258, 0
      %v291 = vsel %vm274, %v259, 0
      %v294 = vsel %vm274, %v260, 0
      %v297 = vsel %vm274, %v261, 0
      %299 = vmatprep.subr.bf16.mxu0 0
      %300 = vmatpush1.bf16.msra.mxu0 %v270
      %301 = vmatprep.subr.bf16.mxu0 0
      %302 = vmatpush1.bf16.msra.mxu0 %v271
      %303 = vmatprep.subr.bf16.mxu0 0
      %304 = vmatpush1.bf16.msra.mxu0 0
      %305 = vmatprep.subr.bf16.mxu0 0
      %306 = vmatpush1.bf16.msra.mxu0 0
      %307 = vmatprep.subr.bf16.mxu0 0
      %308 = vmatpush1.bf16.msra.mxu0 0
      %309 = vmatprep.subr.bf16.mxu0 0
      %310 = vmatpush1.bf16.msra.mxu0 0
      %311 = vmatprep.subr.bf16.mxu0 0
      %312 = vmatpush1.bf16.msra.mxu0 0
      %313 = vmatprep.subr.bf16.mxu0 0
      %314 = vmatpush1.bf16.msra.mxu0 0
      %315 = vmatprep.subr.bf16.mxu0 0
      %316 = vmatpush1.bf16.msra.mxu0 0
      %317 = vmatprep.subr.bf16.mxu0 0
      %318 = vmatpush1.bf16.msra.mxu0 0
      %319 = vmatprep.subr.bf16.mxu0 0
      %320 = vmatpush1.bf16.msra.mxu0 0
      %321 = vmatprep.subr.bf16.mxu0 0
      %322 = vmatpush1.bf16.msra.mxu0 0
      %323 = vmatprep.subr.bf16.mxu0 0
      %324 = vmatpush1.bf16.msra.mxu0 0
      %325 = vmatprep.subr.bf16.mxu0 0
      %326 = vmatpush1.bf16.msra.mxu0 0
      %327 = vmatprep.subr.bf16.mxu0 0
      %328 = vmatpush1.bf16.msra.mxu0 0
      %329 = vmatprep.subr.bf16.mxu0 0
      %330 = vmatpush1.bf16.msra.mxu0 0
      %331 = vmatprep.mubr.bf16.mxu0 0
      %332 = vmatmul.mubr.bf16.gmra.mrb[0].mxu0 %v276
      %v333 = vpop.f32.mrb[0].mxu0
      %v334 = vadd.f32 0.0, %v333
      %v335 = vpop.f32.mrb[0].mxu0
      %v336 = vpop.f32.mrb[0].mxu0
      %v337 = vadd.f32 0.0, %v336
      %v338 = vpop.f32.mrb[0].mxu0
      %339 = vmatprep.mubr.bf16.mxu0 0
      %340 = vmatmul.mubr.bf16.gmra.mrb[0].mxu0 %v279
      %v341 = vpop.f32.mrb[0].mxu0
      %v342 = vadd.f32 0.0, %v341
      %v343 = vpop.f32.mrb[0].mxu0
      %v344 = vpop.f32.mrb[0].mxu0
      %v345 = vadd.f32 0.0, %v344
      %v346 = vpop.f32.mrb[0].mxu0
      %347 = vmatprep.mubr.bf16.mxu0 0
      %348 = vmatmul.mubr.bf16.gmra.mrb[0].mxu0 %v282
      %v349 = vpop.f32.mrb[0].mxu0
      %v350 = vadd.f32 0.0, %v349
      %v351 = vpop.f32.mrb[0].mxu0
      %v352 = vpop.f32.mrb[0].mxu0
      %v353 = vadd.f32 0.0, %v352
      %v354 = vpop.f32.mrb[0].mxu0
      %355 = vmatprep.mubr.bf16.mxu0 0
      %356 = vmatmul.mubr.bf16.gmra.mrb[0].mxu0 %v285
      %v357 = vpop.f32.mrb[0].mxu0
      %v358 = vadd.f32 0.0, %v357
      %v359 = vpop.f32.mrb[0].mxu0
      %v360 = vpop.f32.mrb[0].mxu0
      %v361 = vadd.f32 0.0, %v360
      %v362 = vpop.f32.mrb[0].mxu0
      %363 = vmatprep.mubr.bf16.mxu0 0
      %364 = vmatmul.mubr.bf16.gmra.mrb[0].mxu0 %v288
      %v365 = vpop.f32.mrb[0].mxu0
      %v366 = vadd.f32 0.0, %v365
      %v367 = vpop.f32.mrb[0].mxu0
      %v368 = vpop.f32.mrb[0].mxu0
      %v369 = vadd.f32 0.0, %v368
      %v370 = vpop.f32.mrb[0].mxu0
      %371 = vmatprep.mubr.bf16.mxu0 0
      %372 = vmatmul.mubr.bf16.gmra.mrb[0].mxu0 %v291
      %v373 = vpop.f32.mrb[0].mxu0
      %v374 = vadd.f32 0.0, %v373
      %v375 = vpop.f32.mrb[0].mxu0
      %v376 = vpop.f32.mrb[0].mxu0
      %v377 = vadd.f32 0.0, %v376
      %v378 = vpop.f32.mrb[0].mxu0
      %379 = vmatprep.mubr.bf16.mxu0 0
      %380 = vmatmul.mubr.bf16.gmra.mrb[0].mxu0 %v294
      %v381 = vpop.f32.mrb[0].mxu0
      %v382 = vadd.f32 0.0, %v381
      %v383 = vpop.f32.mrb[0].mxu0
      %v384 = vpop.f32.mrb[0].mxu0
      %v385 = vadd.f32 0.0, %v384
      %v386 = vpop.f32.mrb[0].mxu0
      %387 = vmatprep.mubr.bf16.mxu0 0
      %388 = vmatmul.mubr.bf16.gmra.mrb[0].mxu0 %v297
      %v389 = vpop.f32.mrb[0].mxu0
      %v390 = vadd.f32 0.0, %v389
      %v391 = vpop.f32.mrb[0].mxu0
      %v392 = vpop.f32.mrb[0].mxu0
      %v393 = vadd.f32 0.0, %v392
      %v394 = vpop.f32.mrb[0].mxu0
      %395 = vdwg.mxu0
      %v396 = vpack.c.bf16 %v337, %v334
      %v397 = vpack.c.bf16 %v345, %v342
      %v398 = vpack.c.bf16 %v353, %v350
      %v399 = vpack.c.bf16 %v361, %v358
      %v400 = vpack.c.bf16 %v369, %v366
      %v401 = vpack.c.bf16 %v377, %v374
      %v402 = vpack.c.bf16 %v385, %v382
      %v403 = vpack.c.bf16 %v393, %v390
      %405 = vrot.lane.b32.xlu0 %v396, 96
      %v406 = vpop.permute.xlu0 %405
      %vm407 = vcmask 64512
      %v409 = vsel %vm407, %v396, 0
      %v412 = vsel %vm407, %v406, 0
      %414 = vmatprep.subr.bf16.mxu0 0
      %415 = vmatpush1.bf16.xpose.msra.mxu0 %v412
      %416 = vmatprep.subr.bf16.mxu0 0
      %417 = vmatpush1.bf16.xpose.msra.mxu0 0
      %418 = vmatprep.subr.bf16.mxu0 0
      %419 = vmatpush1.bf16.xpose.msra.mxu0 0
      %420 = vmatprep.subr.bf16.mxu0 0
      %421 = vmatpush1.bf16.xpose.msra.mxu0 0
      %422 = vmatprep.subr.bf16.mxu0 0
      %423 = vmatpush1.bf16.xpose.msra.mxu0 0
      %424 = vmatprep.subr.bf16.mxu0 0
      %425 = vmatpush1.bf16.xpose.msra.mxu0 0
      %426 = vmatprep.subr.bf16.mxu0 0
      %427 = vmatpush1.bf16.xpose.msra.mxu0 0
      %428 = vmatprep.subr.bf16.mxu0 0
      %429 = vmatpush1.bf16.xpose.msra.mxu0 0
      %430 = vmatprep.subr.bf16.mxu0 0
      %431 = vmatpush1.bf16.xpose.msra.mxu0 0
      %432 = vmatprep.subr.bf16.mxu0 0
      %433 = vmatpush1.bf16.xpose.msra.mxu0 0
      %434 = vmatprep.subr.bf16.mxu0 0
      %435 = vmatpush1.bf16.xpose.msra.mxu0 0
      %436 = vmatprep.subr.bf16.mxu0 0
      %437 = vmatpush1.bf16.xpose.msra.mxu0 0
      %438 = vmatprep.subr.bf16.mxu0 0
      %439 = vmatpush1.bf16.xpose.msra.mxu0 0
      %440 = vmatprep.subr.bf16.mxu0 0
      %441 = vmatpush1.bf16.xpose.msra.mxu0 0
      %442 = vmatprep.subr.bf16.mxu0 0
      %443 = vmatpush1.bf16.xpose.msra.mxu0 0
      %444 = vmatprep.subr.bf16.mxu0 0
      %445 = vmatpush1.bf16.xpose.msra.mxu0 0
      %446 = vmatprep.mubr.bf16.mxu0 0
      %447 = vmatmul.mubr.bf16.gmra.mrb[0].mxu0 %v409
      %v448 = vpop.f32.mrb[0].mxu0
      %v449 = vadd.f32 0.0, %v448
      %v450 = vpop.f32.mrb[0].mxu0
      %v451 = vpop.f32.mrb[0].mxu0
      %v452 = vadd.f32 0.0, %v451
      %v453 = vpop.f32.mrb[0].mxu0
      %454 = vdwg.mxu0
      %456 = vrot.lane.b32.xlu0 %v397, 96
      %v457 = vpop.permute.xlu0 %456
      %v459 = vsel %vm407, %v397, 0
      %v462 = vsel %vm407, %v457, 0
      %464 = vmatprep.subr.bf16.mxu0 0
      %465 = vmatpush1.bf16.xpose.msra.mxu0 %v462
      %466 = vmatprep.subr.bf16.mxu0 0
      %467 = vmatpush1.bf16.xpose.msra.mxu0 0
      %468 = vmatprep.subr.bf16.mxu0 0
      %469 = vmatpush1.bf16.xpose.msra.mxu0 0
      %470 = vmatprep.subr.bf16.mxu0 0
      %471 = vmatpush1.bf16.xpose.msra.mxu0 0
      %472 = vmatprep.subr.bf16.mxu0 0
      %473 = vmatpush1.bf16.xpose.msra.mxu0 0
      %474 = vmatprep.subr.bf16.mxu0 0
      %475 = vmatpush1.bf16.xpose.msra.mxu0 0
      %476 = vmatprep.subr.bf16.mxu0 0
      %477 = vmatpush1.bf16.xpose.msra.mxu0 0
      %478 = vmatprep.subr.bf16.mxu0 0
      %479 = vmatpush1.bf16.xpose.msra.mxu0 0
      %480 = vmatprep.subr.bf16.mxu0 0
      %481 = vmatpush1.bf16.xpose.msra.mxu0 0
      %482 = vmatprep.subr.bf16.mxu0 0
      %483 = vmatpush1.bf16.xpose.msra.mxu0 0
      %484 = vmatprep.subr.bf16.mxu0 0
      %485 = vmatpush1.bf16.xpose.msra.mxu0 0
      %486 = vmatprep.subr.bf16.mxu0 0
      %487 = vmatpush1.bf16.xpose.msra.mxu0 0
      %488 = vmatprep.subr.bf16.mxu0 0
      %489 = vmatpush1.bf16.xpose.msra.mxu0 0
      %490 = vmatprep.subr.bf16.mxu0 0
      %491 = vmatpush1.bf16.xpose.msra.mxu0 0
      %492 = vmatprep.subr.bf16.mxu0 0
      %493 = vmatpush1.bf16.xpose.msra.mxu0 0
      %494 = vmatprep.subr.bf16.mxu0 0
      %495 = vmatpush1.bf16.xpose.msra.mxu0 0
      %496 = vmatprep.mubr.bf16.mxu0 0
      %497 = vmatmul.mubr.bf16.gmra.mrb[0].mxu0 %v459
      %v498 = vpop.f32.mrb[0].mxu0
      %v499 = vadd.f32 0.0, %v498
      %v500 = vpop.f32.mrb[0].mxu0
      %v501 = vpop.f32.mrb[0].mxu0
      %v502 = vadd.f32 0.0, %v501
      %v503 = vpop.f32.mrb[0].mxu0
      %504 = vdwg.mxu0
      %506 = vrot.lane.b32.xlu0 %v398, 96
      %v507 = vpop.permute.xlu0 %506
      %v509 = vsel %vm407, %v398, 0
      %v512 = vsel %vm407, %v507, 0
      %514 = vmatprep.subr.bf16.mxu0 0
      %515 = vmatpush1.bf16.xpose.msra.mxu0 %v512
      %516 = vmatprep.subr.bf16.mxu0 0
      %517 = vmatpush1.bf16.xpose.msra.mxu0 0
      %518 = vmatprep.subr.bf16.mxu0 0
      %519 = vmatpush1.bf16.xpose.msra.mxu0 0
      %520 = vmatprep.subr.bf16.mxu0 0
      %521 = vmatpush1.bf16.xpose.msra.mxu0 0
      %522 = vmatprep.subr.bf16.mxu0 0
      %523 = vmatpush1.bf16.xpose.msra.mxu0 0
      %524 = vmatprep.subr.bf16.mxu0 0
      %525 = vmatpush1.bf16.xpose.msra.mxu0 0
      %526 = vmatprep.subr.bf16.mxu0 0
      %527 = vmatpush1.bf16.xpose.msra.mxu0 0
      %528 = vmatprep.subr.bf16.mxu0 0
      %529 = vmatpush1.bf16.xpose.msra.mxu0 0
      %530 = vmatprep.subr.bf16.mxu0 0
      %531 = vmatpush1.bf16.xpose.msra.mxu0 0
      %532 = vmatprep.subr.bf16.mxu0 0
      %533 = vmatpush1.bf16.xpose.msra.mxu0 0
      %534 = vmatprep.subr.bf16.mxu0 0
      %535 = vmatpush1.bf16.xpose.msra.mxu0 0
      %536 = vmatprep.subr.bf16.mxu0 0
      %537 = vmatpush1.bf16.xpose.msra.mxu0 0
      %538 = vmatprep.subr.bf16.mxu0 0
      %539 = vmatpush1.bf16.xpose.msra.mxu0 0
      %540 = vmatprep.subr.bf16.mxu0 0
      %541 = vmatpush1.bf16.xpose.msra.mxu0 0
      %542 = vmatprep.subr.bf16.mxu0 0
      %543 = vmatpush1.bf16.xpose.msra.mxu0 0
      %544 = vmatprep.subr.bf16.mxu0 0
      %545 = vmatpush1.bf16.xpose.msra.mxu0 0
      %546 = vmatprep.mubr.bf16.mxu0 0
      %547 = vmatmul.mubr.bf16.gmra.mrb[0].mxu0 %v509
      %v548 = vpop.f32.mrb[0].mxu0
      %v549 = vadd.f32 0.0, %v548
      %v550 = vpop.f32.mrb[0].mxu0
      %v551 = vpop.f32.mrb[0].mxu0
      %v552 = vadd.f32 0.0, %v551
      %v553 = vpop.f32.mrb[0].mxu0
      %554 = vdwg.mxu0
      %556 = vrot.lane.b32.xlu0 %v399, 96
      %v557 = vpop.permute.xlu0 %556
      %v559 = vsel %vm407, %v399, 0
      %v562 = vsel %vm407, %v557, 0
      %564 = vmatprep.subr.bf16.mxu0 0
      %565 = vmatpush1.bf16.xpose.msra.mxu0 %v562
      %566 = vmatprep.subr.bf16.mxu0 0
      %567 = vmatpush1.bf16.xpose.msra.mxu0 0
      %568 = vmatprep.subr.bf16.mxu0 0
      %569 = vmatpush1.bf16.xpose.msra.mxu0 0
      %570 = vmatprep.subr.bf16.mxu0 0
      %571 = vmatpush1.bf16.xpose.msra.mxu0 0
      %572 = vmatprep.subr.bf16.mxu0 0
      %573 = vmatpush1.bf16.xpose.msra.mxu0 0
      %574 = vmatprep.subr.bf16.mxu0 0
      %575 = vmatpush1.bf16.xpose.msra.mxu0 0
      %576 = vmatprep.subr.bf16.mxu0 0
      %577 = vmatpush1.bf16.xpose.msra.mxu0 0
      %578 = vmatprep.subr.bf16.mxu0 0
      %579 = vmatpush1.bf16.xpose.msra.mxu0 0
      %580 = vmatprep.subr.bf16.mxu0 0
      %581 = vmatpush1.bf16.xpose.msra.mxu0 0
      %582 = vmatprep.subr.bf16.mxu0 0
      %583 = vmatpush1.bf16.xpose.msra.mxu0 0
      %584 = vmatprep.subr.bf16.mxu0 0
      %585 = vmatpush1.bf16.xpose.msra.mxu0 0
      %586 = vmatprep.subr.bf16.mxu0 0
      %587 = vmatpush1.bf16.xpose.msra.mxu0 0
      %588 = vmatprep.subr.bf16.mxu0 0
      %589 = vmatpush1.bf16.xpose.msra.mxu0 0
      %590 = vmatprep.subr.bf16.mxu0 0
      %591 = vmatpush1.bf16.xpose.msra.mxu0 0
      %592 = vmatprep.subr.bf16.mxu0 0
      %593 = vmatpush1.bf16.xpose.msra.mxu0 0
      %594 = vmatprep.subr.bf16.mxu0 0
      %595 = vmatpush1.bf16.xpose.msra.mxu0 0
      %596 = vmatprep.mubr.bf16.mxu0 0
      %597 = vmatmul.mubr.bf16.gmra.mrb[0].mxu0 %v559
      %v598 = vpop.f32.mrb[0].mxu0
      %v599 = vadd.f32 0.0, %v598
      %v600 = vpop.f32.mrb[0].mxu0
      %v601 = vpop.f32.mrb[0].mxu0
      %v602 = vadd.f32 0.0, %v601
      %v603 = vpop.f32.mrb[0].mxu0
      %604 = vdwg.mxu0
      %606 = vrot.lane.b32.xlu0 %v400, 96
      %v607 = vpop.permute.xlu0 %606
      %v609 = vsel %vm407, %v400, 0
      %v612 = vsel %vm407, %v607, 0
      %614 = vmatprep.subr.bf16.mxu0 0
      %615 = vmatpush1.bf16.xpose.msra.mxu0 %v612
      %616 = vmatprep.subr.bf16.mxu0 0
      %617 = vmatpush1.bf16.xpose.msra.mxu0 0
      %618 = vmatprep.subr.bf16.mxu0 0
      %619 = vmatpush1.bf16.xpose.msra.mxu0 0
      %620 = vmatprep.subr.bf16.mxu0 0
      %621 = vmatpush1.bf16.xpose.msra.mxu0 0
      %622 = vmatprep.subr.bf16.mxu0 0
      %623 = vmatpush1.bf16.xpose.msra.mxu0 0
      %624 = vmatprep.subr.bf16.mxu0 0
      %625 = vmatpush1.bf16.xpose.msra.mxu0 0
      %626 = vmatprep.subr.bf16.mxu0 0
      %627 = vmatpush1.bf16.xpose.msra.mxu0 0
      %628 = vmatprep.subr.bf16.mxu0 0
      %629 = vmatpush1.bf16.xpose.msra.mxu0 0
      %630 = vmatprep.subr.bf16.mxu0 0
      %631 = vmatpush1.bf16.xpose.msra.mxu0 0
      %632 = vmatprep.subr.bf16.mxu0 0
      %633 = vmatpush1.bf16.xpose.msra.mxu0 0
      %634 = vmatprep.subr.bf16.mxu0 0
      %635 = vmatpush1.bf16.xpose.msra.mxu0 0
      %636 = vmatprep.subr.bf16.mxu0 0
      %637 = vmatpush1.bf16.xpose.msra.mxu0 0
      %638 = vmatprep.subr.bf16.mxu0 0
      %639 = vmatpush1.bf16.xpose.msra.mxu0 0
      %640 = vmatprep.subr.bf16.mxu0 0
      %641 = vmatpush1.bf16.xpose.msra.mxu0 0
      %642 = vmatprep.subr.bf16.mxu0 0
      %643 = vmatpush1.bf16.xpose.msra.mxu0 0
      %644 = vmatprep.subr.bf16.mxu0 0
      %645 = vmatpush1.bf16.xpose.msra.mxu0 0
      %646 = vmatprep.mubr.bf16.mxu0 0
      %647 = vmatmul.mubr.bf16.gmra.mrb[0].mxu0 %v609
      %v648 = vpop.f32.mrb[0].mxu0
      %v649 = vadd.f32 0.0, %v648
      %v650 = vpop.f32.mrb[0].mxu0
      %v651 = vpop.f32.mrb[0].mxu0
      %v652 = vadd.f32 0.0, %v651
      %v653 = vpop.f32.mrb[0].mxu0
      %654 = vdwg.mxu0
      %656 = vrot.lane.b32.xlu0 %v401, 96
      %v657 = vpop.permute.xlu0 %656
      %v659 = vsel %vm407, %v401, 0
      %v662 = vsel %vm407, %v657, 0
      %664 = vmatprep.subr.bf16.mxu0 0
      %665 = vmatpush1.bf16.xpose.msra.mxu0 %v662
      %666 = vmatprep.subr.bf16.mxu0 0
      %667 = vmatpush1.bf16.xpose.msra.mxu0 0
      %668 = vmatprep.subr.bf16.mxu0 0
      %669 = vmatpush1.bf16.xpose.msra.mxu0 0
      %670 = vmatprep.subr.bf16.mxu0 0
      %671 = vmatpush1.bf16.xpose.msra.mxu0 0
      %672 = vmatprep.subr.bf16.mxu0 0
      %673 = vmatpush1.bf16.xpose.msra.mxu0 0
      %674 = vmatprep.subr.bf16.mxu0 0
      %675 = vmatpush1.bf16.xpose.msra.mxu0 0
      %676 = vmatprep.subr.bf16.mxu0 0
      %677 = vmatpush1.bf16.xpose.msra.mxu0 0
      %678 = vmatprep.subr.bf16.mxu0 0
      %679 = vmatpush1.bf16.xpose.msra.mxu0 0
      %680 = vmatprep.subr.bf16.mxu0 0
      %681 = vmatpush1.bf16.xpose.msra.mxu0 0
      %682 = vmatprep.subr.bf16.mxu0 0
      %683 = vmatpush1.bf16.xpose.msra.mxu0 0
      %684 = vmatprep.subr.bf16.mxu0 0
      %685 = vmatpush1.bf16.xpose.msra.mxu0 0
      %686 = vmatprep.subr.bf16.mxu0 0
      %687 = vmatpush1.bf16.xpose.msra.mxu0 0
      %688 = vmatprep.subr.bf16.mxu0 0
      %689 = vmatpush1.bf16.xpose.msra.mxu0 0
      %690 = vmatprep.subr.bf16.mxu0 0
      %691 = vmatpush1.bf16.xpose.msra.mxu0 0
      %692 = vmatprep.subr.bf16.mxu0 0
      %693 = vmatpush1.bf16.xpose.msra.mxu0 0
      %694 = vmatprep.subr.bf16.mxu0 0
      %695 = vmatpush1.bf16.xpose.msra.mxu0 0
      %696 = vmatprep.mubr.bf16.mxu0 0
      %697 = vmatmul.mubr.bf16.gmra.mrb[0].mxu0 %v659
      %v698 = vpop.f32.mrb[0].mxu0
      %v699 = vadd.f32 0.0, %v698
      %v700 = vpop.f32.mrb[0].mxu0
      %v701 = vpop.f32.mrb[0].mxu0
      %v702 = vadd.f32 0.0, %v701
      %v703 = vpop.f32.mrb[0].mxu0
      %704 = vdwg.mxu0
      %706 = vrot.lane.b32.xlu0 %v402, 96
      %v707 = vpop.permute.xlu0 %706
      %v709 = vsel %vm407, %v402, 0
      %v712 = vsel %vm407, %v707, 0
      %714 = vmatprep.subr.bf16.mxu0 0
      %715 = vmatpush1.bf16.xpose.msra.mxu0 %v712
      %716 = vmatprep.subr.bf16.mxu0 0
      %717 = vmatpush1.bf16.xpose.msra.mxu0 0
      %718 = vmatprep.subr.bf16.mxu0 0
      %719 = vmatpush1.bf16.xpose.msra.mxu0 0
      %720 = vmatprep.subr.bf16.mxu0 0
      %721 = vmatpush1.bf16.xpose.msra.mxu0 0
      %722 = vmatprep.subr.bf16.mxu0 0
      %723 = vmatpush1.bf16.xpose.msra.mxu0 0
      %724 = vmatprep.subr.bf16.mxu0 0
      %725 = vmatpush1.bf16.xpose.msra.mxu0 0
      %726 = vmatprep.subr.bf16.mxu0 0
      %727 = vmatpush1.bf16.xpose.msra.mxu0 0
      %728 = vmatprep.subr.bf16.mxu0 0
      %729 = vmatpush1.bf16.xpose.msra.mxu0 0
      %730 = vmatprep.subr.bf16.mxu0 0
      %731 = vmatpush1.bf16.xpose.msra.mxu0 0
      %732 = vmatprep.subr.bf16.mxu0 0
      %733 = vmatpush1.bf16.xpose.msra.mxu0 0
      %734 = vmatprep.subr.bf16.mxu0 0
      %735 = vmatpush1.bf16.xpose.msra.mxu0 0
      %736 = vmatprep.subr.bf16.mxu0 0
      %737 = vmatpush1.bf16.xpose.msra.mxu0 0
      %738 = vmatprep.subr.bf16.mxu0 0
      %739 = vmatpush1.bf16.xpose.msra.mxu0 0
      %740 = vmatprep.subr.bf16.mxu0 0
      %741 = vmatpush1.bf16.xpose.msra.mxu0 0
      %742 = vmatprep.subr.bf16.mxu0 0
      %743 = vmatpush1.bf16.xpose.msra.mxu0 0
      %744 = vmatprep.subr.bf16.mxu0 0
      %745 = vmatpush1.bf16.xpose.msra.mxu0 0
      %746 = vmatprep.mubr.bf16.mxu0 0
      %747 = vmatmul.mubr.bf16.gmra.mrb[0].mxu0 %v709
      %v748 = vpop.f32.mrb[0].mxu0
      %v749 = vadd.f32 0.0, %v748
      %v750 = vpop.f32.mrb[0].mxu0
      %v751 = vpop.f32.mrb[0].mxu0
      %v752 = vadd.f32 0.0, %v751
      %v753 = vpop.f32.mrb[0].mxu0
      %754 = vdwg.mxu0
      %756 = vrot.lane.b32.xlu0 %v403, 96
      %v757 = vpop.permute.xlu0 %756
      %v759 = vsel %vm407, %v403, 0
      %v762 = vsel %vm407, %v757, 0
      %764 = vmatprep.subr.bf16.mxu0 0
      %765 = vmatpush1.bf16.xpose.msra.mxu0 %v762
      %766 = vmatprep.subr.bf16.mxu0 0
      %767 = vmatpush1.bf16.xpose.msra.mxu0 0
      %768 = vmatprep.subr.bf16.mxu0 0
      %769 = vmatpush1.bf16.xpose.msra.mxu0 0
      %770 = vmatprep.subr.bf16.mxu0 0
      %771 = vmatpush1.bf16.xpose.msra.mxu0 0
      %772 = vmatprep.subr.bf16.mxu0 0
      %773 = vmatpush1.bf16.xpose.msra.mxu0 0
      %774 = vmatprep.subr.bf16.mxu0 0
      %775 = vmatpush1.bf16.xpose.msra.mxu0 0
      %776 = vmatprep.subr.bf16.mxu0 0
      %777 = vmatpush1.bf16.xpose.msra.mxu0 0
      %778 = vmatprep.subr.bf16.mxu0 0
      %779 = vmatpush1.bf16.xpose.msra.mxu0 0
      %780 = vmatprep.subr.bf16.mxu0 0
      %781 = vmatpush1.bf16.xpose.msra.mxu0 0
      %782 = vmatprep.subr.bf16.mxu0 0
      %783 = vmatpush1.bf16.xpose.msra.mxu0 0
      %784 = vmatprep.subr.bf16.mxu0 0
      %785 = vmatpush1.bf16.xpose.msra.mxu0 0
      %786 = vmatprep.subr.bf16.mxu0 0
      %787 = vmatpush1.bf16.xpose.msra.mxu0 0
      %788 = vmatprep.subr.bf16.mxu0 0
      %789 = vmatpush1.bf16.xpose.msra.mxu0 0
      %790 = vmatprep.subr.bf16.mxu0 0
      %791 = vmatpush1.bf16.xpose.msra.mxu0 0
      %792 = vmatprep.subr.bf16.mxu0 0
      %793 = vmatpush1.bf16.xpose.msra.mxu0 0
      %794 = vmatprep.subr.bf16.mxu0 0
      %795 = vmatpush1.bf16.xpose.msra.mxu0 0
      %796 = vmatprep.mubr.bf16.mxu0 0
      %797 = vmatmul.mubr.bf16.gmra.mrb[0].mxu0 %v759
      %v798 = vpop.f32.mrb[0].mxu0
      %v799 = vadd.f32 0.0, %v798
      %v800 = vpop.f32.mrb[0].mxu0
      %v801 = vpop.f32.mrb[0].mxu0
      %v802 = vadd.f32 0.0, %v801
      %v803 = vpop.f32.mrb[0].mxu0
      %804 = vdwg.mxu0
      %v805 = vmul.f32 %v449, 0.35355338
      %v806 = vmul.f32 %v452, 0.35355338
      %v807 = vmul.f32 %v499, 0.35355338
      %v808 = vmul.f32 %v502, 0.35355338
      %v809 = vmul.f32 %v549, 0.35355338
      %v810 = vmul.f32 %v552, 0.35355338
      %v811 = vmul.f32 %v599, 0.35355338
      %v812 = vmul.f32 %v602, 0.35355338
      %v813 = vmul.f32 %v649, 0.35355338
      %v814 = vmul.f32 %v652, 0.35355338
      %v815 = vmul.f32 %v699, 0.35355338
      %v816 = vmul.f32 %v702, 0.35355338
      %v817 = vmul.f32 %v749, 0.35355338
      %v818 = vmul.f32 %v752, 0.35355338
      %v819 = vmul.f32 %v799, 0.35355338
      %v820 = vmul.f32 %v802, 0.35355338
      %vm821 = vcmask 130048
      %v822 = vsel %vm821, %v805, -inf
      %823 = vmax.xlane.f32.xlu0 %v822
      %v824 = vpop.xlane.xlu0 %823
      %v825 = vsel %vm821, %v806, -inf
      %826 = vmax.xlane.f32.xlu0 %v825
      %v827 = vpop.xlane.xlu0 %826
      %v828 = vsel %vm821, %v807, -inf
      %829 = vmax.xlane.f32.xlu0 %v828
      %v830 = vpop.xlane.xlu0 %829
      %v831 = vsel %vm821, %v808, -inf
      %832 = vmax.xlane.f32.xlu0 %v831
      %v833 = vpop.xlane.xlu0 %832
      %v834 = vsel %vm821, %v809, -inf
      %835 = vmax.xlane.f32.xlu0 %v834
      %v836 = vpop.xlane.xlu0 %835
      %v837 = vsel %vm821, %v810, -inf
      %838 = vmax.xlane.f32.xlu0 %v837
      %v839 = vpop.xlane.xlu0 %838
      %v840 = vsel %vm821, %v811, -inf
      %841 = vmax.xlane.f32.xlu0 %v840
      %v842 = vpop.xlane.xlu0 %841
      %v843 = vsel %vm821, %v812, -inf
      %844 = vmax.xlane.f32.xlu0 %v843
      %v845 = vpop.xlane.xlu0 %844
      %v846 = vsel %vm821, %v813, -inf
      %847 = vmax.xlane.f32.xlu0 %v846
      %v848 = vpop.xlane.xlu0 %847
      %v849 = vsel %vm821, %v814, -inf
      %850 = vmax.xlane.f32.xlu0 %v849
      %v851 = vpop.xlane.xlu0 %850
      %v852 = vsel %vm821, %v815, -inf
      %853 = vmax.xlane.f32.xlu0 %v852
      %v854 = vpop.xlane.xlu0 %853
      %v855 = vsel %vm821, %v816, -inf
      %856 = vmax.xlane.f32.xlu0 %v855
      %v857 = vpop.xlane.xlu0 %856
      %v858 = vsel %vm821, %v817, -inf
      %859 = vmax.xlane.f32.xlu0 %v858
      %v860 = vpop.xlane.xlu0 %859
      %v861 = vsel %vm821, %v818, -inf
      %862 = vmax.xlane.f32.xlu0 %v861
      %v863 = vpop.xlane.xlu0 %862
      %v864 = vsel %vm821, %v819, -inf
      %865 = vmax.xlane.f32.xlu0 %v864
      %v866 = vpop.xlane.xlu0 %865
      %v867 = vsel %vm821, %v820, -inf
      %868 = vmax.xlane.f32.xlu0 %v867
      %v869 = vpop.xlane.xlu0 %868
      %v870 = vsub.f32 %v805, %v824
      %v871 = vsub.f32 %v806, %v827
      %v872 = vsub.f32 %v807, %v830
      %v873 = vsub.f32 %v808, %v833
      %v874 = vsub.f32 %v809, %v836
      %v875 = vsub.f32 %v810, %v839
      %v876 = vsub.f32 %v811, %v842
      %v877 = vsub.f32 %v812, %v845
      %v878 = vsub.f32 %v813, %v848
      %v879 = vsub.f32 %v814, %v851
      %v880 = vsub.f32 %v815, %v854
      %v881 = vsub.f32 %v816, %v857
      %v882 = vsub.f32 %v817, %v860
      %v883 = vsub.f32 %v818, %v863
      %v884 = vsub.f32 %v819, %v866
      %v885 = vsub.f32 %v820, %v869
      %v886 = vmul.f32 %v870, 1.442695
      %v887 = vpow.pop %v886
      %v888 = vmul.f32 %v871, 1.442695
      %v889 = vpow.pop %v888
      %v890 = vmul.f32 %v872, 1.442695
      %v891 = vpow.pop %v890
      %v892 = vmul.f32 %v873, 1.442695
      %v893 = vpow.pop %v892
      %v894 = vmul.f32 %v874, 1.442695
      %v895 = vpow.pop %v894
      %v896 = vmul.f32 %v875, 1.442695
      %v897 = vpow.pop %v896
      %v898 = vmul.f32 %v876, 1.442695
      %v899 = vpow.pop %v898
      %v900 = vmul.f32 %v877, 1.442695
      %v901 = vpow.pop %v900
      %v902 = vmul.f32 %v878, 1.442695
      %v903 = vpow.pop %v902
      %v904 = vmul.f32 %v879, 1.442695
      %v905 = vpow.pop %v904
      %v906 = vmul.f32 %v880, 1.442695
      %v907 = vpow.pop %v906
      %v908 = vmul.f32 %v881, 1.442695
      %v909 = vpow.pop %v908
      %v910 = vmul.f32 %v882, 1.442695
      %v911 = vpow.pop %v910
      %v912 = vmul.f32 %v883, 1.442695
      %v913 = vpow.pop %v912
      %v914 = vmul.f32 %v884, 1.442695
      %v915 = vpow.pop %v914
      %v916 = vmul.f32 %v885, 1.442695
      %v917 = vpow.pop %v916
      %v918 = vsel %vm821, %v887, 0.0
      %919 = vadd.xlane.f32.xlu0 %v918
      %v920 = vpop.xlane.xlu0 %919
      %v921 = vsel %vm821, %v889, 0.0
      %922 = vadd.xlane.f32.xlu0 %v921
      %v923 = vpop.xlane.xlu0 %922
      %v924 = vsel %vm821, %v891, 0.0
      %925 = vadd.xlane.f32.xlu0 %v924
      %v926 = vpop.xlane.xlu0 %925
      %v927 = vsel %vm821, %v893, 0.0
      %928 = vadd.xlane.f32.xlu0 %v927
      %v929 = vpop.xlane.xlu0 %928
      %v930 = vsel %vm821, %v895, 0.0
      %931 = vadd.xlane.f32.xlu0 %v930
      %v932 = vpop.xlane.xlu0 %931
      %v933 = vsel %vm821, %v897, 0.0
      %934 = vadd.xlane.f32.xlu0 %v933
      %v935 = vpop.xlane.xlu0 %934
      %v936 = vsel %vm821, %v899, 0.0
      %937 = vadd.xlane.f32.xlu0 %v936
      %v938 = vpop.xlane.xlu0 %937
      %v939 = vsel %vm821, %v901, 0.0
      %940 = vadd.xlane.f32.xlu0 %v939
      %v941 = vpop.xlane.xlu0 %940
      %v942 = vsel %vm821, %v903, 0.0
      %943 = vadd.xlane.f32.xlu0 %v942
      %v944 = vpop.xlane.xlu0 %943
      %v945 = vsel %vm821, %v905, 0.0
      %946 = vadd.xlane.f32.xlu0 %v945
      %v947 = vpop.xlane.xlu0 %946
      %v948 = vsel %vm821, %v907, 0.0
      %949 = vadd.xlane.f32.xlu0 %v948
      %v950 = vpop.xlane.xlu0 %949
      %v951 = vsel %vm821, %v909, 0.0
      %952 = vadd.xlane.f32.xlu0 %v951
      %v953 = vpop.xlane.xlu0 %952
      %v954 = vsel %vm821, %v911, 0.0
      %955 = vadd.xlane.f32.xlu0 %v954
      %v956 = vpop.xlane.xlu0 %955
      %v957 = vsel %vm821, %v913, 0.0
      %958 = vadd.xlane.f32.xlu0 %v957
      %v959 = vpop.xlane.xlu0 %958
      %v960 = vsel %vm821, %v915, 0.0
      %961 = vadd.xlane.f32.xlu0 %v960
      %v962 = vpop.xlane.xlu0 %961
      %v963 = vsel %vm821, %v917, 0.0
      %964 = vadd.xlane.f32.xlu0 %v963
      %v965 = vpop.xlane.xlu0 %964
      %v966 = vrcp.pop %v920
      %v967 = vmul.f32 %v887, %v966
      %v968 = vrcp.pop %v923
      %v969 = vmul.f32 %v889, %v968
      %v970 = vrcp.pop %v926
      %v971 = vmul.f32 %v891, %v970
      %v972 = vrcp.pop %v929
      %v973 = vmul.f32 %v893, %v972
      %v974 = vrcp.pop %v932
      %v975 = vmul.f32 %v895, %v974
      %v976 = vrcp.pop %v935
      %v977 = vmul.f32 %v897, %v976
      %v978 = vrcp.pop %v938
      %v979 = vmul.f32 %v899, %v978
      %v980 = vrcp.pop %v941
      %v981 = vmul.f32 %v901, %v980
      %v982 = vrcp.pop %v944
      %v983 = vmul.f32 %v903, %v982
      %v984 = vrcp.pop %v947
      %v985 = vmul.f32 %v905, %v984
      %v986 = vrcp.pop %v950
      %v987 = vmul.f32 %v907, %v986
      %v988 = vrcp.pop %v953
      %v989 = vmul.f32 %v909, %v988
      %v990 = vrcp.pop %v956
      %v991 = vmul.f32 %v911, %v990
      %v992 = vrcp.pop %v959
      %v993 = vmul.f32 %v913, %v992
      %v994 = vrcp.pop %v962
      %v995 = vmul.f32 %v915, %v994
      %v996 = vrcp.pop %v965
      %v997 = vmul.f32 %v917, %v996
      %v998 = vpack.c.bf16 %v969, %v967
      %v999 = vpack.c.bf16 %v973, %v971
      %v1000 = vpack.c.bf16 %v977, %v975
      %v1001 = vpack.c.bf16 %v981, %v979
      %v1002 = vpack.c.bf16 %v985, %v983
      %v1003 = vpack.c.bf16 %v989, %v987
      %v1004 = vpack.c.bf16 %v993, %v991
      %v1005 = vpack.c.bf16 %v997, %v995
      %1006 = vrot.lane.b32.xlu0 %v396, 64
      %v1007 = vpop.permute.xlu0 %1006
      %v1010 = vsel %vm821, %v998, 0
      %1012 = vmatprep.subr.bf16.mxu0 0
      %1013 = vmatpush1.bf16.msra.mxu0 %v1007
      %1014 = vmatprep.subr.bf16.mxu0 0
      %1015 = vmatpush1.bf16.msra.mxu0 0
      %1016 = vmatprep.subr.bf16.mxu0 0
      %1017 = vmatpush1.bf16.msra.mxu0 0
      %1018 = vmatprep.subr.bf16.mxu0 0
      %1019 = vmatpush1.bf16.msra.mxu0 0
      %1020 = vmatprep.subr.bf16.mxu0 0
      %1021 = vmatpush1.bf16.msra.mxu0 0
      %1022 = vmatprep.subr.bf16.mxu0 0
      %1023 = vmatpush1.bf16.msra.mxu0 0
      %1024 = vmatprep.subr.bf16.mxu0 0
      %1025 = vmatpush1.bf16.msra.mxu0 0
      %1026 = vmatprep.subr.bf16.mxu0 0
      %1027 = vmatpush1.bf16.msra.mxu0 0
      %1028 = vmatprep.subr.bf16.mxu0 0
      %1029 = vmatpush1.bf16.msra.mxu0 0
      %1030 = vmatprep.subr.bf16.mxu0 0
      %1031 = vmatpush1.bf16.msra.mxu0 0
      %1032 = vmatprep.subr.bf16.mxu0 0
      %1033 = vmatpush1.bf16.msra.mxu0 0
      %1034 = vmatprep.subr.bf16.mxu0 0
      %1035 = vmatpush1.bf16.msra.mxu0 0
      %1036 = vmatprep.subr.bf16.mxu0 0
      %1037 = vmatpush1.bf16.msra.mxu0 0
      %1038 = vmatprep.subr.bf16.mxu0 0
      %1039 = vmatpush1.bf16.msra.mxu0 0
      %1040 = vmatprep.subr.bf16.mxu0 0
      %1041 = vmatpush1.bf16.msra.mxu0 0
      %1042 = vmatprep.subr.bf16.mxu0 0
      %1043 = vmatpush1.bf16.msra.mxu0 0
      %1044 = vmatprep.mubr.bf16.mxu0 0
      %1045 = vmatmul.mubr.bf16.gmra.mrb[0].mxu0 %v1010
      %v1046 = vpop.f32.mrb[0].mxu0
      %v1047 = vadd.f32 0.0, %v1046
      %v1048 = vpop.f32.mrb[0].mxu0
      %v1049 = vpop.f32.mrb[0].mxu0
      %v1050 = vadd.f32 0.0, %v1049
      %v1051 = vpop.f32.mrb[0].mxu0
      %1052 = vdwg.mxu0
      %1053 = vrot.lane.b32.xlu0 %v397, 64
      %v1054 = vpop.permute.xlu0 %1053
      %v1057 = vsel %vm821, %v999, 0
      %1059 = vmatprep.subr.bf16.mxu0 0
      %1060 = vmatpush1.bf16.msra.mxu0 %v1054
      %1061 = vmatprep.subr.bf16.mxu0 0
      %1062 = vmatpush1.bf16.msra.mxu0 0
      %1063 = vmatprep.subr.bf16.mxu0 0
      %1064 = vmatpush1.bf16.msra.mxu0 0
      %1065 = vmatprep.subr.bf16.mxu0 0
      %1066 = vmatpush1.bf16.msra.mxu0 0
      %1067 = vmatprep.subr.bf16.mxu0 0
      %1068 = vmatpush1.bf16.msra.mxu0 0
      %1069 = vmatprep.subr.bf16.mxu0 0
      %1070 = vmatpush1.bf16.msra.mxu0 0
      %1071 = vmatprep.subr.bf16.mxu0 0
      %1072 = vmatpush1.bf16.msra.mxu0 0
      %1073 = vmatprep.subr.bf16.mxu0 0
      %1074 = vmatpush1.bf16.msra.mxu0 0
      %1075 = vmatprep.subr.bf16.mxu0 0
      %1076 = vmatpush1.bf16.msra.mxu0 0
      %1077 = vmatprep.subr.bf16.mxu0 0
      %1078 = vmatpush1.bf16.msra.mxu0 0
      %1079 = vmatprep.subr.bf16.mxu0 0
      %1080 = vmatpush1.bf16.msra.mxu0 0
      %1081 = vmatprep.subr.bf16.mxu0 0
      %1082 = vmatpush1.bf16.msra.mxu0 0
      %1083 = vmatprep.subr.bf16.mxu0 0
      %1084 = vmatpush1.bf16.msra.mxu0 0
      %1085 = vmatprep.subr.bf16.mxu0 0
      %1086 = vmatpush1.bf16.msra.mxu0 0
      %1087 = vmatprep.subr.bf16.mxu0 0
      %1088 = vmatpush1.bf16.msra.mxu0 0
      %1089 = vmatprep.subr.bf16.mxu0 0
      %1090 = vmatpush1.bf16.msra.mxu0 0
      %1091 = vmatprep.mubr.bf16.mxu0 0
      %1092 = vmatmul.mubr.bf16.gmra.mrb[0].mxu0 %v1057
      %v1093 = vpop.f32.mrb[0].mxu0
      %v1094 = vadd.f32 0.0, %v1093
      %v1095 = vpop.f32.mrb[0].mxu0
      %v1096 = vpop.f32.mrb[0].mxu0
      %v1097 = vadd.f32 0.0, %v1096
      %v1098 = vpop.f32.mrb[0].mxu0
      %1099 = vdwg.mxu0
      %1100 = vrot.lane.b32.xlu0 %v398, 64
      %v1101 = vpop.permute.xlu0 %1100
      %v1104 = vsel %vm821, %v1000, 0
      %1106 = vmatprep.subr.bf16.mxu0 0
      %1107 = vmatpush1.bf16.msra.mxu0 %v1101
      %1108 = vmatprep.subr.bf16.mxu0 0
      %1109 = vmatpush1.bf16.msra.mxu0 0
      %1110 = vmatprep.subr.bf16.mxu0 0
      %1111 = vmatpush1.bf16.msra.mxu0 0
      %1112 = vmatprep.subr.bf16.mxu0 0
      %1113 = vmatpush1.bf16.msra.mxu0 0
      %1114 = vmatprep.subr.bf16.mxu0 0
      %1115 = vmatpush1.bf16.msra.mxu0 0
      %1116 = vmatprep.subr.bf16.mxu0 0
      %1117 = vmatpush1.bf16.msra.mxu0 0
      %1118 = vmatprep.subr.bf16.mxu0 0
      %1119 = vmatpush1.bf16.msra.mxu0 0
      %1120 = vmatprep.subr.bf16.mxu0 0
      %1121 = vmatpush1.bf16.msra.mxu0 0
      %1122 = vmatprep.subr.bf16.mxu0 0
      %1123 = vmatpush1.bf16.msra.mxu0 0
      %1124 = vmatprep.subr.bf16.mxu0 0
      %1125 = vmatpush1.bf16.msra.mxu0 0
      %1126 = vmatprep.subr.bf16.mxu0 0
      %1127 = vmatpush1.bf16.msra.mxu0 0
      %1128 = vmatprep.subr.bf16.mxu0 0
      %1129 = vmatpush1.bf16.msra.mxu0 0
      %1130 = vmatprep.subr.bf16.mxu0 0
      %1131 = vmatpush1.bf16.msra.mxu0 0
      %1132 = vmatprep.subr.bf16.mxu0 0
      %1133 = vmatpush1.bf16.msra.mxu0 0
      %1134 = vmatprep.subr.bf16.mxu0 0
      %1135 = vmatpush1.bf16.msra.mxu0 0
      %1136 = vmatprep.subr.bf16.mxu0 0
      %1137 = vmatpush1.bf16.msra.mxu0 0
      %1138 = vmatprep.mubr.bf16.mxu0 0
      %1139 = vmatmul.mubr.bf16.gmra.mrb[0].mxu0 %v1104
      %v1140 = vpop.f32.mrb[0].mxu0
      %v1141 = vadd.f32 0.0, %v1140
      %v1142 = vpop.f32.mrb[0].mxu0
      %v1143 = vpop.f32.mrb[0].mxu0
      %v1144 = vadd.f32 0.0, %v1143
      %v1145 = vpop.f32.mrb[0].mxu0
      %1146 = vdwg.mxu0
      %1147 = vrot.lane.b32.xlu0 %v399, 64
      %v1148 = vpop.permute.xlu0 %1147
      %v1151 = vsel %vm821, %v1001, 0
      %1153 = vmatprep.subr.bf16.mxu0 0
      %1154 = vmatpush1.bf16.msra.mxu0 %v1148
      %1155 = vmatprep.subr.bf16.mxu0 0
      %1156 = vmatpush1.bf16.msra.mxu0 0
      %1157 = vmatprep.subr.bf16.mxu0 0
      %1158 = vmatpush1.bf16.msra.mxu0 0
      %1159 = vmatprep.subr.bf16.mxu0 0
      %1160 = vmatpush1.bf16.msra.mxu0 0
      %1161 = vmatprep.subr.bf16.mxu0 0
      %1162 = vmatpush1.bf16.msra.mxu0 0
      %1163 = vmatprep.subr.bf16.mxu0 0
      %1164 = vmatpush1.bf16.msra.mxu0 0
      %1165 = vmatprep.subr.bf16.mxu0 0
      %1166 = vmatpush1.bf16.msra.mxu0 0
      %1167 = vmatprep.subr.bf16.mxu0 0
      %1168 = vmatpush1.bf16.msra.mxu0 0
      %1169 = vmatprep.subr.bf16.mxu0 0
      %1170 = vmatpush1.bf16.msra.mxu0 0
      %1171 = vmatprep.subr.bf16.mxu0 0
      %1172 = vmatpush1.bf16.msra.mxu0 0
      %1173 = vmatprep.subr.bf16.mxu0 0
      %1174 = vmatpush1.bf16.msra.mxu0 0
      %1175 = vmatprep.subr.bf16.mxu0 0
      %1176 = vmatpush1.bf16.msra.mxu0 0
      %1177 = vmatprep.subr.bf16.mxu0 0
      %1178 = vmatpush1.bf16.msra.mxu0 0
      %1179 = vmatprep.subr.bf16.mxu0 0
      %1180 = vmatpush1.bf16.msra.mxu0 0
      %1181 = vmatprep.subr.bf16.mxu0 0
      %1182 = vmatpush1.bf16.msra.mxu0 0
      %1183 = vmatprep.subr.bf16.mxu0 0
      %1184 = vmatpush1.bf16.msra.mxu0 0
      %1185 = vmatprep.mubr.bf16.mxu0 0
      %1186 = vmatmul.mubr.bf16.gmra.mrb[0].mxu0 %v1151
      %v1187 = vpop.f32.mrb[0].mxu0
      %v1188 = vadd.f32 0.0, %v1187
      %v1189 = vpop.f32.mrb[0].mxu0
      %v1190 = vpop.f32.mrb[0].mxu0
      %v1191 = vadd.f32 0.0, %v1190
      %v1192 = vpop.f32.mrb[0].mxu0
      %1193 = vdwg.mxu0
      %1194 = vrot.lane.b32.xlu0 %v400, 64
      %v1195 = vpop.permute.xlu0 %1194
      %v1198 = vsel %vm821, %v1002, 0
      %1200 = vmatprep.subr.bf16.mxu0 0
      %1201 = vmatpush1.bf16.msra.mxu0 %v1195
      %1202 = vmatprep.subr.bf16.mxu0 0
      %1203 = vmatpush1.bf16.msra.mxu0 0
      %1204 = vmatprep.subr.bf16.mxu0 0
      %1205 = vmatpush1.bf16.msra.mxu0 0
      %1206 = vmatprep.subr.bf16.mxu0 0
      %1207 = vmatpush1.bf16.msra.mxu0 0
      %1208 = vmatprep.subr.bf16.mxu0 0
      %1209 = vmatpush1.bf16.msra.mxu0 0
      %1210 = vmatprep.subr.bf16.mxu0 0
      %1211 = vmatpush1.bf16.msra.mxu0 0
      %1212 = vmatprep.subr.bf16.mxu0 0
      %1213 = vmatpush1.bf16.msra.mxu0 0
      %1214 = vmatprep.subr.bf16.mxu0 0
      %1215 = vmatpush1.bf16.msra.mxu0 0
      %1216 = vmatprep.subr.bf16.mxu0 0
      %1217 = vmatpush1.bf16.msra.mxu0 0
      %1218 = vmatprep.subr.bf16.mxu0 0
      %1219 = vmatpush1.bf16.msra.mxu0 0
      %1220 = vmatprep.subr.bf16.mxu0 0
      %1221 = vmatpush1.bf16.msra.mxu0 0
      %1222 = vmatprep.subr.bf16.mxu0 0
      %1223 = vmatpush1.bf16.msra.mxu0 0
      %1224 = vmatprep.subr.bf16.mxu0 0
      %1225 = vmatpush1.bf16.msra.mxu0 0
      %1226 = vmatprep.subr.bf16.mxu0 0
      %1227 = vmatpush1.bf16.msra.mxu0 0
      %1228 = vmatprep.subr.bf16.mxu0 0
      %1229 = vmatpush1.bf16.msra.mxu0 0
      %1230 = vmatprep.subr.bf16.mxu0 0
      %1231 = vmatpush1.bf16.msra.mxu0 0
      %1232 = vmatprep.mubr.bf16.mxu0 0
      %1233 = vmatmul.mubr.bf16.gmra.mrb[0].mxu0 %v1198
      %v1234 = vpop.f32.mrb[0].mxu0
      %v1235 = vadd.f32 0.0, %v1234
      %v1236 = vpop.f32.mrb[0].mxu0
      %v1237 = vpop.f32.mrb[0].mxu0
      %v1238 = vadd.f32 0.0, %v1237
      %v1239 = vpop.f32.mrb[0].mxu0
      %1240 = vdwg.mxu0
      %1241 = vrot.lane.b32.xlu0 %v401, 64
      %v1242 = vpop.permute.xlu0 %1241
      %v1245 = vsel %vm821, %v1003, 0
      %1247 = vmatprep.subr.bf16.mxu0 0
      %1248 = vmatpush1.bf16.msra.mxu0 %v1242
      %1249 = vmatprep.subr.bf16.mxu0 0
      %1250 = vmatpush1.bf16.msra.mxu0 0
      %1251 = vmatprep.subr.bf16.mxu0 0
      %1252 = vmatpush1.bf16.msra.mxu0 0
      %1253 = vmatprep.subr.bf16.mxu0 0
      %1254 = vmatpush1.bf16.msra.mxu0 0
      %1255 = vmatprep.subr.bf16.mxu0 0
      %1256 = vmatpush1.bf16.msra.mxu0 0
      %1257 = vmatprep.subr.bf16.mxu0 0
      %1258 = vmatpush1.bf16.msra.mxu0 0
      %1259 = vmatprep.subr.bf16.mxu0 0
      %1260 = vmatpush1.bf16.msra.mxu0 0
      %1261 = vmatprep.subr.bf16.mxu0 0
      %1262 = vmatpush1.bf16.msra.mxu0 0
      %1263 = vmatprep.subr.bf16.mxu0 0
      %1264 = vmatpush1.bf16.msra.mxu0 0
      %1265 = vmatprep.subr.bf16.mxu0 0
      %1266 = vmatpush1.bf16.msra.mxu0 0
      %1267 = vmatprep.subr.bf16.mxu0 0
      %1268 = vmatpush1.bf16.msra.mxu0 0
      %1269 = vmatprep.subr.bf16.mxu0 0
      %1270 = vmatpush1.bf16.msra.mxu0 0
      %1271 = vmatprep.subr.bf16.mxu0 0
      %1272 = vmatpush1.bf16.msra.mxu0 0
      %1273 = vmatprep.subr.bf16.mxu0 0
      %1274 = vmatpush1.bf16.msra.mxu0 0
      %1275 = vmatprep.subr.bf16.mxu0 0
      %1276 = vmatpush1.bf16.msra.mxu0 0
      %1277 = vmatprep.subr.bf16.mxu0 0
      %1278 = vmatpush1.bf16.msra.mxu0 0
      %1279 = vmatprep.mubr.bf16.mxu0 0
      %1280 = vmatmul.mubr.bf16.gmra.mrb[0].mxu0 %v1245
      %v1281 = vpop.f32.mrb[0].mxu0
      %v1282 = vadd.f32 0.0, %v1281
      %v1283 = vpop.f32.mrb[0].mxu0
      %v1284 = vpop.f32.mrb[0].mxu0
      %v1285 = vadd.f32 0.0, %v1284
      %v1286 = vpop.f32.mrb[0].mxu0
      %1287 = vdwg.mxu0
      %1288 = vrot.lane.b32.xlu0 %v402, 64
      %v1289 = vpop.permute.xlu0 %1288
      %v1292 = vsel %vm821, %v1004, 0
      %1294 = vmatprep.subr.bf16.mxu0 0
      %1295 = vmatpush1.bf16.msra.mxu0 %v1289
      %1296 = vmatprep.subr.bf16.mxu0 0
      %1297 = vmatpush1.bf16.msra.mxu0 0
      %1298 = vmatprep.subr.bf16.mxu0 0
      %1299 = vmatpush1.bf16.msra.mxu0 0
      %1300 = vmatprep.subr.bf16.mxu0 0
      %1301 = vmatpush1.bf16.msra.mxu0 0
      %1302 = vmatprep.subr.bf16.mxu0 0
      %1303 = vmatpush1.bf16.msra.mxu0 0
      %1304 = vmatprep.subr.bf16.mxu0 0
      %1305 = vmatpush1.bf16.msra.mxu0 0
      %1306 = vmatprep.subr.bf16.mxu0 0
      %1307 = vmatpush1.bf16.msra.mxu0 0
      %1308 = vmatprep.subr.bf16.mxu0 0
      %1309 = vmatpush1.bf16.msra.mxu0 0
      %1310 = vmatprep.subr.bf16.mxu0 0
      %1311 = vmatpush1.bf16.msra.mxu0 0
      %1312 = vmatprep.subr.bf16.mxu0 0
      %1313 = vmatpush1.bf16.msra.mxu0 0
      %1314 = vmatprep.subr.bf16.mxu0 0
      %1315 = vmatpush1.bf16.msra.mxu0 0
      %1316 = vmatprep.subr.bf16.mxu0 0
      %1317 = vmatpush1.bf16.msra.mxu0 0
      %1318 = vmatprep.subr.bf16.mxu0 0
      %1319 = vmatpush1.bf16.msra.mxu0 0
      %1320 = vmatprep.subr.bf16.mxu0 0
      %1321 = vmatpush1.bf16.msra.mxu0 0
      %1322 = vmatprep.subr.bf16.mxu0 0
      %1323 = vmatpush1.bf16.msra.mxu0 0
      %1324 = vmatprep.subr.bf16.mxu0 0
      %1325 = vmatpush1.bf16.msra.mxu0 0
      %1326 = vmatprep.mubr.bf16.mxu0 0
      %1327 = vmatmul.mubr.bf16.gmra.mrb[0].mxu0 %v1292
      %v1328 = vpop.f32.mrb[0].mxu0
      %v1329 = vadd.f32 0.0, %v1328
      %v1330 = vpop.f32.mrb[0].mxu0
      %v1331 = vpop.f32.mrb[0].mxu0
      %v1332 = vadd.f32 0.0, %v1331
      %v1333 = vpop.f32.mrb[0].mxu0
      %1334 = vdwg.mxu0
      %1335 = vrot.lane.b32.xlu0 %v403, 64
      %v1336 = vpop.permute.xlu0 %1335
      %v1339 = vsel %vm821, %v1005, 0
      %1341 = vmatprep.subr.bf16.mxu0 0
      %1342 = vmatpush1.bf16.msra.mxu0 %v1336
      %1343 = vmatprep.subr.bf16.mxu0 0
      %1344 = vmatpush1.bf16.msra.mxu0 0
      %1345 = vmatprep.subr.bf16.mxu0 0
      %1346 = vmatpush1.bf16.msra.mxu0 0
      %1347 = vmatprep.subr.bf16.mxu0 0
      %1348 = vmatpush1.bf16.msra.mxu0 0
      %1349 = vmatprep.subr.bf16.mxu0 0
      %1350 = vmatpush1.bf16.msra.mxu0 0
      %1351 = vmatprep.subr.bf16.mxu0 0
      %1352 = vmatpush1.bf16.msra.mxu0 0
      %1353 = vmatprep.subr.bf16.mxu0 0
      %1354 = vmatpush1.bf16.msra.mxu0 0
      %1355 = vmatprep.subr.bf16.mxu0 0
      %1356 = vmatpush1.bf16.msra.mxu0 0
      %1357 = vmatprep.subr.bf16.mxu0 0
      %1358 = vmatpush1.bf16.msra.mxu0 0
      %1359 = vmatprep.subr.bf16.mxu0 0
      %1360 = vmatpush1.bf16.msra.mxu0 0
      %1361 = vmatprep.subr.bf16.mxu0 0
      %1362 = vmatpush1.bf16.msra.mxu0 0
      %1363 = vmatprep.subr.bf16.mxu0 0
      %1364 = vmatpush1.bf16.msra.mxu0 0
      %1365 = vmatprep.subr.bf16.mxu0 0
      %1366 = vmatpush1.bf16.msra.mxu0 0
      %1367 = vmatprep.subr.bf16.mxu0 0
      %1368 = vmatpush1.bf16.msra.mxu0 0
      %1369 = vmatprep.subr.bf16.mxu0 0
      %1370 = vmatpush1.bf16.msra.mxu0 0
      %1371 = vmatprep.subr.bf16.mxu0 0
      %1372 = vmatpush1.bf16.msra.mxu0 0
      %1373 = vmatprep.mubr.bf16.mxu0 0
      %1374 = vmatmul.mubr.bf16.gmra.mrb[0].mxu0 %v1339
      %v1375 = vpop.f32.mrb[0].mxu0
      %v1376 = vadd.f32 0.0, %v1375
      %v1377 = vpop.f32.mrb[0].mxu0
      %v1378 = vpop.f32.mrb[0].mxu0
      %v1379 = vadd.f32 0.0, %v1378
      %v1380 = vpop.f32.mrb[0].mxu0
      %1381 = vdwg.mxu0
      %1382 = vrot.lane.b32.xlu0 %v396, 120
      %v1383 = vpop.permute.xlu0 %1382
      %1384 = vrot.lane.b32.xlu0 %v396, 88
      %v1385 = vpop.permute.xlu0 %1384
      %v1387 = vsel %vm407, %v1383, 0
      %v1390 = vsel %vm407, %v1385, 0
      %1392 = vmatprep.subr.bf16.mxu0 0
      %1393 = vmatpush1.bf16.xpose.msra.mxu0 %v1390
      %1394 = vmatprep.subr.bf16.mxu0 0
      %1395 = vmatpush1.bf16.xpose.msra.mxu0 0
      %1396 = vmatprep.subr.bf16.mxu0 0
      %1397 = vmatpush1.bf16.xpose.msra.mxu0 0
      %1398 = vmatprep.subr.bf16.mxu0 0
      %1399 = vmatpush1.bf16.xpose.msra.mxu0 0
      %1400 = vmatprep.subr.bf16.mxu0 0
      %1401 = vmatpush1.bf16.xpose.msra.mxu0 0
      %1402 = vmatprep.subr.bf16.mxu0 0
      %1403 = vmatpush1.bf16.xpose.msra.mxu0 0
      %1404 = vmatprep.subr.bf16.mxu0 0
      %1405 = vmatpush1.bf16.xpose.msra.mxu0 0
      %1406 = vmatprep.subr.bf16.mxu0 0
      %1407 = vmatpush1.bf16.xpose.msra.mxu0 0
      %1408 = vmatprep.subr.bf16.mxu0 0
      %1409 = vmatpush1.bf16.xpose.msra.mxu0 0
      %1410 = vmatprep.subr.bf16.mxu0 0
      %1411 = vmatpush1.bf16.xpose.msra.mxu0 0
      %1412 = vmatprep.subr.bf16.mxu0 0
      %1413 = vmatpush1.bf16.xpose.msra.mxu0 0
      %1414 = vmatprep.subr.bf16.mxu0 0
      %1415 = vmatpush1.bf16.xpose.msra.mxu0 0
      %1416 = vmatprep.subr.bf16.mxu0 0
      %1417 = vmatpush1.bf16.xpose.msra.mxu0 0
      %1418 = vmatprep.subr.bf16.mxu0 0
      %1419 = vmatpush1.bf16.xpose.msra.mxu0 0
      %1420 = vmatprep.subr.bf16.mxu0 0
      %1421 = vmatpush1.bf16.xpose.msra.mxu0 0
      %1422 = vmatprep.subr.bf16.mxu0 0
      %1423 = vmatpush1.bf16.xpose.msra.mxu0 0
      %1424 = vmatprep.mubr.bf16.mxu0 0
      %1425 = vmatmul.mubr.bf16.gmra.mrb[0].mxu0 %v1387
      %v1426 = vpop.f32.mrb[0].mxu0
      %v1427 = vadd.f32 0.0, %v1426
      %v1428 = vpop.f32.mrb[0].mxu0
      %v1429 = vpop.f32.mrb[0].mxu0
      %v1430 = vadd.f32 0.0, %v1429
      %v1431 = vpop.f32.mrb[0].mxu0
      %1432 = vdwg.mxu0
      %1433 = vrot.lane.b32.xlu0 %v397, 120
      %v1434 = vpop.permute.xlu0 %1433
      %1435 = vrot.lane.b32.xlu0 %v397, 88
      %v1436 = vpop.permute.xlu0 %1435
      %v1438 = vsel %vm407, %v1434, 0
      %v1441 = vsel %vm407, %v1436, 0
      %1443 = vmatprep.subr.bf16.mxu0 0
      %1444 = vmatpush1.bf16.xpose.msra.mxu0 %v1441
      %1445 = vmatprep.subr.bf16.mxu0 0
      %1446 = vmatpush1.bf16.xpose.msra.mxu0 0
      %1447 = vmatprep.subr.bf16.mxu0 0
      %1448 = vmatpush1.bf16.xpose.msra.mxu0 0
      %1449 = vmatprep.subr.bf16.mxu0 0
      %1450 = vmatpush1.bf16.xpose.msra.mxu0 0
      %1451 = vmatprep.subr.bf16.mxu0 0
      %1452 = vmatpush1.bf16.xpose.msra.mxu0 0
      %1453 = vmatprep.subr.bf16.mxu0 0
      %1454 = vmatpush1.bf16.xpose.msra.mxu0 0
      %1455 = vmatprep.subr.bf16.mxu0 0
      %1456 = vmatpush1.bf16.xpose.msra.mxu0 0
      %1457 = vmatprep.subr.bf16.mxu0 0
      %1458 = vmatpush1.bf16.xpose.msra.mxu0 0
      %1459 = vmatprep.subr.bf16.mxu0 0
      %1460 = vmatpush1.bf16.xpose.msra.mxu0 0
      %1461 = vmatprep.subr.bf16.mxu0 0
      %1462 = vmatpush1.bf16.xpose.msra.mxu0 0
      %1463 = vmatprep.subr.bf16.mxu0 0
      %1464 = vmatpush1.bf16.xpose.msra.mxu0 0
      %1465 = vmatprep.subr.bf16.mxu0 0
      %1466 = vmatpush1.bf16.xpose.msra.mxu0 0
      %1467 = vmatprep.subr.bf16.mxu0 0
      %1468 = vmatpush1.bf16.xpose.msra.mxu0 0
      %1469 = vmatprep.subr.bf16.mxu0 0
      %1470 = vmatpush1.bf16.xpose.msra.mxu0 0
      %1471 = vmatprep.subr.bf16.mxu0 0
      %1472 = vmatpush1.bf16.xpose.msra.mxu0 0
      %1473 = vmatprep.subr.bf16.mxu0 0
      %1474 = vmatpush1.bf16.xpose.msra.mxu0 0
      %1475 = vmatprep.mubr.bf16.mxu0 0
      %1476 = vmatmul.mubr.bf16.gmra.mrb[0].mxu0 %v1438
      %v1477 = vpop.f32.mrb[0].mxu0
      %v1478 = vadd.f32 0.0, %v1477
      %v1479 = vpop.f32.mrb[0].mxu0
      %v1480 = vpop.f32.mrb[0].mxu0
      %v1481 = vadd.f32 0.0, %v1480
      %v1482 = vpop.f32.mrb[0].mxu0
      %1483 = vdwg.mxu0
      %1484 = vrot.lane.b32.xlu0 %v398, 120
      %v1485 = vpop.permute.xlu0 %1484
      %1486 = vrot.lane.b32.xlu0 %v398, 88
      %v1487 = vpop.permute.xlu0 %1486
      %v1489 = vsel %vm407, %v1485, 0
      %v1492 = vsel %vm407, %v1487, 0
      %1494 = vmatprep.subr.bf16.mxu0 0
      %1495 = vmatpush1.bf16.xpose.msra.mxu0 %v1492
      %1496 = vmatprep.subr.bf16.mxu0 0
      %1497 = vmatpush1.bf16.xpose.msra.mxu0 0
      %1498 = vmatprep.subr.bf16.mxu0 0
      %1499 = vmatpush1.bf16.xpose.msra.mxu0 0
      %1500 = vmatprep.subr.bf16.mxu0 0
      %1501 = vmatpush1.bf16.xpose.msra.mxu0 0
      %1502 = vmatprep.subr.bf16.mxu0 0
      %1503 = vmatpush1.bf16.xpose.msra.mxu0 0
      %1504 = vmatprep.subr.bf16.mxu0 0
      %1505 = vmatpush1.bf16.xpose.msra.mxu0 0
      %1506 = vmatprep.subr.bf16.mxu0 0
      %1507 = vmatpush1.bf16.xpose.msra.mxu0 0
      %1508 = vmatprep.subr.bf16.mxu0 0
      %1509 = vmatpush1.bf16.xpose.msra.mxu0 0
      %1510 = vmatprep.subr.bf16.mxu0 0
      %1511 = vmatpush1.bf16.xpose.msra.mxu0 0
      %1512 = vmatprep.subr.bf16.mxu0 0
      %1513 = vmatpush1.bf16.xpose.msra.mxu0 0
      %1514 = vmatprep.subr.bf16.mxu0 0
      %1515 = vmatpush1.bf16.xpose.msra.mxu0 0
      %1516 = vmatprep.subr.bf16.mxu0 0
      %1517 = vmatpush1.bf16.xpose.msra.mxu0 0
      %1518 = vmatprep.subr.bf16.mxu0 0
      %1519 = vmatpush1.bf16.xpose.msra.mxu0 0
      %1520 = vmatprep.subr.bf16.mxu0 0
      %1521 = vmatpush1.bf16.xpose.msra.mxu0 0
      %1522 = vmatprep.subr.bf16.mxu0 0
      %1523 = vmatpush1.bf16.xpose.msra.mxu0 0
      %1524 = vmatprep.subr.bf16.mxu0 0
      %1525 = vmatpush1.bf16.xpose.msra.mxu0 0
      %1526 = vmatprep.mubr.bf16.mxu0 0
      %1527 = vmatmul.mubr.bf16.gmra.mrb[0].mxu0 %v1489
      %v1528 = vpop.f32.mrb[0].mxu0
      %v1529 = vadd.f32 0.0, %v1528
      %v1530 = vpop.f32.mrb[0].mxu0
      %v1531 = vpop.f32.mrb[0].mxu0
      %v1532 = vadd.f32 0.0, %v1531
      %v1533 = vpop.f32.mrb[0].mxu0
      %1534 = vdwg.mxu0
      %1535 = vrot.lane.b32.xlu0 %v399, 120
      %v1536 = vpop.permute.xlu0 %1535
      %1537 = vrot.lane.b32.xlu0 %v399, 88
      %v1538 = vpop.permute.xlu0 %1537
      %v1540 = vsel %vm407, %v1536, 0
      %v1543 = vsel %vm407, %v1538, 0
      %1545 = vmatprep.subr.bf16.mxu0 0
      %1546 = vmatpush1.bf16.xpose.msra.mxu0 %v1543
      %1547 = vmatprep.subr.bf16.mxu0 0
      %1548 = vmatpush1.bf16.xpose.msra.mxu0 0
      %1549 = vmatprep.subr.bf16.mxu0 0
      %1550 = vmatpush1.bf16.xpose.msra.mxu0 0
      %1551 = vmatprep.subr.bf16.mxu0 0
      %1552 = vmatpush1.bf16.xpose.msra.mxu0 0
      %1553 = vmatprep.subr.bf16.mxu0 0
      %1554 = vmatpush1.bf16.xpose.msra.mxu0 0
      %1555 = vmatprep.subr.bf16.mxu0 0
      %1556 = vmatpush1.bf16.xpose.msra.mxu0 0
      %1557 = vmatprep.subr.bf16.mxu0 0
      %1558 = vmatpush1.bf16.xpose.msra.mxu0 0
      %1559 = vmatprep.subr.bf16.mxu0 0
      %1560 = vmatpush1.bf16.xpose.msra.mxu0 0
      %1561 = vmatprep.subr.bf16.mxu0 0
      %1562 = vmatpush1.bf16.xpose.msra.mxu0 0
      %1563 = vmatprep.subr.bf16.mxu0 0
      %1564 = vmatpush1.bf16.xpose.msra.mxu0 0
      %1565 = vmatprep.subr.bf16.mxu0 0
      %1566 = vmatpush1.bf16.xpose.msra.mxu0 0
      %1567 = vmatprep.subr.bf16.mxu0 0
      %1568 = vmatpush1.bf16.xpose.msra.mxu0 0
      %1569 = vmatprep.subr.bf16.mxu0 0
      %1570 = vmatpush1.bf16.xpose.msra.mxu0 0
      %1571 = vmatprep.subr.bf16.mxu0 0
      %1572 = vmatpush1.bf16.xpose.msra.mxu0 0
      %1573 = vmatprep.subr.bf16.mxu0 0
      %1574 = vmatpush1.bf16.xpose.msra.mxu0 0
      %1575 = vmatprep.subr.bf16.mxu0 0
      %1576 = vmatpush1.bf16.xpose.msra.mxu0 0
      %1577 = vmatprep.mubr.bf16.mxu0 0
      %1578 = vmatmul.mubr.bf16.gmra.mrb[0].mxu0 %v1540
      %v1579 = vpop.f32.mrb[0].mxu0
      %v1580 = vadd.f32 0.0, %v1579
      %v1581 = vpop.f32.mrb[0].mxu0
      %v1582 = vpop.f32.mrb[0].mxu0
      %v1583 = vadd.f32 0.0, %v1582
      %v1584 = vpop.f32.mrb[0].mxu0
      %1585 = vdwg.mxu0
      %1586 = vrot.lane.b32.xlu0 %v400, 120
      %v1587 = vpop.permute.xlu0 %1586
      %1588 = vrot.lane.b32.xlu0 %v400, 88
      %v1589 = vpop.permute.xlu0 %1588
      %v1591 = vsel %vm407, %v1587, 0
      %v1594 = vsel %vm407, %v1589, 0
      %1596 = vmatprep.subr.bf16.mxu0 0
      %1597 = vmatpush1.bf16.xpose.msra.mxu0 %v1594
      %1598 = vmatprep.subr.bf16.mxu0 0
      %1599 = vmatpush1.bf16.xpose.msra.mxu0 0
      %1600 = vmatprep.subr.bf16.mxu0 0
      %1601 = vmatpush1.bf16.xpose.msra.mxu0 0
      %1602 = vmatprep.subr.bf16.mxu0 0
      %1603 = vmatpush1.bf16.xpose.msra.mxu0 0
      %1604 = vmatprep.subr.bf16.mxu0 0
      %1605 = vmatpush1.bf16.xpose.msra.mxu0 0
      %1606 = vmatprep.subr.bf16.mxu0 0
      %1607 = vmatpush1.bf16.xpose.msra.mxu0 0
      %1608 = vmatprep.subr.bf16.mxu0 0
      %1609 = vmatpush1.bf16.xpose.msra.mxu0 0
      %1610 = vmatprep.subr.bf16.mxu0 0
      %1611 = vmatpush1.bf16.xpose.msra.mxu0 0
      %1612 = vmatprep.subr.bf16.mxu0 0
      %1613 = vmatpush1.bf16.xpose.msra.mxu0 0
      %1614 = vmatprep.subr.bf16.mxu0 0
      %1615 = vmatpush1.bf16.xpose.msra.mxu0 0
      %1616 = vmatprep.subr.bf16.mxu0 0
      %1617 = vmatpush1.bf16.xpose.msra.mxu0 0
      %1618 = vmatprep.subr.bf16.mxu0 0
      %1619 = vmatpush1.bf16.xpose.msra.mxu0 0
      %1620 = vmatprep.subr.bf16.mxu0 0
      %1621 = vmatpush1.bf16.xpose.msra.mxu0 0
      %1622 = vmatprep.subr.bf16.mxu0 0
      %1623 = vmatpush1.bf16.xpose.msra.mxu0 0
      %1624 = vmatprep.subr.bf16.mxu0 0
      %1625 = vmatpush1.bf16.xpose.msra.mxu0 0
      %1626 = vmatprep.subr.bf16.mxu0 0
      %1627 = vmatpush1.bf16.xpose.msra.mxu0 0
      %1628 = vmatprep.mubr.bf16.mxu0 0
      %1629 = vmatmul.mubr.bf16.gmra.mrb[0].mxu0 %v1591
      %v1630 = vpop.f32.mrb[0].mxu0
      %v1631 = vadd.f32 0.0, %v1630
      %v1632 = vpop.f32.mrb[0].mxu0
      %v1633 = vpop.f32.mrb[0].mxu0
      %v1634 = vadd.f32 0.0, %v1633
      %v1635 = vpop.f32.mrb[0].mxu0
      %1636 = vdwg.mxu0
      %1637 = vrot.lane.b32.xlu0 %v401, 120
      %v1638 = vpop.permute.xlu0 %1637
      %1639 = vrot.lane.b32.xlu0 %v401, 88
      %v1640 = vpop.permute.xlu0 %1639
      %v1642 = vsel %vm407, %v1638, 0
      %v1645 = vsel %vm407, %v1640, 0
      %1647 = vmatprep.subr.bf16.mxu0 0
      %1648 = vmatpush1.bf16.xpose.msra.mxu0 %v1645
      %1649 = vmatprep.subr.bf16.mxu0 0
      %1650 = vmatpush1.bf16.xpose.msra.mxu0 0
      %1651 = vmatprep.subr.bf16.mxu0 0
      %1652 = vmatpush1.bf16.xpose.msra.mxu0 0
      %1653 = vmatprep.subr.bf16.mxu0 0
      %1654 = vmatpush1.bf16.xpose.msra.mxu0 0
      %1655 = vmatprep.subr.bf16.mxu0 0
      %1656 = vmatpush1.bf16.xpose.msra.mxu0 0
      %1657 = vmatprep.subr.bf16.mxu0 0
      %1658 = vmatpush1.bf16.xpose.msra.mxu0 0
      %1659 = vmatprep.subr.bf16.mxu0 0
      %1660 = vmatpush1.bf16.xpose.msra.mxu0 0
      %1661 = vmatprep.subr.bf16.mxu0 0
      %1662 = vmatpush1.bf16.xpose.msra.mxu0 0
      %1663 = vmatprep.subr.bf16.mxu0 0
      %1664 = vmatpush1.bf16.xpose.msra.mxu0 0
      %1665 = vmatprep.subr.bf16.mxu0 0
      %1666 = vmatpush1.bf16.xpose.msra.mxu0 0
      %1667 = vmatprep.subr.bf16.mxu0 0
      %1668 = vmatpush1.bf16.xpose.msra.mxu0 0
      %1669 = vmatprep.subr.bf16.mxu0 0
      %1670 = vmatpush1.bf16.xpose.msra.mxu0 0
      %1671 = vmatprep.subr.bf16.mxu0 0
      %1672 = vmatpush1.bf16.xpose.msra.mxu0 0
      %1673 = vmatprep.subr.bf16.mxu0 0
      %1674 = vmatpush1.bf16.xpose.msra.mxu0 0
      %1675 = vmatprep.subr.bf16.mxu0 0
      %1676 = vmatpush1.bf16.xpose.msra.mxu0 0
      %1677 = vmatprep.subr.bf16.mxu0 0
      %1678 = vmatpush1.bf16.xpose.msra.mxu0 0
      %1679 = vmatprep.mubr.bf16.mxu0 0
      %1680 = vmatmul.mubr.bf16.gmra.mrb[0].mxu0 %v1642
      %v1681 = vpop.f32.mrb[0].mxu0
      %v1682 = vadd.f32 0.0, %v1681
      %v1683 = vpop.f32.mrb[0].mxu0
      %v1684 = vpop.f32.mrb[0].mxu0
      %v1685 = vadd.f32 0.0, %v1684
      %v1686 = vpop.f32.mrb[0].mxu0
      %1687 = vdwg.mxu0
      %1688 = vrot.lane.b32.xlu0 %v402, 120
      %v1689 = vpop.permute.xlu0 %1688
      %1690 = vrot.lane.b32.xlu0 %v402, 88
      %v1691 = vpop.permute.xlu0 %1690
      %v1693 = vsel %vm407, %v1689, 0
      %v1696 = vsel %vm407, %v1691, 0
      %1698 = vmatprep.subr.bf16.mxu0 0
      %1699 = vmatpush1.bf16.xpose.msra.mxu0 %v1696
      %1700 = vmatprep.subr.bf16.mxu0 0
      %1701 = vmatpush1.bf16.xpose.msra.mxu0 0
      %1702 = vmatprep.subr.bf16.mxu0 0
      %1703 = vmatpush1.bf16.xpose.msra.mxu0 0
      %1704 = vmatprep.subr.bf16.mxu0 0
      %1705 = vmatpush1.bf16.xpose.msra.mxu0 0
      %1706 = vmatprep.subr.bf16.mxu0 0
      %1707 = vmatpush1.bf16.xpose.msra.mxu0 0
      %1708 = vmatprep.subr.bf16.mxu0 0
      %1709 = vmatpush1.bf16.xpose.msra.mxu0 0
      %1710 = vmatprep.subr.bf16.mxu0 0
      %1711 = vmatpush1.bf16.xpose.msra.mxu0 0
      %1712 = vmatprep.subr.bf16.mxu0 0
      %1713 = vmatpush1.bf16.xpose.msra.mxu0 0
      %1714 = vmatprep.subr.bf16.mxu0 0
      %1715 = vmatpush1.bf16.xpose.msra.mxu0 0
      %1716 = vmatprep.subr.bf16.mxu0 0
      %1717 = vmatpush1.bf16.xpose.msra.mxu0 0
      %1718 = vmatprep.subr.bf16.mxu0 0
      %1719 = vmatpush1.bf16.xpose.msra.mxu0 0
      %1720 = vmatprep.subr.bf16.mxu0 0
      %1721 = vmatpush1.bf16.xpose.msra.mxu0 0
      %1722 = vmatprep.subr.bf16.mxu0 0
      %1723 = vmatpush1.bf16.xpose.msra.mxu0 0
      %1724 = vmatprep.subr.bf16.mxu0 0
      %1725 = vmatpush1.bf16.xpose.msra.mxu0 0
      %1726 = vmatprep.subr.bf16.mxu0 0
      %1727 = vmatpush1.bf16.xpose.msra.mxu0 0
      %1728 = vmatprep.subr.bf16.mxu0 0
      %1729 = vmatpush1.bf16.xpose.msra.mxu0 0
      %1730 = vmatprep.mubr.bf16.mxu0 0
      %1731 = vmatmul.mubr.bf16.gmra.mrb[0].mxu0 %v1693
      %v1732 = vpop.f32.mrb[0].mxu0
      %v1733 = vadd.f32 0.0, %v1732
      %v1734 = vpop.f32.mrb[0].mxu0
      %v1735 = vpop.f32.mrb[0].mxu0
      %v1736 = vadd.f32 0.0, %v1735
      %v1737 = vpop.f32.mrb[0].mxu0
      %1738 = vdwg.mxu0
      %1739 = vrot.lane.b32.xlu0 %v403, 120
      %v1740 = vpop.permute.xlu0 %1739
      %1741 = vrot.lane.b32.xlu0 %v403, 88
      %v1742 = vpop.permute.xlu0 %1741
      %v1744 = vsel %vm407, %v1740, 0
      %v1747 = vsel %vm407, %v1742, 0
      %1749 = vmatprep.subr.bf16.mxu0 0
      %1750 = vmatpush1.bf16.xpose.msra.mxu0 %v1747
      %1751 = vmatprep.subr.bf16.mxu0 0
      %1752 = vmatpush1.bf16.xpose.msra.mxu0 0
      %1753 = vmatprep.subr.bf16.mxu0 0
      %1754 = vmatpush1.bf16.xpose.msra.mxu0 0
      %1755 = vmatprep.subr.bf16.mxu0 0
      %1756 = vmatpush1.bf16.xpose.msra.mxu0 0
      %1757 = vmatprep.subr.bf16.mxu0 0
      %1758 = vmatpush1.bf16.xpose.msra.mxu0 0
      %1759 = vmatprep.subr.bf16.mxu0 0
      %1760 = vmatpush1.bf16.xpose.msra.mxu0 0
      %1761 = vmatprep.subr.bf16.mxu0 0
      %1762 = vmatpush1.bf16.xpose.msra.mxu0 0
      %1763 = vmatprep.subr.bf16.mxu0 0
      %1764 = vmatpush1.bf16.xpose.msra.mxu0 0
      %1765 = vmatprep.subr.bf16.mxu0 0
      %1766 = vmatpush1.bf16.xpose.msra.mxu0 0
      %1767 = vmatprep.subr.bf16.mxu0 0
      %1768 = vmatpush1.bf16.xpose.msra.mxu0 0
      %1769 = vmatprep.subr.bf16.mxu0 0
      %1770 = vmatpush1.bf16.xpose.msra.mxu0 0
      %1771 = vmatprep.subr.bf16.mxu0 0
      %1772 = vmatpush1.bf16.xpose.msra.mxu0 0
      %1773 = vmatprep.subr.bf16.mxu0 0
      %1774 = vmatpush1.bf16.xpose.msra.mxu0 0
      %1775 = vmatprep.subr.bf16.mxu0 0
      %1776 = vmatpush1.bf16.xpose.msra.mxu0 0
      %1777 = vmatprep.subr.bf16.mxu0 0
      %1778 = vmatpush1.bf16.xpose.msra.mxu0 0
      %1779 = vmatprep.subr.bf16.mxu0 0
      %1780 = vmatpush1.bf16.xpose.msra.mxu0 0
      %1781 = vmatprep.mubr.bf16.mxu0 0
      %1782 = vmatmul.mubr.bf16.gmra.mrb[0].mxu0 %v1744
      %v1783 = vpop.f32.mrb[0].mxu0
      %v1784 = vadd.f32 0.0, %v1783
      %v1785 = vpop.f32.mrb[0].mxu0
      %v1786 = vpop.f32.mrb[0].mxu0
      %v1787 = vadd.f32 0.0, %v1786
      %v1788 = vpop.f32.mrb[0].mxu0
      %1789 = vdwg.mxu0
      %v1790 = vmul.f32 %v1427, 0.35355338
      %v1791 = vmul.f32 %v1430, 0.35355338
      %v1792 = vmul.f32 %v1478, 0.35355338
      %v1793 = vmul.f32 %v1481, 0.35355338
      %v1794 = vmul.f32 %v1529, 0.35355338
      %v1795 = vmul.f32 %v1532, 0.35355338
      %v1796 = vmul.f32 %v1580, 0.35355338
      %v1797 = vmul.f32 %v1583, 0.35355338
      %v1798 = vmul.f32 %v1631, 0.35355338
      %v1799 = vmul.f32 %v1634, 0.35355338
      %v1800 = vmul.f32 %v1682, 0.35355338
      %v1801 = vmul.f32 %v1685, 0.35355338
      %v1802 = vmul.f32 %v1733, 0.35355338
      %v1803 = vmul.f32 %v1736, 0.35355338
      %v1804 = vmul.f32 %v1784, 0.35355338
      %v1805 = vmul.f32 %v1787, 0.35355338
      %v1806 = vsel %vm821, %v1790, -inf
      %1807 = vmax.xlane.f32.xlu0 %v1806
      %v1808 = vpop.xlane.xlu0 %1807
      %v1809 = vsel %vm821, %v1791, -inf
      %1810 = vmax.xlane.f32.xlu0 %v1809
      %v1811 = vpop.xlane.xlu0 %1810
      %v1812 = vsel %vm821, %v1792, -inf
      %1813 = vmax.xlane.f32.xlu0 %v1812
      %v1814 = vpop.xlane.xlu0 %1813
      %v1815 = vsel %vm821, %v1793, -inf
      %1816 = vmax.xlane.f32.xlu0 %v1815
      %v1817 = vpop.xlane.xlu0 %1816
      %v1818 = vsel %vm821, %v1794, -inf
      %1819 = vmax.xlane.f32.xlu0 %v1818
      %v1820 = vpop.xlane.xlu0 %1819
      %v1821 = vsel %vm821, %v1795, -inf
      %1822 = vmax.xlane.f32.xlu0 %v1821
      %v1823 = vpop.xlane.xlu0 %1822
      %v1824 = vsel %vm821, %v1796, -inf
      %1825 = vmax.xlane.f32.xlu0 %v1824
      %v1826 = vpop.xlane.xlu0 %1825
      %v1827 = vsel %vm821, %v1797, -inf
      %1828 = vmax.xlane.f32.xlu0 %v1827
      %v1829 = vpop.xlane.xlu0 %1828
      %v1830 = vsel %vm821, %v1798, -inf
      %1831 = vmax.xlane.f32.xlu0 %v1830
      %v1832 = vpop.xlane.xlu0 %1831
      %v1833 = vsel %vm821, %v1799, -inf
      %1834 = vmax.xlane.f32.xlu0 %v1833
      %v1835 = vpop.xlane.xlu0 %1834
      %v1836 = vsel %vm821, %v1800, -inf
      %1837 = vmax.xlane.f32.xlu0 %v1836
      %v1838 = vpop.xlane.xlu0 %1837
      %v1839 = vsel %vm821, %v1801, -inf
      %1840 = vmax.xlane.f32.xlu0 %v1839
      %v1841 = vpop.xlane.xlu0 %1840
      %v1842 = vsel %vm821, %v1802, -inf
      %1843 = vmax.xlane.f32.xlu0 %v1842
      %v1844 = vpop.xlane.xlu0 %1843
      %v1845 = vsel %vm821, %v1803, -inf
      %1846 = vmax.xlane.f32.xlu0 %v1845
      %v1847 = vpop.xlane.xlu0 %1846
      %v1848 = vsel %vm821, %v1804, -inf
      %1849 = vmax.xlane.f32.xlu0 %v1848
      %v1850 = vpop.xlane.xlu0 %1849
      %v1851 = vsel %vm821, %v1805, -inf
      %1852 = vmax.xlane.f32.xlu0 %v1851
      %v1853 = vpop.xlane.xlu0 %1852
      %v1854 = vsub.f32 %v1790, %v1808
      %v1855 = vsub.f32 %v1791, %v1811
      %v1856 = vsub.f32 %v1792, %v1814
      %v1857 = vsub.f32 %v1793, %v1817
      %v1858 = vsub.f32 %v1794, %v1820
      %v1859 = vsub.f32 %v1795, %v1823
      %v1860 = vsub.f32 %v1796, %v1826
      %v1861 = vsub.f32 %v1797, %v1829
      %v1862 = vsub.f32 %v1798, %v1832
      %v1863 = vsub.f32 %v1799, %v1835
      %v1864 = vsub.f32 %v1800, %v1838
      %v1865 = vsub.f32 %v1801, %v1841
      %v1866 = vsub.f32 %v1802, %v1844
      %v1867 = vsub.f32 %v1803, %v1847
      %v1868 = vsub.f32 %v1804, %v1850
      %v1869 = vsub.f32 %v1805, %v1853
      %v1870 = vmul.f32 %v1854, 1.442695
      %v1871 = vpow.pop %v1870
      %v1872 = vmul.f32 %v1855, 1.442695
      %v1873 = vpow.pop %v1872
      %v1874 = vmul.f32 %v1856, 1.442695
      %v1875 = vpow.pop %v1874
      %v1876 = vmul.f32 %v1857, 1.442695
      %v1877 = vpow.pop %v1876
      %v1878 = vmul.f32 %v1858, 1.442695
      %v1879 = vpow.pop %v1878
      %v1880 = vmul.f32 %v1859, 1.442695
      %v1881 = vpow.pop %v1880
      %v1882 = vmul.f32 %v1860, 1.442695
      %v1883 = vpow.pop %v1882
      %v1884 = vmul.f32 %v1861, 1.442695
      %v1885 = vpow.pop %v1884
      %v1886 = vmul.f32 %v1862, 1.442695
      %v1887 = vpow.pop %v1886
      %v1888 = vmul.f32 %v1863, 1.442695
      %v1889 = vpow.pop %v1888
      %v1890 = vmul.f32 %v1864, 1.442695
      %v1891 = vpow.pop %v1890
      %v1892 = vmul.f32 %v1865, 1.442695
      %v1893 = vpow.pop %v1892
      %v1894 = vmul.f32 %v1866, 1.442695
      %v1895 = vpow.pop %v1894
      %v1896 = vmul.f32 %v1867, 1.442695
      %v1897 = vpow.pop %v1896
      %v1898 = vmul.f32 %v1868, 1.442695
      %v1899 = vpow.pop %v1898
      %v1900 = vmul.f32 %v1869, 1.442695
      %v1901 = vpow.pop %v1900
      %v1902 = vsel %vm821, %v1871, 0.0
      %1903 = vadd.xlane.f32.xlu0 %v1902
      %v1904 = vpop.xlane.xlu0 %1903
      %v1905 = vsel %vm821, %v1873, 0.0
      %1906 = vadd.xlane.f32.xlu0 %v1905
      %v1907 = vpop.xlane.xlu0 %1906
      %v1908 = vsel %vm821, %v1875, 0.0
      %1909 = vadd.xlane.f32.xlu0 %v1908
      %v1910 = vpop.xlane.xlu0 %1909
      %v1911 = vsel %vm821, %v1877, 0.0
      %1912 = vadd.xlane.f32.xlu0 %v1911
      %v1913 = vpop.xlane.xlu0 %1912
      %v1914 = vsel %vm821, %v1879, 0.0
      %1915 = vadd.xlane.f32.xlu0 %v1914
      %v1916 = vpop.xlane.xlu0 %1915
      %v1917 = vsel %vm821, %v1881, 0.0
      %1918 = vadd.xlane.f32.xlu0 %v1917
      %v1919 = vpop.xlane.xlu0 %1918
      %v1920 = vsel %vm821, %v1883, 0.0
      %1921 = vadd.xlane.f32.xlu0 %v1920
      %v1922 = vpop.xlane.xlu0 %1921
      %v1923 = vsel %vm821, %v1885, 0.0
      %1924 = vadd.xlane.f32.xlu0 %v1923
      %v1925 = vpop.xlane.xlu0 %1924
      %v1926 = vsel %vm821, %v1887, 0.0
      %1927 = vadd.xlane.f32.xlu0 %v1926
      %v1928 = vpop.xlane.xlu0 %1927
      %v1929 = vsel %vm821, %v1889, 0.0
      %1930 = vadd.xlane.f32.xlu0 %v1929
      %v1931 = vpop.xlane.xlu0 %1930
      %v1932 = vsel %vm821, %v1891, 0.0
      %1933 = vadd.xlane.f32.xlu0 %v1932
      %v1934 = vpop.xlane.xlu0 %1933
      %v1935 = vsel %vm821, %v1893, 0.0
      %1936 = vadd.xlane.f32.xlu0 %v1935
      %v1937 = vpop.xlane.xlu0 %1936
      %v1938 = vsel %vm821, %v1895, 0.0
      %1939 = vadd.xlane.f32.xlu0 %v1938
      %v1940 = vpop.xlane.xlu0 %1939
      %v1941 = vsel %vm821, %v1897, 0.0
      %1942 = vadd.xlane.f32.xlu0 %v1941
      %v1943 = vpop.xlane.xlu0 %1942
      %v1944 = vsel %vm821, %v1899, 0.0
      %1945 = vadd.xlane.f32.xlu0 %v1944
      %v1946 = vpop.xlane.xlu0 %1945
      %v1947 = vsel %vm821, %v1901, 0.0
      %1948 = vadd.xlane.f32.xlu0 %v1947
      %v1949 = vpop.xlane.xlu0 %1948
      %v1950 = vrcp.pop %v1904
      %v1951 = vmul.f32 %v1871, %v1950
      %v1952 = vrcp.pop %v1907
      %v1953 = vmul.f32 %v1873, %v1952
      %v1954 = vrcp.pop %v1910
      %v1955 = vmul.f32 %v1875, %v1954
      %v1956 = vrcp.pop %v1913
      %v1957 = vmul.f32 %v1877, %v1956
      %v1958 = vrcp.pop %v1916
      %v1959 = vmul.f32 %v1879, %v1958
      %v1960 = vrcp.pop %v1919
      %v1961 = vmul.f32 %v1881, %v1960
      %v1962 = vrcp.pop %v1922
      %v1963 = vmul.f32 %v1883, %v1962
      %v1964 = vrcp.pop %v1925
      %v1965 = vmul.f32 %v1885, %v1964
      %v1966 = vrcp.pop %v1928
      %v1967 = vmul.f32 %v1887, %v1966
      %v1968 = vrcp.pop %v1931
      %v1969 = vmul.f32 %v1889, %v1968
      %v1970 = vrcp.pop %v1934
      %v1971 = vmul.f32 %v1891, %v1970
      %v1972 = vrcp.pop %v1937
      %v1973 = vmul.f32 %v1893, %v1972
      %v1974 = vrcp.pop %v1940
      %v1975 = vmul.f32 %v1895, %v1974
      %v1976 = vrcp.pop %v1943
      %v1977 = vmul.f32 %v1897, %v1976
      %v1978 = vrcp.pop %v1946
      %v1979 = vmul.f32 %v1899, %v1978
      %v1980 = vrcp.pop %v1949
      %v1981 = vmul.f32 %v1901, %v1980
      %v1982 = vpack.c.bf16 %v1953, %v1951
      %v1983 = vpack.c.bf16 %v1957, %v1955
      %v1984 = vpack.c.bf16 %v1961, %v1959
      %v1985 = vpack.c.bf16 %v1965, %v1963
      %v1986 = vpack.c.bf16 %v1969, %v1967
      %v1987 = vpack.c.bf16 %v1973, %v1971
      %v1988 = vpack.c.bf16 %v1977, %v1975
      %v1989 = vpack.c.bf16 %v1981, %v1979
      %1990 = vrot.lane.b32.xlu0 %v396, 56
      %v1991 = vpop.permute.xlu0 %1990
      %v1994 = vsel %vm821, %v1982, 0
      %1996 = vmatprep.subr.bf16.mxu0 0
      %1997 = vmatpush1.bf16.msra.mxu0 %v1991
      %1998 = vmatprep.subr.bf16.mxu0 0
      %1999 = vmatpush1.bf16.msra.mxu0 0
      %2000 = vmatprep.subr.bf16.mxu0 0
      %2001 = vmatpush1.bf16.msra.mxu0 0
      %2002 = vmatprep.subr.bf16.mxu0 0
      %2003 = vmatpush1.bf16.msra.mxu0 0
      %2004 = vmatprep.subr.bf16.mxu0 0
      %2005 = vmatpush1.bf16.msra.mxu0 0
      %2006 = vmatprep.subr.bf16.mxu0 0
      %2007 = vmatpush1.bf16.msra.mxu0 0
      %2008 = vmatprep.subr.bf16.mxu0 0
      %2009 = vmatpush1.bf16.msra.mxu0 0
      %2010 = vmatprep.subr.bf16.mxu0 0
      %2011 = vmatpush1.bf16.msra.mxu0 0
      %2012 = vmatprep.subr.bf16.mxu0 0
      %2013 = vmatpush1.bf16.msra.mxu0 0
      %2014 = vmatprep.subr.bf16.mxu0 0
      %2015 = vmatpush1.bf16.msra.mxu0 0
      %2016 = vmatprep.subr.bf16.mxu0 0
      %2017 = vmatpush1.bf16.msra.mxu0 0
      %2018 = vmatprep.subr.bf16.mxu0 0
      %2019 = vmatpush1.bf16.msra.mxu0 0
      %2020 = vmatprep.subr.bf16.mxu0 0
      %2021 = vmatpush1.bf16.msra.mxu0 0
      %2022 = vmatprep.subr.bf16.mxu0 0
      %2023 = vmatpush1.bf16.msra.mxu0 0
      %2024 = vmatprep.subr.bf16.mxu0 0
      %2025 = vmatpush1.bf16.msra.mxu0 0
      %2026 = vmatprep.subr.bf16.mxu0 0
      %2027 = vmatpush1.bf16.msra.mxu0 0
      %2028 = vmatprep.mubr.bf16.mxu0 0
      %2029 = vmatmul.mubr.bf16.gmra.mrb[0].mxu0 %v1994
      %v2030 = vpop.f32.mrb[0].mxu0
      %v2031 = vadd.f32 0.0, %v2030
      %v2032 = vpop.f32.mrb[0].mxu0
      %v2033 = vpop.f32.mrb[0].mxu0
      %v2034 = vadd.f32 0.0, %v2033
      %v2035 = vpop.f32.mrb[0].mxu0
      %2036 = vdwg.mxu0
      %2037 = vrot.lane.b32.xlu0 %v397, 56
      %v2038 = vpop.permute.xlu0 %2037
      %v2041 = vsel %vm821, %v1983, 0
      %2043 = vmatprep.subr.bf16.mxu0 0
      %2044 = vmatpush1.bf16.msra.mxu0 %v2038
      %2045 = vmatprep.subr.bf16.mxu0 0
      %2046 = vmatpush1.bf16.msra.mxu0 0
      %2047 = vmatprep.subr.bf16.mxu0 0
      %2048 = vmatpush1.bf16.msra.mxu0 0
      %2049 = vmatprep.subr.bf16.mxu0 0
      %2050 = vmatpush1.bf16.msra.mxu0 0
      %2051 = vmatprep.subr.bf16.mxu0 0
      %2052 = vmatpush1.bf16.msra.mxu0 0
      %2053 = vmatprep.subr.bf16.mxu0 0
      %2054 = vmatpush1.bf16.msra.mxu0 0
      %2055 = vmatprep.subr.bf16.mxu0 0
      %2056 = vmatpush1.bf16.msra.mxu0 0
      %2057 = vmatprep.subr.bf16.mxu0 0
      %2058 = vmatpush1.bf16.msra.mxu0 0
      %2059 = vmatprep.subr.bf16.mxu0 0
      %2060 = vmatpush1.bf16.msra.mxu0 0
      %2061 = vmatprep.subr.bf16.mxu0 0
      %2062 = vmatpush1.bf16.msra.mxu0 0
      %2063 = vmatprep.subr.bf16.mxu0 0
      %2064 = vmatpush1.bf16.msra.mxu0 0
      %2065 = vmatprep.subr.bf16.mxu0 0
      %2066 = vmatpush1.bf16.msra.mxu0 0
      %2067 = vmatprep.subr.bf16.mxu0 0
      %2068 = vmatpush1.bf16.msra.mxu0 0
      %2069 = vmatprep.subr.bf16.mxu0 0
      %2070 = vmatpush1.bf16.msra.mxu0 0
      %2071 = vmatprep.subr.bf16.mxu0 0
      %2072 = vmatpush1.bf16.msra.mxu0 0
      %2073 = vmatprep.subr.bf16.mxu0 0
      %2074 = vmatpush1.bf16.msra.mxu0 0
      %2075 = vmatprep.mubr.bf16.mxu0 0
      %2076 = vmatmul.mubr.bf16.gmra.mrb[0].mxu0 %v2041
      %v2077 = vpop.f32.mrb[0].mxu0
      %v2078 = vadd.f32 0.0, %v2077
      %v2079 = vpop.f32.mrb[0].mxu0
      %v2080 = vpop.f32.mrb[0].mxu0
      %v2081 = vadd.f32 0.0, %v2080
      %v2082 = vpop.f32.mrb[0].mxu0
      %2083 = vdwg.mxu0
      %2084 = vrot.lane.b32.xlu0 %v398, 56
      %v2085 = vpop.permute.xlu0 %2084
      %v2088 = vsel %vm821, %v1984, 0
      %2090 = vmatprep.subr.bf16.mxu0 0
      %2091 = vmatpush1.bf16.msra.mxu0 %v2085
      %2092 = vmatprep.subr.bf16.mxu0 0
      %2093 = vmatpush1.bf16.msra.mxu0 0
      %2094 = vmatprep.subr.bf16.mxu0 0
      %2095 = vmatpush1.bf16.msra.mxu0 0
      %2096 = vmatprep.subr.bf16.mxu0 0
      %2097 = vmatpush1.bf16.msra.mxu0 0
      %2098 = vmatprep.subr.bf16.mxu0 0
      %2099 = vmatpush1.bf16.msra.mxu0 0
      %2100 = vmatprep.subr.bf16.mxu0 0
      %2101 = vmatpush1.bf16.msra.mxu0 0
      %2102 = vmatprep.subr.bf16.mxu0 0
      %2103 = vmatpush1.bf16.msra.mxu0 0
      %2104 = vmatprep.subr.bf16.mxu0 0
      %2105 = vmatpush1.bf16.msra.mxu0 0
      %2106 = vmatprep.subr.bf16.mxu0 0
      %2107 = vmatpush1.bf16.msra.mxu0 0
      %2108 = vmatprep.subr.bf16.mxu0 0
      %2109 = vmatpush1.bf16.msra.mxu0 0
      %2110 = vmatprep.subr.bf16.mxu0 0
      %2111 = vmatpush1.bf16.msra.mxu0 0
      %2112 = vmatprep.subr.bf16.mxu0 0
      %2113 = vmatpush1.bf16.msra.mxu0 0
      %2114 = vmatprep.subr.bf16.mxu0 0
      %2115 = vmatpush1.bf16.msra.mxu0 0
      %2116 = vmatprep.subr.bf16.mxu0 0
      %2117 = vmatpush1.bf16.msra.mxu0 0
      %2118 = vmatprep.subr.bf16.mxu0 0
      %2119 = vmatpush1.bf16.msra.mxu0 0
      %2120 = vmatprep.subr.bf16.mxu0 0
      %2121 = vmatpush1.bf16.msra.mxu0 0
      %2122 = vmatprep.mubr.bf16.mxu0 0
      %2123 = vmatmul.mubr.bf16.gmra.mrb[0].mxu0 %v2088
      %v2124 = vpop.f32.mrb[0].mxu0
      %v2125 = vadd.f32 0.0, %v2124
      %v2126 = vpop.f32.mrb[0].mxu0
      %v2127 = vpop.f32.mrb[0].mxu0
      %v2128 = vadd.f32 0.0, %v2127
      %v2129 = vpop.f32.mrb[0].mxu0
      %2130 = vdwg.mxu0
      %2131 = vrot.lane.b32.xlu0 %v399, 56
      %v2132 = vpop.permute.xlu0 %2131
      %v2135 = vsel %vm821, %v1985, 0
      %2137 = vmatprep.subr.bf16.mxu0 0
      %2138 = vmatpush1.bf16.msra.mxu0 %v2132
      %2139 = vmatprep.subr.bf16.mxu0 0
      %2140 = vmatpush1.bf16.msra.mxu0 0
      %2141 = vmatprep.subr.bf16.mxu0 0
      %2142 = vmatpush1.bf16.msra.mxu0 0
      %2143 = vmatprep.subr.bf16.mxu0 0
      %2144 = vmatpush1.bf16.msra.mxu0 0
      %2145 = vmatprep.subr.bf16.mxu0 0
      %2146 = vmatpush1.bf16.msra.mxu0 0
      %2147 = vmatprep.subr.bf16.mxu0 0
      %2148 = vmatpush1.bf16.msra.mxu0 0
      %2149 = vmatprep.subr.bf16.mxu0 0
      %2150 = vmatpush1.bf16.msra.mxu0 0
      %2151 = vmatprep.subr.bf16.mxu0 0
      %2152 = vmatpush1.bf16.msra.mxu0 0
      %2153 = vmatprep.subr.bf16.mxu0 0
      %2154 = vmatpush1.bf16.msra.mxu0 0
      %2155 = vmatprep.subr.bf16.mxu0 0
      %2156 = vmatpush1.bf16.msra.mxu0 0
      %2157 = vmatprep.subr.bf16.mxu0 0
      %2158 = vmatpush1.bf16.msra.mxu0 0
      %2159 = vmatprep.subr.bf16.mxu0 0
      %2160 = vmatpush1.bf16.msra.mxu0 0
      %2161 = vmatprep.subr.bf16.mxu0 0
      %2162 = vmatpush1.bf16.msra.mxu0 0
      %2163 = vmatprep.subr.bf16.mxu0 0
      %2164 = vmatpush1.bf16.msra.mxu0 0
      %2165 = vmatprep.subr.bf16.mxu0 0
      %2166 = vmatpush1.bf16.msra.mxu0 0
      %2167 = vmatprep.subr.bf16.mxu0 0
      %2168 = vmatpush1.bf16.msra.mxu0 0
      %2169 = vmatprep.mubr.bf16.mxu0 0
      %2170 = vmatmul.mubr.bf16.gmra.mrb[0].mxu0 %v2135
      %v2171 = vpop.f32.mrb[0].mxu0
      %v2172 = vadd.f32 0.0, %v2171
      %v2173 = vpop.f32.mrb[0].mxu0
      %v2174 = vpop.f32.mrb[0].mxu0
      %v2175 = vadd.f32 0.0, %v2174
      %v2176 = vpop.f32.mrb[0].mxu0
      %2177 = vdwg.mxu0
      %2178 = vrot.lane.b32.xlu0 %v400, 56
      %v2179 = vpop.permute.xlu0 %2178
      %v2182 = vsel %vm821, %v1986, 0
      %2184 = vmatprep.subr.bf16.mxu0 0
      %2185 = vmatpush1.bf16.msra.mxu0 %v2179
      %2186 = vmatprep.subr.bf16.mxu0 0
      %2187 = vmatpush1.bf16.msra.mxu0 0
      %2188 = vmatprep.subr.bf16.mxu0 0
      %2189 = vmatpush1.bf16.msra.mxu0 0
      %2190 = vmatprep.subr.bf16.mxu0 0
      %2191 = vmatpush1.bf16.msra.mxu0 0
      %2192 = vmatprep.subr.bf16.mxu0 0
      %2193 = vmatpush1.bf16.msra.mxu0 0
      %2194 = vmatprep.subr.bf16.mxu0 0
      %2195 = vmatpush1.bf16.msra.mxu0 0
      %2196 = vmatprep.subr.bf16.mxu0 0
      %2197 = vmatpush1.bf16.msra.mxu0 0
      %2198 = vmatprep.subr.bf16.mxu0 0
      %2199 = vmatpush1.bf16.msra.mxu0 0
      %2200 = vmatprep.subr.bf16.mxu0 0
      %2201 = vmatpush1.bf16.msra.mxu0 0
      %2202 = vmatprep.subr.bf16.mxu0 0
      %2203 = vmatpush1.bf16.msra.mxu0 0
      %2204 = vmatprep.subr.bf16.mxu0 0
      %2205 = vmatpush1.bf16.msra.mxu0 0
      %2206 = vmatprep.subr.bf16.mxu0 0
      %2207 = vmatpush1.bf16.msra.mxu0 0
      %2208 = vmatprep.subr.bf16.mxu0 0
      %2209 = vmatpush1.bf16.msra.mxu0 0
      %2210 = vmatprep.subr.bf16.mxu0 0
      %2211 = vmatpush1.bf16.msra.mxu0 0
      %2212 = vmatprep.subr.bf16.mxu0 0
      %2213 = vmatpush1.bf16.msra.mxu0 0
      %2214 = vmatprep.subr.bf16.mxu0 0
      %2215 = vmatpush1.bf16.msra.mxu0 0
      %2216 = vmatprep.mubr.bf16.mxu0 0
      %2217 = vmatmul.mubr.bf16.gmra.mrb[0].mxu0 %v2182
      %v2218 = vpop.f32.mrb[0].mxu0
      %v2219 = vadd.f32 0.0, %v2218
      %v2220 = vpop.f32.mrb[0].mxu0
      %v2221 = vpop.f32.mrb[0].mxu0
      %v2222 = vadd.f32 0.0, %v2221
      %v2223 = vpop.f32.mrb[0].mxu0
      %2224 = vdwg.mxu0
      %2225 = vrot.lane.b32.xlu0 %v401, 56
      %v2226 = vpop.permute.xlu0 %2225
      %v2229 = vsel %vm821, %v1987, 0
      %2231 = vmatprep.subr.bf16.mxu0 0
      %2232 = vmatpush1.bf16.msra.mxu0 %v2226
      %2233 = vmatprep.subr.bf16.mxu0 0
      %2234 = vmatpush1.bf16.msra.mxu0 0
      %2235 = vmatprep.subr.bf16.mxu0 0
      %2236 = vmatpush1.bf16.msra.mxu0 0
      %2237 = vmatprep.subr.bf16.mxu0 0
      %2238 = vmatpush1.bf16.msra.mxu0 0
      %2239 = vmatprep.subr.bf16.mxu0 0
      %2240 = vmatpush1.bf16.msra.mxu0 0
      %2241 = vmatprep.subr.bf16.mxu0 0
      %2242 = vmatpush1.bf16.msra.mxu0 0
      %2243 = vmatprep.subr.bf16.mxu0 0
      %2244 = vmatpush1.bf16.msra.mxu0 0
      %2245 = vmatprep.subr.bf16.mxu0 0
      %2246 = vmatpush1.bf16.msra.mxu0 0
      %2247 = vmatprep.subr.bf16.mxu0 0
      %2248 = vmatpush1.bf16.msra.mxu0 0
      %2249 = vmatprep.subr.bf16.mxu0 0
      %2250 = vmatpush1.bf16.msra.mxu0 0
      %2251 = vmatprep.subr.bf16.mxu0 0
      %2252 = vmatpush1.bf16.msra.mxu0 0
      %2253 = vmatprep.subr.bf16.mxu0 0
      %2254 = vmatpush1.bf16.msra.mxu0 0
      %2255 = vmatprep.subr.bf16.mxu0 0
      %2256 = vmatpush1.bf16.msra.mxu0 0
      %2257 = vmatprep.subr.bf16.mxu0 0
      %2258 = vmatpush1.bf16.msra.mxu0 0
      %2259 = vmatprep.subr.bf16.mxu0 0
      %2260 = vmatpush1.bf16.msra.mxu0 0
      %2261 = vmatprep.subr.bf16.mxu0 0
      %2262 = vmatpush1.bf16.msra.mxu0 0
      %2263 = vmatprep.mubr.bf16.mxu0 0
      %2264 = vmatmul.mubr.bf16.gmra.mrb[0].mxu0 %v2229
      %v2265 = vpop.f32.mrb[0].mxu0
      %v2266 = vadd.f32 0.0, %v2265
      %v2267 = vpop.f32.mrb[0].mxu0
      %v2268 = vpop.f32.mrb[0].mxu0
      %v2269 = vadd.f32 0.0, %v2268
      %v2270 = vpop.f32.mrb[0].mxu0
      %2271 = vdwg.mxu0
      %2272 = vrot.lane.b32.xlu0 %v402, 56
      %v2273 = vpop.permute.xlu0 %2272
      %v2276 = vsel %vm821, %v1988, 0
      %2278 = vmatprep.subr.bf16.mxu0 0
      %2279 = vmatpush1.bf16.msra.mxu0 %v2273
      %2280 = vmatprep.subr.bf16.mxu0 0
      %2281 = vmatpush1.bf16.msra.mxu0 0
      %2282 = vmatprep.subr.bf16.mxu0 0
      %2283 = vmatpush1.bf16.msra.mxu0 0
      %2284 = vmatprep.subr.bf16.mxu0 0
      %2285 = vmatpush1.bf16.msra.mxu0 0
      %2286 = vmatprep.subr.bf16.mxu0 0
      %2287 = vmatpush1.bf16.msra.mxu0 0
      %2288 = vmatprep.subr.bf16.mxu0 0
      %2289 = vmatpush1.bf16.msra.mxu0 0
      %2290 = vmatprep.subr.bf16.mxu0 0
      %2291 = vmatpush1.bf16.msra.mxu0 0
      %2292 = vmatprep.subr.bf16.mxu0 0
      %2293 = vmatpush1.bf16.msra.mxu0 0
      %2294 = vmatprep.subr.bf16.mxu0 0
      %2295 = vmatpush1.bf16.msra.mxu0 0
      %2296 = vmatprep.subr.bf16.mxu0 0
      %2297 = vmatpush1.bf16.msra.mxu0 0
      %2298 = vmatprep.subr.bf16.mxu0 0
      %2299 = vmatpush1.bf16.msra.mxu0 0
      %2300 = vmatprep.subr.bf16.mxu0 0
      %2301 = vmatpush1.bf16.msra.mxu0 0
      %2302 = vmatprep.subr.bf16.mxu0 0
      %2303 = vmatpush1.bf16.msra.mxu0 0
      %2304 = vmatprep.subr.bf16.mxu0 0
      %2305 = vmatpush1.bf16.msra.mxu0 0
      %2306 = vmatprep.subr.bf16.mxu0 0
      %2307 = vmatpush1.bf16.msra.mxu0 0
      %2308 = vmatprep.subr.bf16.mxu0 0
      %2309 = vmatpush1.bf16.msra.mxu0 0
      %2310 = vmatprep.mubr.bf16.mxu0 0
      %2311 = vmatmul.mubr.bf16.gmra.mrb[0].mxu0 %v2276
      %v2312 = vpop.f32.mrb[0].mxu0
      %v2313 = vadd.f32 0.0, %v2312
      %v2314 = vpop.f32.mrb[0].mxu0
      %v2315 = vpop.f32.mrb[0].mxu0
      %v2316 = vadd.f32 0.0, %v2315
      %v2317 = vpop.f32.mrb[0].mxu0
      %2318 = vdwg.mxu0
      %2319 = vrot.lane.b32.xlu0 %v403, 56
      %v2320 = vpop.permute.xlu0 %2319
      %v2323 = vsel %vm821, %v1989, 0
      %2325 = vmatprep.subr.bf16.mxu0 0
      %2326 = vmatpush1.bf16.msra.mxu0 %v2320
      %2327 = vmatprep.subr.bf16.mxu0 0
      %2328 = vmatpush1.bf16.msra.mxu0 0
      %2329 = vmatprep.subr.bf16.mxu0 0
      %2330 = vmatpush1.bf16.msra.mxu0 0
      %2331 = vmatprep.subr.bf16.mxu0 0
      %2332 = vmatpush1.bf16.msra.mxu0 0
      %2333 = vmatprep.subr.bf16.mxu0 0
      %2334 = vmatpush1.bf16.msra.mxu0 0
      %2335 = vmatprep.subr.bf16.mxu0 0
      %2336 = vmatpush1.bf16.msra.mxu0 0
      %2337 = vmatprep.subr.bf16.mxu0 0
      %2338 = vmatpush1.bf16.msra.mxu0 0
      %2339 = vmatprep.subr.bf16.mxu0 0
      %2340 = vmatpush1.bf16.msra.mxu0 0
      %2341 = vmatprep.subr.bf16.mxu0 0
      %2342 = vmatpush1.bf16.msra.mxu0 0
      %2343 = vmatprep.subr.bf16.mxu0 0
      %2344 = vmatpush1.bf16.msra.mxu0 0
      %2345 = vmatprep.subr.bf16.mxu0 0
      %2346 = vmatpush1.bf16.msra.mxu0 0
      %2347 = vmatprep.subr.bf16.mxu0 0
      %2348 = vmatpush1.bf16.msra.mxu0 0
      %2349 = vmatprep.subr.bf16.mxu0 0
      %2350 = vmatpush1.bf16.msra.mxu0 0
      %2351 = vmatprep.subr.bf16.mxu0 0
      %2352 = vmatpush1.bf16.msra.mxu0 0
      %2353 = vmatprep.subr.bf16.mxu0 0
      %2354 = vmatpush1.bf16.msra.mxu0 0
      %2355 = vmatprep.subr.bf16.mxu0 0
      %2356 = vmatpush1.bf16.msra.mxu0 0
      %2357 = vmatprep.mubr.bf16.mxu0 0
      %2358 = vmatmul.mubr.bf16.gmra.mrb[0].mxu0 %v2323
      %v2359 = vpop.f32.mrb[0].mxu0
      %v2360 = vadd.f32 0.0, %v2359
      %v2361 = vpop.f32.mrb[0].mxu0
      %v2362 = vpop.f32.mrb[0].mxu0
      %v2363 = vadd.f32 0.0, %v2362
      %v2364 = vpop.f32.mrb[0].mxu0
      %2365 = vdwg.mxu0
      %2366 = vrot.lane.b32.xlu0 %v396, 112
      %v2367 = vpop.permute.xlu0 %2366
      %2368 = vrot.lane.b32.xlu0 %v396, 80
      %v2369 = vpop.permute.xlu0 %2368
      %v2371 = vsel %vm407, %v2367, 0
      %v2374 = vsel %vm407, %v2369, 0
      %2376 = vmatprep.subr.bf16.mxu0 0
      %2377 = vmatpush1.bf16.xpose.msra.mxu0 %v2374
      %2378 = vmatprep.subr.bf16.mxu0 0
      %2379 = vmatpush1.bf16.xpose.msra.mxu0 0
      %2380 = vmatprep.subr.bf16.mxu0 0
      %2381 = vmatpush1.bf16.xpose.msra.mxu0 0
      %2382 = vmatprep.subr.bf16.mxu0 0
      %2383 = vmatpush1.bf16.xpose.msra.mxu0 0
      %2384 = vmatprep.subr.bf16.mxu0 0
      %2385 = vmatpush1.bf16.xpose.msra.mxu0 0
      %2386 = vmatprep.subr.bf16.mxu0 0
      %2387 = vmatpush1.bf16.xpose.msra.mxu0 0
      %2388 = vmatprep.subr.bf16.mxu0 0
      %2389 = vmatpush1.bf16.xpose.msra.mxu0 0
      %2390 = vmatprep.subr.bf16.mxu0 0
      %2391 = vmatpush1.bf16.xpose.msra.mxu0 0
      %2392 = vmatprep.subr.bf16.mxu0 0
      %2393 = vmatpush1.bf16.xpose.msra.mxu0 0
      %2394 = vmatprep.subr.bf16.mxu0 0
      %2395 = vmatpush1.bf16.xpose.msra.mxu0 0
      %2396 = vmatprep.subr.bf16.mxu0 0
      %2397 = vmatpush1.bf16.xpose.msra.mxu0 0
      %2398 = vmatprep.subr.bf16.mxu0 0
      %2399 = vmatpush1.bf16.xpose.msra.mxu0 0
      %2400 = vmatprep.subr.bf16.mxu0 0
      %2401 = vmatpush1.bf16.xpose.msra.mxu0 0
      %2402 = vmatprep.subr.bf16.mxu0 0
      %2403 = vmatpush1.bf16.xpose.msra.mxu0 0
      %2404 = vmatprep.subr.bf16.mxu0 0
      %2405 = vmatpush1.bf16.xpose.msra.mxu0 0
      %2406 = vmatprep.subr.bf16.mxu0 0
      %2407 = vmatpush1.bf16.xpose.msra.mxu0 0
      %2408 = vmatprep.mubr.bf16.mxu0 0
      %2409 = vmatmul.mubr.bf16.gmra.mrb[0].mxu0 %v2371
      %v2410 = vpop.f32.mrb[0].mxu0
      %v2411 = vadd.f32 0.0, %v2410
      %v2412 = vpop.f32.mrb[0].mxu0
      %v2413 = vpop.f32.mrb[0].mxu0
      %v2414 = vadd.f32 0.0, %v2413
      %v2415 = vpop.f32.mrb[0].mxu0
      %2416 = vdwg.mxu0
      %2417 = vrot.lane.b32.xlu0 %v397, 112
      %v2418 = vpop.permute.xlu0 %2417
      %2419 = vrot.lane.b32.xlu0 %v397, 80
      %v2420 = vpop.permute.xlu0 %2419
      %v2422 = vsel %vm407, %v2418, 0
      %v2425 = vsel %vm407, %v2420, 0
      %2427 = vmatprep.subr.bf16.mxu0 0
      %2428 = vmatpush1.bf16.xpose.msra.mxu0 %v2425
      %2429 = vmatprep.subr.bf16.mxu0 0
      %2430 = vmatpush1.bf16.xpose.msra.mxu0 0
      %2431 = vmatprep.subr.bf16.mxu0 0
      %2432 = vmatpush1.bf16.xpose.msra.mxu0 0
      %2433 = vmatprep.subr.bf16.mxu0 0
      %2434 = vmatpush1.bf16.xpose.msra.mxu0 0
      %2435 = vmatprep.subr.bf16.mxu0 0
      %2436 = vmatpush1.bf16.xpose.msra.mxu0 0
      %2437 = vmatprep.subr.bf16.mxu0 0
      %2438 = vmatpush1.bf16.xpose.msra.mxu0 0
      %2439 = vmatprep.subr.bf16.mxu0 0
      %2440 = vmatpush1.bf16.xpose.msra.mxu0 0
      %2441 = vmatprep.subr.bf16.mxu0 0
      %2442 = vmatpush1.bf16.xpose.msra.mxu0 0
      %2443 = vmatprep.subr.bf16.mxu0 0
      %2444 = vmatpush1.bf16.xpose.msra.mxu0 0
      %2445 = vmatprep.subr.bf16.mxu0 0
      %2446 = vmatpush1.bf16.xpose.msra.mxu0 0
      %2447 = vmatprep.subr.bf16.mxu0 0
      %2448 = vmatpush1.bf16.xpose.msra.mxu0 0
      %2449 = vmatprep.subr.bf16.mxu0 0
      %2450 = vmatpush1.bf16.xpose.msra.mxu0 0
      %2451 = vmatprep.subr.bf16.mxu0 0
      %2452 = vmatpush1.bf16.xpose.msra.mxu0 0
      %2453 = vmatprep.subr.bf16.mxu0 0
      %2454 = vmatpush1.bf16.xpose.msra.mxu0 0
      %2455 = vmatprep.subr.bf16.mxu0 0
      %2456 = vmatpush1.bf16.xpose.msra.mxu0 0
      %2457 = vmatprep.subr.bf16.mxu0 0
      %2458 = vmatpush1.bf16.xpose.msra.mxu0 0
      %2459 = vmatprep.mubr.bf16.mxu0 0
      %2460 = vmatmul.mubr.bf16.gmra.mrb[0].mxu0 %v2422
      %v2461 = vpop.f32.mrb[0].mxu0
      %v2462 = vadd.f32 0.0, %v2461
      %v2463 = vpop.f32.mrb[0].mxu0
      %v2464 = vpop.f32.mrb[0].mxu0
      %v2465 = vadd.f32 0.0, %v2464
      %v2466 = vpop.f32.mrb[0].mxu0
      %2467 = vdwg.mxu0
      %2468 = vrot.lane.b32.xlu0 %v398, 112
      %v2469 = vpop.permute.xlu0 %2468
      %2470 = vrot.lane.b32.xlu0 %v398, 80
      %v2471 = vpop.permute.xlu0 %2470
      %v2473 = vsel %vm407, %v2469, 0
      %v2476 = vsel %vm407, %v2471, 0
      %2478 = vmatprep.subr.bf16.mxu0 0
      %2479 = vmatpush1.bf16.xpose.msra.mxu0 %v2476
      %2480 = vmatprep.subr.bf16.mxu0 0
      %2481 = vmatpush1.bf16.xpose.msra.mxu0 0
      %2482 = vmatprep.subr.bf16.mxu0 0
      %2483 = vmatpush1.bf16.xpose.msra.mxu0 0
      %2484 = vmatprep.subr.bf16.mxu0 0
      %2485 = vmatpush1.bf16.xpose.msra.mxu0 0
      %2486 = vmatprep.subr.bf16.mxu0 0
      %2487 = vmatpush1.bf16.xpose.msra.mxu0 0
      %2488 = vmatprep.subr.bf16.mxu0 0
      %2489 = vmatpush1.bf16.xpose.msra.mxu0 0
      %2490 = vmatprep.subr.bf16.mxu0 0
      %2491 = vmatpush1.bf16.xpose.msra.mxu0 0
      %2492 = vmatprep.subr.bf16.mxu0 0
      %2493 = vmatpush1.bf16.xpose.msra.mxu0 0
      %2494 = vmatprep.subr.bf16.mxu0 0
      %2495 = vmatpush1.bf16.xpose.msra.mxu0 0
      %2496 = vmatprep.subr.bf16.mxu0 0
      %2497 = vmatpush1.bf16.xpose.msra.mxu0 0
      %2498 = vmatprep.subr.bf16.mxu0 0
      %2499 = vmatpush1.bf16.xpose.msra.mxu0 0
      %2500 = vmatprep.subr.bf16.mxu0 0
      %2501 = vmatpush1.bf16.xpose.msra.mxu0 0
      %2502 = vmatprep.subr.bf16.mxu0 0
      %2503 = vmatpush1.bf16.xpose.msra.mxu0 0
      %2504 = vmatprep.subr.bf16.mxu0 0
      %2505 = vmatpush1.bf16.xpose.msra.mxu0 0
      %2506 = vmatprep.subr.bf16.mxu0 0
      %2507 = vmatpush1.bf16.xpose.msra.mxu0 0
      %2508 = vmatprep.subr.bf16.mxu0 0
      %2509 = vmatpush1.bf16.xpose.msra.mxu0 0
      %2510 = vmatprep.mubr.bf16.mxu0 0
      %2511 = vmatmul.mubr.bf16.gmra.mrb[0].mxu0 %v2473
      %v2512 = vpop.f32.mrb[0].mxu0
      %v2513 = vadd.f32 0.0, %v2512
      %v2514 = vpop.f32.mrb[0].mxu0
      %v2515 = vpop.f32.mrb[0].mxu0
      %v2516 = vadd.f32 0.0, %v2515
      %v2517 = vpop.f32.mrb[0].mxu0
      %2518 = vdwg.mxu0
      %2519 = vrot.lane.b32.xlu0 %v399, 112
      %v2520 = vpop.permute.xlu0 %2519
      %2521 = vrot.lane.b32.xlu0 %v399, 80
      %v2522 = vpop.permute.xlu0 %2521
      %v2524 = vsel %vm407, %v2520, 0
      %v2527 = vsel %vm407, %v2522, 0
      %2529 = vmatprep.subr.bf16.mxu0 0
      %2530 = vmatpush1.bf16.xpose.msra.mxu0 %v2527
      %2531 = vmatprep.subr.bf16.mxu0 0
      %2532 = vmatpush1.bf16.xpose.msra.mxu0 0
      %2533 = vmatprep.subr.bf16.mxu0 0
      %2534 = vmatpush1.bf16.xpose.msra.mxu0 0
      %2535 = vmatprep.subr.bf16.mxu0 0
      %2536 = vmatpush1.bf16.xpose.msra.mxu0 0
      %2537 = vmatprep.subr.bf16.mxu0 0
      %2538 = vmatpush1.bf16.xpose.msra.mxu0 0
      %2539 = vmatprep.subr.bf16.mxu0 0
      %2540 = vmatpush1.bf16.xpose.msra.mxu0 0
      %2541 = vmatprep.subr.bf16.mxu0 0
      %2542 = vmatpush1.bf16.xpose.msra.mxu0 0
      %2543 = vmatprep.subr.bf16.mxu0 0
      %2544 = vmatpush1.bf16.xpose.msra.mxu0 0
      %2545 = vmatprep.subr.bf16.mxu0 0
      %2546 = vmatpush1.bf16.xpose.msra.mxu0 0
      %2547 = vmatprep.subr.bf16.mxu0 0
      %2548 = vmatpush1.bf16.xpose.msra.mxu0 0
      %2549 = vmatprep.subr.bf16.mxu0 0
      %2550 = vmatpush1.bf16.xpose.msra.mxu0 0
      %2551 = vmatprep.subr.bf16.mxu0 0
      %2552 = vmatpush1.bf16.xpose.msra.mxu0 0
      %2553 = vmatprep.subr.bf16.mxu0 0
      %2554 = vmatpush1.bf16.xpose.msra.mxu0 0
      %2555 = vmatprep.subr.bf16.mxu0 0
      %2556 = vmatpush1.bf16.xpose.msra.mxu0 0
      %2557 = vmatprep.subr.bf16.mxu0 0
      %2558 = vmatpush1.bf16.xpose.msra.mxu0 0
      %2559 = vmatprep.subr.bf16.mxu0 0
      %2560 = vmatpush1.bf16.xpose.msra.mxu0 0
      %2561 = vmatprep.mubr.bf16.mxu0 0
      %2562 = vmatmul.mubr.bf16.gmra.mrb[0].mxu0 %v2524
      %v2563 = vpop.f32.mrb[0].mxu0
      %v2564 = vadd.f32 0.0, %v2563
      %v2565 = vpop.f32.mrb[0].mxu0
      %v2566 = vpop.f32.mrb[0].mxu0
      %v2567 = vadd.f32 0.0, %v2566
      %v2568 = vpop.f32.mrb[0].mxu0
      %2569 = vdwg.mxu0
      %2570 = vrot.lane.b32.xlu0 %v400, 112
      %v2571 = vpop.permute.xlu0 %2570
      %2572 = vrot.lane.b32.xlu0 %v400, 80
      %v2573 = vpop.permute.xlu0 %2572
      %v2575 = vsel %vm407, %v2571, 0
      %v2578 = vsel %vm407, %v2573, 0
      %2580 = vmatprep.subr.bf16.mxu0 0
      %2581 = vmatpush1.bf16.xpose.msra.mxu0 %v2578
      %2582 = vmatprep.subr.bf16.mxu0 0
      %2583 = vmatpush1.bf16.xpose.msra.mxu0 0
      %2584 = vmatprep.subr.bf16.mxu0 0
      %2585 = vmatpush1.bf16.xpose.msra.mxu0 0
      %2586 = vmatprep.subr.bf16.mxu0 0
      %2587 = vmatpush1.bf16.xpose.msra.mxu0 0
      %2588 = vmatprep.subr.bf16.mxu0 0
      %2589 = vmatpush1.bf16.xpose.msra.mxu0 0
      %2590 = vmatprep.subr.bf16.mxu0 0
      %2591 = vmatpush1.bf16.xpose.msra.mxu0 0
      %2592 = vmatprep.subr.bf16.mxu0 0
      %2593 = vmatpush1.bf16.xpose.msra.mxu0 0
      %2594 = vmatprep.subr.bf16.mxu0 0
      %2595 = vmatpush1.bf16.xpose.msra.mxu0 0
      %2596 = vmatprep.subr.bf16.mxu0 0
      %2597 = vmatpush1.bf16.xpose.msra.mxu0 0
      %2598 = vmatprep.subr.bf16.mxu0 0
      %2599 = vmatpush1.bf16.xpose.msra.mxu0 0
      %2600 = vmatprep.subr.bf16.mxu0 0
      %2601 = vmatpush1.bf16.xpose.msra.mxu0 0
      %2602 = vmatprep.subr.bf16.mxu0 0
      %2603 = vmatpush1.bf16.xpose.msra.mxu0 0
      %2604 = vmatprep.subr.bf16.mxu0 0
      %2605 = vmatpush1.bf16.xpose.msra.mxu0 0
      %2606 = vmatprep.subr.bf16.mxu0 0
      %2607 = vmatpush1.bf16.xpose.msra.mxu0 0
      %2608 = vmatprep.subr.bf16.mxu0 0
      %2609 = vmatpush1.bf16.xpose.msra.mxu0 0
      %2610 = vmatprep.subr.bf16.mxu0 0
      %2611 = vmatpush1.bf16.xpose.msra.mxu0 0
      %2612 = vmatprep.mubr.bf16.mxu0 0
      %2613 = vmatmul.mubr.bf16.gmra.mrb[0].mxu0 %v2575
      %v2614 = vpop.f32.mrb[0].mxu0
      %v2615 = vadd.f32 0.0, %v2614
      %v2616 = vpop.f32.mrb[0].mxu0
      %v2617 = vpop.f32.mrb[0].mxu0
      %v2618 = vadd.f32 0.0, %v2617
      %v2619 = vpop.f32.mrb[0].mxu0
      %2620 = vdwg.mxu0
      %2621 = vrot.lane.b32.xlu0 %v401, 112
      %v2622 = vpop.permute.xlu0 %2621
      %2623 = vrot.lane.b32.xlu0 %v401, 80
      %v2624 = vpop.permute.xlu0 %2623
      %v2626 = vsel %vm407, %v2622, 0
      %v2629 = vsel %vm407, %v2624, 0
      %2631 = vmatprep.subr.bf16.mxu0 0
      %2632 = vmatpush1.bf16.xpose.msra.mxu0 %v2629
      %2633 = vmatprep.subr.bf16.mxu0 0
      %2634 = vmatpush1.bf16.xpose.msra.mxu0 0
      %2635 = vmatprep.subr.bf16.mxu0 0
      %2636 = vmatpush1.bf16.xpose.msra.mxu0 0
      %2637 = vmatprep.subr.bf16.mxu0 0
      %2638 = vmatpush1.bf16.xpose.msra.mxu0 0
      %2639 = vmatprep.subr.bf16.mxu0 0
      %2640 = vmatpush1.bf16.xpose.msra.mxu0 0
      %2641 = vmatprep.subr.bf16.mxu0 0
      %2642 = vmatpush1.bf16.xpose.msra.mxu0 0
      %2643 = vmatprep.subr.bf16.mxu0 0
      %2644 = vmatpush1.bf16.xpose.msra.mxu0 0
      %2645 = vmatprep.subr.bf16.mxu0 0
      %2646 = vmatpush1.bf16.xpose.msra.mxu0 0
      %2647 = vmatprep.subr.bf16.mxu0 0
      %2648 = vmatpush1.bf16.xpose.msra.mxu0 0
      %2649 = vmatprep.subr.bf16.mxu0 0
      %2650 = vmatpush1.bf16.xpose.msra.mxu0 0
      %2651 = vmatprep.subr.bf16.mxu0 0
      %2652 = vmatpush1.bf16.xpose.msra.mxu0 0
      %2653 = vmatprep.subr.bf16.mxu0 0
      %2654 = vmatpush1.bf16.xpose.msra.mxu0 0
      %2655 = vmatprep.subr.bf16.mxu0 0
      %2656 = vmatpush1.bf16.xpose.msra.mxu0 0
      %2657 = vmatprep.subr.bf16.mxu0 0
      %2658 = vmatpush1.bf16.xpose.msra.mxu0 0
      %2659 = vmatprep.subr.bf16.mxu0 0
      %2660 = vmatpush1.bf16.xpose.msra.mxu0 0
      %2661 = vmatprep.subr.bf16.mxu0 0
      %2662 = vmatpush1.bf16.xpose.msra.mxu0 0
      %2663 = vmatprep.mubr.bf16.mxu0 0
      %2664 = vmatmul.mubr.bf16.gmra.mrb[0].mxu0 %v2626
      %v2665 = vpop.f32.mrb[0].mxu0
      %v2666 = vadd.f32 0.0, %v2665
      %v2667 = vpop.f32.mrb[0].mxu0
      %v2668 = vpop.f32.mrb[0].mxu0
      %v2669 = vadd.f32 0.0, %v2668
      %v2670 = vpop.f32.mrb[0].mxu0
      %2671 = vdwg.mxu0
      %2672 = vrot.lane.b32.xlu0 %v402, 112
      %v2673 = vpop.permute.xlu0 %2672
      %2674 = vrot.lane.b32.xlu0 %v402, 80
      %v2675 = vpop.permute.xlu0 %2674
      %v2677 = vsel %vm407, %v2673, 0
      %v2680 = vsel %vm407, %v2675, 0
      %2682 = vmatprep.subr.bf16.mxu0 0
      %2683 = vmatpush1.bf16.xpose.msra.mxu0 %v2680
      %2684 = vmatprep.subr.bf16.mxu0 0
      %2685 = vmatpush1.bf16.xpose.msra.mxu0 0
      %2686 = vmatprep.subr.bf16.mxu0 0
      %2687 = vmatpush1.bf16.xpose.msra.mxu0 0
      %2688 = vmatprep.subr.bf16.mxu0 0
      %2689 = vmatpush1.bf16.xpose.msra.mxu0 0
      %2690 = vmatprep.subr.bf16.mxu0 0
      %2691 = vmatpush1.bf16.xpose.msra.mxu0 0
      %2692 = vmatprep.subr.bf16.mxu0 0
      %2693 = vmatpush1.bf16.xpose.msra.mxu0 0
      %2694 = vmatprep.subr.bf16.mxu0 0
      %2695 = vmatpush1.bf16.xpose.msra.mxu0 0
      %2696 = vmatprep.subr.bf16.mxu0 0
      %2697 = vmatpush1.bf16.xpose.msra.mxu0 0
      %2698 = vmatprep.subr.bf16.mxu0 0
      %2699 = vmatpush1.bf16.xpose.msra.mxu0 0
      %2700 = vmatprep.subr.bf16.mxu0 0
      %2701 = vmatpush1.bf16.xpose.msra.mxu0 0
      %2702 = vmatprep.subr.bf16.mxu0 0
      %2703 = vmatpush1.bf16.xpose.msra.mxu0 0
      %2704 = vmatprep.subr.bf16.mxu0 0
      %2705 = vmatpush1.bf16.xpose.msra.mxu0 0
      %2706 = vmatprep.subr.bf16.mxu0 0
      %2707 = vmatpush1.bf16.xpose.msra.mxu0 0
      %2708 = vmatprep.subr.bf16.mxu0 0
      %2709 = vmatpush1.bf16.xpose.msra.mxu0 0
      %2710 = vmatprep.subr.bf16.mxu0 0
      %2711 = vmatpush1.bf16.xpose.msra.mxu0 0
      %2712 = vmatprep.subr.bf16.mxu0 0
      %2713 = vmatpush1.bf16.xpose.msra.mxu0 0
      %2714 = vmatprep.mubr.bf16.mxu0 0
      %2715 = vmatmul.mubr.bf16.gmra.mrb[0].mxu0 %v2677
      %v2716 = vpop.f32.mrb[0].mxu0
      %v2717 = vadd.f32 0.0, %v2716
      %v2718 = vpop.f32.mrb[0].mxu0
      %v2719 = vpop.f32.mrb[0].mxu0
      %v2720 = vadd.f32 0.0, %v2719
      %v2721 = vpop.f32.mrb[0].mxu0
      %2722 = vdwg.mxu0
      %2723 = vrot.lane.b32.xlu0 %v403, 112
      %v2724 = vpop.permute.xlu0 %2723
      %2725 = vrot.lane.b32.xlu0 %v403, 80
      %v2726 = vpop.permute.xlu0 %2725
      %v2728 = vsel %vm407, %v2724, 0
      %v2731 = vsel %vm407, %v2726, 0
      %2733 = vmatprep.subr.bf16.mxu0 0
      %2734 = vmatpush1.bf16.xpose.msra.mxu0 %v2731
      %2735 = vmatprep.subr.bf16.mxu0 0
      %2736 = vmatpush1.bf16.xpose.msra.mxu0 0
      %2737 = vmatprep.subr.bf16.mxu0 0
      %2738 = vmatpush1.bf16.xpose.msra.mxu0 0
      %2739 = vmatprep.subr.bf16.mxu0 0
      %2740 = vmatpush1.bf16.xpose.msra.mxu0 0
      %2741 = vmatprep.subr.bf16.mxu0 0
      %2742 = vmatpush1.bf16.xpose.msra.mxu0 0
      %2743 = vmatprep.subr.bf16.mxu0 0
      %2744 = vmatpush1.bf16.xpose.msra.mxu0 0
      %2745 = vmatprep.subr.bf16.mxu0 0
      %2746 = vmatpush1.bf16.xpose.msra.mxu0 0
      %2747 = vmatprep.subr.bf16.mxu0 0
      %2748 = vmatpush1.bf16.xpose.msra.mxu0 0
      %2749 = vmatprep.subr.bf16.mxu0 0
      %2750 = vmatpush1.bf16.xpose.msra.mxu0 0
      %2751 = vmatprep.subr.bf16.mxu0 0
      %2752 = vmatpush1.bf16.xpose.msra.mxu0 0
      %2753 = vmatprep.subr.bf16.mxu0 0
      %2754 = vmatpush1.bf16.xpose.msra.mxu0 0
      %2755 = vmatprep.subr.bf16.mxu0 0
      %2756 = vmatpush1.bf16.xpose.msra.mxu0 0
      %2757 = vmatprep.subr.bf16.mxu0 0
      %2758 = vmatpush1.bf16.xpose.msra.mxu0 0
      %2759 = vmatprep.subr.bf16.mxu0 0
      %2760 = vmatpush1.bf16.xpose.msra.mxu0 0
      %2761 = vmatprep.subr.bf16.mxu0 0
      %2762 = vmatpush1.bf16.xpose.msra.mxu0 0
      %2763 = vmatprep.subr.bf16.mxu0 0
      %2764 = vmatpush1.bf16.xpose.msra.mxu0 0
      %2765 = vmatprep.mubr.bf16.mxu0 0
      %2766 = vmatmul.mubr.bf16.gmra.mrb[0].mxu0 %v2728
      %v2767 = vpop.f32.mrb[0].mxu0
      %v2768 = vadd.f32 0.0, %v2767
      %v2769 = vpop.f32.mrb[0].mxu0
      %v2770 = vpop.f32.mrb[0].mxu0
      %v2771 = vadd.f32 0.0, %v2770
      %v2772 = vpop.f32.mrb[0].mxu0
      %2773 = vdwg.mxu0
      %v2774 = vmul.f32 %v2411, 0.35355338
      %v2775 = vmul.f32 %v2414, 0.35355338
      %v2776 = vmul.f32 %v2462, 0.35355338
      %v2777 = vmul.f32 %v2465, 0.35355338
      %v2778 = vmul.f32 %v2513, 0.35355338
      %v2779 = vmul.f32 %v2516, 0.35355338
      %v2780 = vmul.f32 %v2564, 0.35355338
      %v2781 = vmul.f32 %v2567, 0.35355338
      %v2782 = vmul.f32 %v2615, 0.35355338
      %v2783 = vmul.f32 %v2618, 0.35355338
      %v2784 = vmul.f32 %v2666, 0.35355338
      %v2785 = vmul.f32 %v2669, 0.35355338
      %v2786 = vmul.f32 %v2717, 0.35355338
      %v2787 = vmul.f32 %v2720, 0.35355338
      %v2788 = vmul.f32 %v2768, 0.35355338
      %v2789 = vmul.f32 %v2771, 0.35355338
      %v2790 = vsel %vm821, %v2774, -inf
      %2791 = vmax.xlane.f32.xlu0 %v2790
      %v2792 = vpop.xlane.xlu0 %2791
      %v2793 = vsel %vm821, %v2775, -inf
      %2794 = vmax.xlane.f32.xlu0 %v2793
      %v2795 = vpop.xlane.xlu0 %2794
      %v2796 = vsel %vm821, %v2776, -inf
      %2797 = vmax.xlane.f32.xlu0 %v2796
      %v2798 = vpop.xlane.xlu0 %2797
      %v2799 = vsel %vm821, %v2777, -inf
      %2800 = vmax.xlane.f32.xlu0 %v2799
      %v2801 = vpop.xlane.xlu0 %2800
      %v2802 = vsel %vm821, %v2778, -inf
      %2803 = vmax.xlane.f32.xlu0 %v2802
      %v2804 = vpop.xlane.xlu0 %2803
      %v2805 = vsel %vm821, %v2779, -inf
      %2806 = vmax.xlane.f32.xlu0 %v2805
      %v2807 = vpop.xlane.xlu0 %2806
      %v2808 = vsel %vm821, %v2780, -inf
      %2809 = vmax.xlane.f32.xlu0 %v2808
      %v2810 = vpop.xlane.xlu0 %2809
      %v2811 = vsel %vm821, %v2781, -inf
      %2812 = vmax.xlane.f32.xlu0 %v2811
      %v2813 = vpop.xlane.xlu0 %2812
      %v2814 = vsel %vm821, %v2782, -inf
      %2815 = vmax.xlane.f32.xlu0 %v2814
      %v2816 = vpop.xlane.xlu0 %2815
      %v2817 = vsel %vm821, %v2783, -inf
      %2818 = vmax.xlane.f32.xlu0 %v2817
      %v2819 = vpop.xlane.xlu0 %2818
      %v2820 = vsel %vm821, %v2784, -inf
      %2821 = vmax.xlane.f32.xlu0 %v2820
      %v2822 = vpop.xlane.xlu0 %2821
      %v2823 = vsel %vm821, %v2785, -inf
      %2824 = vmax.xlane.f32.xlu0 %v2823
      %v2825 = vpop.xlane.xlu0 %2824
      %v2826 = vsel %vm821, %v2786, -inf
      %2827 = vmax.xlane.f32.xlu0 %v2826
      %v2828 = vpop.xlane.xlu0 %2827
      %v2829 = vsel %vm821, %v2787, -inf
      %2830 = vmax.xlane.f32.xlu0 %v2829
      %v2831 = vpop.xlane.xlu0 %2830
      %v2832 = vsel %vm821, %v2788, -inf
      %2833 = vmax.xlane.f32.xlu0 %v2832
      %v2834 = vpop.xlane.xlu0 %2833
      %v2835 = vsel %vm821, %v2789, -inf
      %2836 = vmax.xlane.f32.xlu0 %v2835
      %v2837 = vpop.xlane.xlu0 %2836
      %v2838 = vsub.f32 %v2774, %v2792
      %v2839 = vsub.f32 %v2775, %v2795
      %v2840 = vsub.f32 %v2776, %v2798
      %v2841 = vsub.f32 %v2777, %v2801
      %v2842 = vsub.f32 %v2778, %v2804
      %v2843 = vsub.f32 %v2779, %v2807
      %v2844 = vsub.f32 %v2780, %v2810
      %v2845 = vsub.f32 %v2781, %v2813
      %v2846 = vsub.f32 %v2782, %v2816
      %v2847 = vsub.f32 %v2783, %v2819
      %v2848 = vsub.f32 %v2784, %v2822
      %v2849 = vsub.f32 %v2785, %v2825
      %v2850 = vsub.f32 %v2786, %v2828
      %v2851 = vsub.f32 %v2787, %v2831
      %v2852 = vsub.f32 %v2788, %v2834
      %v2853 = vsub.f32 %v2789, %v2837
      %v2854 = vmul.f32 %v2838, 1.442695
      %v2855 = vpow.pop %v2854
      %v2856 = vmul.f32 %v2839, 1.442695
      %v2857 = vpow.pop %v2856
      %v2858 = vmul.f32 %v2840, 1.442695
      %v2859 = vpow.pop %v2858
      %v2860 = vmul.f32 %v2841, 1.442695
      %v2861 = vpow.pop %v2860
      %v2862 = vmul.f32 %v2842, 1.442695
      %v2863 = vpow.pop %v2862
      %v2864 = vmul.f32 %v2843, 1.442695
      %v2865 = vpow.pop %v2864
      %v2866 = vmul.f32 %v2844, 1.442695
      %v2867 = vpow.pop %v2866
      %v2868 = vmul.f32 %v2845, 1.442695
      %v2869 = vpow.pop %v2868
      %v2870 = vmul.f32 %v2846, 1.442695
      %v2871 = vpow.pop %v2870
      %v2872 = vmul.f32 %v2847, 1.442695
      %v2873 = vpow.pop %v2872
      %v2874 = vmul.f32 %v2848, 1.442695
      %v2875 = vpow.pop %v2874
      %v2876 = vmul.f32 %v2849, 1.442695
      %v2877 = vpow.pop %v2876
      %v2878 = vmul.f32 %v2850, 1.442695
      %v2879 = vpow.pop %v2878
      %v2880 = vmul.f32 %v2851, 1.442695
      %v2881 = vpow.pop %v2880
      %v2882 = vmul.f32 %v2852, 1.442695
      %v2883 = vpow.pop %v2882
      %v2884 = vmul.f32 %v2853, 1.442695
      %v2885 = vpow.pop %v2884
      %v2886 = vsel %vm821, %v2855, 0.0
      %2887 = vadd.xlane.f32.xlu0 %v2886
      %v2888 = vpop.xlane.xlu0 %2887
      %v2889 = vsel %vm821, %v2857, 0.0
      %2890 = vadd.xlane.f32.xlu0 %v2889
      %v2891 = vpop.xlane.xlu0 %2890
      %v2892 = vsel %vm821, %v2859, 0.0
      %2893 = vadd.xlane.f32.xlu0 %v2892
      %v2894 = vpop.xlane.xlu0 %2893
      %v2895 = vsel %vm821, %v2861, 0.0
      %2896 = vadd.xlane.f32.xlu0 %v2895
      %v2897 = vpop.xlane.xlu0 %2896
      %v2898 = vsel %vm821, %v2863, 0.0
      %2899 = vadd.xlane.f32.xlu0 %v2898
      %v2900 = vpop.xlane.xlu0 %2899
      %v2901 = vsel %vm821, %v2865, 0.0
      %2902 = vadd.xlane.f32.xlu0 %v2901
      %v2903 = vpop.xlane.xlu0 %2902
      %v2904 = vsel %vm821, %v2867, 0.0
      %2905 = vadd.xlane.f32.xlu0 %v2904
      %v2906 = vpop.xlane.xlu0 %2905
      %v2907 = vsel %vm821, %v2869, 0.0
      %2908 = vadd.xlane.f32.xlu0 %v2907
      %v2909 = vpop.xlane.xlu0 %2908
      %v2910 = vsel %vm821, %v2871, 0.0
      %2911 = vadd.xlane.f32.xlu0 %v2910
      %v2912 = vpop.xlane.xlu0 %2911
      %v2913 = vsel %vm821, %v2873, 0.0
      %2914 = vadd.xlane.f32.xlu0 %v2913
      %v2915 = vpop.xlane.xlu0 %2914
      %v2916 = vsel %vm821, %v2875, 0.0
      %2917 = vadd.xlane.f32.xlu0 %v2916
      %v2918 = vpop.xlane.xlu0 %2917
      %v2919 = vsel %vm821, %v2877, 0.0
      %2920 = vadd.xlane.f32.xlu0 %v2919
      %v2921 = vpop.xlane.xlu0 %2920
      %v2922 = vsel %vm821, %v2879, 0.0
      %2923 = vadd.xlane.f32.xlu0 %v2922
      %v2924 = vpop.xlane.xlu0 %2923
      %v2925 = vsel %vm821, %v2881, 0.0
      %2926 = vadd.xlane.f32.xlu0 %v2925
      %v2927 = vpop.xlane.xlu0 %2926
      %v2928 = vsel %vm821, %v2883, 0.0
      %2929 = vadd.xlane.f32.xlu0 %v2928
      %v2930 = vpop.xlane.xlu0 %2929
      %v2931 = vsel %vm821, %v2885, 0.0
      %2932 = vadd.xlane.f32.xlu0 %v2931
      %v2933 = vpop.xlane.xlu0 %2932
      %v2934 = vrcp.pop %v2888
      %v2935 = vmul.f32 %v2855, %v2934
      %v2936 = vrcp.pop %v2891
      %v2937 = vmul.f32 %v2857, %v2936
      %v2938 = vrcp.pop %v2894
      %v2939 = vmul.f32 %v2859, %v2938
      %v2940 = vrcp.pop %v2897
      %v2941 = vmul.f32 %v2861, %v2940
      %v2942 = vrcp.pop %v2900
      %v2943 = vmul.f32 %v2863, %v2942
      %v2944 = vrcp.pop %v2903
      %v2945 = vmul.f32 %v2865, %v2944
      %v2946 = vrcp.pop %v2906
      %v2947 = vmul.f32 %v2867, %v2946
      %v2948 = vrcp.pop %v2909
      %v2949 = vmul.f32 %v2869, %v2948
      %v2950 = vrcp.pop %v2912
      %v2951 = vmul.f32 %v2871, %v2950
      %v2952 = vrcp.pop %v2915
      %v2953 = vmul.f32 %v2873, %v2952
      %v2954 = vrcp.pop %v2918
      %v2955 = vmul.f32 %v2875, %v2954
      %v2956 = vrcp.pop %v2921
      %v2957 = vmul.f32 %v2877, %v2956
      %v2958 = vrcp.pop %v2924
      %v2959 = vmul.f32 %v2879, %v2958
      %v2960 = vrcp.pop %v2927
      %v2961 = vmul.f32 %v2881, %v2960
      %v2962 = vrcp.pop %v2930
      %v2963 = vmul.f32 %v2883, %v2962
      %v2964 = vrcp.pop %v2933
      %v2965 = vmul.f32 %v2885, %v2964
      %v2966 = vpack.c.bf16 %v2937, %v2935
      %v2967 = vpack.c.bf16 %v2941, %v2939
      %v2968 = vpack.c.bf16 %v2945, %v2943
      %v2969 = vpack.c.bf16 %v2949, %v2947
      %v2970 = vpack.c.bf16 %v2953, %v2951
      %v2971 = vpack.c.bf16 %v2957, %v2955
      %v2972 = vpack.c.bf16 %v2961, %v2959
      %v2973 = vpack.c.bf16 %v2965, %v2963
      %2974 = vrot.lane.b32.xlu0 %v396, 48
      %v2975 = vpop.permute.xlu0 %2974
      %v2978 = vsel %vm821, %v2966, 0
      %2980 = vmatprep.subr.bf16.mxu0 0
      %2981 = vmatpush1.bf16.msra.mxu0 %v2975
      %2982 = vmatprep.subr.bf16.mxu0 0
      %2983 = vmatpush1.bf16.msra.mxu0 0
      %2984 = vmatprep.subr.bf16.mxu0 0
      %2985 = vmatpush1.bf16.msra.mxu0 0
      %2986 = vmatprep.subr.bf16.mxu0 0
      %2987 = vmatpush1.bf16.msra.mxu0 0
      %2988 = vmatprep.subr.bf16.mxu0 0
      %2989 = vmatpush1.bf16.msra.mxu0 0
      %2990 = vmatprep.subr.bf16.mxu0 0
      %2991 = vmatpush1.bf16.msra.mxu0 0
      %2992 = vmatprep.subr.bf16.mxu0 0
      %2993 = vmatpush1.bf16.msra.mxu0 0
      %2994 = vmatprep.subr.bf16.mxu0 0
      %2995 = vmatpush1.bf16.msra.mxu0 0
      %2996 = vmatprep.subr.bf16.mxu0 0
      %2997 = vmatpush1.bf16.msra.mxu0 0
      %2998 = vmatprep.subr.bf16.mxu0 0
      %2999 = vmatpush1.bf16.msra.mxu0 0
      %3000 = vmatprep.subr.bf16.mxu0 0
      %3001 = vmatpush1.bf16.msra.mxu0 0
      %3002 = vmatprep.subr.bf16.mxu0 0
      %3003 = vmatpush1.bf16.msra.mxu0 0
      %3004 = vmatprep.subr.bf16.mxu0 0
      %3005 = vmatpush1.bf16.msra.mxu0 0
      %3006 = vmatprep.subr.bf16.mxu0 0
      %3007 = vmatpush1.bf16.msra.mxu0 0
      %3008 = vmatprep.subr.bf16.mxu0 0
      %3009 = vmatpush1.bf16.msra.mxu0 0
      %3010 = vmatprep.subr.bf16.mxu0 0
      %3011 = vmatpush1.bf16.msra.mxu0 0
      %3012 = vmatprep.mubr.bf16.mxu0 0
      %3013 = vmatmul.mubr.bf16.gmra.mrb[0].mxu0 %v2978
      %v3014 = vpop.f32.mrb[0].mxu0
      %v3015 = vadd.f32 0.0, %v3014
      %v3016 = vpop.f32.mrb[0].mxu0
      %v3017 = vpop.f32.mrb[0].mxu0
      %v3018 = vadd.f32 0.0, %v3017
      %v3019 = vpop.f32.mrb[0].mxu0
      %3020 = vdwg.mxu0
      %3021 = vrot.lane.b32.xlu0 %v397, 48
      %v3022 = vpop.permute.xlu0 %3021
      %v3025 = vsel %vm821, %v2967, 0
      %3027 = vmatprep.subr.bf16.mxu0 0
      %3028 = vmatpush1.bf16.msra.mxu0 %v3022
      %3029 = vmatprep.subr.bf16.mxu0 0
      %3030 = vmatpush1.bf16.msra.mxu0 0
      %3031 = vmatprep.subr.bf16.mxu0 0
      %3032 = vmatpush1.bf16.msra.mxu0 0
      %3033 = vmatprep.subr.bf16.mxu0 0
      %3034 = vmatpush1.bf16.msra.mxu0 0
      %3035 = vmatprep.subr.bf16.mxu0 0
      %3036 = vmatpush1.bf16.msra.mxu0 0
      %3037 = vmatprep.subr.bf16.mxu0 0
      %3038 = vmatpush1.bf16.msra.mxu0 0
      %3039 = vmatprep.subr.bf16.mxu0 0
      %3040 = vmatpush1.bf16.msra.mxu0 0
      %3041 = vmatprep.subr.bf16.mxu0 0
      %3042 = vmatpush1.bf16.msra.mxu0 0
      %3043 = vmatprep.subr.bf16.mxu0 0
      %3044 = vmatpush1.bf16.msra.mxu0 0
      %3045 = vmatprep.subr.bf16.mxu0 0
      %3046 = vmatpush1.bf16.msra.mxu0 0
      %3047 = vmatprep.subr.bf16.mxu0 0
      %3048 = vmatpush1.bf16.msra.mxu0 0
      %3049 = vmatprep.subr.bf16.mxu0 0
      %3050 = vmatpush1.bf16.msra.mxu0 0
      %3051 = vmatprep.subr.bf16.mxu0 0
      %3052 = vmatpush1.bf16.msra.mxu0 0
      %3053 = vmatprep.subr.bf16.mxu0 0
      %3054 = vmatpush1.bf16.msra.mxu0 0
      %3055 = vmatprep.subr.bf16.mxu0 0
      %3056 = vmatpush1.bf16.msra.mxu0 0
      %3057 = vmatprep.subr.bf16.mxu0 0
      %3058 = vmatpush1.bf16.msra.mxu0 0
      %3059 = vmatprep.mubr.bf16.mxu0 0
      %3060 = vmatmul.mubr.bf16.gmra.mrb[0].mxu0 %v3025
      %v3061 = vpop.f32.mrb[0].mxu0
      %v3062 = vadd.f32 0.0, %v3061
      %v3063 = vpop.f32.mrb[0].mxu0
      %v3064 = vpop.f32.mrb[0].mxu0
      %v3065 = vadd.f32 0.0, %v3064
      %v3066 = vpop.f32.mrb[0].mxu0
      %3067 = vdwg.mxu0
      %3068 = vrot.lane.b32.xlu0 %v398, 48
      %v3069 = vpop.permute.xlu0 %3068
      %v3072 = vsel %vm821, %v2968, 0
      %3074 = vmatprep.subr.bf16.mxu0 0
      %3075 = vmatpush1.bf16.msra.mxu0 %v3069
      %3076 = vmatprep.subr.bf16.mxu0 0
      %3077 = vmatpush1.bf16.msra.mxu0 0
      %3078 = vmatprep.subr.bf16.mxu0 0
      %3079 = vmatpush1.bf16.msra.mxu0 0
      %3080 = vmatprep.subr.bf16.mxu0 0
      %3081 = vmatpush1.bf16.msra.mxu0 0
      %3082 = vmatprep.subr.bf16.mxu0 0
      %3083 = vmatpush1.bf16.msra.mxu0 0
      %3084 = vmatprep.subr.bf16.mxu0 0
      %3085 = vmatpush1.bf16.msra.mxu0 0
      %3086 = vmatprep.subr.bf16.mxu0 0
      %3087 = vmatpush1.bf16.msra.mxu0 0
      %3088 = vmatprep.subr.bf16.mxu0 0
      %3089 = vmatpush1.bf16.msra.mxu0 0
      %3090 = vmatprep.subr.bf16.mxu0 0
      %3091 = vmatpush1.bf16.msra.mxu0 0
      %3092 = vmatprep.subr.bf16.mxu0 0
      %3093 = vmatpush1.bf16.msra.mxu0 0
      %3094 = vmatprep.subr.bf16.mxu0 0
      %3095 = vmatpush1.bf16.msra.mxu0 0
      %3096 = vmatprep.subr.bf16.mxu0 0
      %3097 = vmatpush1.bf16.msra.mxu0 0
      %3098 = vmatprep.subr.bf16.mxu0 0
      %3099 = vmatpush1.bf16.msra.mxu0 0
      %3100 = vmatprep.subr.bf16.mxu0 0
      %3101 = vmatpush1.bf16.msra.mxu0 0
      %3102 = vmatprep.subr.bf16.mxu0 0
      %3103 = vmatpush1.bf16.msra.mxu0 0
      %3104 = vmatprep.subr.bf16.mxu0 0
      %3105 = vmatpush1.bf16.msra.mxu0 0
      %3106 = vmatprep.mubr.bf16.mxu0 0
      %3107 = vmatmul.mubr.bf16.gmra.mrb[0].mxu0 %v3072
      %v3108 = vpop.f32.mrb[0].mxu0
      %v3109 = vadd.f32 0.0, %v3108
      %v3110 = vpop.f32.mrb[0].mxu0
      %v3111 = vpop.f32.mrb[0].mxu0
      %v3112 = vadd.f32 0.0, %v3111
      %v3113 = vpop.f32.mrb[0].mxu0
      %3114 = vdwg.mxu0
      %3115 = vrot.lane.b32.xlu0 %v399, 48
      %v3116 = vpop.permute.xlu0 %3115
      %v3119 = vsel %vm821, %v2969, 0
      %3121 = vmatprep.subr.bf16.mxu0 0
      %3122 = vmatpush1.bf16.msra.mxu0 %v3116
      %3123 = vmatprep.subr.bf16.mxu0 0
      %3124 = vmatpush1.bf16.msra.mxu0 0
      %3125 = vmatprep.subr.bf16.mxu0 0
      %3126 = vmatpush1.bf16.msra.mxu0 0
      %3127 = vmatprep.subr.bf16.mxu0 0
      %3128 = vmatpush1.bf16.msra.mxu0 0
      %3129 = vmatprep.subr.bf16.mxu0 0
      %3130 = vmatpush1.bf16.msra.mxu0 0
      %3131 = vmatprep.subr.bf16.mxu0 0
      %3132 = vmatpush1.bf16.msra.mxu0 0
      %3133 = vmatprep.subr.bf16.mxu0 0
      %3134 = vmatpush1.bf16.msra.mxu0 0
      %3135 = vmatprep.subr.bf16.mxu0 0
      %3136 = vmatpush1.bf16.msra.mxu0 0
      %3137 = vmatprep.subr.bf16.mxu0 0
      %3138 = vmatpush1.bf16.msra.mxu0 0
      %3139 = vmatprep.subr.bf16.mxu0 0
      %3140 = vmatpush1.bf16.msra.mxu0 0
      %3141 = vmatprep.subr.bf16.mxu0 0
      %3142 = vmatpush1.bf16.msra.mxu0 0
      %3143 = vmatprep.subr.bf16.mxu0 0
      %3144 = vmatpush1.bf16.msra.mxu0 0
      %3145 = vmatprep.subr.bf16.mxu0 0
      %3146 = vmatpush1.bf16.msra.mxu0 0
      %3147 = vmatprep.subr.bf16.mxu0 0
      %3148 = vmatpush1.bf16.msra.mxu0 0
      %3149 = vmatprep.subr.bf16.mxu0 0
      %3150 = vmatpush1.bf16.msra.mxu0 0
      %3151 = vmatprep.subr.bf16.mxu0 0
      %3152 = vmatpush1.bf16.msra.mxu0 0
      %3153 = vmatprep.mubr.bf16.mxu0 0
      %3154 = vmatmul.mubr.bf16.gmra.mrb[0].mxu0 %v3119
      %v3155 = vpop.f32.mrb[0].mxu0
      %v3156 = vadd.f32 0.0, %v3155
      %v3157 = vpop.f32.mrb[0].mxu0
      %v3158 = vpop.f32.mrb[0].mxu0
      %v3159 = vadd.f32 0.0, %v3158
      %v3160 = vpop.f32.mrb[0].mxu0
      %3161 = vdwg.mxu0
      %3162 = vrot.lane.b32.xlu0 %v400, 48
      %v3163 = vpop.permute.xlu0 %3162
      %v3166 = vsel %vm821, %v2970, 0
      %3168 = vmatprep.subr.bf16.mxu0 0
      %3169 = vmatpush1.bf16.msra.mxu0 %v3163
      %3170 = vmatprep.subr.bf16.mxu0 0
      %3171 = vmatpush1.bf16.msra.mxu0 0
      %3172 = vmatprep.subr.bf16.mxu0 0
      %3173 = vmatpush1.bf16.msra.mxu0 0
      %3174 = vmatprep.subr.bf16.mxu0 0
      %3175 = vmatpush1.bf16.msra.mxu0 0
      %3176 = vmatprep.subr.bf16.mxu0 0
      %3177 = vmatpush1.bf16.msra.mxu0 0
      %3178 = vmatprep.subr.bf16.mxu0 0
      %3179 = vmatpush1.bf16.msra.mxu0 0
      %3180 = vmatprep.subr.bf16.mxu0 0
      %3181 = vmatpush1.bf16.msra.mxu0 0
      %3182 = vmatprep.subr.bf16.mxu0 0
      %3183 = vmatpush1.bf16.msra.mxu0 0
      %3184 = vmatprep.subr.bf16.mxu0 0
      %3185 = vmatpush1.bf16.msra.mxu0 0
      %3186 = vmatprep.subr.bf16.mxu0 0
      %3187 = vmatpush1.bf16.msra.mxu0 0
      %3188 = vmatprep.subr.bf16.mxu0 0
      %3189 = vmatpush1.bf16.msra.mxu0 0
      %3190 = vmatprep.subr.bf16.mxu0 0
      %3191 = vmatpush1.bf16.msra.mxu0 0
      %3192 = vmatprep.subr.bf16.mxu0 0
      %3193 = vmatpush1.bf16.msra.mxu0 0
      %3194 = vmatprep.subr.bf16.mxu0 0
      %3195 = vmatpush1.bf16.msra.mxu0 0
      %3196 = vmatprep.subr.bf16.mxu0 0
      %3197 = vmatpush1.bf16.msra.mxu0 0
      %3198 = vmatprep.subr.bf16.mxu0 0
      %3199 = vmatpush1.bf16.msra.mxu0 0
      %3200 = vmatprep.mubr.bf16.mxu0 0
      %3201 = vmatmul.mubr.bf16.gmra.mrb[0].mxu0 %v3166
      %v3202 = vpop.f32.mrb[0].mxu0
      %v3203 = vadd.f32 0.0, %v3202
      %v3204 = vpop.f32.mrb[0].mxu0
      %v3205 = vpop.f32.mrb[0].mxu0
      %v3206 = vadd.f32 0.0, %v3205
      %v3207 = vpop.f32.mrb[0].mxu0
      %3208 = vdwg.mxu0
      %3209 = vrot.lane.b32.xlu0 %v401, 48
      %v3210 = vpop.permute.xlu0 %3209
      %v3213 = vsel %vm821, %v2971, 0
      %3215 = vmatprep.subr.bf16.mxu0 0
      %3216 = vmatpush1.bf16.msra.mxu0 %v3210
      %3217 = vmatprep.subr.bf16.mxu0 0
      %3218 = vmatpush1.bf16.msra.mxu0 0
      %3219 = vmatprep.subr.bf16.mxu0 0
      %3220 = vmatpush1.bf16.msra.mxu0 0
      %3221 = vmatprep.subr.bf16.mxu0 0
      %3222 = vmatpush1.bf16.msra.mxu0 0
      %3223 = vmatprep.subr.bf16.mxu0 0
      %3224 = vmatpush1.bf16.msra.mxu0 0
      %3225 = vmatprep.subr.bf16.mxu0 0
      %3226 = vmatpush1.bf16.msra.mxu0 0
      %3227 = vmatprep.subr.bf16.mxu0 0
      %3228 = vmatpush1.bf16.msra.mxu0 0
      %3229 = vmatprep.subr.bf16.mxu0 0
      %3230 = vmatpush1.bf16.msra.mxu0 0
      %3231 = vmatprep.subr.bf16.mxu0 0
      %3232 = vmatpush1.bf16.msra.mxu0 0
      %3233 = vmatprep.subr.bf16.mxu0 0
      %3234 = vmatpush1.bf16.msra.mxu0 0
      %3235 = vmatprep.subr.bf16.mxu0 0
      %3236 = vmatpush1.bf16.msra.mxu0 0
      %3237 = vmatprep.subr.bf16.mxu0 0
      %3238 = vmatpush1.bf16.msra.mxu0 0
      %3239 = vmatprep.subr.bf16.mxu0 0
      %3240 = vmatpush1.bf16.msra.mxu0 0
      %3241 = vmatprep.subr.bf16.mxu0 0
      %3242 = vmatpush1.bf16.msra.mxu0 0
      %3243 = vmatprep.subr.bf16.mxu0 0
      %3244 = vmatpush1.bf16.msra.mxu0 0
      %3245 = vmatprep.subr.bf16.mxu0 0
      %3246 = vmatpush1.bf16.msra.mxu0 0
      %3247 = vmatprep.mubr.bf16.mxu0 0
      %3248 = vmatmul.mubr.bf16.gmra.mrb[0].mxu0 %v3213
      %v3249 = vpop.f32.mrb[0].mxu0
      %v3250 = vadd.f32 0.0, %v3249
      %v3251 = vpop.f32.mrb[0].mxu0
      %v3252 = vpop.f32.mrb[0].mxu0
      %v3253 = vadd.f32 0.0, %v3252
      %v3254 = vpop.f32.mrb[0].mxu0
      %3255 = vdwg.mxu0
      %3256 = vrot.lane.b32.xlu0 %v402, 48
      %v3257 = vpop.permute.xlu0 %3256
      %v3260 = vsel %vm821, %v2972, 0
      %3262 = vmatprep.subr.bf16.mxu0 0
      %3263 = vmatpush1.bf16.msra.mxu0 %v3257
      %3264 = vmatprep.subr.bf16.mxu0 0
      %3265 = vmatpush1.bf16.msra.mxu0 0
      %3266 = vmatprep.subr.bf16.mxu0 0
      %3267 = vmatpush1.bf16.msra.mxu0 0
      %3268 = vmatprep.subr.bf16.mxu0 0
      %3269 = vmatpush1.bf16.msra.mxu0 0
      %3270 = vmatprep.subr.bf16.mxu0 0
      %3271 = vmatpush1.bf16.msra.mxu0 0
      %3272 = vmatprep.subr.bf16.mxu0 0
      %3273 = vmatpush1.bf16.msra.mxu0 0
      %3274 = vmatprep.subr.bf16.mxu0 0
      %3275 = vmatpush1.bf16.msra.mxu0 0
      %3276 = vmatprep.subr.bf16.mxu0 0
      %3277 = vmatpush1.bf16.msra.mxu0 0
      %3278 = vmatprep.subr.bf16.mxu0 0
      %3279 = vmatpush1.bf16.msra.mxu0 0
      %3280 = vmatprep.subr.bf16.mxu0 0
      %3281 = vmatpush1.bf16.msra.mxu0 0
      %3282 = vmatprep.subr.bf16.mxu0 0
      %3283 = vmatpush1.bf16.msra.mxu0 0
      %3284 = vmatprep.subr.bf16.mxu0 0
      %3285 = vmatpush1.bf16.msra.mxu0 0
      %3286 = vmatprep.subr.bf16.mxu0 0
      %3287 = vmatpush1.bf16.msra.mxu0 0
      %3288 = vmatprep.subr.bf16.mxu0 0
      %3289 = vmatpush1.bf16.msra.mxu0 0
      %3290 = vmatprep.subr.bf16.mxu0 0
      %3291 = vmatpush1.bf16.msra.mxu0 0
      %3292 = vmatprep.subr.bf16.mxu0 0
      %3293 = vmatpush1.bf16.msra.mxu0 0
      %3294 = vmatprep.mubr.bf16.mxu0 0
      %3295 = vmatmul.mubr.bf16.gmra.mrb[0].mxu0 %v3260
      %v3296 = vpop.f32.mrb[0].mxu0
      %v3297 = vadd.f32 0.0, %v3296
      %v3298 = vpop.f32.mrb[0].mxu0
      %v3299 = vpop.f32.mrb[0].mxu0
      %v3300 = vadd.f32 0.0, %v3299
      %v3301 = vpop.f32.mrb[0].mxu0
      %3302 = vdwg.mxu0
      %3303 = vrot.lane.b32.xlu0 %v403, 48
      %v3304 = vpop.permute.xlu0 %3303
      %v3307 = vsel %vm821, %v2973, 0
      %3309 = vmatprep.subr.bf16.mxu0 0
      %3310 = vmatpush1.bf16.msra.mxu0 %v3304
      %3311 = vmatprep.subr.bf16.mxu0 0
      %3312 = vmatpush1.bf16.msra.mxu0 0
      %3313 = vmatprep.subr.bf16.mxu0 0
      %3314 = vmatpush1.bf16.msra.mxu0 0
      %3315 = vmatprep.subr.bf16.mxu0 0
      %3316 = vmatpush1.bf16.msra.mxu0 0
      %3317 = vmatprep.subr.bf16.mxu0 0
      %3318 = vmatpush1.bf16.msra.mxu0 0
      %3319 = vmatprep.subr.bf16.mxu0 0
      %3320 = vmatpush1.bf16.msra.mxu0 0
      %3321 = vmatprep.subr.bf16.mxu0 0
      %3322 = vmatpush1.bf16.msra.mxu0 0
      %3323 = vmatprep.subr.bf16.mxu0 0
      %3324 = vmatpush1.bf16.msra.mxu0 0
      %3325 = vmatprep.subr.bf16.mxu0 0
      %3326 = vmatpush1.bf16.msra.mxu0 0
      %3327 = vmatprep.subr.bf16.mxu0 0
      %3328 = vmatpush1.bf16.msra.mxu0 0
      %3329 = vmatprep.subr.bf16.mxu0 0
      %3330 = vmatpush1.bf16.msra.mxu0 0
      %3331 = vmatprep.subr.bf16.mxu0 0
      %3332 = vmatpush1.bf16.msra.mxu0 0
      %3333 = vmatprep.subr.bf16.mxu0 0
      %3334 = vmatpush1.bf16.msra.mxu0 0
      %3335 = vmatprep.subr.bf16.mxu0 0
      %3336 = vmatpush1.bf16.msra.mxu0 0
      %3337 = vmatprep.subr.bf16.mxu0 0
      %3338 = vmatpush1.bf16.msra.mxu0 0
      %3339 = vmatprep.subr.bf16.mxu0 0
      %3340 = vmatpush1.bf16.msra.mxu0 0
      %3341 = vmatprep.mubr.bf16.mxu0 0
      %3342 = vmatmul.mubr.bf16.gmra.mrb[0].mxu0 %v3307
      %v3343 = vpop.f32.mrb[0].mxu0
      %v3344 = vadd.f32 0.0, %v3343
      %v3345 = vpop.f32.mrb[0].mxu0
      %v3346 = vpop.f32.mrb[0].mxu0
      %v3347 = vadd.f32 0.0, %v3346
      %v3348 = vpop.f32.mrb[0].mxu0
      %3349 = vdwg.mxu0
      %3350 = vrot.lane.b32.xlu0 %v396, 104
      %v3351 = vpop.permute.xlu0 %3350
      %3352 = vrot.lane.b32.xlu0 %v396, 72
      %v3353 = vpop.permute.xlu0 %3352
      %v3355 = vsel %vm407, %v3351, 0
      %v3358 = vsel %vm407, %v3353, 0
      %3360 = vmatprep.subr.bf16.mxu0 0
      %3361 = vmatpush1.bf16.xpose.msra.mxu0 %v3358
      %3362 = vmatprep.subr.bf16.mxu0 0
      %3363 = vmatpush1.bf16.xpose.msra.mxu0 0
      %3364 = vmatprep.subr.bf16.mxu0 0
      %3365 = vmatpush1.bf16.xpose.msra.mxu0 0
      %3366 = vmatprep.subr.bf16.mxu0 0
      %3367 = vmatpush1.bf16.xpose.msra.mxu0 0
      %3368 = vmatprep.subr.bf16.mxu0 0
      %3369 = vmatpush1.bf16.xpose.msra.mxu0 0
      %3370 = vmatprep.subr.bf16.mxu0 0
      %3371 = vmatpush1.bf16.xpose.msra.mxu0 0
      %3372 = vmatprep.subr.bf16.mxu0 0
      %3373 = vmatpush1.bf16.xpose.msra.mxu0 0
      %3374 = vmatprep.subr.bf16.mxu0 0
      %3375 = vmatpush1.bf16.xpose.msra.mxu0 0
      %3376 = vmatprep.subr.bf16.mxu0 0
      %3377 = vmatpush1.bf16.xpose.msra.mxu0 0
      %3378 = vmatprep.subr.bf16.mxu0 0
      %3379 = vmatpush1.bf16.xpose.msra.mxu0 0
      %3380 = vmatprep.subr.bf16.mxu0 0
      %3381 = vmatpush1.bf16.xpose.msra.mxu0 0
      %3382 = vmatprep.subr.bf16.mxu0 0
      %3383 = vmatpush1.bf16.xpose.msra.mxu0 0
      %3384 = vmatprep.subr.bf16.mxu0 0
      %3385 = vmatpush1.bf16.xpose.msra.mxu0 0
      %3386 = vmatprep.subr.bf16.mxu0 0
      %3387 = vmatpush1.bf16.xpose.msra.mxu0 0
      %3388 = vmatprep.subr.bf16.mxu0 0
      %3389 = vmatpush1.bf16.xpose.msra.mxu0 0
      %3390 = vmatprep.subr.bf16.mxu0 0
      %3391 = vmatpush1.bf16.xpose.msra.mxu0 0
      %3392 = vmatprep.mubr.bf16.mxu0 0
      %3393 = vmatmul.mubr.bf16.gmra.mrb[0].mxu0 %v3355
      %v3394 = vpop.f32.mrb[0].mxu0
      %v3395 = vadd.f32 0.0, %v3394
      %v3396 = vpop.f32.mrb[0].mxu0
      %v3397 = vpop.f32.mrb[0].mxu0
      %v3398 = vadd.f32 0.0, %v3397
      %v3399 = vpop.f32.mrb[0].mxu0
      %3400 = vdwg.mxu0
      %3401 = vrot.lane.b32.xlu0 %v397, 104
      %v3402 = vpop.permute.xlu0 %3401
      %3403 = vrot.lane.b32.xlu0 %v397, 72
      %v3404 = vpop.permute.xlu0 %3403
      %v3406 = vsel %vm407, %v3402, 0
      %v3409 = vsel %vm407, %v3404, 0
      %3411 = vmatprep.subr.bf16.mxu0 0
      %3412 = vmatpush1.bf16.xpose.msra.mxu0 %v3409
      %3413 = vmatprep.subr.bf16.mxu0 0
      %3414 = vmatpush1.bf16.xpose.msra.mxu0 0
      %3415 = vmatprep.subr.bf16.mxu0 0
      %3416 = vmatpush1.bf16.xpose.msra.mxu0 0
      %3417 = vmatprep.subr.bf16.mxu0 0
      %3418 = vmatpush1.bf16.xpose.msra.mxu0 0
      %3419 = vmatprep.subr.bf16.mxu0 0
      %3420 = vmatpush1.bf16.xpose.msra.mxu0 0
      %3421 = vmatprep.subr.bf16.mxu0 0
      %3422 = vmatpush1.bf16.xpose.msra.mxu0 0
      %3423 = vmatprep.subr.bf16.mxu0 0
      %3424 = vmatpush1.bf16.xpose.msra.mxu0 0
      %3425 = vmatprep.subr.bf16.mxu0 0
      %3426 = vmatpush1.bf16.xpose.msra.mxu0 0
      %3427 = vmatprep.subr.bf16.mxu0 0
      %3428 = vmatpush1.bf16.xpose.msra.mxu0 0
      %3429 = vmatprep.subr.bf16.mxu0 0
      %3430 = vmatpush1.bf16.xpose.msra.mxu0 0
      %3431 = vmatprep.subr.bf16.mxu0 0
      %3432 = vmatpush1.bf16.xpose.msra.mxu0 0
      %3433 = vmatprep.subr.bf16.mxu0 0
      %3434 = vmatpush1.bf16.xpose.msra.mxu0 0
      %3435 = vmatprep.subr.bf16.mxu0 0
      %3436 = vmatpush1.bf16.xpose.msra.mxu0 0
      %3437 = vmatprep.subr.bf16.mxu0 0
      %3438 = vmatpush1.bf16.xpose.msra.mxu0 0
      %3439 = vmatprep.subr.bf16.mxu0 0
      %3440 = vmatpush1.bf16.xpose.msra.mxu0 0
      %3441 = vmatprep.subr.bf16.mxu0 0
      %3442 = vmatpush1.bf16.xpose.msra.mxu0 0
      %3443 = vmatprep.mubr.bf16.mxu0 0
      %3444 = vmatmul.mubr.bf16.gmra.mrb[0].mxu0 %v3406
      %v3445 = vpop.f32.mrb[0].mxu0
      %v3446 = vadd.f32 0.0, %v3445
      %v3447 = vpop.f32.mrb[0].mxu0
      %v3448 = vpop.f32.mrb[0].mxu0
      %v3449 = vadd.f32 0.0, %v3448
      %v3450 = vpop.f32.mrb[0].mxu0
      %3451 = vdwg.mxu0
      %3452 = vrot.lane.b32.xlu0 %v398, 104
      %v3453 = vpop.permute.xlu0 %3452
      %3454 = vrot.lane.b32.xlu0 %v398, 72
      %v3455 = vpop.permute.xlu0 %3454
      %v3457 = vsel %vm407, %v3453, 0
      %v3460 = vsel %vm407, %v3455, 0
      %3462 = vmatprep.subr.bf16.mxu0 0
      %3463 = vmatpush1.bf16.xpose.msra.mxu0 %v3460
      %3464 = vmatprep.subr.bf16.mxu0 0
      %3465 = vmatpush1.bf16.xpose.msra.mxu0 0
      %3466 = vmatprep.subr.bf16.mxu0 0
      %3467 = vmatpush1.bf16.xpose.msra.mxu0 0
      %3468 = vmatprep.subr.bf16.mxu0 0
      %3469 = vmatpush1.bf16.xpose.msra.mxu0 0
      %3470 = vmatprep.subr.bf16.mxu0 0
      %3471 = vmatpush1.bf16.xpose.msra.mxu0 0
      %3472 = vmatprep.subr.bf16.mxu0 0
      %3473 = vmatpush1.bf16.xpose.msra.mxu0 0
      %3474 = vmatprep.subr.bf16.mxu0 0
      %3475 = vmatpush1.bf16.xpose.msra.mxu0 0
      %3476 = vmatprep.subr.bf16.mxu0 0
      %3477 = vmatpush1.bf16.xpose.msra.mxu0 0
      %3478 = vmatprep.subr.bf16.mxu0 0
      %3479 = vmatpush1.bf16.xpose.msra.mxu0 0
      %3480 = vmatprep.subr.bf16.mxu0 0
      %3481 = vmatpush1.bf16.xpose.msra.mxu0 0
      %3482 = vmatprep.subr.bf16.mxu0 0
      %3483 = vmatpush1.bf16.xpose.msra.mxu0 0
      %3484 = vmatprep.subr.bf16.mxu0 0
      %3485 = vmatpush1.bf16.xpose.msra.mxu0 0
      %3486 = vmatprep.subr.bf16.mxu0 0
      %3487 = vmatpush1.bf16.xpose.msra.mxu0 0
      %3488 = vmatprep.subr.bf16.mxu0 0
      %3489 = vmatpush1.bf16.xpose.msra.mxu0 0
      %3490 = vmatprep.subr.bf16.mxu0 0
      %3491 = vmatpush1.bf16.xpose.msra.mxu0 0
      %3492 = vmatprep.subr.bf16.mxu0 0
      %3493 = vmatpush1.bf16.xpose.msra.mxu0 0
      %3494 = vmatprep.mubr.bf16.mxu0 0
      %3495 = vmatmul.mubr.bf16.gmra.mrb[0].mxu0 %v3457
      %v3496 = vpop.f32.mrb[0].mxu0
      %v3497 = vadd.f32 0.0, %v3496
      %v3498 = vpop.f32.mrb[0].mxu0
      %v3499 = vpop.f32.mrb[0].mxu0
      %v3500 = vadd.f32 0.0, %v3499
      %v3501 = vpop.f32.mrb[0].mxu0
      %3502 = vdwg.mxu0
      %3503 = vrot.lane.b32.xlu0 %v399, 104
      %v3504 = vpop.permute.xlu0 %3503
      %3505 = vrot.lane.b32.xlu0 %v399, 72
      %v3506 = vpop.permute.xlu0 %3505
      %v3508 = vsel %vm407, %v3504, 0
      %v3511 = vsel %vm407, %v3506, 0
      %3513 = vmatprep.subr.bf16.mxu0 0
      %3514 = vmatpush1.bf16.xpose.msra.mxu0 %v3511
      %3515 = vmatprep.subr.bf16.mxu0 0
      %3516 = vmatpush1.bf16.xpose.msra.mxu0 0
      %3517 = vmatprep.subr.bf16.mxu0 0
      %3518 = vmatpush1.bf16.xpose.msra.mxu0 0
      %3519 = vmatprep.subr.bf16.mxu0 0
      %3520 = vmatpush1.bf16.xpose.msra.mxu0 0
      %3521 = vmatprep.subr.bf16.mxu0 0
      %3522 = vmatpush1.bf16.xpose.msra.mxu0 0
      %3523 = vmatprep.subr.bf16.mxu0 0
      %3524 = vmatpush1.bf16.xpose.msra.mxu0 0
      %3525 = vmatprep.subr.bf16.mxu0 0
      %3526 = vmatpush1.bf16.xpose.msra.mxu0 0
      %3527 = vmatprep.subr.bf16.mxu0 0
      %3528 = vmatpush1.bf16.xpose.msra.mxu0 0
      %3529 = vmatprep.subr.bf16.mxu0 0
      %3530 = vmatpush1.bf16.xpose.msra.mxu0 0
      %3531 = vmatprep.subr.bf16.mxu0 0
      %3532 = vmatpush1.bf16.xpose.msra.mxu0 0
      %3533 = vmatprep.subr.bf16.mxu0 0
      %3534 = vmatpush1.bf16.xpose.msra.mxu0 0
      %3535 = vmatprep.subr.bf16.mxu0 0
      %3536 = vmatpush1.bf16.xpose.msra.mxu0 0
      %3537 = vmatprep.subr.bf16.mxu0 0
      %3538 = vmatpush1.bf16.xpose.msra.mxu0 0
      %3539 = vmatprep.subr.bf16.mxu0 0
      %3540 = vmatpush1.bf16.xpose.msra.mxu0 0
      %3541 = vmatprep.subr.bf16.mxu0 0
      %3542 = vmatpush1.bf16.xpose.msra.mxu0 0
      %3543 = vmatprep.subr.bf16.mxu0 0
      %3544 = vmatpush1.bf16.xpose.msra.mxu0 0
      %3545 = vmatprep.mubr.bf16.mxu0 0
      %3546 = vmatmul.mubr.bf16.gmra.mrb[0].mxu0 %v3508
      %v3547 = vpop.f32.mrb[0].mxu0
      %v3548 = vadd.f32 0.0, %v3547
      %v3549 = vpop.f32.mrb[0].mxu0
      %v3550 = vpop.f32.mrb[0].mxu0
      %v3551 = vadd.f32 0.0, %v3550
      %v3552 = vpop.f32.mrb[0].mxu0
      %3553 = vdwg.mxu0
      %3554 = vrot.lane.b32.xlu0 %v400, 104
      %v3555 = vpop.permute.xlu0 %3554
      %3556 = vrot.lane.b32.xlu0 %v400, 72
      %v3557 = vpop.permute.xlu0 %3556
      %v3559 = vsel %vm407, %v3555, 0
      %v3562 = vsel %vm407, %v3557, 0
      %3564 = vmatprep.subr.bf16.mxu0 0
      %3565 = vmatpush1.bf16.xpose.msra.mxu0 %v3562
      %3566 = vmatprep.subr.bf16.mxu0 0
      %3567 = vmatpush1.bf16.xpose.msra.mxu0 0
      %3568 = vmatprep.subr.bf16.mxu0 0
      %3569 = vmatpush1.bf16.xpose.msra.mxu0 0
      %3570 = vmatprep.subr.bf16.mxu0 0
      %3571 = vmatpush1.bf16.xpose.msra.mxu0 0
      %3572 = vmatprep.subr.bf16.mxu0 0
      %3573 = vmatpush1.bf16.xpose.msra.mxu0 0
      %3574 = vmatprep.subr.bf16.mxu0 0
      %3575 = vmatpush1.bf16.xpose.msra.mxu0 0
      %3576 = vmatprep.subr.bf16.mxu0 0
      %3577 = vmatpush1.bf16.xpose.msra.mxu0 0
      %3578 = vmatprep.subr.bf16.mxu0 0
      %3579 = vmatpush1.bf16.xpose.msra.mxu0 0
      %3580 = vmatprep.subr.bf16.mxu0 0
      %3581 = vmatpush1.bf16.xpose.msra.mxu0 0
      %3582 = vmatprep.subr.bf16.mxu0 0
      %3583 = vmatpush1.bf16.xpose.msra.mxu0 0
      %3584 = vmatprep.subr.bf16.mxu0 0
      %3585 = vmatpush1.bf16.xpose.msra.mxu0 0
      %3586 = vmatprep.subr.bf16.mxu0 0
      %3587 = vmatpush1.bf16.xpose.msra.mxu0 0
      %3588 = vmatprep.subr.bf16.mxu0 0
      %3589 = vmatpush1.bf16.xpose.msra.mxu0 0
      %3590 = vmatprep.subr.bf16.mxu0 0
      %3591 = vmatpush1.bf16.xpose.msra.mxu0 0
      %3592 = vmatprep.subr.bf16.mxu0 0
      %3593 = vmatpush1.bf16.xpose.msra.mxu0 0
      %3594 = vmatprep.subr.bf16.mxu0 0
      %3595 = vmatpush1.bf16.xpose.msra.mxu0 0
      %3596 = vmatprep.mubr.bf16.mxu0 0
      %3597 = vmatmul.mubr.bf16.gmra.mrb[0].mxu0 %v3559
      %v3598 = vpop.f32.mrb[0].mxu0
      %v3599 = vadd.f32 0.0, %v3598
      %v3600 = vpop.f32.mrb[0].mxu0
      %v3601 = vpop.f32.mrb[0].mxu0
      %v3602 = vadd.f32 0.0, %v3601
      %v3603 = vpop.f32.mrb[0].mxu0
      %3604 = vdwg.mxu0
      %3605 = vrot.lane.b32.xlu0 %v401, 104
      %v3606 = vpop.permute.xlu0 %3605
      %3607 = vrot.lane.b32.xlu0 %v401, 72
      %v3608 = vpop.permute.xlu0 %3607
      %v3610 = vsel %vm407, %v3606, 0
      %v3613 = vsel %vm407, %v3608, 0
      %3615 = vmatprep.subr.bf16.mxu0 0
      %3616 = vmatpush1.bf16.xpose.msra.mxu0 %v3613
      %3617 = vmatprep.subr.bf16.mxu0 0
      %3618 = vmatpush1.bf16.xpose.msra.mxu0 0
      %3619 = vmatprep.subr.bf16.mxu0 0
      %3620 = vmatpush1.bf16.xpose.msra.mxu0 0
      %3621 = vmatprep.subr.bf16.mxu0 0
      %3622 = vmatpush1.bf16.xpose.msra.mxu0 0
      %3623 = vmatprep.subr.bf16.mxu0 0
      %3624 = vmatpush1.bf16.xpose.msra.mxu0 0
      %3625 = vmatprep.subr.bf16.mxu0 0
      %3626 = vmatpush1.bf16.xpose.msra.mxu0 0
      %3627 = vmatprep.subr.bf16.mxu0 0
      %3628 = vmatpush1.bf16.xpose.msra.mxu0 0
      %3629 = vmatprep.subr.bf16.mxu0 0
      %3630 = vmatpush1.bf16.xpose.msra.mxu0 0
      %3631 = vmatprep.subr.bf16.mxu0 0
      %3632 = vmatpush1.bf16.xpose.msra.mxu0 0
      %3633 = vmatprep.subr.bf16.mxu0 0
      %3634 = vmatpush1.bf16.xpose.msra.mxu0 0
      %3635 = vmatprep.subr.bf16.mxu0 0
      %3636 = vmatpush1.bf16.xpose.msra.mxu0 0
      %3637 = vmatprep.subr.bf16.mxu0 0
      %3638 = vmatpush1.bf16.xpose.msra.mxu0 0
      %3639 = vmatprep.subr.bf16.mxu0 0
      %3640 = vmatpush1.bf16.xpose.msra.mxu0 0
      %3641 = vmatprep.subr.bf16.mxu0 0
      %3642 = vmatpush1.bf16.xpose.msra.mxu0 0
      %3643 = vmatprep.subr.bf16.mxu0 0
      %3644 = vmatpush1.bf16.xpose.msra.mxu0 0
      %3645 = vmatprep.subr.bf16.mxu0 0
      %3646 = vmatpush1.bf16.xpose.msra.mxu0 0
      %3647 = vmatprep.mubr.bf16.mxu0 0
      %3648 = vmatmul.mubr.bf16.gmra.mrb[0].mxu0 %v3610
      %v3649 = vpop.f32.mrb[0].mxu0
      %v3650 = vadd.f32 0.0, %v3649
      %v3651 = vpop.f32.mrb[0].mxu0
      %v3652 = vpop.f32.mrb[0].mxu0
      %v3653 = vadd.f32 0.0, %v3652
      %v3654 = vpop.f32.mrb[0].mxu0
      %3655 = vdwg.mxu0
      %3656 = vrot.lane.b32.xlu0 %v402, 104
      %v3657 = vpop.permute.xlu0 %3656
      %3658 = vrot.lane.b32.xlu0 %v402, 72
      %v3659 = vpop.permute.xlu0 %3658
      %v3661 = vsel %vm407, %v3657, 0
      %v3664 = vsel %vm407, %v3659, 0
      %3666 = vmatprep.subr.bf16.mxu0 0
      %3667 = vmatpush1.bf16.xpose.msra.mxu0 %v3664
      %3668 = vmatprep.subr.bf16.mxu0 0
      %3669 = vmatpush1.bf16.xpose.msra.mxu0 0
      %3670 = vmatprep.subr.bf16.mxu0 0
      %3671 = vmatpush1.bf16.xpose.msra.mxu0 0
      %3672 = vmatprep.subr.bf16.mxu0 0
      %3673 = vmatpush1.bf16.xpose.msra.mxu0 0
      %3674 = vmatprep.subr.bf16.mxu0 0
      %3675 = vmatpush1.bf16.xpose.msra.mxu0 0
      %3676 = vmatprep.subr.bf16.mxu0 0
      %3677 = vmatpush1.bf16.xpose.msra.mxu0 0
      %3678 = vmatprep.subr.bf16.mxu0 0
      %3679 = vmatpush1.bf16.xpose.msra.mxu0 0
      %3680 = vmatprep.subr.bf16.mxu0 0
      %3681 = vmatpush1.bf16.xpose.msra.mxu0 0
      %3682 = vmatprep.subr.bf16.mxu0 0
      %3683 = vmatpush1.bf16.xpose.msra.mxu0 0
      %3684 = vmatprep.subr.bf16.mxu0 0
      %3685 = vmatpush1.bf16.xpose.msra.mxu0 0
      %3686 = vmatprep.subr.bf16.mxu0 0
      %3687 = vmatpush1.bf16.xpose.msra.mxu0 0
      %3688 = vmatprep.subr.bf16.mxu0 0
      %3689 = vmatpush1.bf16.xpose.msra.mxu0 0
      %3690 = vmatprep.subr.bf16.mxu0 0
      %3691 = vmatpush1.bf16.xpose.msra.mxu0 0
      %3692 = vmatprep.subr.bf16.mxu0 0
      %3693 = vmatpush1.bf16.xpose.msra.mxu0 0
      %3694 = vmatprep.subr.bf16.mxu0 0
      %3695 = vmatpush1.bf16.xpose.msra.mxu0 0
      %3696 = vmatprep.subr.bf16.mxu0 0
      %3697 = vmatpush1.bf16.xpose.msra.mxu0 0
      %3698 = vmatprep.mubr.bf16.mxu0 0
      %3699 = vmatmul.mubr.bf16.gmra.mrb[0].mxu0 %v3661
      %v3700 = vpop.f32.mrb[0].mxu0
      %v3701 = vadd.f32 0.0, %v3700
      %v3702 = vpop.f32.mrb[0].mxu0
      %v3703 = vpop.f32.mrb[0].mxu0
      %v3704 = vadd.f32 0.0, %v3703
      %v3705 = vpop.f32.mrb[0].mxu0
      %3706 = vdwg.mxu0
      %3707 = vrot.lane.b32.xlu0 %v403, 104
      %v3708 = vpop.permute.xlu0 %3707
      %3709 = vrot.lane.b32.xlu0 %v403, 72
      %v3710 = vpop.permute.xlu0 %3709
      %v3712 = vsel %vm407, %v3708, 0
      %v3715 = vsel %vm407, %v3710, 0
      %3717 = vmatprep.subr.bf16.mxu0 0
      %3718 = vmatpush1.bf16.xpose.msra.mxu0 %v3715
      %3719 = vmatprep.subr.bf16.mxu0 0
      %3720 = vmatpush1.bf16.xpose.msra.mxu0 0
      %3721 = vmatprep.subr.bf16.mxu0 0
      %3722 = vmatpush1.bf16.xpose.msra.mxu0 0
      %3723 = vmatprep.subr.bf16.mxu0 0
      %3724 = vmatpush1.bf16.xpose.msra.mxu0 0
      %3725 = vmatprep.subr.bf16.mxu0 0
      %3726 = vmatpush1.bf16.xpose.msra.mxu0 0
      %3727 = vmatprep.subr.bf16.mxu0 0
      %3728 = vmatpush1.bf16.xpose.msra.mxu0 0
      %3729 = vmatprep.subr.bf16.mxu0 0
      %3730 = vmatpush1.bf16.xpose.msra.mxu0 0
      %3731 = vmatprep.subr.bf16.mxu0 0
      %3732 = vmatpush1.bf16.xpose.msra.mxu0 0
      %3733 = vmatprep.subr.bf16.mxu0 0
      %3734 = vmatpush1.bf16.xpose.msra.mxu0 0
      %3735 = vmatprep.subr.bf16.mxu0 0
      %3736 = vmatpush1.bf16.xpose.msra.mxu0 0
      %3737 = vmatprep.subr.bf16.mxu0 0
      %3738 = vmatpush1.bf16.xpose.msra.mxu0 0
      %3739 = vmatprep.subr.bf16.mxu0 0
      %3740 = vmatpush1.bf16.xpose.msra.mxu0 0
      %3741 = vmatprep.subr.bf16.mxu0 0
      %3742 = vmatpush1.bf16.xpose.msra.mxu0 0
      %3743 = vmatprep.subr.bf16.mxu0 0
      %3744 = vmatpush1.bf16.xpose.msra.mxu0 0
      %3745 = vmatprep.subr.bf16.mxu0 0
      %3746 = vmatpush1.bf16.xpose.msra.mxu0 0
      %3747 = vmatprep.subr.bf16.mxu0 0
      %3748 = vmatpush1.bf16.xpose.msra.mxu0 0
      %3749 = vmatprep.mubr.bf16.mxu0 0
      %3750 = vmatmul.mubr.bf16.gmra.mrb[0].mxu0 %v3712
      %v3751 = vpop.f32.mrb[0].mxu0
      %v3752 = vadd.f32 0.0, %v3751
      %v3753 = vpop.f32.mrb[0].mxu0
      %v3754 = vpop.f32.mrb[0].mxu0
      %v3755 = vadd.f32 0.0, %v3754
      %v3756 = vpop.f32.mrb[0].mxu0
      %3757 = vdwg.mxu0
      %v3758 = vmul.f32 %v3395, 0.35355338
      %v3759 = vmul.f32 %v3398, 0.35355338
      %v3760 = vmul.f32 %v3446, 0.35355338
      %v3761 = vmul.f32 %v3449, 0.35355338
      %v3762 = vmul.f32 %v3497, 0.35355338
      %v3763 = vmul.f32 %v3500, 0.35355338
      %v3764 = vmul.f32 %v3548, 0.35355338
      %v3765 = vmul.f32 %v3551, 0.35355338
      %v3766 = vmul.f32 %v3599, 0.35355338
      %v3767 = vmul.f32 %v3602, 0.35355338
      %v3768 = vmul.f32 %v3650, 0.35355338
      %v3769 = vmul.f32 %v3653, 0.35355338
      %v3770 = vmul.f32 %v3701, 0.35355338
      %v3771 = vmul.f32 %v3704, 0.35355338
      %v3772 = vmul.f32 %v3752, 0.35355338
      %v3773 = vmul.f32 %v3755, 0.35355338
      %v3774 = vsel %vm821, %v3758, -inf
      %3775 = vmax.xlane.f32.xlu0 %v3774
      %v3776 = vpop.xlane.xlu0 %3775
      %v3777 = vsel %vm821, %v3759, -inf
      %3778 = vmax.xlane.f32.xlu0 %v3777
      %v3779 = vpop.xlane.xlu0 %3778
      %v3780 = vsel %vm821, %v3760, -inf
      %3781 = vmax.xlane.f32.xlu0 %v3780
      %v3782 = vpop.xlane.xlu0 %3781
      %v3783 = vsel %vm821, %v3761, -inf
      %3784 = vmax.xlane.f32.xlu0 %v3783
      %v3785 = vpop.xlane.xlu0 %3784
      %v3786 = vsel %vm821, %v3762, -inf
      %3787 = vmax.xlane.f32.xlu0 %v3786
      %v3788 = vpop.xlane.xlu0 %3787
      %v3789 = vsel %vm821, %v3763, -inf
      %3790 = vmax.xlane.f32.xlu0 %v3789
      %v3791 = vpop.xlane.xlu0 %3790
      %v3792 = vsel %vm821, %v3764, -inf
      %3793 = vmax.xlane.f32.xlu0 %v3792
      %v3794 = vpop.xlane.xlu0 %3793
      %v3795 = vsel %vm821, %v3765, -inf
      %3796 = vmax.xlane.f32.xlu0 %v3795
      %v3797 = vpop.xlane.xlu0 %3796
      %v3798 = vsel %vm821, %v3766, -inf
      %3799 = vmax.xlane.f32.xlu0 %v3798
      %v3800 = vpop.xlane.xlu0 %3799
      %v3801 = vsel %vm821, %v3767, -inf
      %3802 = vmax.xlane.f32.xlu0 %v3801
      %v3803 = vpop.xlane.xlu0 %3802
      %v3804 = vsel %vm821, %v3768, -inf
      %3805 = vmax.xlane.f32.xlu0 %v3804
      %v3806 = vpop.xlane.xlu0 %3805
      %v3807 = vsel %vm821, %v3769, -inf
      %3808 = vmax.xlane.f32.xlu0 %v3807
      %v3809 = vpop.xlane.xlu0 %3808
      %v3810 = vsel %vm821, %v3770, -inf
      %3811 = vmax.xlane.f32.xlu0 %v3810
      %v3812 = vpop.xlane.xlu0 %3811
      %v3813 = vsel %vm821, %v3771, -inf
      %3814 = vmax.xlane.f32.xlu0 %v3813
      %v3815 = vpop.xlane.xlu0 %3814
      %v3816 = vsel %vm821, %v3772, -inf
      %3817 = vmax.xlane.f32.xlu0 %v3816
      %v3818 = vpop.xlane.xlu0 %3817
      %v3819 = vsel %vm821, %v3773, -inf
      %3820 = vmax.xlane.f32.xlu0 %v3819
      %v3821 = vpop.xlane.xlu0 %3820
      %v3822 = vsub.f32 %v3758, %v3776
      %v3823 = vsub.f32 %v3759, %v3779
      %v3824 = vsub.f32 %v3760, %v3782
      %v3825 = vsub.f32 %v3761, %v3785
      %v3826 = vsub.f32 %v3762, %v3788
      %v3827 = vsub.f32 %v3763, %v3791
      %v3828 = vsub.f32 %v3764, %v3794
      %v3829 = vsub.f32 %v3765, %v3797
      %v3830 = vsub.f32 %v3766, %v3800
      %v3831 = vsub.f32 %v3767, %v3803
      %v3832 = vsub.f32 %v3768, %v3806
      %v3833 = vsub.f32 %v3769, %v3809
      %v3834 = vsub.f32 %v3770, %v3812
      %v3835 = vsub.f32 %v3771, %v3815
      %v3836 = vsub.f32 %v3772, %v3818
      %v3837 = vsub.f32 %v3773, %v3821
      %v3838 = vmul.f32 %v3822, 1.442695
      %v3839 = vpow.pop %v3838
      %v3840 = vmul.f32 %v3823, 1.442695
      %v3841 = vpow.pop %v3840
      %v3842 = vmul.f32 %v3824, 1.442695
      %v3843 = vpow.pop %v3842
      %v3844 = vmul.f32 %v3825, 1.442695
      %v3845 = vpow.pop %v3844
      %v3846 = vmul.f32 %v3826, 1.442695
      %v3847 = vpow.pop %v3846
      %v3848 = vmul.f32 %v3827, 1.442695
      %v3849 = vpow.pop %v3848
      %v3850 = vmul.f32 %v3828, 1.442695
      %v3851 = vpow.pop %v3850
      %v3852 = vmul.f32 %v3829, 1.442695
      %v3853 = vpow.pop %v3852
      %v3854 = vmul.f32 %v3830, 1.442695
      %v3855 = vpow.pop %v3854
      %v3856 = vmul.f32 %v3831, 1.442695
      %v3857 = vpow.pop %v3856
      %v3858 = vmul.f32 %v3832, 1.442695
      %v3859 = vpow.pop %v3858
      %v3860 = vmul.f32 %v3833, 1.442695
      %v3861 = vpow.pop %v3860
      %v3862 = vmul.f32 %v3834, 1.442695
      %v3863 = vpow.pop %v3862
      %v3864 = vmul.f32 %v3835, 1.442695
      %v3865 = vpow.pop %v3864
      %v3866 = vmul.f32 %v3836, 1.442695
      %v3867 = vpow.pop %v3866
      %v3868 = vmul.f32 %v3837, 1.442695
      %v3869 = vpow.pop %v3868
      %v3870 = vsel %vm821, %v3839, 0.0
      %3871 = vadd.xlane.f32.xlu0 %v3870
      %v3872 = vpop.xlane.xlu0 %3871
      %v3873 = vsel %vm821, %v3841, 0.0
      %3874 = vadd.xlane.f32.xlu0 %v3873
      %v3875 = vpop.xlane.xlu0 %3874
      %v3876 = vsel %vm821, %v3843, 0.0
      %3877 = vadd.xlane.f32.xlu0 %v3876
      %v3878 = vpop.xlane.xlu0 %3877
      %v3879 = vsel %vm821, %v3845, 0.0
      %3880 = vadd.xlane.f32.xlu0 %v3879
      %v3881 = vpop.xlane.xlu0 %3880
      %v3882 = vsel %vm821, %v3847, 0.0
      %3883 = vadd.xlane.f32.xlu0 %v3882
      %v3884 = vpop.xlane.xlu0 %3883
      %v3885 = vsel %vm821, %v3849, 0.0
      %3886 = vadd.xlane.f32.xlu0 %v3885
      %v3887 = vpop.xlane.xlu0 %3886
      %v3888 = vsel %vm821, %v3851, 0.0
      %3889 = vadd.xlane.f32.xlu0 %v3888
      %v3890 = vpop.xlane.xlu0 %3889
      %v3891 = vsel %vm821, %v3853, 0.0
      %3892 = vadd.xlane.f32.xlu0 %v3891
      %v3893 = vpop.xlane.xlu0 %3892
      %v3894 = vsel %vm821, %v3855, 0.0
      %3895 = vadd.xlane.f32.xlu0 %v3894
      %v3896 = vpop.xlane.xlu0 %3895
      %v3897 = vsel %vm821, %v3857, 0.0
      %3898 = vadd.xlane.f32.xlu0 %v3897
      %v3899 = vpop.xlane.xlu0 %3898
      %v3900 = vsel %vm821, %v3859, 0.0
      %3901 = vadd.xlane.f32.xlu0 %v3900
      %v3902 = vpop.xlane.xlu0 %3901
      %v3903 = vsel %vm821, %v3861, 0.0
      %3904 = vadd.xlane.f32.xlu0 %v3903
      %v3905 = vpop.xlane.xlu0 %3904
      %v3906 = vsel %vm821, %v3863, 0.0
      %3907 = vadd.xlane.f32.xlu0 %v3906
      %v3908 = vpop.xlane.xlu0 %3907
      %v3909 = vsel %vm821, %v3865, 0.0
      %3910 = vadd.xlane.f32.xlu0 %v3909
      %v3911 = vpop.xlane.xlu0 %3910
      %v3912 = vsel %vm821, %v3867, 0.0
      %3913 = vadd.xlane.f32.xlu0 %v3912
      %v3914 = vpop.xlane.xlu0 %3913
      %v3915 = vsel %vm821, %v3869, 0.0
      %3916 = vadd.xlane.f32.xlu0 %v3915
      %v3917 = vpop.xlane.xlu0 %3916
      %v3918 = vrcp.pop %v3872
      %v3919 = vmul.f32 %v3839, %v3918
      %v3920 = vrcp.pop %v3875
      %v3921 = vmul.f32 %v3841, %v3920
      %v3922 = vrcp.pop %v3878
      %v3923 = vmul.f32 %v3843, %v3922
      %v3924 = vrcp.pop %v3881
      %v3925 = vmul.f32 %v3845, %v3924
      %v3926 = vrcp.pop %v3884
      %v3927 = vmul.f32 %v3847, %v3926
      %v3928 = vrcp.pop %v3887
      %v3929 = vmul.f32 %v3849, %v3928
      %v3930 = vrcp.pop %v3890
      %v3931 = vmul.f32 %v3851, %v3930
      %v3932 = vrcp.pop %v3893
      %v3933 = vmul.f32 %v3853, %v3932
      %v3934 = vrcp.pop %v3896
      %v3935 = vmul.f32 %v3855, %v3934
      %v3936 = vrcp.pop %v3899
      %v3937 = vmul.f32 %v3857, %v3936
      %v3938 = vrcp.pop %v3902
      %v3939 = vmul.f32 %v3859, %v3938
      %v3940 = vrcp.pop %v3905
      %v3941 = vmul.f32 %v3861, %v3940
      %v3942 = vrcp.pop %v3908
      %v3943 = vmul.f32 %v3863, %v3942
      %v3944 = vrcp.pop %v3911
      %v3945 = vmul.f32 %v3865, %v3944
      %v3946 = vrcp.pop %v3914
      %v3947 = vmul.f32 %v3867, %v3946
      %v3948 = vrcp.pop %v3917
      %v3949 = vmul.f32 %v3869, %v3948
      %v3950 = vpack.c.bf16 %v3921, %v3919
      %v3951 = vpack.c.bf16 %v3925, %v3923
      %v3952 = vpack.c.bf16 %v3929, %v3927
      %v3953 = vpack.c.bf16 %v3933, %v3931
      %v3954 = vpack.c.bf16 %v3937, %v3935
      %v3955 = vpack.c.bf16 %v3941, %v3939
      %v3956 = vpack.c.bf16 %v3945, %v3943
      %v3957 = vpack.c.bf16 %v3949, %v3947
      %3958 = vrot.lane.b32.xlu0 %v396, 40
      %v3959 = vpop.permute.xlu0 %3958
      %v3962 = vsel %vm821, %v3950, 0
      %3964 = vmatprep.subr.bf16.mxu0 0
      %3965 = vmatpush1.bf16.msra.mxu0 %v3959
      %3966 = vmatprep.subr.bf16.mxu0 0
      %3967 = vmatpush1.bf16.msra.mxu0 0
      %3968 = vmatprep.subr.bf16.mxu0 0
      %3969 = vmatpush1.bf16.msra.mxu0 0
      %3970 = vmatprep.subr.bf16.mxu0 0
      %3971 = vmatpush1.bf16.msra.mxu0 0
      %3972 = vmatprep.subr.bf16.mxu0 0
      %3973 = vmatpush1.bf16.msra.mxu0 0
      %3974 = vmatprep.subr.bf16.mxu0 0
      %3975 = vmatpush1.bf16.msra.mxu0 0
      %3976 = vmatprep.subr.bf16.mxu0 0
      %3977 = vmatpush1.bf16.msra.mxu0 0
      %3978 = vmatprep.subr.bf16.mxu0 0
      %3979 = vmatpush1.bf16.msra.mxu0 0
      %3980 = vmatprep.subr.bf16.mxu0 0
      %3981 = vmatpush1.bf16.msra.mxu0 0
      %3982 = vmatprep.subr.bf16.mxu0 0
      %3983 = vmatpush1.bf16.msra.mxu0 0
      %3984 = vmatprep.subr.bf16.mxu0 0
      %3985 = vmatpush1.bf16.msra.mxu0 0
      %3986 = vmatprep.subr.bf16.mxu0 0
      %3987 = vmatpush1.bf16.msra.mxu0 0
      %3988 = vmatprep.subr.bf16.mxu0 0
      %3989 = vmatpush1.bf16.msra.mxu0 0
      %3990 = vmatprep.subr.bf16.mxu0 0
      %3991 = vmatpush1.bf16.msra.mxu0 0
      %3992 = vmatprep.subr.bf16.mxu0 0
      %3993 = vmatpush1.bf16.msra.mxu0 0
      %3994 = vmatprep.subr.bf16.mxu0 0
      %3995 = vmatpush1.bf16.msra.mxu0 0
      %3996 = vmatprep.mubr.bf16.mxu0 0
      %3997 = vmatmul.mubr.bf16.gmra.mrb[0].mxu0 %v3962
      %v3998 = vpop.f32.mrb[0].mxu0
      %v3999 = vadd.f32 0.0, %v3998
      %v4000 = vpop.f32.mrb[0].mxu0
      %v4001 = vpop.f32.mrb[0].mxu0
      %v4002 = vadd.f32 0.0, %v4001
      %v4003 = vpop.f32.mrb[0].mxu0
      %4004 = vdwg.mxu0
      %4005 = vrot.lane.b32.xlu0 %v397, 40
      %v4006 = vpop.permute.xlu0 %4005
      %v4009 = vsel %vm821, %v3951, 0
      %4011 = vmatprep.subr.bf16.mxu0 0
      %4012 = vmatpush1.bf16.msra.mxu0 %v4006
      %4013 = vmatprep.subr.bf16.mxu0 0
      %4014 = vmatpush1.bf16.msra.mxu0 0
      %4015 = vmatprep.subr.bf16.mxu0 0
      %4016 = vmatpush1.bf16.msra.mxu0 0
      %4017 = vmatprep.subr.bf16.mxu0 0
      %4018 = vmatpush1.bf16.msra.mxu0 0
      %4019 = vmatprep.subr.bf16.mxu0 0
      %4020 = vmatpush1.bf16.msra.mxu0 0
      %4021 = vmatprep.subr.bf16.mxu0 0
      %4022 = vmatpush1.bf16.msra.mxu0 0
      %4023 = vmatprep.subr.bf16.mxu0 0
      %4024 = vmatpush1.bf16.msra.mxu0 0
      %4025 = vmatprep.subr.bf16.mxu0 0
      %4026 = vmatpush1.bf16.msra.mxu0 0
      %4027 = vmatprep.subr.bf16.mxu0 0
      %4028 = vmatpush1.bf16.msra.mxu0 0
      %4029 = vmatprep.subr.bf16.mxu0 0
      %4030 = vmatpush1.bf16.msra.mxu0 0
      %4031 = vmatprep.subr.bf16.mxu0 0
      %4032 = vmatpush1.bf16.msra.mxu0 0
      %4033 = vmatprep.subr.bf16.mxu0 0
      %4034 = vmatpush1.bf16.msra.mxu0 0
      %4035 = vmatprep.subr.bf16.mxu0 0
      %4036 = vmatpush1.bf16.msra.mxu0 0
      %4037 = vmatprep.subr.bf16.mxu0 0
      %4038 = vmatpush1.bf16.msra.mxu0 0
      %4039 = vmatprep.subr.bf16.mxu0 0
      %4040 = vmatpush1.bf16.msra.mxu0 0
      %4041 = vmatprep.subr.bf16.mxu0 0
      %4042 = vmatpush1.bf16.msra.mxu0 0
      %4043 = vmatprep.mubr.bf16.mxu0 0
      %4044 = vmatmul.mubr.bf16.gmra.mrb[0].mxu0 %v4009
      %v4045 = vpop.f32.mrb[0].mxu0
      %v4046 = vadd.f32 0.0, %v4045
      %v4047 = vpop.f32.mrb[0].mxu0
      %v4048 = vpop.f32.mrb[0].mxu0
      %v4049 = vadd.f32 0.0, %v4048
      %v4050 = vpop.f32.mrb[0].mxu0
      %4051 = vdwg.mxu0
      %4052 = vrot.lane.b32.xlu0 %v398, 40
      %v4053 = vpop.permute.xlu0 %4052
      %v4056 = vsel %vm821, %v3952, 0
      %4058 = vmatprep.subr.bf16.mxu0 0
      %4059 = vmatpush1.bf16.msra.mxu0 %v4053
      %4060 = vmatprep.subr.bf16.mxu0 0
      %4061 = vmatpush1.bf16.msra.mxu0 0
      %4062 = vmatprep.subr.bf16.mxu0 0
      %4063 = vmatpush1.bf16.msra.mxu0 0
      %4064 = vmatprep.subr.bf16.mxu0 0
      %4065 = vmatpush1.bf16.msra.mxu0 0
      %4066 = vmatprep.subr.bf16.mxu0 0
      %4067 = vmatpush1.bf16.msra.mxu0 0
      %4068 = vmatprep.subr.bf16.mxu0 0
      %4069 = vmatpush1.bf16.msra.mxu0 0
      %4070 = vmatprep.subr.bf16.mxu0 0
      %4071 = vmatpush1.bf16.msra.mxu0 0
      %4072 = vmatprep.subr.bf16.mxu0 0
      %4073 = vmatpush1.bf16.msra.mxu0 0
      %4074 = vmatprep.subr.bf16.mxu0 0
      %4075 = vmatpush1.bf16.msra.mxu0 0
      %4076 = vmatprep.subr.bf16.mxu0 0
      %4077 = vmatpush1.bf16.msra.mxu0 0
      %4078 = vmatprep.subr.bf16.mxu0 0
      %4079 = vmatpush1.bf16.msra.mxu0 0
      %4080 = vmatprep.subr.bf16.mxu0 0
      %4081 = vmatpush1.bf16.msra.mxu0 0
      %4082 = vmatprep.subr.bf16.mxu0 0
      %4083 = vmatpush1.bf16.msra.mxu0 0
      %4084 = vmatprep.subr.bf16.mxu0 0
      %4085 = vmatpush1.bf16.msra.mxu0 0
      %4086 = vmatprep.subr.bf16.mxu0 0
      %4087 = vmatpush1.bf16.msra.mxu0 0
      %4088 = vmatprep.subr.bf16.mxu0 0
      %4089 = vmatpush1.bf16.msra.mxu0 0
      %4090 = vmatprep.mubr.bf16.mxu0 0
      %4091 = vmatmul.mubr.bf16.gmra.mrb[0].mxu0 %v4056
      %v4092 = vpop.f32.mrb[0].mxu0
      %v4093 = vadd.f32 0.0, %v4092
      %v4094 = vpop.f32.mrb[0].mxu0
      %v4095 = vpop.f32.mrb[0].mxu0
      %v4096 = vadd.f32 0.0, %v4095
      %v4097 = vpop.f32.mrb[0].mxu0
      %4098 = vdwg.mxu0
      %4099 = vrot.lane.b32.xlu0 %v399, 40
      %v4100 = vpop.permute.xlu0 %4099
      %v4103 = vsel %vm821, %v3953, 0
      %4105 = vmatprep.subr.bf16.mxu0 0
      %4106 = vmatpush1.bf16.msra.mxu0 %v4100
      %4107 = vmatprep.subr.bf16.mxu0 0
      %4108 = vmatpush1.bf16.msra.mxu0 0
      %4109 = vmatprep.subr.bf16.mxu0 0
      %4110 = vmatpush1.bf16.msra.mxu0 0
      %4111 = vmatprep.subr.bf16.mxu0 0
      %4112 = vmatpush1.bf16.msra.mxu0 0
      %4113 = vmatprep.subr.bf16.mxu0 0
      %4114 = vmatpush1.bf16.msra.mxu0 0
      %4115 = vmatprep.subr.bf16.mxu0 0
      %4116 = vmatpush1.bf16.msra.mxu0 0
      %4117 = vmatprep.subr.bf16.mxu0 0
      %4118 = vmatpush1.bf16.msra.mxu0 0
      %4119 = vmatprep.subr.bf16.mxu0 0
      %4120 = vmatpush1.bf16.msra.mxu0 0
      %4121 = vmatprep.subr.bf16.mxu0 0
      %4122 = vmatpush1.bf16.msra.mxu0 0
      %4123 = vmatprep.subr.bf16.mxu0 0
      %4124 = vmatpush1.bf16.msra.mxu0 0
      %4125 = vmatprep.subr.bf16.mxu0 0
      %4126 = vmatpush1.bf16.msra.mxu0 0
      %4127 = vmatprep.subr.bf16.mxu0 0
      %4128 = vmatpush1.bf16.msra.mxu0 0
      %4129 = vmatprep.subr.bf16.mxu0 0
      %4130 = vmatpush1.bf16.msra.mxu0 0
      %4131 = vmatprep.subr.bf16.mxu0 0
      %4132 = vmatpush1.bf16.msra.mxu0 0
      %4133 = vmatprep.subr.bf16.mxu0 0
      %4134 = vmatpush1.bf16.msra.mxu0 0
      %4135 = vmatprep.subr.bf16.mxu0 0
      %4136 = vmatpush1.bf16.msra.mxu0 0
      %4137 = vmatprep.mubr.bf16.mxu0 0
      %4138 = vmatmul.mubr.bf16.gmra.mrb[0].mxu0 %v4103
      %v4139 = vpop.f32.mrb[0].mxu0
      %v4140 = vadd.f32 0.0, %v4139
      %v4141 = vpop.f32.mrb[0].mxu0
      %v4142 = vpop.f32.mrb[0].mxu0
      %v4143 = vadd.f32 0.0, %v4142
      %v4144 = vpop.f32.mrb[0].mxu0
      %4145 = vdwg.mxu0
      %4146 = vrot.lane.b32.xlu0 %v400, 40
      %v4147 = vpop.permute.xlu0 %4146
      %v4150 = vsel %vm821, %v3954, 0
      %4152 = vmatprep.subr.bf16.mxu0 0
      %4153 = vmatpush1.bf16.msra.mxu0 %v4147
      %4154 = vmatprep.subr.bf16.mxu0 0
      %4155 = vmatpush1.bf16.msra.mxu0 0
      %4156 = vmatprep.subr.bf16.mxu0 0
      %4157 = vmatpush1.bf16.msra.mxu0 0
      %4158 = vmatprep.subr.bf16.mxu0 0
      %4159 = vmatpush1.bf16.msra.mxu0 0
      %4160 = vmatprep.subr.bf16.mxu0 0
      %4161 = vmatpush1.bf16.msra.mxu0 0
      %4162 = vmatprep.subr.bf16.mxu0 0
      %4163 = vmatpush1.bf16.msra.mxu0 0
      %4164 = vmatprep.subr.bf16.mxu0 0
      %4165 = vmatpush1.bf16.msra.mxu0 0
      %4166 = vmatprep.subr.bf16.mxu0 0
      %4167 = vmatpush1.bf16.msra.mxu0 0
      %4168 = vmatprep.subr.bf16.mxu0 0
      %4169 = vmatpush1.bf16.msra.mxu0 0
      %4170 = vmatprep.subr.bf16.mxu0 0
      %4171 = vmatpush1.bf16.msra.mxu0 0
      %4172 = vmatprep.subr.bf16.mxu0 0
      %4173 = vmatpush1.bf16.msra.mxu0 0
      %4174 = vmatprep.subr.bf16.mxu0 0
      %4175 = vmatpush1.bf16.msra.mxu0 0
      %4176 = vmatprep.subr.bf16.mxu0 0
      %4177 = vmatpush1.bf16.msra.mxu0 0
      %4178 = vmatprep.subr.bf16.mxu0 0
      %4179 = vmatpush1.bf16.msra.mxu0 0
      %4180 = vmatprep.subr.bf16.mxu0 0
      %4181 = vmatpush1.bf16.msra.mxu0 0
      %4182 = vmatprep.subr.bf16.mxu0 0
      %4183 = vmatpush1.bf16.msra.mxu0 0
      %4184 = vmatprep.mubr.bf16.mxu0 0
      %4185 = vmatmul.mubr.bf16.gmra.mrb[0].mxu0 %v4150
      %v4186 = vpop.f32.mrb[0].mxu0
      %v4187 = vadd.f32 0.0, %v4186
      %v4188 = vpop.f32.mrb[0].mxu0
      %v4189 = vpop.f32.mrb[0].mxu0
      %v4190 = vadd.f32 0.0, %v4189
      %v4191 = vpop.f32.mrb[0].mxu0
      %4192 = vdwg.mxu0
      %4193 = vrot.lane.b32.xlu0 %v401, 40
      %v4194 = vpop.permute.xlu0 %4193
      %v4197 = vsel %vm821, %v3955, 0
      %4199 = vmatprep.subr.bf16.mxu0 0
      %4200 = vmatpush1.bf16.msra.mxu0 %v4194
      %4201 = vmatprep.subr.bf16.mxu0 0
      %4202 = vmatpush1.bf16.msra.mxu0 0
      %4203 = vmatprep.subr.bf16.mxu0 0
      %4204 = vmatpush1.bf16.msra.mxu0 0
      %4205 = vmatprep.subr.bf16.mxu0 0
      %4206 = vmatpush1.bf16.msra.mxu0 0
      %4207 = vmatprep.subr.bf16.mxu0 0
      %4208 = vmatpush1.bf16.msra.mxu0 0
      %4209 = vmatprep.subr.bf16.mxu0 0
      %4210 = vmatpush1.bf16.msra.mxu0 0
      %4211 = vmatprep.subr.bf16.mxu0 0
      %4212 = vmatpush1.bf16.msra.mxu0 0
      %4213 = vmatprep.subr.bf16.mxu0 0
      %4214 = vmatpush1.bf16.msra.mxu0 0
      %4215 = vmatprep.subr.bf16.mxu0 0
      %4216 = vmatpush1.bf16.msra.mxu0 0
      %4217 = vmatprep.subr.bf16.mxu0 0
      %4218 = vmatpush1.bf16.msra.mxu0 0
      %4219 = vmatprep.subr.bf16.mxu0 0
      %4220 = vmatpush1.bf16.msra.mxu0 0
      %4221 = vmatprep.subr.bf16.mxu0 0
      %4222 = vmatpush1.bf16.msra.mxu0 0
      %4223 = vmatprep.subr.bf16.mxu0 0
      %4224 = vmatpush1.bf16.msra.mxu0 0
      %4225 = vmatprep.subr.bf16.mxu0 0
      %4226 = vmatpush1.bf16.msra.mxu0 0
      %4227 = vmatprep.subr.bf16.mxu0 0
      %4228 = vmatpush1.bf16.msra.mxu0 0
      %4229 = vmatprep.subr.bf16.mxu0 0
      %4230 = vmatpush1.bf16.msra.mxu0 0
      %4231 = vmatprep.mubr.bf16.mxu0 0
      %4232 = vmatmul.mubr.bf16.gmra.mrb[0].mxu0 %v4197
      %v4233 = vpop.f32.mrb[0].mxu0
      %v4234 = vadd.f32 0.0, %v4233
      %v4235 = vpop.f32.mrb[0].mxu0
      %v4236 = vpop.f32.mrb[0].mxu0
      %v4237 = vadd.f32 0.0, %v4236
      %v4238 = vpop.f32.mrb[0].mxu0
      %4239 = vdwg.mxu0
      %4240 = vrot.lane.b32.xlu0 %v402, 40
      %v4241 = vpop.permute.xlu0 %4240
      %v4244 = vsel %vm821, %v3956, 0
      %4246 = vmatprep.subr.bf16.mxu0 0
      %4247 = vmatpush1.bf16.msra.mxu0 %v4241
      %4248 = vmatprep.subr.bf16.mxu0 0
      %4249 = vmatpush1.bf16.msra.mxu0 0
      %4250 = vmatprep.subr.bf16.mxu0 0
      %4251 = vmatpush1.bf16.msra.mxu0 0
      %4252 = vmatprep.subr.bf16.mxu0 0
      %4253 = vmatpush1.bf16.msra.mxu0 0
      %4254 = vmatprep.subr.bf16.mxu0 0
      %4255 = vmatpush1.bf16.msra.mxu0 0
      %4256 = vmatprep.subr.bf16.mxu0 0
      %4257 = vmatpush1.bf16.msra.mxu0 0
      %4258 = vmatprep.subr.bf16.mxu0 0
      %4259 = vmatpush1.bf16.msra.mxu0 0
      %4260 = vmatprep.subr.bf16.mxu0 0
      %4261 = vmatpush1.bf16.msra.mxu0 0
      %4262 = vmatprep.subr.bf16.mxu0 0
      %4263 = vmatpush1.bf16.msra.mxu0 0
      %4264 = vmatprep.subr.bf16.mxu0 0
      %4265 = vmatpush1.bf16.msra.mxu0 0
      %4266 = vmatprep.subr.bf16.mxu0 0
      %4267 = vmatpush1.bf16.msra.mxu0 0
      %4268 = vmatprep.subr.bf16.mxu0 0
      %4269 = vmatpush1.bf16.msra.mxu0 0
      %4270 = vmatprep.subr.bf16.mxu0 0
      %4271 = vmatpush1.bf16.msra.mxu0 0
      %4272 = vmatprep.subr.bf16.mxu0 0
      %4273 = vmatpush1.bf16.msra.mxu0 0
      %4274 = vmatprep.subr.bf16.mxu0 0
      %4275 = vmatpush1.bf16.msra.mxu0 0
      %4276 = vmatprep.subr.bf16.mxu0 0
      %4277 = vmatpush1.bf16.msra.mxu0 0
      %4278 = vmatprep.mubr.bf16.mxu0 0
      %4279 = vmatmul.mubr.bf16.gmra.mrb[0].mxu0 %v4244
      %v4280 = vpop.f32.mrb[0].mxu0
      %v4281 = vadd.f32 0.0, %v4280
      %v4282 = vpop.f32.mrb[0].mxu0
      %v4283 = vpop.f32.mrb[0].mxu0
      %v4284 = vadd.f32 0.0, %v4283
      %v4285 = vpop.f32.mrb[0].mxu0
      %4286 = vdwg.mxu0
      %4287 = vrot.lane.b32.xlu0 %v403, 40
      %v4288 = vpop.permute.xlu0 %4287
      %v4291 = vsel %vm821, %v3957, 0
      %4293 = vmatprep.subr.bf16.mxu0 0
      %4294 = vmatpush1.bf16.msra.mxu0 %v4288
      %4295 = vmatprep.subr.bf16.mxu0 0
      %4296 = vmatpush1.bf16.msra.mxu0 0
      %4297 = vmatprep.subr.bf16.mxu0 0
      %4298 = vmatpush1.bf16.msra.mxu0 0
      %4299 = vmatprep.subr.bf16.mxu0 0
      %4300 = vmatpush1.bf16.msra.mxu0 0
      %4301 = vmatprep.subr.bf16.mxu0 0
      %4302 = vmatpush1.bf16.msra.mxu0 0
      %4303 = vmatprep.subr.bf16.mxu0 0
      %4304 = vmatpush1.bf16.msra.mxu0 0
      %4305 = vmatprep.subr.bf16.mxu0 0
      %4306 = vmatpush1.bf16.msra.mxu0 0
      %4307 = vmatprep.subr.bf16.mxu0 0
      %4308 = vmatpush1.bf16.msra.mxu0 0
      %4309 = vmatprep.subr.bf16.mxu0 0
      %4310 = vmatpush1.bf16.msra.mxu0 0
      %4311 = vmatprep.subr.bf16.mxu0 0
      %4312 = vmatpush1.bf16.msra.mxu0 0
      %4313 = vmatprep.subr.bf16.mxu0 0
      %4314 = vmatpush1.bf16.msra.mxu0 0
      %4315 = vmatprep.subr.bf16.mxu0 0
      %4316 = vmatpush1.bf16.msra.mxu0 0
      %4317 = vmatprep.subr.bf16.mxu0 0
      %4318 = vmatpush1.bf16.msra.mxu0 0
      %4319 = vmatprep.subr.bf16.mxu0 0
      %4320 = vmatpush1.bf16.msra.mxu0 0
      %4321 = vmatprep.subr.bf16.mxu0 0
      %4322 = vmatpush1.bf16.msra.mxu0 0
      %4323 = vmatprep.subr.bf16.mxu0 0
      %4324 = vmatpush1.bf16.msra.mxu0 0
      %4325 = vmatprep.mubr.bf16.mxu0 0
      %4326 = vmatmul.mubr.bf16.gmra.mrb[0].mxu0 %v4291
      %v4327 = vpop.f32.mrb[0].mxu0
      %v4328 = vadd.f32 0.0, %v4327
      %v4329 = vpop.f32.mrb[0].mxu0
      %v4330 = vpop.f32.mrb[0].mxu0
      %v4331 = vadd.f32 0.0, %v4330
      %v4332 = vpop.f32.mrb[0].mxu0
      %4333 = vdwg.mxu0
      %4350 = vrot.lane.b32.xlu0 %v2031, 8
      %v4351 = vpop.permute.xlu0 %4350
      %4352 = vrot.lane.b32.xlu0 %v2034, 8
      %v4353 = vpop.permute.xlu0 %4352
      %4354 = vrot.lane.b32.xlu0 %v2078, 8
      %v4355 = vpop.permute.xlu0 %4354
      %4356 = vrot.lane.b32.xlu0 %v2081, 8
      %v4357 = vpop.permute.xlu0 %4356
      %4358 = vrot.lane.b32.xlu0 %v2125, 8
      %v4359 = vpop.permute.xlu0 %4358
      %4360 = vrot.lane.b32.xlu0 %v2128, 8
      %v4361 = vpop.permute.xlu0 %4360
      %4362 = vrot.lane.b32.xlu0 %v2172, 8
      %v4363 = vpop.permute.xlu0 %4362
      %4364 = vrot.lane.b32.xlu0 %v2175, 8
      %v4365 = vpop.permute.xlu0 %4364
      %4366 = vrot.lane.b32.xlu0 %v2219, 8
      %v4367 = vpop.permute.xlu0 %4366
      %4368 = vrot.lane.b32.xlu0 %v2222, 8
      %v4369 = vpop.permute.xlu0 %4368
      %4370 = vrot.lane.b32.xlu0 %v2266, 8
      %v4371 = vpop.permute.xlu0 %4370
      %4372 = vrot.lane.b32.xlu0 %v2269, 8
      %v4373 = vpop.permute.xlu0 %4372
      %4374 = vrot.lane.b32.xlu0 %v2313, 8
      %v4375 = vpop.permute.xlu0 %4374
      %4376 = vrot.lane.b32.xlu0 %v2316, 8
      %v4377 = vpop.permute.xlu0 %4376
      %4378 = vrot.lane.b32.xlu0 %v2360, 8
      %v4379 = vpop.permute.xlu0 %4378
      %4380 = vrot.lane.b32.xlu0 %v2363, 8
      %v4381 = vpop.permute.xlu0 %4380
      %4414 = vrot.lane.b32.xlu0 %v3015, 16
      %v4415 = vpop.permute.xlu0 %4414
      %4416 = vrot.lane.b32.xlu0 %v3018, 16
      %v4417 = vpop.permute.xlu0 %4416
      %4418 = vrot.lane.b32.xlu0 %v3062, 16
      %v4419 = vpop.permute.xlu0 %4418
      %4420 = vrot.lane.b32.xlu0 %v3065, 16
      %v4421 = vpop.permute.xlu0 %4420
      %4422 = vrot.lane.b32.xlu0 %v3109, 16
      %v4423 = vpop.permute.xlu0 %4422
      %4424 = vrot.lane.b32.xlu0 %v3112, 16
      %v4425 = vpop.permute.xlu0 %4424
      %4426 = vrot.lane.b32.xlu0 %v3156, 16
      %v4427 = vpop.permute.xlu0 %4426
      %4428 = vrot.lane.b32.xlu0 %v3159, 16
      %v4429 = vpop.permute.xlu0 %4428
      %4430 = vrot.lane.b32.xlu0 %v3203, 16
      %v4431 = vpop.permute.xlu0 %4430
      %4432 = vrot.lane.b32.xlu0 %v3206, 16
      %v4433 = vpop.permute.xlu0 %4432
      %4434 = vrot.lane.b32.xlu0 %v3250, 16
      %v4435 = vpop.permute.xlu0 %4434
      %4436 = vrot.lane.b32.xlu0 %v3253, 16
      %v4437 = vpop.permute.xlu0 %4436
      %4438 = vrot.lane.b32.xlu0 %v3297, 16
      %v4439 = vpop.permute.xlu0 %4438
      %4440 = vrot.lane.b32.xlu0 %v3300, 16
      %v4441 = vpop.permute.xlu0 %4440
      %4442 = vrot.lane.b32.xlu0 %v3344, 16
      %v4443 = vpop.permute.xlu0 %4442
      %4444 = vrot.lane.b32.xlu0 %v3347, 16
      %v4445 = vpop.permute.xlu0 %4444
      %4478 = vrot.lane.b32.xlu0 %v3999, 24
      %v4479 = vpop.permute.xlu0 %4478
      %4480 = vrot.lane.b32.xlu0 %v4002, 24
      %v4481 = vpop.permute.xlu0 %4480
      %4482 = vrot.lane.b32.xlu0 %v4046, 24
      %v4483 = vpop.permute.xlu0 %4482
      %4484 = vrot.lane.b32.xlu0 %v4049, 24
      %v4485 = vpop.permute.xlu0 %4484
      %4486 = vrot.lane.b32.xlu0 %v4093, 24
      %v4487 = vpop.permute.xlu0 %4486
      %4488 = vrot.lane.b32.xlu0 %v4096, 24
      %v4489 = vpop.permute.xlu0 %4488
      %4490 = vrot.lane.b32.xlu0 %v4140, 24
      %v4491 = vpop.permute.xlu0 %4490
      %4492 = vrot.lane.b32.xlu0 %v4143, 24
      %v4493 = vpop.permute.xlu0 %4492
      %4494 = vrot.lane.b32.xlu0 %v4187, 24
      %v4495 = vpop.permute.xlu0 %4494
      %4496 = vrot.lane.b32.xlu0 %v4190, 24
      %v4497 = vpop.permute.xlu0 %4496
      %4498 = vrot.lane.b32.xlu0 %v4234, 24
      %v4499 = vpop.permute.xlu0 %4498
      %4500 = vrot.lane.b32.xlu0 %v4237, 24
      %v4501 = vpop.permute.xlu0 %4500
      %4502 = vrot.lane.b32.xlu0 %v4281, 24
      %v4503 = vpop.permute.xlu0 %4502
      %4504 = vrot.lane.b32.xlu0 %v4284, 24
      %v4505 = vpop.permute.xlu0 %4504
      %4506 = vrot.lane.b32.xlu0 %v4328, 24
      %v4507 = vpop.permute.xlu0 %4506
      %4508 = vrot.lane.b32.xlu0 %v4331, 24
      %v4509 = vpop.permute.xlu0 %4508
      %v4526 = vsel %vm407, %v1047, %v4351
      %v4527 = vsel %vm407, %v1050, %v4353
      %v4528 = vsel %vm407, %v1094, %v4355
      %v4529 = vsel %vm407, %v1097, %v4357
      %v4530 = vsel %vm407, %v1141, %v4359
      %v4531 = vsel %vm407, %v1144, %v4361
      %v4532 = vsel %vm407, %v1188, %v4363
      %v4533 = vsel %vm407, %v1191, %v4365
      %v4534 = vsel %vm407, %v1235, %v4367
      %v4535 = vsel %vm407, %v1238, %v4369
      %v4536 = vsel %vm407, %v1282, %v4371
      %v4537 = vsel %vm407, %v1285, %v4373
      %v4538 = vsel %vm407, %v1329, %v4375
      %v4539 = vsel %vm407, %v1332, %v4377
      %v4540 = vsel %vm407, %v1376, %v4379
      %v4541 = vsel %vm407, %v1379, %v4381
      %v4542 = vsel %vm821, %v4526, %v4415
      %v4543 = vsel %vm821, %v4527, %v4417
      %v4544 = vsel %vm821, %v4528, %v4419
      %v4545 = vsel %vm821, %v4529, %v4421
      %v4546 = vsel %vm821, %v4530, %v4423
      %v4547 = vsel %vm821, %v4531, %v4425
      %v4548 = vsel %vm821, %v4532, %v4427
      %v4549 = vsel %vm821, %v4533, %v4429
      %v4550 = vsel %vm821, %v4534, %v4431
      %v4551 = vsel %vm821, %v4535, %v4433
      %v4552 = vsel %vm821, %v4536, %v4435
      %v4553 = vsel %vm821, %v4537, %v4437
      %v4554 = vsel %vm821, %v4538, %v4439
      %v4555 = vsel %vm821, %v4539, %v4441
      %v4556 = vsel %vm821, %v4540, %v4443
      %v4557 = vsel %vm821, %v4541, %v4445
      %vm4558 = vcmask 195584
      %v4559 = vsel %vm4558, %v4542, %v4479
      %v4560 = vsel %vm4558, %v4543, %v4481
      %v4561 = vsel %vm4558, %v4544, %v4483
      %v4562 = vsel %vm4558, %v4545, %v4485
      %v4563 = vsel %vm4558, %v4546, %v4487
      %v4564 = vsel %vm4558, %v4547, %v4489
      %v4565 = vsel %vm4558, %v4548, %v4491
      %v4566 = vsel %vm4558, %v4549, %v4493
      %v4567 = vsel %vm4558, %v4550, %v4495
      %v4568 = vsel %vm4558, %v4551, %v4497
      %v4569 = vsel %vm4558, %v4552, %v4499
      %v4570 = vsel %vm4558, %v4553, %v4501
      %v4571 = vsel %vm4558, %v4554, %v4503
      %v4572 = vsel %vm4558, %v4555, %v4505
      %v4573 = vsel %vm4558, %v4556, %v4507
      %v4574 = vsel %vm4558, %v4557, %v4509
      %v4575 = vld [vmem:[%s3] sm:$0x1]
      %v4576 = vld [vmem:[%s3 + $0x1] sm:$0x1]
      %v4577 = vpack.c.bf16 %v4560, %v4559
      %v4578 = vpack.c.bf16 %v4562, %v4561
      %v4579 = vpack.c.bf16 %v4564, %v4563
      %v4580 = vpack.c.bf16 %v4566, %v4565
      %v4581 = vpack.c.bf16 %v4568, %v4567
      %v4582 = vpack.c.bf16 %v4570, %v4569
      %v4583 = vpack.c.bf16 %v4572, %v4571
      %v4584 = vpack.c.bf16 %v4574, %v4573
      %v4585 = vld [vmem:[%s2] sm:$0xf]
      %v4586 = vld [vmem:[%s2 + $0x4] sm:$0xf]
      %v4587 = vld [vmem:[%s2 + $0x8] sm:$0xf]
      %v4588 = vld [vmem:[%s2 + $0xc] sm:$0xf]
      %v4589 = vlaneseq
      %v4590 = vshrl.u32 %v4589, 7
      %v4591 = vsub.s32 0, %v4590
      %v4592 = vrot.slane %v4575, %v4591
      %v4597 = vunpack.c.l.b16 %v4585
      %v4598 = vunpack.c.l.b16 %v4586
      %v4599 = vunpack.c.l.b16 %v4587
      %v4600 = vunpack.c.l.b16 %v4588
      %v4601 = vpack.c.b16 %v4598, %v4597
      %v4602 = vpack.c.b16 %v4600, %v4599
      %v4606 = vsel %vm274, %v4577, 0
      %v4609 = vsel %vm274, %v4578, 0
      %v4612 = vsel %vm274, %v4579, 0
      %v4615 = vsel %vm274, %v4580, 0
      %v4618 = vsel %vm274, %v4581, 0
      %v4621 = vsel %vm274, %v4582, 0
      %v4624 = vsel %vm274, %v4583, 0
      %v4627 = vsel %vm274, %v4584, 0
      %4629 = vmatprep.subr.bf16.mxu0 0
      %4630 = vmatpush1.bf16.msra.mxu0 %v4601
      %4631 = vmatprep.subr.bf16.mxu0 0
      %4632 = vmatpush1.bf16.msra.mxu0 %v4602
      %4633 = vmatprep.subr.bf16.mxu0 0
      %4634 = vmatpush1.bf16.msra.mxu0 0
      %4635 = vmatprep.subr.bf16.mxu0 0
      %4636 = vmatpush1.bf16.msra.mxu0 0
      %4637 = vmatprep.subr.bf16.mxu0 0
      %4638 = vmatpush1.bf16.msra.mxu0 0
      %4639 = vmatprep.subr.bf16.mxu0 0
      %4640 = vmatpush1.bf16.msra.mxu0 0
      %4641 = vmatprep.subr.bf16.mxu0 0
      %4642 = vmatpush1.bf16.msra.mxu0 0
      %4643 = vmatprep.subr.bf16.mxu0 0
      %4644 = vmatpush1.bf16.msra.mxu0 0
      %4645 = vmatprep.subr.bf16.mxu0 0
      %4646 = vmatpush1.bf16.msra.mxu0 0
      %4647 = vmatprep.subr.bf16.mxu0 0
      %4648 = vmatpush1.bf16.msra.mxu0 0
      %4649 = vmatprep.subr.bf16.mxu0 0
      %4650 = vmatpush1.bf16.msra.mxu0 0
      %4651 = vmatprep.subr.bf16.mxu0 0
      %4652 = vmatpush1.bf16.msra.mxu0 0
      %4653 = vmatprep.subr.bf16.mxu0 0
      %4654 = vmatpush1.bf16.msra.mxu0 0
      %4655 = vmatprep.subr.bf16.mxu0 0
      %4656 = vmatpush1.bf16.msra.mxu0 0
      %4657 = vmatprep.subr.bf16.mxu0 0
      %4658 = vmatpush1.bf16.msra.mxu0 0
      %4659 = vmatprep.subr.bf16.mxu0 0
      %4660 = vmatpush1.bf16.msra.mxu0 0
      %4661 = vmatprep.mubr.bf16.mxu0 0
      %4662 = vmatmul.mubr.bf16.gmra.mrb[0].mxu0 %v4606
      %v4663 = vpop.f32.mrb[0].mxu0
      %v4664 = vadd.f32 %v4592, %v4663
      %v4665 = vpop.f32.mrb[0].mxu0
      %v4666 = vpop.f32.mrb[0].mxu0
      %v4667 = vadd.f32 %v4592, %v4666
      %v4668 = vpop.f32.mrb[0].mxu0
      %4669 = vmatprep.mubr.bf16.mxu0 0
      %4670 = vmatmul.mubr.bf16.gmra.mrb[0].mxu0 %v4609
      %v4671 = vpop.f32.mrb[0].mxu0
      %v4672 = vadd.f32 %v4592, %v4671
      %v4673 = vpop.f32.mrb[0].mxu0
      %v4674 = vpop.f32.mrb[0].mxu0
      %v4675 = vadd.f32 %v4592, %v4674
      %v4676 = vpop.f32.mrb[0].mxu0
      %4677 = vmatprep.mubr.bf16.mxu0 0
      %4678 = vmatmul.mubr.bf16.gmra.mrb[0].mxu0 %v4612
      %v4679 = vpop.f32.mrb[0].mxu0
      %v4680 = vadd.f32 %v4592, %v4679
      %v4681 = vpop.f32.mrb[0].mxu0
      %v4682 = vpop.f32.mrb[0].mxu0
      %v4683 = vadd.f32 %v4592, %v4682
      %v4684 = vpop.f32.mrb[0].mxu0
      %4685 = vmatprep.mubr.bf16.mxu0 0
      %4686 = vmatmul.mubr.bf16.gmra.mrb[0].mxu0 %v4615
      %v4687 = vpop.f32.mrb[0].mxu0
      %v4688 = vadd.f32 %v4592, %v4687
      %v4689 = vpop.f32.mrb[0].mxu0
      %v4690 = vpop.f32.mrb[0].mxu0
      %v4691 = vadd.f32 %v4592, %v4690
      %v4692 = vpop.f32.mrb[0].mxu0
      %4693 = vmatprep.mubr.bf16.mxu0 0
      %4694 = vmatmul.mubr.bf16.gmra.mrb[0].mxu0 %v4618
      %v4695 = vpop.f32.mrb[0].mxu0
      %v4696 = vadd.f32 %v4592, %v4695
      %v4697 = vpop.f32.mrb[0].mxu0
      %v4698 = vpop.f32.mrb[0].mxu0
      %v4699 = vadd.f32 %v4592, %v4698
      %v4700 = vpop.f32.mrb[0].mxu0
      %4701 = vmatprep.mubr.bf16.mxu0 0
      %4702 = vmatmul.mubr.bf16.gmra.mrb[0].mxu0 %v4621
      %v4703 = vpop.f32.mrb[0].mxu0
      %v4704 = vadd.f32 %v4592, %v4703
      %v4705 = vpop.f32.mrb[0].mxu0
      %v4706 = vpop.f32.mrb[0].mxu0
      %v4707 = vadd.f32 %v4592, %v4706
      %v4708 = vpop.f32.mrb[0].mxu0
      %4709 = vmatprep.mubr.bf16.mxu0 0
      %4710 = vmatmul.mubr.bf16.gmra.mrb[0].mxu0 %v4624
      %v4711 = vpop.f32.mrb[0].mxu0
      %v4712 = vadd.f32 %v4592, %v4711
      %v4713 = vpop.f32.mrb[0].mxu0
      %v4714 = vpop.f32.mrb[0].mxu0
      %v4715 = vadd.f32 %v4592, %v4714
      %v4716 = vpop.f32.mrb[0].mxu0
      %4717 = vmatprep.mubr.bf16.mxu0 0
      %4718 = vmatmul.mubr.bf16.gmra.mrb[0].mxu0 %v4627
      %v4719 = vpop.f32.mrb[0].mxu0
      %v4720 = vadd.f32 %v4592, %v4719
      %v4721 = vpop.f32.mrb[0].mxu0
      %v4722 = vpop.f32.mrb[0].mxu0
      %v4723 = vadd.f32 %v4592, %v4722
      %v4724 = vpop.f32.mrb[0].mxu0
      %4725 = vdwg.mxu0
      %v4726 = vtanh.pop %v4664
      %v4727 = vtanh.pop %v4667
      %v4728 = vtanh.pop %v4672
      %v4729 = vtanh.pop %v4675
      %v4730 = vtanh.pop %v4680
      %v4731 = vtanh.pop %v4683
      %v4732 = vtanh.pop %v4688
      %v4733 = vtanh.pop %v4691
      %v4734 = vtanh.pop %v4696
      %v4735 = vtanh.pop %v4699
      %v4736 = vtanh.pop %v4704
      %v4737 = vtanh.pop %v4707
      %v4738 = vtanh.pop %v4712
      %v4739 = vtanh.pop %v4715
      %v4740 = vtanh.pop %v4720
      %v4741 = vtanh.pop %v4723
      %v4742 = vlaneseq
      %v4743 = vshrl.u32 %v4742, 7
      %v4744 = vsub.s32 0, %v4743
      %v4745 = vrot.slane %v4576, %v4744
      %v4746 = vmul.f32 %v4726, %v4745
      %v4747 = vmul.f32 %v4727, %v4745
      %v4748 = vmul.f32 %v4728, %v4745
      %v4749 = vmul.f32 %v4729, %v4745
      %v4750 = vmul.f32 %v4730, %v4745
      %v4751 = vmul.f32 %v4731, %v4745
      %v4752 = vmul.f32 %v4732, %v4745
      %v4753 = vmul.f32 %v4733, %v4745
      %v4754 = vmul.f32 %v4734, %v4745
      %v4755 = vmul.f32 %v4735, %v4745
      %v4756 = vmul.f32 %v4736, %v4745
      %v4757 = vmul.f32 %v4737, %v4745
      %v4758 = vmul.f32 %v4738, %v4745
      %v4759 = vmul.f32 %v4739, %v4745
      %v4760 = vmul.f32 %v4740, %v4745
      %v4761 = vmul.f32 %v4741, %v4745
      %v4762 = vsel %vm274, %v4746, 0.0
      %4763 = vadd.xlane.f32.xlu0 %v4762
      %v4764 = vpop.xlane.xlu0 %4763
      %v4765 = vsel %vm274, %v4747, 0.0
      %4766 = vadd.xlane.f32.xlu0 %v4765
      %v4767 = vpop.xlane.xlu0 %4766
      %v4768 = vsel %vm274, %v4748, 0.0
      %4769 = vadd.xlane.f32.xlu0 %v4768
      %v4770 = vpop.xlane.xlu0 %4769
      %v4771 = vsel %vm274, %v4749, 0.0
      %4772 = vadd.xlane.f32.xlu0 %v4771
      %v4773 = vpop.xlane.xlu0 %4772
      %v4774 = vsel %vm274, %v4750, 0.0
      %4775 = vadd.xlane.f32.xlu0 %v4774
      %v4776 = vpop.xlane.xlu0 %4775
      %v4777 = vsel %vm274, %v4751, 0.0
      %4778 = vadd.xlane.f32.xlu0 %v4777
      %v4779 = vpop.xlane.xlu0 %4778
      %v4780 = vsel %vm274, %v4752, 0.0
      %4781 = vadd.xlane.f32.xlu0 %v4780
      %v4782 = vpop.xlane.xlu0 %4781
      %v4783 = vsel %vm274, %v4753, 0.0
      %4784 = vadd.xlane.f32.xlu0 %v4783
      %v4785 = vpop.xlane.xlu0 %4784
      %v4786 = vsel %vm274, %v4754, 0.0
      %4787 = vadd.xlane.f32.xlu0 %v4786
      %v4788 = vpop.xlane.xlu0 %4787
      %v4789 = vsel %vm274, %v4755, 0.0
      %4790 = vadd.xlane.f32.xlu0 %v4789
      %v4791 = vpop.xlane.xlu0 %4790
      %v4792 = vsel %vm274, %v4756, 0.0
      %4793 = vadd.xlane.f32.xlu0 %v4792
      %v4794 = vpop.xlane.xlu0 %4793
      %v4795 = vsel %vm274, %v4757, 0.0
      %4796 = vadd.xlane.f32.xlu0 %v4795
      %v4797 = vpop.xlane.xlu0 %4796
      %v4798 = vsel %vm274, %v4758, 0.0
      %4799 = vadd.xlane.f32.xlu0 %v4798
      %v4800 = vpop.xlane.xlu0 %4799
      %v4801 = vsel %vm274, %v4759, 0.0
      %4802 = vadd.xlane.f32.xlu0 %v4801
      %v4803 = vpop.xlane.xlu0 %4802
      %v4804 = vsel %vm274, %v4760, 0.0
      %4805 = vadd.xlane.f32.xlu0 %v4804
      %v4806 = vpop.xlane.xlu0 %4805
      %v4807 = vsel %vm274, %v4761, 0.0
      %4808 = vadd.xlane.f32.xlu0 %v4807
      %v4809 = vpop.xlane.xlu0 %4808
      %v4826 = vlaneseq
      %v4827 = vand.u32 %v4826, 127
      %v4828 = vlaneseq
      %v4829 = vshrl.u32 %v4828, 7
      %v4830 = vsub.s32 %v4827, %v4829
      %v4831 = vrot.slane %v4764, %v4830
      %v4832 = vadd.s32 %v4827, 4294967288
      %v4833 = vlaneseq
      %v4834 = vshrl.u32 %v4833, 7
      %v4835 = vsub.s32 %v4832, %v4834
      %v4836 = vrot.slane %v4767, %v4835
      %vm4837 = vcmask 130112
      %v4838 = vsel %vm4837, %v4836, %v4831
      %v4839 = vlaneseq
      %v4840 = vshrl.u32 %v4839, 7
      %v4841 = vsub.s32 %v4827, %v4840
      %v4842 = vrot.slane %v4770, %v4841
      %v4843 = vlaneseq
      %v4844 = vshrl.u32 %v4843, 7
      %v4845 = vsub.s32 %v4832, %v4844
      %v4846 = vrot.slane %v4773, %v4845
      %v4847 = vsel %vm4837, %v4846, %v4842
      %v4848 = vlaneseq
      %v4849 = vshrl.u32 %v4848, 7
      %v4850 = vsub.s32 %v4827, %v4849
      %v4851 = vrot.slane %v4776, %v4850
      %v4852 = vlaneseq
      %v4853 = vshrl.u32 %v4852, 7
      %v4854 = vsub.s32 %v4832, %v4853
      %v4855 = vrot.slane %v4779, %v4854
      %v4856 = vsel %vm4837, %v4855, %v4851
      %v4857 = vlaneseq
      %v4858 = vshrl.u32 %v4857, 7
      %v4859 = vsub.s32 %v4827, %v4858
      %v4860 = vrot.slane %v4782, %v4859
      %v4861 = vlaneseq
      %v4862 = vshrl.u32 %v4861, 7
      %v4863 = vsub.s32 %v4832, %v4862
      %v4864 = vrot.slane %v4785, %v4863
      %v4865 = vsel %vm4837, %v4864, %v4860
      %v4866 = vlaneseq
      %v4867 = vshrl.u32 %v4866, 7
      %v4868 = vsub.s32 %v4827, %v4867
      %v4869 = vrot.slane %v4788, %v4868
      %v4870 = vlaneseq
      %v4871 = vshrl.u32 %v4870, 7
      %v4872 = vsub.s32 %v4832, %v4871
      %v4873 = vrot.slane %v4791, %v4872
      %v4874 = vsel %vm4837, %v4873, %v4869
      %v4875 = vlaneseq
      %v4876 = vshrl.u32 %v4875, 7
      %v4877 = vsub.s32 %v4827, %v4876
      %v4878 = vrot.slane %v4794, %v4877
      %v4879 = vlaneseq
      %v4880 = vshrl.u32 %v4879, 7
      %v4881 = vsub.s32 %v4832, %v4880
      %v4882 = vrot.slane %v4797, %v4881
      %v4883 = vsel %vm4837, %v4882, %v4878
      %v4884 = vlaneseq
      %v4885 = vshrl.u32 %v4884, 7
      %v4886 = vsub.s32 %v4827, %v4885
      %v4887 = vrot.slane %v4800, %v4886
      %v4888 = vlaneseq
      %v4889 = vshrl.u32 %v4888, 7
      %v4890 = vsub.s32 %v4832, %v4889
      %v4891 = vrot.slane %v4803, %v4890
      %v4892 = vsel %vm4837, %v4891, %v4887
      %v4893 = vlaneseq
      %v4894 = vshrl.u32 %v4893, 7
      %v4895 = vsub.s32 %v4827, %v4894
      %v4896 = vrot.slane %v4806, %v4895
      %v4897 = vlaneseq
      %v4898 = vshrl.u32 %v4897, 7
      %v4899 = vsub.s32 %v4832, %v4898
      %v4900 = vrot.slane %v4809, %v4899
      %v4901 = vsel %vm4837, %v4900, %v4896
      %vm4902 = vcmask 1041409
      %v4903 = vsel %vm4902, %v4847, %v4838
      %vm4904 = vcmask 1042434
      %v4905 = vsel %vm4904, %v4856, %v4903
      %vm4906 = vcmask 1043459
      %v4907 = vsel %vm4906, %v4865, %v4905
      %vm4908 = vcmask 1044484
      %v4909 = vsel %vm4908, %v4874, %v4907
      %vm4910 = vcmask 1045509
      %v4911 = vsel %vm4910, %v4883, %v4909
      %vm4912 = vcmask 1046534
      %v4913 = vsel %vm4912, %v4892, %v4911
      %vm4914 = vcmask 1047559
      %v4915 = vsel %vm4914, %v4901, %v4913
      %v4917 = vsel %vm821, %v4915, -inf
      %4918 = vmax.xlane.f32.xlu0 %v4917
      %v4919 = vpop.xlane.xlu0 %4918
      %v4921 = vlaneseq
      %v4922 = vshrl.u32 %v4921, 7
      %v4923 = vsub.s32 0, %v4922
      %v4924 = vrot.slane %v4919, %v4923
      %v4925 = vlaneseq
      %v4926 = vshrl.u32 %v4925, 7
      %v4927 = vsub.s32 1, %v4926
      %v4928 = vrot.slane %v4919, %v4927
      %v4929 = vlaneseq
      %v4930 = vshrl.u32 %v4929, 7
      %v4931 = vsub.s32 2, %v4930
      %v4932 = vrot.slane %v4919, %v4931
      %v4933 = vlaneseq
      %v4934 = vshrl.u32 %v4933, 7
      %v4935 = vsub.s32 3, %v4934
      %v4936 = vrot.slane %v4919, %v4935
      %v4937 = vlaneseq
      %v4938 = vshrl.u32 %v4937, 7
      %v4939 = vsub.s32 4, %v4938
      %v4940 = vrot.slane %v4919, %v4939
      %v4941 = vlaneseq
      %v4942 = vshrl.u32 %v4941, 7
      %v4943 = vsub.s32 5, %v4942
      %v4944 = vrot.slane %v4919, %v4943
      %v4945 = vlaneseq
      %v4946 = vshrl.u32 %v4945, 7
      %v4947 = vsub.s32 6, %v4946
      %v4948 = vrot.slane %v4919, %v4947
      %v4949 = vlaneseq
      %v4950 = vshrl.u32 %v4949, 7
      %v4951 = vsub.s32 7, %v4950
      %v4952 = vrot.slane %v4919, %v4951
      %v4961 = vsub.f32 %v4764, %v4924
      %v4962 = vsub.f32 %v4767, %v4924
      %v4963 = vsub.f32 %v4770, %v4928
      %v4964 = vsub.f32 %v4773, %v4928
      %v4965 = vsub.f32 %v4776, %v4932
      %v4966 = vsub.f32 %v4779, %v4932
      %v4967 = vsub.f32 %v4782, %v4936
      %v4968 = vsub.f32 %v4785, %v4936
      %v4969 = vsub.f32 %v4788, %v4940
      %v4970 = vsub.f32 %v4791, %v4940
      %v4971 = vsub.f32 %v4794, %v4944
      %v4972 = vsub.f32 %v4797, %v4944
      %v4973 = vsub.f32 %v4800, %v4948
      %v4974 = vsub.f32 %v4803, %v4948
      %v4975 = vsub.f32 %v4806, %v4952
      %v4976 = vsub.f32 %v4809, %v4952
      %v4977 = vmul.f32 %v4961, 1.442695
      %v4978 = vpow.pop %v4977
      %v4979 = vmul.f32 %v4962, 1.442695
      %v4980 = vpow.pop %v4979
      %v4981 = vmul.f32 %v4963, 1.442695
      %v4982 = vpow.pop %v4981
      %v4983 = vmul.f32 %v4964, 1.442695
      %v4984 = vpow.pop %v4983
      %v4985 = vmul.f32 %v4965, 1.442695
      %v4986 = vpow.pop %v4985
      %v4987 = vmul.f32 %v4966, 1.442695
      %v4988 = vpow.pop %v4987
      %v4989 = vmul.f32 %v4967, 1.442695
      %v4990 = vpow.pop %v4989
      %v4991 = vmul.f32 %v4968, 1.442695
      %v4992 = vpow.pop %v4991
      %v4993 = vmul.f32 %v4969, 1.442695
      %v4994 = vpow.pop %v4993
      %v4995 = vmul.f32 %v4970, 1.442695
      %v4996 = vpow.pop %v4995
      %v4997 = vmul.f32 %v4971, 1.442695
      %v4998 = vpow.pop %v4997
      %v4999 = vmul.f32 %v4972, 1.442695
      %v5000 = vpow.pop %v4999
      %v5001 = vmul.f32 %v4973, 1.442695
      %v5002 = vpow.pop %v5001
      %v5003 = vmul.f32 %v4974, 1.442695
      %v5004 = vpow.pop %v5003
      %v5005 = vmul.f32 %v4975, 1.442695
      %v5006 = vpow.pop %v5005
      %v5007 = vmul.f32 %v4976, 1.442695
      %v5008 = vpow.pop %v5007
      %5025 = vset.pattern.permute.xlu0 0
      %5026 = vperm.xlu0 %5025, %v4978
      %v5027 = vpop.permute.xlu0 %5026
      %5028 = vset.pattern.permute.xlu0 0
      %5029 = vperm.xlu0 %5028, %v4980
      %v5030 = vpop.permute.xlu0 %5029
      %5031 = vset.pattern.permute.xlu0 0
      %5032 = vperm.xlu0 %5031, %v4982
      %v5033 = vpop.permute.xlu0 %5032
      %5034 = vset.pattern.permute.xlu0 0
      %5035 = vperm.xlu0 %5034, %v4984
      %v5036 = vpop.permute.xlu0 %5035
      %5037 = vset.pattern.permute.xlu0 0
      %5038 = vperm.xlu0 %5037, %v4986
      %v5039 = vpop.permute.xlu0 %5038
      %5040 = vset.pattern.permute.xlu0 0
      %5041 = vperm.xlu0 %5040, %v4988
      %v5042 = vpop.permute.xlu0 %5041
      %5043 = vset.pattern.permute.xlu0 0
      %5044 = vperm.xlu0 %5043, %v4990
      %v5045 = vpop.permute.xlu0 %5044
      %5046 = vset.pattern.permute.xlu0 0
      %5047 = vperm.xlu0 %5046, %v4992
      %v5048 = vpop.permute.xlu0 %5047
      %5049 = vset.pattern.permute.xlu0 0
      %5050 = vperm.xlu0 %5049, %v4994
      %v5051 = vpop.permute.xlu0 %5050
      %5052 = vset.pattern.permute.xlu0 0
      %5053 = vperm.xlu0 %5052, %v4996
      %v5054 = vpop.permute.xlu0 %5053
      %5055 = vset.pattern.permute.xlu0 0
      %5056 = vperm.xlu0 %5055, %v4998
      %v5057 = vpop.permute.xlu0 %5056
      %5058 = vset.pattern.permute.xlu0 0
      %5059 = vperm.xlu0 %5058, %v5000
      %v5060 = vpop.permute.xlu0 %5059
      %5061 = vset.pattern.permute.xlu0 0
      %5062 = vperm.xlu0 %5061, %v5002
      %v5063 = vpop.permute.xlu0 %5062
      %5064 = vset.pattern.permute.xlu0 0
      %5065 = vperm.xlu0 %5064, %v5004
      %v5066 = vpop.permute.xlu0 %5065
      %5067 = vset.pattern.permute.xlu0 0
      %5068 = vperm.xlu0 %5067, %v5006
      %v5069 = vpop.permute.xlu0 %5068
      %5070 = vset.pattern.permute.xlu0 0
      %5071 = vperm.xlu0 %5070, %v5008
      %v5072 = vpop.permute.xlu0 %5071
      %v5073 = vlaneseq
      %v5074 = vshrl.u32 %v5073, 7
      %v5075 = vsub.s32 %v4827, %v5074
      %v5076 = vrot.slane %v5027, %v5075
      %v5077 = vlaneseq
      %v5078 = vshrl.u32 %v5077, 7
      %v5079 = vsub.s32 %v4832, %v5078
      %v5080 = vrot.slane %v5030, %v5079
      %v5081 = vsel %vm4837, %v5080, %v5076
      %v5082 = vlaneseq
      %v5083 = vshrl.u32 %v5082, 7
      %v5084 = vsub.s32 %v4827, %v5083
      %v5085 = vrot.slane %v5033, %v5084
      %v5086 = vlaneseq
      %v5087 = vshrl.u32 %v5086, 7
      %v5088 = vsub.s32 %v4832, %v5087
      %v5089 = vrot.slane %v5036, %v5088
      %v5090 = vsel %vm4837, %v5089, %v5085
      %v5091 = vlaneseq
      %v5092 = vshrl.u32 %v5091, 7
      %v5093 = vsub.s32 %v4827, %v5092
      %v5094 = vrot.slane %v5039, %v5093
      %v5095 = vlaneseq
      %v5096 = vshrl.u32 %v5095, 7
      %v5097 = vsub.s32 %v4832, %v5096
      %v5098 = vrot.slane %v5042, %v5097
      %v5099 = vsel %vm4837, %v5098, %v5094
      %v5100 = vlaneseq
      %v5101 = vshrl.u32 %v5100, 7
      %v5102 = vsub.s32 %v4827, %v5101
      %v5103 = vrot.slane %v5045, %v5102
      %v5104 = vlaneseq
      %v5105 = vshrl.u32 %v5104, 7
      %v5106 = vsub.s32 %v4832, %v5105
      %v5107 = vrot.slane %v5048, %v5106
      %v5108 = vsel %vm4837, %v5107, %v5103
      %v5109 = vlaneseq
      %v5110 = vshrl.u32 %v5109, 7
      %v5111 = vsub.s32 %v4827, %v5110
      %v5112 = vrot.slane %v5051, %v5111
      %v5113 = vlaneseq
      %v5114 = vshrl.u32 %v5113, 7
      %v5115 = vsub.s32 %v4832, %v5114
      %v5116 = vrot.slane %v5054, %v5115
      %v5117 = vsel %vm4837, %v5116, %v5112
      %v5118 = vlaneseq
      %v5119 = vshrl.u32 %v5118, 7
      %v5120 = vsub.s32 %v4827, %v5119
      %v5121 = vrot.slane %v5057, %v5120
      %v5122 = vlaneseq
      %v5123 = vshrl.u32 %v5122, 7
      %v5124 = vsub.s32 %v4832, %v5123
      %v5125 = vrot.slane %v5060, %v5124
      %v5126 = vsel %vm4837, %v5125, %v5121
      %v5127 = vlaneseq
      %v5128 = vshrl.u32 %v5127, 7
      %v5129 = vsub.s32 %v4827, %v5128
      %v5130 = vrot.slane %v5063, %v5129
      %v5131 = vlaneseq
      %v5132 = vshrl.u32 %v5131, 7
      %v5133 = vsub.s32 %v4832, %v5132
      %v5134 = vrot.slane %v5066, %v5133
      %v5135 = vsel %vm4837, %v5134, %v5130
      %v5136 = vlaneseq
      %v5137 = vshrl.u32 %v5136, 7
      %v5138 = vsub.s32 %v4827, %v5137
      %v5139 = vrot.slane %v5069, %v5138
      %v5140 = vlaneseq
      %v5141 = vshrl.u32 %v5140, 7
      %v5142 = vsub.s32 %v4832, %v5141
      %v5143 = vrot.slane %v5072, %v5142
      %v5144 = vsel %vm4837, %v5143, %v5139
      %v5145 = vsel %vm4902, %v5090, %v5081
      %v5146 = vsel %vm4904, %v5099, %v5145
      %v5147 = vsel %vm4906, %v5108, %v5146
      %v5148 = vsel %vm4908, %v5117, %v5147
      %v5149 = vsel %vm4910, %v5126, %v5148
      %v5150 = vsel %vm4912, %v5135, %v5149
      %v5151 = vsel %vm4914, %v5144, %v5150
      %v5153 = vsel %vm821, %v5151, 0.0
      %5154 = vadd.xlane.f32.xlu0 %v5153
      %v5155 = vpop.xlane.xlu0 %5154
      %v5157 = vlaneseq
      %v5158 = vshrl.u32 %v5157, 7
      %v5159 = vsub.s32 0, %v5158
      %v5160 = vrot.slane %v5155, %v5159
      %v5161 = vlaneseq
      %v5162 = vshrl.u32 %v5161, 7
      %v5163 = vsub.s32 1, %v5162
      %v5164 = vrot.slane %v5155, %v5163
      %v5165 = vlaneseq
      %v5166 = vshrl.u32 %v5165, 7
      %v5167 = vsub.s32 2, %v5166
      %v5168 = vrot.slane %v5155, %v5167
      %v5169 = vlaneseq
      %v5170 = vshrl.u32 %v5169, 7
      %v5171 = vsub.s32 3, %v5170
      %v5172 = vrot.slane %v5155, %v5171
      %v5173 = vlaneseq
      %v5174 = vshrl.u32 %v5173, 7
      %v5175 = vsub.s32 4, %v5174
      %v5176 = vrot.slane %v5155, %v5175
      %v5177 = vlaneseq
      %v5178 = vshrl.u32 %v5177, 7
      %v5179 = vsub.s32 5, %v5178
      %v5180 = vrot.slane %v5155, %v5179
      %v5181 = vlaneseq
      %v5182 = vshrl.u32 %v5181, 7
      %v5183 = vsub.s32 6, %v5182
      %v5184 = vrot.slane %v5155, %v5183
      %v5185 = vlaneseq
      %v5186 = vshrl.u32 %v5185, 7
      %v5187 = vsub.s32 7, %v5186
      %v5188 = vrot.slane %v5155, %v5187
      %v5197 = vrcp.pop %v5160
      %v5198 = vmul.f32 %v4978, %v5197
      %v5199 = vmul.f32 %v4980, %v5197
      %v5200 = vrcp.pop %v5164
      %v5201 = vmul.f32 %v4982, %v5200
      %v5202 = vmul.f32 %v4984, %v5200
      %v5203 = vrcp.pop %v5168
      %v5204 = vmul.f32 %v4986, %v5203
      %v5205 = vmul.f32 %v4988, %v5203
      %v5206 = vrcp.pop %v5172
      %v5207 = vmul.f32 %v4990, %v5206
      %v5208 = vmul.f32 %v4992, %v5206
      %v5209 = vrcp.pop %v5176
      %v5210 = vmul.f32 %v4994, %v5209
      %v5211 = vmul.f32 %v4996, %v5209
      %v5212 = vrcp.pop %v5180
      %v5213 = vmul.f32 %v4998, %v5212
      %v5214 = vmul.f32 %v5000, %v5212
      %v5215 = vrcp.pop %v5184
      %v5216 = vmul.f32 %v5002, %v5215
      %v5217 = vmul.f32 %v5004, %v5215
      %v5218 = vrcp.pop %v5188
      %v5219 = vmul.f32 %v5006, %v5218
      %v5220 = vmul.f32 %v5008, %v5218
      %5222 = vset.pattern.permute.xlu0 0
      %5223 = vperm.xlu0 %5222, %v5198
      %v5224 = vpop.permute.xlu0 %5223
      %5227 = vset.pattern.permute.xlu0 0
      %5228 = vperm.xlu0 %5227, %v5199
      %v5229 = vpop.permute.xlu0 %5228
      %5232 = vset.pattern.permute.xlu0 0
      %5233 = vperm.xlu0 %5232, %v5201
      %v5234 = vpop.permute.xlu0 %5233
      %5237 = vset.pattern.permute.xlu0 0
      %5238 = vperm.xlu0 %5237, %v5202
      %v5239 = vpop.permute.xlu0 %5238
      %5242 = vset.pattern.permute.xlu0 0
      %5243 = vperm.xlu0 %5242, %v5204
      %v5244 = vpop.permute.xlu0 %5243
      %5247 = vset.pattern.permute.xlu0 0
      %5248 = vperm.xlu0 %5247, %v5205
      %v5249 = vpop.permute.xlu0 %5248
      %5252 = vset.pattern.permute.xlu0 0
      %5253 = vperm.xlu0 %5252, %v5207
      %v5254 = vpop.permute.xlu0 %5253
      %5257 = vset.pattern.permute.xlu0 0
      %5258 = vperm.xlu0 %5257, %v5208
      %v5259 = vpop.permute.xlu0 %5258
      %5262 = vset.pattern.permute.xlu0 0
      %5263 = vperm.xlu0 %5262, %v5210
      %v5264 = vpop.permute.xlu0 %5263
      %5267 = vset.pattern.permute.xlu0 0
      %5268 = vperm.xlu0 %5267, %v5211
      %v5269 = vpop.permute.xlu0 %5268
      %5272 = vset.pattern.permute.xlu0 0
      %5273 = vperm.xlu0 %5272, %v5213
      %v5274 = vpop.permute.xlu0 %5273
      %5277 = vset.pattern.permute.xlu0 0
      %5278 = vperm.xlu0 %5277, %v5214
      %v5279 = vpop.permute.xlu0 %5278
      %5282 = vset.pattern.permute.xlu0 0
      %5283 = vperm.xlu0 %5282, %v5216
      %v5284 = vpop.permute.xlu0 %5283
      %5287 = vset.pattern.permute.xlu0 0
      %5288 = vperm.xlu0 %5287, %v5217
      %v5289 = vpop.permute.xlu0 %5288
      %5292 = vset.pattern.permute.xlu0 0
      %5293 = vperm.xlu0 %5292, %v5219
      %v5294 = vpop.permute.xlu0 %5293
      %5297 = vset.pattern.permute.xlu0 0
      %5298 = vperm.xlu0 %5297, %v5220
      %v5299 = vpop.permute.xlu0 %5298
      %v5301 = vmul.f32 %v5224, %v4559
      %v5302 = vmul.f32 %v5229, %v4560
      %v5303 = vmul.f32 %v5234, %v4561
      %v5304 = vmul.f32 %v5239, %v4562
      %v5305 = vmul.f32 %v5244, %v4563
      %v5306 = vmul.f32 %v5249, %v4564
      %v5307 = vmul.f32 %v5254, %v4565
      %v5308 = vmul.f32 %v5259, %v4566
      %v5309 = vmul.f32 %v5264, %v4567
      %v5310 = vmul.f32 %v5269, %v4568
      %v5311 = vmul.f32 %v5274, %v4569
      %v5312 = vmul.f32 %v5279, %v4570
      %v5313 = vmul.f32 %v5284, %v4571
      %v5314 = vmul.f32 %v5289, %v4572
      %v5315 = vmul.f32 %v5294, %v4573
      %v5316 = vmul.f32 %v5299, %v4574
      %v5317 = vsel %vm274, %v5301, 0.0
      %v5318 = vsel %vm274, %v5302, 0.0
      %v5319 = vadd.f32 %v5317, %v5318
      %v5320 = vrot.slane %v5319, 4
      %v5321 = vadd.f32 %v5319, %v5320
      %v5322 = vrot.slane %v5321, 2
      %v5323 = vadd.f32 %v5321, %v5322
      %v5324 = vrot.slane %v5323, 1
      %v5325 = vadd.f32 %v5323, %v5324
      %v5326 = vsel %vm274, %v5303, 0.0
      %v5327 = vsel %vm274, %v5304, 0.0
      %v5328 = vadd.f32 %v5326, %v5327
      %v5329 = vrot.slane %v5328, 4
      %v5330 = vadd.f32 %v5328, %v5329
      %v5331 = vrot.slane %v5330, 2
      %v5332 = vadd.f32 %v5330, %v5331
      %v5333 = vrot.slane %v5332, 1
      %v5334 = vadd.f32 %v5332, %v5333
      %v5335 = vsel %vm274, %v5305, 0.0
      %v5336 = vsel %vm274, %v5306, 0.0
      %v5337 = vadd.f32 %v5335, %v5336
      %v5338 = vrot.slane %v5337, 4
      %v5339 = vadd.f32 %v5337, %v5338
      %v5340 = vrot.slane %v5339, 2
      %v5341 = vadd.f32 %v5339, %v5340
      %v5342 = vrot.slane %v5341, 1
      %v5343 = vadd.f32 %v5341, %v5342
      %v5344 = vsel %vm274, %v5307, 0.0
      %v5345 = vsel %vm274, %v5308, 0.0
      %v5346 = vadd.f32 %v5344, %v5345
      %v5347 = vrot.slane %v5346, 4
      %v5348 = vadd.f32 %v5346, %v5347
      %v5349 = vrot.slane %v5348, 2
      %v5350 = vadd.f32 %v5348, %v5349
      %v5351 = vrot.slane %v5350, 1
      %v5352 = vadd.f32 %v5350, %v5351
      %v5353 = vsel %vm274, %v5309, 0.0
      %v5354 = vsel %vm274, %v5310, 0.0
      %v5355 = vadd.f32 %v5353, %v5354
      %v5356 = vrot.slane %v5355, 4
      %v5357 = vadd.f32 %v5355, %v5356
      %v5358 = vrot.slane %v5357, 2
      %v5359 = vadd.f32 %v5357, %v5358
      %v5360 = vrot.slane %v5359, 1
      %v5361 = vadd.f32 %v5359, %v5360
      %v5362 = vsel %vm274, %v5311, 0.0
      %v5363 = vsel %vm274, %v5312, 0.0
      %v5364 = vadd.f32 %v5362, %v5363
      %v5365 = vrot.slane %v5364, 4
      %v5366 = vadd.f32 %v5364, %v5365
      %v5367 = vrot.slane %v5366, 2
      %v5368 = vadd.f32 %v5366, %v5367
      %v5369 = vrot.slane %v5368, 1
      %v5370 = vadd.f32 %v5368, %v5369
      %v5371 = vsel %vm274, %v5313, 0.0
      %v5372 = vsel %vm274, %v5314, 0.0
      %v5373 = vadd.f32 %v5371, %v5372
      %v5374 = vrot.slane %v5373, 4
      %v5375 = vadd.f32 %v5373, %v5374
      %v5376 = vrot.slane %v5375, 2
      %v5377 = vadd.f32 %v5375, %v5376
      %v5378 = vrot.slane %v5377, 1
      %v5379 = vadd.f32 %v5377, %v5378
      %v5380 = vsel %vm274, %v5315, 0.0
      %v5381 = vsel %vm274, %v5316, 0.0
      %v5382 = vadd.f32 %v5380, %v5381
      %v5383 = vrot.slane %v5382, 4
      %v5384 = vadd.f32 %v5382, %v5383
      %v5385 = vrot.slane %v5384, 2
      %v5386 = vadd.f32 %v5384, %v5385
      %v5387 = vrot.slane %v5386, 1
      %v5388 = vadd.f32 %v5386, %v5387
      %v5397 = vsel %vm4902, %v5334, %v5325
      %v5398 = vsel %vm4904, %v5343, %v5397
      %v5399 = vsel %vm4906, %v5352, %v5398
      %v5400 = vsel %vm4908, %v5361, %v5399
      %v5401 = vsel %vm4910, %v5370, %v5400
      %v5402 = vsel %vm4912, %v5379, %v5401
      %v5403 = vsel %vm4914, %v5388, %v5402
      %5405 = vst.msk [vmem:[%s200] sm:$0xff] %vm274, %v5403
      %p5406 = scmp.lt.s32.totalorder %s15, 2
      %s5407 = scalar_select %p5406, %s15, 2
      %s5408 = smul.addr %s5407, 8
      %s5409 = scalar_lea.vmem %s4, %s5408
      // Predicated region
      $region37: #{caum_forward.2} parent=35 // pred_check
        %p5410 = pneg %p122
      $region38: #{caum_forward.2} parent=35 // pred_check_branch
        %5412 = sbr.rel (%p5410) target = $region40
      $region39: #{caum_forward.2} parent=35 // pred_region
        _
      $region40: #{caum_forward.2} parent=35 // pred_fallthru
        _
    $region36: #{caum_forward.2} parent=5 // pred_fallthru
      _
    %p5413 = scmp.le.s32.totalorder 2, %s10
    // Predicated region
    $region41: #{caum_forward.2} parent=5 // pred_check
      %p5414 = pneg %p5413
    $region42: #{caum_forward.2} parent=5 // pred_check_branch
      %5416 = sbr.rel (%p5414) target = $region44
    $region43: #{caum_forward.2} parent=5 // pred_region
      %s5417 = ssub.s32 %s10, 2
      // Predicated region
      $region45: #{caum_forward.2} parent=43 // pred_check
        %p5418 = pneg %p128
      $region46: #{caum_forward.2} parent=43 // pred_check_branch
        %5420 = sbr.rel (%p5418) target = $region48
      $region47: #{caum_forward.2} parent=43 // pred_region
        %p5421 = scmp.lt.s32.totalorder %s16, 2
        %s5422 = scalar_select %p5421, %s16, 2
        %s5423 = smul.addr %s5422, 8
        %s5424 = scalar_lea.vmem %s4, %s5423
      $region48: #{caum_forward.2} parent=43 // pred_fallthru
        _
    $region44: #{caum_forward.2} parent=5 // pred_fallthru
      _
  $region6: #{caum_forward.2} parent=0 // loop_footer
    %s14 = sadd.s32 1, %s10
  $region7: #{caum_forward.2} parent=0 // loop_footer_branch
    %9 = sbr.rel target = $region3
  $region8: #{caum_forward.2} parent=0 // loop_exit
    _

</llo_original>
